<compile_context>
chip_gen: v7x
topology: tpu7x:2x2x1
jax: 0.10.0
libtpu: 0.0.40
codegen_flags: <defaults>
</compile_context>

<pallas_src>
import functools

import jax
import jax.numpy as jnp
from jax import lax
from jax.experimental import pallas as pl
from jax.experimental.pallas import tpu as pltpu


def _round_up(x, m):
    return (x + m - 1) // m * m


# ---------------------------------------------------------------------------
# Pallas kernel: out[Cp, tm] = (W @ act(A)) + b      (full-K single block)
# ---------------------------------------------------------------------------
def _mm_kernel(w_ref, a_ref, b_ref, o_ref, *, act):
    a = a_ref[...]                                   # (Kp, tm) bf16
    if act == "relu":
        a = jnp.maximum(a, 0.0)
    elif act == "leaky":
        a = jnp.where(a > 0, a, a * 0.2)
    acc = jnp.dot(w_ref[...], a, preferred_element_type=jnp.float32)
    o_ref[...] = (acc + b_ref[...]).astype(o_ref.dtype)


def matmul_bias_act_t(A, Wp, Bp, act):
    """A: (K, M) patches; Wp: (Cp, Kp) bf16 prepacked; Bp: (Cp, 1) f32.

    Returns (Cp, Mp) f32 with Mp = round_up(M, 128); caller slices.
    """
    K, M = A.shape
    Cp, Kp = Wp.shape
    Mp = _round_up(M, 128)
    # Biggest lane tile that divides Mp (amortizes grid-step overhead on the
    # large layers, keeps >=2 parallel blocks for megacore on M=2048/3072).
    tm = 512 if Mp % 512 == 0 else (256 if Mp % 256 == 0 else 128)

    A = A.astype(jnp.bfloat16)
    if K != Kp or M != Mp:
        A = jnp.pad(A, ((0, Kp - K), (0, Mp - M)))   # zeros: act(0)=0, safe

    grid = (Mp // tm,)
    out = pl.pallas_call(
        functools.partial(_mm_kernel, act=act),
        out_shape=jax.ShapeDtypeStruct((Cp, Mp), jnp.float32),
        grid_spec=pltpu.PrefetchScalarGridSpec(
            num_scalar_prefetch=0,
            grid=grid,
            in_specs=[
                pl.BlockSpec((Cp, Kp), lambda i: (0, 0)),   # weights (resident)
                pl.BlockSpec((Kp, tm), lambda i: (0, i)),   # patches, full K
                pl.BlockSpec((Cp, 1), lambda i: (0, 0)),    # bias
            ],
            out_specs=pl.BlockSpec((Cp, tm), lambda i: (0, i)),
        ),
        compiler_params=pltpu.CompilerParams(
            dimension_semantics=("parallel",)),
    )(Wp, A, Bp)
    return out


# ---------------------------------------------------------------------------
# Conv3d / ConvTranspose3d via transposed im2col + Pallas matmul
# ---------------------------------------------------------------------------
def _im2col_t(x, ksize, stride, pad):
    """Patch matrix in (K, M) layout, rows ordered (cin, kd, kh, kw)."""
    x = x.astype(jnp.bfloat16)
    N, C, D, H, W = x.shape
    kd, kh, kw = ksize
    sd, sh, sw = stride
    pd, ph, pw = pad
    xp = jnp.pad(x, ((0, 0), (0, 0), (pd, pd), (ph, ph), (pw, pw)))
    Do = (D + 2 * pd - kd) // sd + 1
    Ho = (H + 2 * ph - kh) // sh + 1
    Wo = (W + 2 * pw - kw) // sw + 1
    cols = []
    for dz in range(kd):
        for dy in range(kh):
            for dx in range(kw):
                cols.append(xp[:, :, dz:dz + Do * sd:sd,
                               dy:dy + Ho * sh:sh,
                               dx:dx + Wo * sw:sw])
    cols = jnp.stack(cols, axis=0)            # (Ks, N, C, Do, Ho, Wo)
    cols = cols.transpose(2, 0, 1, 3, 4, 5)   # (C, Ks, N, Do, Ho, Wo)
    return cols.reshape(C * kd * kh * kw, N * Do * Ho * Wo), (Do, Ho, Wo)


def conv3d(x, wm, bm, cout, ksize, stride, pad, act):
    """wm: prepacked (Cp, Kp) bf16 weight matrix; bm: (Cp, 1) f32 bias."""
    patches, (Do, Ho, Wo) = _im2col_t(x, ksize, stride, pad)
    out = matmul_bias_act_t(patches, wm, bm, act)       # (Cp, Mp)
    N = x.shape[0]
    M = N * Do * Ho * Wo
    out = out[:cout, :M].reshape(cout, N, Do, Ho, Wo)
    return out.transpose(1, 0, 2, 3, 4)                 # (N, Cout, Do, Ho, Wo)


def conv_transpose3d(x, wm, bm, cout, ksize, stride, pad, act):
    """Weight was flipped/transposed to equivalent-conv form at init."""
    s = stride
    N, C, D, H, W = x.shape
    kd, kh, kw = ksize
    xd = jnp.zeros((N, C, (D - 1) * s + 1, (H - 1) * s + 1, (W - 1) * s + 1),
                   x.dtype)
    xd = xd.at[:, :, ::s, ::s, ::s].set(x)
    padc = (kd - 1 - pad[0], kh - 1 - pad[1], kw - 1 - pad[2])
    return conv3d(xd, wm, bm, cout, ksize, (1, 1, 1), padc, act)


# ---------------------------------------------------------------------------
# Plain-JAX glue ops
# ---------------------------------------------------------------------------
def batchnorm3d(x, gamma, beta, eps=1e-5):
    # Train-mode BatchNorm3d (batch statistics, biased variance), affine.
    mean = x.mean(axis=(0, 2, 3, 4), keepdims=True)
    var = x.var(axis=(0, 2, 3, 4), keepdims=True)
    xn = (x - mean) * lax.rsqrt(var + eps)
    return xn * gamma.reshape(1, -1, 1, 1, 1) + beta.reshape(1, -1, 1, 1, 1)


def maxpool_d(x, k):
    # nn.MaxPool3d(kernel_size=(k, 1, 1)): pool the depth axis only.
    N, C, D, H, W = x.shape
    Do = D // k
    return x[:, :, :Do * k].reshape(N, C, Do, k, H, W).max(axis=3)


def _up2x(x, axis):
    # x2 linear upsample along one axis, align_corners=False:
    #   out[2i]   = 0.25*x[i-1] + 0.75*x[i]   (clamped at the start)
    #   out[2i+1] = 0.75*x[i]   + 0.25*x[i+1] (clamped at the end)
    n = x.shape[axis]
    if n == 1:
        return jnp.concatenate([x, x], axis=axis)
    sl = lambda a, b: lax.slice_in_dim(x, a, b, axis=axis)
    prev = jnp.concatenate([sl(0, 1), sl(0, n - 1)], axis=axis)
    nxt = jnp.concatenate([sl(1, n), sl(n - 1, n)], axis=axis)
    even = 0.75 * x + 0.25 * prev
    odd = 0.75 * x + 0.25 * nxt
    out = jnp.stack([even, odd], axis=axis + 1)
    shape = list(x.shape)
    shape[axis] = 2 * n
    return out.reshape(shape)


def upsample_trilinear2x(x):
    x = _up2x(x, 2)
    x = _up2x(x, 3)
    x = _up2x(x, 4)
    return x


# ---------------------------------------------------------------------------
# Parameters (deterministic, synthetic), prepacked to matmul layout at init
# ---------------------------------------------------------------------------
def _prep_conv(w, b):
    """(Cout, Cin, kd, kh, kw) -> (Cp, Kp) bf16 matrix + (Cp, 1) f32 bias."""
    cout = w.shape[0]
    k = w.reshape(cout, -1)
    K = k.shape[1]
    Cp = _round_up(cout, 16)
    Kp = _round_up(K, 16)
    wm = jnp.zeros((Cp, Kp), jnp.bfloat16).at[:cout, :K].set(
        k.astype(jnp.bfloat16))
    bm = jnp.zeros((Cp, 1), jnp.float32).at[:cout, 0].set(
        b.astype(jnp.float32))
    return wm, bm


def init_params(key, channels=8, time_step=10):
    c = channels

    def conv_w(key, cout, cin, kd, kh, kw):
        k1, k2 = jax.random.split(key)
        w = jax.random.normal(k1, (cout, cin, kd, kh, kw), jnp.float32) * 0.05
        b = jax.random.normal(k2, (cout,), jnp.float32) * 0.01
        return w, b

    def bn_p(cout):
        return jnp.ones((cout,), jnp.float32), jnp.zeros((cout,), jnp.float32)

    keys = jax.random.split(key, 10)
    p = {}

    def add_conv(name, key, cout, cin, ks):
        w, b = conv_w(key, cout, cin, *ks)
        p[name + "_w"], p[name + "_b"] = _prep_conv(w, b)

    add_conv("l1", keys[0], c, time_step, (4, 4, 4))
    add_conv("l2", keys[1], 2 * c, c, (2, 4, 4))
    p["l2_g"], p["l2_be"] = bn_p(2 * c)
    add_conv("l3", keys[2], 2 * c, 2 * c, (2, 4, 4))
    p["l3_g"], p["l3_be"] = bn_p(2 * c)
    add_conv("l4", keys[3], 4 * c, 2 * c, (2, 5, 5))
    p["l4_g"], p["l4_be"] = bn_p(4 * c)
    add_conv("l5", keys[4], 8 * c, 4 * c, (2, 2, 4))
    add_conv("d5", keys[5], 4 * c, 8 * c, (2, 3, 3))
    p["d5_g"], p["d5_be"] = bn_p(4 * c)
    add_conv("d4", keys[6], 2 * c, 8 * c, (4, 3, 3))
    p["d4_g"], p["d4_be"] = bn_p(2 * c)
    add_conv("d3", keys[7], 2 * c, 4 * c, (4, 3, 3))
    p["d3_g"], p["d3_be"] = bn_p(2 * c)
    add_conv("d2", keys[8], c, 4 * c, (4, 3, 3))
    p["d2_g"], p["d2_be"] = bn_p(c)

    # dlayer1: ConvTranspose3d(2c, 1, (3,4,4), stride 2, pad 1): flip spatial
    # dims and swap in/out channels once here -> equivalent direct conv.
    k1, k2 = jax.random.split(keys[9])
    w = jax.random.normal(k1, (2 * c, 1, 3, 4, 4), jnp.float32) * 0.05
    b = jax.random.normal(k2, (1,), jnp.float32) * 0.01
    wf = w[:, :, ::-1, ::-1, ::-1].transpose(1, 0, 2, 3, 4)  # (1, 2c, 3, 4, 4)
    p["d1_w"], p["d1_b"] = _prep_conv(wf, b)
    return p


# ---------------------------------------------------------------------------
# Forward pass
# ---------------------------------------------------------------------------
def unet3d_forward(p, x, channels=8):
    c = channels
    # encoder (pre-conv activation fused into the Pallas matmul kernel)
    out1 = conv3d(x, p["l1_w"], p["l1_b"], c, (4, 4, 4), (2, 2, 2), (1, 1, 1),
                  "none")
    out2 = batchnorm3d(conv3d(out1, p["l2_w"], p["l2_b"], 2 * c, (2, 4, 4),
                              (2, 2, 2), (1, 1, 1), "leaky"),
                       p["l2_g"], p["l2_be"])
    out3 = batchnorm3d(conv3d(out2, p["l3_w"], p["l3_b"], 2 * c, (2, 4, 4),
                              (2, 2, 2), (1, 1, 1), "leaky"),
                       p["l3_g"], p["l3_be"])
    out4 = batchnorm3d(conv3d(out3, p["l4_w"], p["l4_b"], 4 * c, (2, 5, 5),
                              (1, 1, 1), (0, 1, 0), "leaky"),
                       p["l4_g"], p["l4_be"])
    out5 = conv3d(out4, p["l5_w"], p["l5_b"], 8 * c, (2, 2, 4),
                  (1, 1, 1), (0, 0, 0), "leaky")

    # decoder blocks: ReLU -> trilinear upsample x2 -> Conv3d -> BN
    # (ReLU must precede the upsample, so it is applied in JAX here)
    u5 = upsample_trilinear2x(jnp.maximum(out5, 0.0))
    dout5 = batchnorm3d(conv3d(u5, p["d5_w"], p["d5_b"], 4 * c, (2, 3, 3),
                               (1, 1, 1), (0, 1, 2), "none"),
                        p["d5_g"], p["d5_be"])
    cat4 = jnp.concatenate([dout5, maxpool_d(out4, 2)], axis=1)

    u4 = upsample_trilinear2x(jnp.maximum(cat4, 0.0))
    dout4 = batchnorm3d(conv3d(u4, p["d4_w"], p["d4_b"], 2 * c, (4, 3, 3),
                               (1, 1, 1), (1, 1, 1), "none"),
                        p["d4_g"], p["d4_be"])
    cat3 = jnp.concatenate([dout4, maxpool_d(out3, 2)], axis=1)

    u3 = upsample_trilinear2x(jnp.maximum(cat3, 0.0))
    dout3 = batchnorm3d(conv3d(u3, p["d3_w"], p["d3_b"], 2 * c, (4, 3, 3),
                               (1, 1, 1), (1, 1, 1), "none"),
                        p["d3_g"], p["d3_be"])
    cat2 = jnp.concatenate([dout3, maxpool_d(out2, 3)], axis=1)

    u2 = upsample_trilinear2x(jnp.maximum(cat2, 0.0))
    dout2 = batchnorm3d(conv3d(u2, p["d2_w"], p["d2_b"], c, (4, 3, 3),
                               (1, 1, 1), (1, 1, 1), "none"),
                        p["d2_g"], p["d2_be"])
    cat1 = jnp.concatenate([dout2, maxpool_d(out1, 4)], axis=1)

    # dlayer1: ReLU (fused in kernel) -> ConvTranspose3d(2c, 1, (3,4,4), s2, p1)
    dout1 = conv_transpose3d(cat1, p["d1_w"], p["d1_b"], 1, (3, 4, 4), 2,
                             (1, 1, 1), "relu")
    return jnp.squeeze(dout1, axis=1)   # (N, 1, 32, 64)


if __name__ == "__main__":
    key = jax.random.PRNGKey(0)
    kx, kp = jax.random.split(key)
    # Smallest spatial shape consistent with the UNet3D skip-connection
    # geometry: x_allTimeStep: (N, time_step, D, H, W) = (1, 10, 12, 32, 64).
    x = jax.random.normal(kx, (1, 10, 12, 32, 64), jnp.float32)
    params = init_params(kp, channels=8, time_step=10)

    fwd = jax.jit(unet3d_forward)
    out = jax.block_until_ready(fwd(params, x))
    assert out.shape == (1, 1, 32, 64), out.shape
    assert bool(jnp.all(jnp.isfinite(out)))
    print("KERNEL_OK")
</pallas_src>

<mosaic_0001>
module attributes {stable_mosaic.version = 11 : i64} {
  func.func @_mm_kernel(%arg0: i32, %arg1: memref<16x640xbf16, #tpu.memory_space<vmem>>, %arg2: memref<640x512xbf16, #tpu.memory_space<vmem>>, %arg3: memref<16x1xf32, #tpu.memory_space<vmem>>, %arg4: memref<16x512xf32, #tpu.memory_space<vmem>>) attributes {dimension_semantics = [#tpu.dimension_semantics<parallel>], iteration_bounds = array<i64: 6>, scalar_prefetch = 0 : i64, scratch_operands = 0 : i64, tpu.core_type = #tpu.core_type<tc>, window_params = [{pipeline_mode = #tpu.pipeline_mode<synchronous>, transform_indices = @transform_0, window_bounds = array<i64: 16, 640>}, {transform_indices = @transform_1, window_bounds = array<i64: 640, 512>}, {pipeline_mode = #tpu.pipeline_mode<synchronous>, transform_indices = @transform_2, window_bounds = array<i64: 16, 1>}, {transform_indices = @transform_3, window_bounds = array<i64: 16, 512>}]} {
    %c0 = arith.constant 0 : index
    %c0_0 = arith.constant 0 : index
    %0 = vector.load %arg2[%c0, %c0_0] : memref<640x512xbf16, #tpu.memory_space<vmem>>, vector<640x512xbf16>
    %c0_1 = arith.constant 0 : index
    %c0_2 = arith.constant 0 : index
    %1 = vector.load %arg1[%c0_1, %c0_2] : memref<16x640xbf16, #tpu.memory_space<vmem>>, vector<16x640xbf16>
    %cst = arith.constant dense<0.000000e+00> : vector<16x512xf32>
    %2 = tpu.matmul %1, %0, %cst {dimension_numbers = #tpu.dot_dimension_numbers<[1], [0], [0], [1], [0, 0, 1, 1], [], []>} : vector<16x640xbf16>, vector<640x512xbf16>, vector<16x512xf32> -> vector<16x512xf32>
    %c0_3 = arith.constant 0 : index
    %c0_4 = arith.constant 0 : index
    %3 = vector.load %arg3[%c0_3, %c0_4] : memref<16x1xf32, #tpu.memory_space<vmem>>, vector<16x1xf32>
    %4 = vector.broadcast %3 : vector<16x1xf32> to vector<16x512xf32>
    %5 = arith.addf %2, %4 : vector<16x512xf32>
    %c0_5 = arith.constant 0 : index
    %c0_6 = arith.constant 0 : index
    %6 = vector.load %arg4[%c0_5, %c0_6] : memref<16x512xf32, #tpu.memory_space<vmem>>, vector<16x512xf32>
    tpu.vector_store %arg4[%c0_5, %c0_6], %5 {strides = array<i32>} : memref<16x512xf32, #tpu.memory_space<vmem>>, vector<16x512xf32>,
    return
  }
  func.func @transform_0(%arg0: i32) -> (i32, i32) {
    %c0_i32 = arith.constant 0 : i32
    %c0_i32_0 = arith.constant 0 : i32
    %c0_i32_1 = arith.constant 0 : i32
    return %c0_i32, %c0_i32_0 : i32, i32
  }
  func.func @transform_1(%arg0: i32) -> (i32, i32) {
    %c0_i32 = arith.constant 0 : i32
    %c0_i32_0 = arith.constant 0 : i32
    return %c0_i32, %arg0 : i32, i32
  }
  func.func @transform_2(%arg0: i32) -> (i32, i32) {
    %c0_i32 = arith.constant 0 : i32
    %c0_i32_0 = arith.constant 0 : i32
    %c0_i32_1 = arith.constant 0 : i32
    return %c0_i32, %c0_i32_0 : i32, i32
  }
  func.func @transform_3(%arg0: i32) -> (i32, i32) {
    %c0_i32 = arith.constant 0 : i32
    %c0_i32_0 = arith.constant 0 : i32
    return %c0_i32, %arg0 : i32, i32
  }
}

module attributes {stable_mosaic.version = 11 : i64} {
  func.func @_mm_kernel(%arg0: i32, %arg1: memref<16x256xbf16, #tpu.memory_space<vmem>>, %arg2: memref<256x512xbf16, #tpu.memory_space<vmem>>, %arg3: memref<16x1xf32, #tpu.memory_space<vmem>>, %arg4: memref<16x512xf32, #tpu.memory_space<vmem>>) attributes {dimension_semantics = [#tpu.dimension_semantics<parallel>], iteration_bounds = array<i64: 1>, scalar_prefetch = 0 : i64, scratch_operands = 0 : i64, tpu.core_type = #tpu.core_type<tc>, window_params = [{pipeline_mode = #tpu.pipeline_mode<synchronous>, transform_indices = @transform_0, window_bounds = array<i64: 16, 256>}, {transform_indices = @transform_1, window_bounds = array<i64: 256, 512>}, {pipeline_mode = #tpu.pipeline_mode<synchronous>, transform_indices = @transform_2, window_bounds = array<i64: 16, 1>}, {transform_indices = @transform_3, window_bounds = array<i64: 16, 512>}]} {
    %c0 = arith.constant 0 : index
    %c0_0 = arith.constant 0 : index
    %0 = vector.load %arg2[%c0, %c0_0] : memref<256x512xbf16, #tpu.memory_space<vmem>>, vector<256x512xbf16>
    %cst = arith.constant 0.000000e+00 : bf16
    %1 = vector.broadcast %cst : bf16 to vector<256x512xbf16>
    %2 = arith.cmpf ogt, %0, %1 : vector<256x512xbf16>
    %cst_1 = arith.constant 2.001950e-01 : bf16
    %3 = vector.broadcast %cst_1 : bf16 to vector<256x512xbf16>
    %4 = arith.mulf %0, %3 : vector<256x512xbf16>
    %5 = arith.select %2, %0, %4 : vector<256x512xi1>, vector<256x512xbf16>
    %c0_2 = arith.constant 0 : index
    %c0_3 = arith.constant 0 : index
    %6 = vector.load %arg1[%c0_2, %c0_3] : memref<16x256xbf16, #tpu.memory_space<vmem>>, vector<16x256xbf16>
    %cst_4 = arith.constant dense<0.000000e+00> : vector<16x512xf32>
    %7 = tpu.matmul %6, %5, %cst_4 {dimension_numbers = #tpu.dot_dimension_numbers<[1], [0], [0], [1], [0, 0, 1, 1], [], []>} : vector<16x256xbf16>, vector<256x512xbf16>, vector<16x512xf32> -> vector<16x512xf32>
    %c0_5 = arith.constant 0 : index
    %c0_6 = arith.constant 0 : index
    %8 = vector.load %arg3[%c0_5, %c0_6] : memref<16x1xf32, #tpu.memory_space<vmem>>, vector<16x1xf32>
    %9 = vector.broadcast %8 : vector<16x1xf32> to vector<16x512xf32>
    %10 = arith.addf %7, %9 : vector<16x512xf32>
    %c0_7 = arith.constant 0 : index
    %c0_8 = arith.constant 0 : index
    %11 = vector.load %arg4[%c0_7, %c0_8] : memref<16x512xf32, #tpu.memory_space<vmem>>, vector<16x512xf32>
    tpu.vector_store %arg4[%c0_7, %c0_8], %10 {strides = array<i32>} : memref<16x512xf32, #tpu.memory_space<vmem>>, vector<16x512xf32>,
    return
  }
  func.func @transform_0(%arg0: i32) -> (i32, i32) {
    %c0_i32 = arith.constant 0 : i32
    %c0_i32_0 = arith.constant 0 : i32
    %c0_i32_1 = arith.constant 0 : i32
    return %c0_i32, %c0_i32_0 : i32, i32
  }
  func.func @transform_1(%arg0: i32) -> (i32, i32) {
    %c0_i32 = arith.constant 0 : i32
    %c0_i32_0 = arith.constant 0 : i32
    return %c0_i32, %arg0 : i32, i32
  }
  func.func @transform_2(%arg0: i32) -> (i32, i32) {
    %c0_i32 = arith.constant 0 : i32
    %c0_i32_0 = arith.constant 0 : i32
    %c0_i32_1 = arith.constant 0 : i32
    return %c0_i32, %c0_i32_0 : i32, i32
  }
  func.func @transform_3(%arg0: i32) -> (i32, i32) {
    %c0_i32 = arith.constant 0 : i32
    %c0_i32_0 = arith.constant 0 : i32
    return %c0_i32, %arg0 : i32, i32
  }
}

module attributes {stable_mosaic.version = 11 : i64} {
  func.func @_mm_kernel(%arg0: i32, %arg1: memref<16x512xbf16, #tpu.memory_space<vmem>>, %arg2: memref<512x128xbf16, #tpu.memory_space<vmem>>, %arg3: memref<16x1xf32, #tpu.memory_space<vmem>>, %arg4: memref<16x128xf32, #tpu.memory_space<vmem>>) attributes {dimension_semantics = [#tpu.dimension_semantics<parallel>], iteration_bounds = array<i64: 1>, scalar_prefetch = 0 : i64, scratch_operands = 0 : i64, tpu.core_type = #tpu.core_type<tc>, window_params = [{pipeline_mode = #tpu.pipeline_mode<synchronous>, transform_indices = @transform_0, window_bounds = array<i64: 16, 512>}, {transform_indices = @transform_1, window_bounds = array<i64: 512, 128>}, {pipeline_mode = #tpu.pipeline_mode<synchronous>, transform_indices = @transform_2, window_bounds = array<i64: 16, 1>}, {transform_indices = @transform_3, window_bounds = array<i64: 16, 128>}]} {
    %c0 = arith.constant 0 : index
    %c0_0 = arith.constant 0 : index
    %0 = vector.load %arg2[%c0, %c0_0] : memref<512x128xbf16, #tpu.memory_space<vmem>>, vector<512x128xbf16>
    %cst = arith.constant 0.000000e+00 : bf16
    %1 = vector.broadcast %cst : bf16 to vector<512x128xbf16>
    %2 = arith.cmpf ogt, %0, %1 : vector<512x128xbf16>
    %cst_1 = arith.constant 2.001950e-01 : bf16
    %3 = vector.broadcast %cst_1 : bf16 to vector<512x128xbf16>
    %4 = arith.mulf %0, %3 : vector<512x128xbf16>
    %5 = arith.select %2, %0, %4 : vector<512x128xi1>, vector<512x128xbf16>
    %c0_2 = arith.constant 0 : index
    %c0_3 = arith.constant 0 : index
    %6 = vector.load %arg1[%c0_2, %c0_3] : memref<16x512xbf16, #tpu.memory_space<vmem>>, vector<16x512xbf16>
    %cst_4 = arith.constant dense<0.000000e+00> : vector<16x128xf32>
    %7 = tpu.matmul %6, %5, %cst_4 {dimension_numbers = #tpu.dot_dimension_numbers<[1], [0], [0], [1], [0, 0, 1, 1], [], []>} : vector<16x512xbf16>, vector<512x128xbf16>, vector<16x128xf32> -> vector<16x128xf32>
    %c0_5 = arith.constant 0 : index
    %c0_6 = arith.constant 0 : index
    %8 = vector.load %arg3[%c0_5, %c0_6] : memref<16x1xf32, #tpu.memory_space<vmem>>, vector<16x1xf32>
    %9 = vector.broadcast %8 : vector<16x1xf32> to vector<16x128xf32>
    %10 = arith.addf %7, %9 : vector<16x128xf32>
    %c0_7 = arith.constant 0 : index
    %c0_8 = arith.constant 0 : index
    %11 = vector.load %arg4[%c0_7, %c0_8] : memref<16x128xf32, #tpu.memory_space<vmem>>, vector<16x128xf32>
    tpu.vector_store %arg4[%c0_7, %c0_8], %10 {strides = array<i32>} : memref<16x128xf32, #tpu.memory_space<vmem>>, vector<16x128xf32>,
    return
  }
  func.func @transform_0(%arg0: i32) -> (i32, i32) {
    %c0_i32 = arith.constant 0 : i32
    %c0_i32_0 = arith.constant 0 : i32
    %c0_i32_1 = arith.constant 0 : i32
    return %c0_i32, %c0_i32_0 : i32, i32
  }
  func.func @transform_1(%arg0: i32) -> (i32, i32) {
    %c0_i32 = arith.constant 0 : i32
    %c0_i32_0 = arith.constant 0 : i32
    return %c0_i32, %arg0 : i32, i32
  }
  func.func @transform_2(%arg0: i32) -> (i32, i32) {
    %c0_i32 = arith.constant 0 : i32
    %c0_i32_0 = arith.constant 0 : i32
    %c0_i32_1 = arith.constant 0 : i32
    return %c0_i32, %c0_i32_0 : i32, i32
  }
  func.func @transform_3(%arg0: i32) -> (i32, i32) {
    %c0_i32 = arith.constant 0 : i32
    %c0_i32_0 = arith.constant 0 : i32
    return %c0_i32, %arg0 : i32, i32
  }
}

module attributes {stable_mosaic.version = 11 : i64} {
  func.func @_mm_kernel(%arg0: i32, %arg1: memref<32x800xbf16, #tpu.memory_space<vmem>>, %arg2: memref<800x128xbf16, #tpu.memory_space<vmem>>, %arg3: memref<32x1xf32, #tpu.memory_space<vmem>>, %arg4: memref<32x128xf32, #tpu.memory_space<vmem>>) attributes {dimension_semantics = [#tpu.dimension_semantics<parallel>], iteration_bounds = array<i64: 1>, scalar_prefetch = 0 : i64, scratch_operands = 0 : i64, tpu.core_type = #tpu.core_type<tc>, window_params = [{pipeline_mode = #tpu.pipeline_mode<synchronous>, transform_indices = @transform_0, window_bounds = array<i64: 32, 800>}, {transform_indices = @transform_1, window_bounds = array<i64: 800, 128>}, {pipeline_mode = #tpu.pipeline_mode<synchronous>, transform_indices = @transform_2, window_bounds = array<i64: 32, 1>}, {transform_indices = @transform_3, window_bounds = array<i64: 32, 128>}]} {
    %c0 = arith.constant 0 : index
    %c0_0 = arith.constant 0 : index
    %0 = vector.load %arg2[%c0, %c0_0] : memref<800x128xbf16, #tpu.memory_space<vmem>>, vector<800x128xbf16>
    %cst = arith.constant 0.000000e+00 : bf16
    %1 = vector.broadcast %cst : bf16 to vector<800x128xbf16>
    %2 = arith.cmpf ogt, %0, %1 : vector<800x128xbf16>
    %cst_1 = arith.constant 2.001950e-01 : bf16
    %3 = vector.broadcast %cst_1 : bf16 to vector<800x128xbf16>
    %4 = arith.mulf %0, %3 : vector<800x128xbf16>
    %5 = arith.select %2, %0, %4 : vector<800x128xi1>, vector<800x128xbf16>
    %c0_2 = arith.constant 0 : index
    %c0_3 = arith.constant 0 : index
    %6 = vector.load %arg1[%c0_2, %c0_3] : memref<32x800xbf16, #tpu.memory_space<vmem>>, vector<32x800xbf16>
    %cst_4 = arith.constant dense<0.000000e+00> : vector<32x128xf32>
    %7 = tpu.matmul %6, %5, %cst_4 {dimension_numbers = #tpu.dot_dimension_numbers<[1], [0], [0], [1], [0, 0, 1, 1], [], []>} : vector<32x800xbf16>, vector<800x128xbf16>, vector<32x128xf32> -> vector<32x128xf32>
    %c0_5 = arith.constant 0 : index
    %c0_6 = arith.constant 0 : index
    %8 = vector.load %arg3[%c0_5, %c0_6] : memref<32x1xf32, #tpu.memory_space<vmem>>, vector<32x1xf32>
    %9 = vector.broadcast %8 : vector<32x1xf32> to vector<32x128xf32>
    %10 = arith.addf %7, %9 : vector<32x128xf32>
    %c0_7 = arith.constant 0 : index
    %c0_8 = arith.constant 0 : index
    %11 = vector.load %arg4[%c0_7, %c0_8] : memref<32x128xf32, #tpu.memory_space<vmem>>, vector<32x128xf32>
    tpu.vector_store %arg4[%c0_7, %c0_8], %10 {strides = array<i32>} : memref<32x128xf32, #tpu.memory_space<vmem>>, vector<32x128xf32>,
    return
  }
  func.func @transform_0(%arg0: i32) -> (i32, i32) {
    %c0_i32 = arith.constant 0 : i32
    %c0_i32_0 = arith.constant 0 : i32
    %c0_i32_1 = arith.constant 0 : i32
    return %c0_i32, %c0_i32_0 : i32, i32
  }
  func.func @transform_1(%arg0: i32) -> (i32, i32) {
    %c0_i32 = arith.constant 0 : i32
    %c0_i32_0 = arith.constant 0 : i32
    return %c0_i32, %arg0 : i32, i32
  }
  func.func @transform_2(%arg0: i32) -> (i32, i32) {
    %c0_i32 = arith.constant 0 : i32
    %c0_i32_0 = arith.constant 0 : i32
    %c0_i32_1 = arith.constant 0 : i32
    return %c0_i32, %c0_i32_0 : i32, i32
  }
  func.func @transform_3(%arg0: i32) -> (i32, i32) {
    %c0_i32 = arith.constant 0 : i32
    %c0_i32_0 = arith.constant 0 : i32
    return %c0_i32, %arg0 : i32, i32
  }
}

module attributes {stable_mosaic.version = 11 : i64} {
  func.func @_mm_kernel(%arg0: i32, %arg1: memref<64x512xbf16, #tpu.memory_space<vmem>>, %arg2: memref<512x128xbf16, #tpu.memory_space<vmem>>, %arg3: memref<64x1xf32, #tpu.memory_space<vmem>>, %arg4: memref<64x128xf32, #tpu.memory_space<vmem>>) attributes {dimension_semantics = [#tpu.dimension_semantics<parallel>], iteration_bounds = array<i64: 1>, scalar_prefetch = 0 : i64, scratch_operands = 0 : i64, tpu.core_type = #tpu.core_type<tc>, window_params = [{pipeline_mode = #tpu.pipeline_mode<synchronous>, transform_indices = @transform_0, window_bounds = array<i64: 64, 512>}, {transform_indices = @transform_1, window_bounds = array<i64: 512, 128>}, {pipeline_mode = #tpu.pipeline_mode<synchronous>, transform_indices = @transform_2, window_bounds = array<i64: 64, 1>}, {transform_indices = @transform_3, window_bounds = array<i64: 64, 128>}]} {
    %c0 = arith.constant 0 : index
    %c0_0 = arith.constant 0 : index
    %0 = vector.load %arg2[%c0, %c0_0] : memref<512x128xbf16, #tpu.memory_space<vmem>>, vector<512x128xbf16>
    %cst = arith.constant 0.000000e+00 : bf16
    %1 = vector.broadcast %cst : bf16 to vector<512x128xbf16>
    %2 = arith.cmpf ogt, %0, %1 : vector<512x128xbf16>
    %cst_1 = arith.constant 2.001950e-01 : bf16
    %3 = vector.broadcast %cst_1 : bf16 to vector<512x128xbf16>
    %4 = arith.mulf %0, %3 : vector<512x128xbf16>
    %5 = arith.select %2, %0, %4 : vector<512x128xi1>, vector<512x128xbf16>
    %c0_2 = arith.constant 0 : index
    %c0_3 = arith.constant 0 : index
    %6 = vector.load %arg1[%c0_2, %c0_3] : memref<64x512xbf16, #tpu.memory_space<vmem>>, vector<64x512xbf16>
    %cst_4 = arith.constant dense<0.000000e+00> : vector<64x128xf32>
    %7 = tpu.matmul %6, %5, %cst_4 {dimension_numbers = #tpu.dot_dimension_numbers<[1], [0], [0], [1], [0, 0, 1, 1], [], []>} : vector<64x512xbf16>, vector<512x128xbf16>, vector<64x128xf32> -> vector<64x128xf32>
    %c0_5 = arith.constant 0 : index
    %c0_6 = arith.constant 0 : index
    %8 = vector.load %arg3[%c0_5, %c0_6] : memref<64x1xf32, #tpu.memory_space<vmem>>, vector<64x1xf32>
    %9 = vector.broadcast %8 : vector<64x1xf32> to vector<64x128xf32>
    %10 = arith.addf %7, %9 : vector<64x128xf32>
    %c0_7 = arith.constant 0 : index
    %c0_8 = arith.constant 0 : index
    %11 = vector.load %arg4[%c0_7, %c0_8] : memref<64x128xf32, #tpu.memory_space<vmem>>, vector<64x128xf32>
    tpu.vector_store %arg4[%c0_7, %c0_8], %10 {strides = array<i32>} : memref<64x128xf32, #tpu.memory_space<vmem>>, vector<64x128xf32>,
    return
  }
  func.func @transform_0(%arg0: i32) -> (i32, i32) {
    %c0_i32 = arith.constant 0 : i32
    %c0_i32_0 = arith.constant 0 : i32
    %c0_i32_1 = arith.constant 0 : i32
    return %c0_i32, %c0_i32_0 : i32, i32
  }
  func.func @transform_1(%arg0: i32) -> (i32, i32) {
    %c0_i32 = arith.constant 0 : i32
    %c0_i32_0 = arith.constant 0 : i32
    return %c0_i32, %arg0 : i32, i32
  }
  func.func @transform_2(%arg0: i32) -> (i32, i32) {
    %c0_i32 = arith.constant 0 : i32
    %c0_i32_0 = arith.constant 0 : i32
    %c0_i32_1 = arith.constant 0 : i32
    return %c0_i32, %c0_i32_0 : i32, i32
  }
  func.func @transform_3(%arg0: i32) -> (i32, i32) {
    %c0_i32 = arith.constant 0 : i32
    %c0_i32_0 = arith.constant 0 : i32
    return %c0_i32, %arg0 : i32, i32
  }
}

module attributes {stable_mosaic.version = 11 : i64} {
  func.func @_mm_kernel(%arg0: i32, %arg1: memref<32x1152xbf16, #tpu.memory_space<vmem>>, %arg2: memref<1152x128xbf16, #tpu.memory_space<vmem>>, %arg3: memref<32x1xf32, #tpu.memory_space<vmem>>, %arg4: memref<32x128xf32, #tpu.memory_space<vmem>>) attributes {dimension_semantics = [#tpu.dimension_semantics<parallel>], iteration_bounds = array<i64: 1>, scalar_prefetch = 0 : i64, scratch_operands = 0 : i64, tpu.core_type = #tpu.core_type<tc>, window_params = [{pipeline_mode = #tpu.pipeline_mode<synchronous>, transform_indices = @transform_0, window_bounds = array<i64: 32, 1152>}, {transform_indices = @transform_1, window_bounds = array<i64: 1152, 128>}, {pipeline_mode = #tpu.pipeline_mode<synchronous>, transform_indices = @transform_2, window_bounds = array<i64: 32, 1>}, {transform_indices = @transform_3, window_bounds = array<i64: 32, 128>}]} {
    %c0 = arith.constant 0 : index
    %c0_0 = arith.constant 0 : index
    %0 = vector.load %arg2[%c0, %c0_0] : memref<1152x128xbf16, #tpu.memory_space<vmem>>, vector<1152x128xbf16>
    %c0_1 = arith.constant 0 : index
    %c0_2 = arith.constant 0 : index
    %1 = vector.load %arg1[%c0_1, %c0_2] : memref<32x1152xbf16, #tpu.memory_space<vmem>>, vector<32x1152xbf16>
    %cst = arith.constant dense<0.000000e+00> : vector<32x128xf32>
    %2 = tpu.matmul %1, %0, %cst {dimension_numbers = #tpu.dot_dimension_numbers<[1], [0], [0], [1], [0, 0, 1, 1], [], []>} : vector<32x1152xbf16>, vector<1152x128xbf16>, vector<32x128xf32> -> vector<32x128xf32>
    %c0_3 = arith.constant 0 : index
    %c0_4 = arith.constant 0 : index
    %3 = vector.load %arg3[%c0_3, %c0_4] : memref<32x1xf32, #tpu.memory_space<vmem>>, vector<32x1xf32>
    %4 = vector.broadcast %3 : vector<32x1xf32> to vector<32x128xf32>
    %5 = arith.addf %2, %4 : vector<32x128xf32>
    %c0_5 = arith.constant 0 : index
    %c0_6 = arith.constant 0 : index
    %6 = vector.load %arg4[%c0_5, %c0_6] : memref<32x128xf32, #tpu.memory_space<vmem>>, vector<32x128xf32>
    tpu.vector_store %arg4[%c0_5, %c0_6], %5 {strides = array<i32>} : memref<32x128xf32, #tpu.memory_space<vmem>>, vector<32x128xf32>,
    return
  }
  func.func @transform_0(%arg0: i32) -> (i32, i32) {
    %c0_i32 = arith.constant 0 : i32
    %c0_i32_0 = arith.constant 0 : i32
    %c0_i32_1 = arith.constant 0 : i32
    return %c0_i32, %c0_i32_0 : i32, i32
  }
  func.func @transform_1(%arg0: i32) -> (i32, i32) {
    %c0_i32 = arith.constant 0 : i32
    %c0_i32_0 = arith.constant 0 : i32
    return %c0_i32, %arg0 : i32, i32
  }
  func.func @transform_2(%arg0: i32) -> (i32, i32) {
    %c0_i32 = arith.constant 0 : i32
    %c0_i32_0 = arith.constant 0 : i32
    %c0_i32_1 = arith.constant 0 : i32
    return %c0_i32, %c0_i32_0 : i32, i32
  }
  func.func @transform_3(%arg0: i32) -> (i32, i32) {
    %c0_i32 = arith.constant 0 : i32
    %c0_i32_0 = arith.constant 0 : i32
    return %c0_i32, %arg0 : i32, i32
  }
}

module attributes {stable_mosaic.version = 11 : i64} {
  func.func @_mm_kernel(%arg0: i32, %arg1: memref<16x2304xbf16, #tpu.memory_space<vmem>>, %arg2: memref<2304x128xbf16, #tpu.memory_space<vmem>>, %arg3: memref<16x1xf32, #tpu.memory_space<vmem>>, %arg4: memref<16x128xf32, #tpu.memory_space<vmem>>) attributes {dimension_semantics = [#tpu.dimension_semantics<parallel>], iteration_bounds = array<i64: 1>, scalar_prefetch = 0 : i64, scratch_operands = 0 : i64, tpu.core_type = #tpu.core_type<tc>, window_params = [{pipeline_mode = #tpu.pipeline_mode<synchronous>, transform_indices = @transform_0, window_bounds = array<i64: 16, 2304>}, {transform_indices = @transform_1, window_bounds = array<i64: 2304, 128>}, {pipeline_mode = #tpu.pipeline_mode<synchronous>, transform_indices = @transform_2, window_bounds = array<i64: 16, 1>}, {transform_indices = @transform_3, window_bounds = array<i64: 16, 128>}]} {
    %c0 = arith.constant 0 : index
    %c0_0 = arith.constant 0 : index
    %0 = vector.load %arg2[%c0, %c0_0] : memref<2304x128xbf16, #tpu.memory_space<vmem>>, vector<2304x128xbf16>
    %c0_1 = arith.constant 0 : index
    %c0_2 = arith.constant 0 : index
    %1 = vector.load %arg1[%c0_1, %c0_2] : memref<16x2304xbf16, #tpu.memory_space<vmem>>, vector<16x2304xbf16>
    %cst = arith.constant dense<0.000000e+00> : vector<16x128xf32>
    %2 = tpu.matmul %1, %0, %cst {dimension_numbers = #tpu.dot_dimension_numbers<[1], [0], [0], [1], [0, 0, 1, 1], [], []>} : vector<16x2304xbf16>, vector<2304x128xbf16>, vector<16x128xf32> -> vector<16x128xf32>
    %c0_3 = arith.constant 0 : index
    %c0_4 = arith.constant 0 : index
    %3 = vector.load %arg3[%c0_3, %c0_4] : memref<16x1xf32, #tpu.memory_space<vmem>>, vector<16x1xf32>
    %4 = vector.broadcast %3 : vector<16x1xf32> to vector<16x128xf32>
    %5 = arith.addf %2, %4 : vector<16x128xf32>
    %c0_5 = arith.constant 0 : index
    %c0_6 = arith.constant 0 : index
    %6 = vector.load %arg4[%c0_5, %c0_6] : memref<16x128xf32, #tpu.memory_space<vmem>>, vector<16x128xf32>
    tpu.vector_store %arg4[%c0_5, %c0_6], %5 {strides = array<i32>} : memref<16x128xf32, #tpu.memory_space<vmem>>, vector<16x128xf32>,
    return
  }
  func.func @transform_0(%arg0: i32) -> (i32, i32) {
    %c0_i32 = arith.constant 0 : i32
    %c0_i32_0 = arith.constant 0 : i32
    %c0_i32_1 = arith.constant 0 : i32
    return %c0_i32, %c0_i32_0 : i32, i32
  }
  func.func @transform_1(%arg0: i32) -> (i32, i32) {
    %c0_i32 = arith.constant 0 : i32
    %c0_i32_0 = arith.constant 0 : i32
    return %c0_i32, %arg0 : i32, i32
  }
  func.func @transform_2(%arg0: i32) -> (i32, i32) {
    %c0_i32 = arith.constant 0 : i32
    %c0_i32_0 = arith.constant 0 : i32
    %c0_i32_1 = arith.constant 0 : i32
    return %c0_i32, %c0_i32_0 : i32, i32
  }
  func.func @transform_3(%arg0: i32) -> (i32, i32) {
    %c0_i32 = arith.constant 0 : i32
    %c0_i32_0 = arith.constant 0 : i32
    return %c0_i32, %arg0 : i32, i32
  }
}

module attributes {stable_mosaic.version = 11 : i64} {
  func.func @_mm_kernel(%arg0: i32, %arg1: memref<16x1152xbf16, #tpu.memory_space<vmem>>, %arg2: memref<1152x128xbf16, #tpu.memory_space<vmem>>, %arg3: memref<16x1xf32, #tpu.memory_space<vmem>>, %arg4: memref<16x128xf32, #tpu.memory_space<vmem>>) attributes {dimension_semantics = [#tpu.dimension_semantics<parallel>], iteration_bounds = array<i64: 1>, scalar_prefetch = 0 : i64, scratch_operands = 0 : i64, tpu.core_type = #tpu.core_type<tc>, window_params = [{pipeline_mode = #tpu.pipeline_mode<synchronous>, transform_indices = @transform_0, window_bounds = array<i64: 16, 1152>}, {transform_indices = @transform_1, window_bounds = array<i64: 1152, 128>}, {pipeline_mode = #tpu.pipeline_mode<synchronous>, transform_indices = @transform_2, window_bounds = array<i64: 16, 1>}, {transform_indices = @transform_3, window_bounds = array<i64: 16, 128>}]} {
    %c0 = arith.constant 0 : index
    %c0_0 = arith.constant 0 : index
    %0 = vector.load %arg2[%c0, %c0_0] : memref<1152x128xbf16, #tpu.memory_space<vmem>>, vector<1152x128xbf16>
    %c0_1 = arith.constant 0 : index
    %c0_2 = arith.constant 0 : index
    %1 = vector.load %arg1[%c0_1, %c0_2] : memref<16x1152xbf16, #tpu.memory_space<vmem>>, vector<16x1152xbf16>
    %cst = arith.constant dense<0.000000e+00> : vector<16x128xf32>
    %2 = tpu.matmul %1, %0, %cst {dimension_numbers = #tpu.dot_dimension_numbers<[1], [0], [0], [1], [0, 0, 1, 1], [], []>} : vector<16x1152xbf16>, vector<1152x128xbf16>, vector<16x128xf32> -> vector<16x128xf32>
    %c0_3 = arith.constant 0 : index
    %c0_4 = arith.constant 0 : index
    %3 = vector.load %arg3[%c0_3, %c0_4] : memref<16x1xf32, #tpu.memory_space<vmem>>, vector<16x1xf32>
    %4 = vector.broadcast %3 : vector<16x1xf32> to vector<16x128xf32>
    %5 = arith.addf %2, %4 : vector<16x128xf32>
    %c0_5 = arith.constant 0 : index
    %c0_6 = arith.constant 0 : index
    %6 = vector.load %arg4[%c0_5, %c0_6] : memref<16x128xf32, #tpu.memory_space<vmem>>, vector<16x128xf32>
    tpu.vector_store %arg4[%c0_5, %c0_6], %5 {strides = array<i32>} : memref<16x128xf32, #tpu.memory_space<vmem>>, vector<16x128xf32>,
    return
  }
  func.func @transform_0(%arg0: i32) -> (i32, i32) {
    %c0_i32 = arith.constant 0 : i32
    %c0_i32_0 = arith.constant 0 : i32
    %c0_i32_1 = arith.constant 0 : i32
    return %c0_i32, %c0_i32_0 : i32, i32
  }
  func.func @transform_1(%arg0: i32) -> (i32, i32) {
    %c0_i32 = arith.constant 0 : i32
    %c0_i32_0 = arith.constant 0 : i32
    return %c0_i32, %arg0 : i32, i32
  }
  func.func @transform_2(%arg0: i32) -> (i32, i32) {
    %c0_i32 = arith.constant 0 : i32
    %c0_i32_0 = arith.constant 0 : i32
    %c0_i32_1 = arith.constant 0 : i32
    return %c0_i32, %c0_i32_0 : i32, i32
  }
  func.func @transform_3(%arg0: i32) -> (i32, i32) {
    %c0_i32 = arith.constant 0 : i32
    %c0_i32_0 = arith.constant 0 : i32
    return %c0_i32, %arg0 : i32, i32
  }
}

module attributes {stable_mosaic.version = 11 : i64} {
  func.func @_mm_kernel(%arg0: i32, %arg1: memref<16x1152xbf16, #tpu.memory_space<vmem>>, %arg2: memref<1152x512xbf16, #tpu.memory_space<vmem>>, %arg3: memref<16x1xf32, #tpu.memory_space<vmem>>, %arg4: memref<16x512xf32, #tpu.memory_space<vmem>>) attributes {dimension_semantics = [#tpu.dimension_semantics<parallel>], iteration_bounds = array<i64: 1>, scalar_prefetch = 0 : i64, scratch_operands = 0 : i64, tpu.core_type = #tpu.core_type<tc>, window_params = [{pipeline_mode = #tpu.pipeline_mode<synchronous>, transform_indices = @transform_0, window_bounds = array<i64: 16, 1152>}, {transform_indices = @transform_1, window_bounds = array<i64: 1152, 512>}, {pipeline_mode = #tpu.pipeline_mode<synchronous>, transform_indices = @transform_2, window_bounds = array<i64: 16, 1>}, {transform_indices = @transform_3, window_bounds = array<i64: 16, 512>}]} {
    %c0 = arith.constant 0 : index
    %c0_0 = arith.constant 0 : index
    %0 = vector.load %arg2[%c0, %c0_0] : memref<1152x512xbf16, #tpu.memory_space<vmem>>, vector<1152x512xbf16>
    %c0_1 = arith.constant 0 : index
    %c0_2 = arith.constant 0 : index
    %1 = vector.load %arg1[%c0_1, %c0_2] : memref<16x1152xbf16, #tpu.memory_space<vmem>>, vector<16x1152xbf16>
    %cst = arith.constant dense<0.000000e+00> : vector<16x512xf32>
    %2 = tpu.matmul %1, %0, %cst {dimension_numbers = #tpu.dot_dimension_numbers<[1], [0], [0], [1], [0, 0, 1, 1], [], []>} : vector<16x1152xbf16>, vector<1152x512xbf16>, vector<16x512xf32> -> vector<16x512xf32>
    %c0_3 = arith.constant 0 : index
    %c0_4 = arith.constant 0 : index
    %3 = vector.load %arg3[%c0_3, %c0_4] : memref<16x1xf32, #tpu.memory_space<vmem>>, vector<16x1xf32>
    %4 = vector.broadcast %3 : vector<16x1xf32> to vector<16x512xf32>
    %5 = arith.addf %2, %4 : vector<16x512xf32>
    %c0_5 = arith.constant 0 : index
    %c0_6 = arith.constant 0 : index
    %6 = vector.load %arg4[%c0_5, %c0_6] : memref<16x512xf32, #tpu.memory_space<vmem>>, vector<16x512xf32>
    tpu.vector_store %arg4[%c0_5, %c0_6], %5 {strides = array<i32>} : memref<16x512xf32, #tpu.memory_space<vmem>>, vector<16x512xf32>,
    return
  }
  func.func @transform_0(%arg0: i32) -> (i32, i32) {
    %c0_i32 = arith.constant 0 : i32
    %c0_i32_0 = arith.constant 0 : i32
    %c0_i32_1 = arith.constant 0 : i32
    return %c0_i32, %c0_i32_0 : i32, i32
  }
  func.func @transform_1(%arg0: i32) -> (i32, i32) {
    %c0_i32 = arith.constant 0 : i32
    %c0_i32_0 = arith.constant 0 : i32
    return %c0_i32, %arg0 : i32, i32
  }
  func.func @transform_2(%arg0: i32) -> (i32, i32) {
    %c0_i32 = arith.constant 0 : i32
    %c0_i32_0 = arith.constant 0 : i32
    %c0_i32_1 = arith.constant 0 : i32
    return %c0_i32, %c0_i32_0 : i32, i32
  }
  func.func @transform_3(%arg0: i32) -> (i32, i32) {
    %c0_i32 = arith.constant 0 : i32
    %c0_i32_0 = arith.constant 0 : i32
    return %c0_i32, %arg0 : i32, i32
  }
}

module attributes {stable_mosaic.version = 11 : i64} {
  func.func @_mm_kernel(%arg0: i32, %arg1: memref<16x768xbf16, #tpu.memory_space<vmem>>, %arg2: memref<768x512xbf16, #tpu.memory_space<vmem>>, %arg3: memref<16x1xf32, #tpu.memory_space<vmem>>, %arg4: memref<16x512xf32, #tpu.memory_space<vmem>>) attributes {dimension_semantics = [#tpu.dimension_semantics<parallel>], iteration_bounds = array<i64: 4>, scalar_prefetch = 0 : i64, scratch_operands = 0 : i64, tpu.core_type = #tpu.core_type<tc>, window_params = [{pipeline_mode = #tpu.pipeline_mode<synchronous>, transform_indices = @transform_0, window_bounds = array<i64: 16, 768>}, {transform_indices = @transform_1, window_bounds = array<i64: 768, 512>}, {pipeline_mode = #tpu.pipeline_mode<synchronous>, transform_indices = @transform_2, window_bounds = array<i64: 16, 1>}, {transform_indices = @transform_3, window_bounds = array<i64: 16, 512>}]} {
    %c0 = arith.constant 0 : index
    %c0_0 = arith.constant 0 : index
    %0 = vector.load %arg2[%c0, %c0_0] : memref<768x512xbf16, #tpu.memory_space<vmem>>, vector<768x512xbf16>
    %cst = arith.constant 0.000000e+00 : bf16
    %1 = vector.broadcast %cst : bf16 to vector<768x512xbf16>
    %2 = arith.maximumf %0, %1 : vector<768x512xbf16>
    %c0_1 = arith.constant 0 : index
    %c0_2 = arith.constant 0 : index
    %3 = vector.load %arg1[%c0_1, %c0_2] : memref<16x768xbf16, #tpu.memory_space<vmem>>, vector<16x768xbf16>
    %cst_3 = arith.constant dense<0.000000e+00> : vector<16x512xf32>
    %4 = tpu.matmul %3, %2, %cst_3 {dimension_numbers = #tpu.dot_dimension_numbers<[1], [0], [0], [1], [0, 0, 1, 1], [], []>} : vector<16x768xbf16>, vector<768x512xbf16>, vector<16x512xf32> -> vector<16x512xf32>
    %c0_4 = arith.constant 0 : index
    %c0_5 = arith.constant 0 : index
    %5 = vector.load %arg3[%c0_4, %c0_5] : memref<16x1xf32, #tpu.memory_space<vmem>>, vector<16x1xf32>
    %6 = vector.broadcast %5 : vector<16x1xf32> to vector<16x512xf32>
    %7 = arith.addf %4, %6 : vector<16x512xf32>
    %c0_6 = arith.constant 0 : index
    %c0_7 = arith.constant 0 : index
    %8 = vector.load %arg4[%c0_6, %c0_7] : memref<16x512xf32, #tpu.memory_space<vmem>>, vector<16x512xf32>
    tpu.vector_store %arg4[%c0_6, %c0_7], %7 {strides = array<i32>} : memref<16x512xf32, #tpu.memory_space<vmem>>, vector<16x512xf32>,
    return
  }
  func.func @transform_0(%arg0: i32) -> (i32, i32) {
    %c0_i32 = arith.constant 0 : i32
    %c0_i32_0 = arith.constant 0 : i32
    %c0_i32_1 = arith.constant 0 : i32
    return %c0_i32, %c0_i32_0 : i32, i32
  }
  func.func @transform_1(%arg0: i32) -> (i32, i32) {
    %c0_i32 = arith.constant 0 : i32
    %c0_i32_0 = arith.constant 0 : i32
    return %c0_i32, %arg0 : i32, i32
  }
  func.func @transform_2(%arg0: i32) -> (i32, i32) {
    %c0_i32 = arith.constant 0 : i32
    %c0_i32_0 = arith.constant 0 : i32
    %c0_i32_1 = arith.constant 0 : i32
    return %c0_i32, %c0_i32_0 : i32, i32
  }
  func.func @transform_3(%arg0: i32) -> (i32, i32) {
    %c0_i32 = arith.constant 0 : i32
    %c0_i32_0 = arith.constant 0 : i32
    return %c0_i32, %arg0 : i32, i32
  }
}

</mosaic_0001>

<llo_original>
// kernel: unet3d_forward.10
$region0: #{unet3d_forward.10}
  #allocation0 [shape = 'u32[]', space=smem, size = 0x4, offset = 0x4, fixed_abs, tag = 'smem constant byte address 0x4 - core index']
  #allocation1 [shape = 'u32[144,128]{1,0:T(1,128)}', space=vmem, size = 0x12000, scoped, tag = 'internal scratch']
  %s0 = inlined_call_operand.vmem [shape: bf16[16,640], index: 0, kind: input, shape index: {}]
  %s1 = inlined_call_operand.vmem [shape: bf16[640,3072], index: 1, kind: input, shape index: {}]
  %s2 = inlined_call_operand.vmem [shape: f32[16,1], index: 2, kind: input, shape index: {}]
  %s3 = inlined_call_operand.vmem [shape: f32[16,3072], index: 3, kind: output, shape index: {}]
  %s4 = sld [smem:[#allocation0]]
  $region87: #{unet3d_forward.10} parent=0
    _
  %s6 = ssub.s32 1, %s4
  %s7 = scalar_select 0, %s6, %s4
  $region1: #{unet3d_forward.10} parent=0
    #allocation2 [shape = 'u8[1310720]{0}', space=vmem, size = 0x140000, scoped, tag = 'input window, operand 1']
    #allocation3 [shape = 'u8[65536]{0}', space=vmem, size = 0x10000, scoped, tag = 'output window, operand 0']
    loop: start=0, step=1, limit=8
    $region2: #{unet3d_forward.10} parent=1 // loop_pre_header
      _
    $region3: #{unet3d_forward.10} parent=1 // loop_header
      %s9 = sphi 0, %s13
      %p10 = scmp.ge.s32.totalorder %s9, 8
      %s17 = sphi 0, %s17
      %s19 = sphi 0, %s17
      %s20 = sphi 0, %s19
      %s34 = sphi 0, %s20
      %s40 = sphi 0, %s42
      %s43 = sphi 0, %s40
      %s44 = sphi 0, %s43
      %s60 = sphi 0, %s44
      %s64 = sphi 0, %s64
      %s66 = sphi 0, %s64
      %s67 = sphi 0, %s66
      %s81 = sphi 0, %s67
      %s87 = sphi 0, %s89
      %s90 = sphi 0, %s87
      %s91 = sphi 0, %s90
      %s107 = sphi 0, %s91
    $region4: #{unet3d_forward.10} parent=1 // loop_header_branch
      %12 = sbr.rel (%p10) target = $region8
    $region5: #{unet3d_forward.10} parent=1 // loop_body
      %s14 = ssub.s32 %s9, 1
      %s15 = ssub.s32 %s9, 2
      %s16 = sadd.s32 %s9, 1
      %s18 = sadd.s32 %s17, 1
      %p21 = scmp.eq.s32.totalorder %s9, 5
      %p22 = scmp.ne.s32.totalorder %s17, %s19
      %p23 = scmp.eq.s32.totalorder %s9, 0
      %p24 = por %p22, %p23
      %p25 = scmp.ne.s32.totalorder %s17, %s19
      %p26 = scmp.eq.s32.totalorder %s14, 5
      %p27 = por %p25, %p26
      %p28 = scmp.ne.s32.totalorder %s19, %s20
      %p29 = scmp.eq.s32.totalorder %s14, 0
      %p30 = por %p28, %p29
      %p31 = scmp.ne.s32.totalorder %s19, %s20
      %p32 = scmp.eq.s32.totalorder %s15, 5
      %p33 = por %p31, %p32
      %p35 = scmp.ne.s32.totalorder %s20, %s34
      %p36 = scmp.eq.s32.totalorder %s15, 0
      %p37 = por %p35, %p36
      %s38 = ssub.s32 %s9, %s16
      %p39 = scmp.eq.s32.totalorder %s38, 0
      %s41 = sadd.s32 %s40, 1
      %s42 = scalar_select %p39, %s40, %s41
      %p45 = pneg %p39
      %p46 = scmp.eq.s32.totalorder %s9, 5
      %p47 = por %p45, %p46
      %p48 = scmp.ne.s32.totalorder %s40, %s43
      %p49 = scmp.eq.s32.totalorder %s9, 0
      %p50 = por %p48, %p49
      %p51 = scmp.ne.s32.totalorder %s40, %s43
      %p52 = scmp.eq.s32.totalorder %s14, 5
      %p53 = por %p51, %p52
      %p54 = scmp.ne.s32.totalorder %s43, %s44
      %p55 = scmp.eq.s32.totalorder %s14, 0
      %p56 = por %p54, %p55
      %p57 = scmp.ne.s32.totalorder %s43, %s44
      %p58 = scmp.eq.s32.totalorder %s15, 5
      %p59 = por %p57, %p58
      %p61 = scmp.ne.s32.totalorder %s44, %s60
      %p62 = scmp.eq.s32.totalorder %s15, 0
      %p63 = por %p61, %p62
      %s65 = sadd.s32 %s64, 1
      %p68 = scmp.eq.s32.totalorder %s9, 5
      %p69 = scmp.ne.s32.totalorder %s64, %s66
      %p70 = scmp.eq.s32.totalorder %s9, 0
      %p71 = por %p69, %p70
      %p72 = scmp.ne.s32.totalorder %s64, %s66
      %p73 = scmp.eq.s32.totalorder %s14, 5
      %p74 = por %p72, %p73
      %p75 = scmp.ne.s32.totalorder %s66, %s67
      %p76 = scmp.eq.s32.totalorder %s14, 0
      %p77 = por %p75, %p76
      %p78 = scmp.ne.s32.totalorder %s66, %s67
      %p79 = scmp.eq.s32.totalorder %s15, 5
      %p80 = por %p78, %p79
      %p82 = scmp.ne.s32.totalorder %s67, %s81
      %p83 = scmp.eq.s32.totalorder %s15, 0
      %p84 = por %p82, %p83
      %s85 = ssub.s32 %s9, %s16
      %p86 = scmp.eq.s32.totalorder %s85, 0
      %s88 = sadd.s32 %s87, 1
      %s89 = scalar_select %p86, %s87, %s88
      %p92 = pneg %p86
      %p93 = scmp.eq.s32.totalorder %s9, 5
      %p94 = por %p92, %p93
      %p95 = scmp.ne.s32.totalorder %s87, %s90
      %p96 = scmp.eq.s32.totalorder %s9, 0
      %p97 = por %p95, %p96
      %p98 = scmp.ne.s32.totalorder %s87, %s90
      %p99 = scmp.eq.s32.totalorder %s14, 5
      %p100 = por %p98, %p99
      %p101 = scmp.ne.s32.totalorder %s90, %s91
      %p102 = scmp.eq.s32.totalorder %s14, 0
      %p103 = por %p101, %p102
      %p104 = scmp.ne.s32.totalorder %s90, %s91
      %p105 = scmp.eq.s32.totalorder %s15, 5
      %p106 = por %p104, %p105
      %p108 = scmp.ne.s32.totalorder %s91, %s107
      %p109 = scmp.eq.s32.totalorder %s15, 0
      %p110 = por %p108, %p109
      %p111 = scmp.le.s32.totalorder 1, %s9
      %p112 = scmp.lt.s32.totalorder %s9, 7
      %p113 = pnand %p111, %p112
      %p114 = pneg %p113
      // Predicated region
      $region9: #{unet3d_forward.10} parent=5 // pred_check
        _
      $region10: #{unet3d_forward.10} parent=5 // pred_check_branch
        %116 = sbr.rel (%p113) target = $region12
      $region11: #{unet3d_forward.10} parent=5 // pred_region
        %s117 = ssub.s32 %s9, 1
        // Predicated region
        $region13: #{unet3d_forward.10} parent=11 // pred_check
          %p118 = pneg %p30
        $region14: #{unet3d_forward.10} parent=11 // pred_check_branch
          %120 = sbr.rel (%p118) target = $region16
        $region15: #{unet3d_forward.10} parent=11 // pred_region
          _
        $region16: #{unet3d_forward.10} parent=11 // pred_fallthru
          _
        // Predicated region
        $region17: #{unet3d_forward.10} parent=11 // pred_check
          %p121 = pneg %p77
        $region18: #{unet3d_forward.10} parent=11 // pred_check_branch
          %123 = sbr.rel (%p121) target = $region20
        $region19: #{unet3d_forward.10} parent=11 // pred_region
          _
        $region20: #{unet3d_forward.10} parent=11 // pred_fallthru
          _
      $region12: #{unet3d_forward.10} parent=5 // pred_fallthru
        _
      %p124 = scmp.lt.s32.totalorder %s9, 6
      // Predicated region
      $region21: #{unet3d_forward.10} parent=5 // pred_check
        %p125 = pneg %p124
      $region22: #{unet3d_forward.10} parent=5 // pred_check_branch
        %127 = sbr.rel (%p125) target = $region24
      $region23: #{unet3d_forward.10} parent=5 // pred_region
        // Predicated region
        $region25: #{unet3d_forward.10} parent=23 // pred_check
          %p128 = pneg %p50
        $region26: #{unet3d_forward.10} parent=23 // pred_check_branch
          %130 = sbr.rel (%p128) target = $region28
        $region27: #{unet3d_forward.10} parent=23 // pred_region
          %s131 = sand.u32 %s40, 1
          %s132 = sand.u32 %s40, 1
          %s133 = smul.addr %s132, 1280
          %s134 = scalar_lea.vmem [#allocation2], %s133
          %s135 = smul.u32 4, %s9
          %s136 = smul.addr %s135, 4
          %s137 = scalar_lea.vmem %s1, %s136
          // Predicated region
          $region29: #{unet3d_forward.10} parent=27 // pred_check
            _
          $region30: #{unet3d_forward.10} parent=27 // pred_check_branch
            %139 = sbr.rel (0) target = $region32
          $region31: #{unet3d_forward.10} parent=27 // pred_region
            // Predicated region
            $region33: #{unet3d_forward.10} parent=31 // pred_check
              _
            $region34: #{unet3d_forward.10} parent=31 // pred_check_branch
              %141 = sbr.rel (0) target = $region36
            $region35: #{unet3d_forward.10} parent=31 // pred_region
              loop: start=0, step=1, limit=1
              $region37: #{unet3d_forward.10} parent=35 // loop_pre_header
                _
              $region38: #{unet3d_forward.10} parent=35 // loop_header
                %s143 = sphi 0, %s147
                %p144 = scmp.ge.s32.totalorder %s143, 1
                %s148 = sphi %s137, %s137
                %s149 = sphi %s134, %s134
              $region39: #{unet3d_forward.10} parent=35 // loop_header_branch
                %146 = sbr.rel (%p144) target = $region43
              $region40: #{unet3d_forward.10} parent=35 // loop_body
                %v150 = vld [vmem:[%s148] sm:$0xff]
                %151 = vst [vmem:[%s149] sm:$0xff] %v150
                %v152 = vld [vmem:[%s148 + $0x8] sm:$0xff]
                %153 = vst [vmem:[%s149 + $0x8] sm:$0xff] %v152
                %v154 = vld [vmem:[%s148 + $0x60] sm:$0xff]
                %155 = vst [vmem:[%s149 + $0x10] sm:$0xff] %v154
                %v156 = vld [vmem:[%s148 + $0x68] sm:$0xff]
                %157 = vst [vmem:[%s149 + $0x18] sm:$0xff] %v156
                %v158 = vld [vmem:[%s148 + $0xc0] sm:$0xff]
                %159 = vst [vmem:[%s149 + $0x20] sm:$0xff] %v158
                %v160 = vld [vmem:[%s148 + $0xc8] sm:$0xff]
                %161 = vst [vmem:[%s149 + $0x28] sm:$0xff] %v160
                %v162 = vld [vmem:[%s148 + $0x120] sm:$0xff]
                %163 = vst [vmem:[%s149 + $0x30] sm:$0xff] %v162
                %v164 = vld [vmem:[%s148 + $0x128] sm:$0xff]
                %165 = vst [vmem:[%s149 + $0x38] sm:$0xff] %v164
                %v166 = vld [vmem:[%s148 + $0x180] sm:$0xff]
                %167 = vst [vmem:[%s149 + $0x40] sm:$0xff] %v166
                %v168 = vld [vmem:[%s148 + $0x188] sm:$0xff]
                %169 = vst [vmem:[%s149 + $0x48] sm:$0xff] %v168
                %v170 = vld [vmem:[%s148 + $0x1e0] sm:$0xff]
                %171 = vst [vmem:[%s149 + $0x50] sm:$0xff] %v170
                %v172 = vld [vmem:[%s148 + $0x1e8] sm:$0xff]
                %173 = vst [vmem:[%s149 + $0x58] sm:$0xff] %v172
                %v174 = vld [vmem:[%s148 + $0x240] sm:$0xff]
                %175 = vst [vmem:[%s149 + $0x60] sm:$0xff] %v174
                %v176 = vld [vmem:[%s148 + $0x248] sm:$0xff]
                %177 = vst [vmem:[%s149 + $0x68] sm:$0xff] %v176
                %v178 = vld [vmem:[%s148 + $0x2a0] sm:$0xff]
                %179 = vst [vmem:[%s149 + $0x70] sm:$0xff] %v178
                %v180 = vld [vmem:[%s148 + $0x2a8] sm:$0xff]
                %181 = vst [vmem:[%s149 + $0x78] sm:$0xff] %v180
                %v182 = vld [vmem:[%s148 + $0x300] sm:$0xff]
                %183 = vst [vmem:[%s149 + $0x80] sm:$0xff] %v182
                %v184 = vld [vmem:[%s148 + $0x308] sm:$0xff]
                %185 = vst [vmem:[%s149 + $0x88] sm:$0xff] %v184
                %v186 = vld [vmem:[%s148 + $0x360] sm:$0xff]
                %187 = vst [vmem:[%s149 + $0x90] sm:$0xff] %v186
                %v188 = vld [vmem:[%s148 + $0x368] sm:$0xff]
                %189 = vst [vmem:[%s149 + $0x98] sm:$0xff] %v188
                %v190 = vld [vmem:[%s148 + $0x3c0] sm:$0xff]
                %191 = vst [vmem:[%s149 + $0xa0] sm:$0xff] %v190
                %v192 = vld [vmem:[%s148 + $0x3c8] sm:$0xff]
                %193 = vst [vmem:[%s149 + $0xa8] sm:$0xff] %v192
                %v194 = vld [vmem:[%s148 + $0x420] sm:$0xff]
                %195 = vst [vmem:[%s149 + $0xb0] sm:$0xff] %v194
                %v196 = vld [vmem:[%s148 + $0x428] sm:$0xff]
                %197 = vst [vmem:[%s149 + $0xb8] sm:$0xff] %v196
                %v198 = vld [vmem:[%s148 + $0x480] sm:$0xff]
                %199 = vst [vmem:[%s149 + $0xc0] sm:$0xff] %v198
                %v200 = vld [vmem:[%s148 + $0x488] sm:$0xff]
                %201 = vst [vmem:[%s149 + $0xc8] sm:$0xff] %v200
                %v202 = vld [vmem:[%s148 + $0x4e0] sm:$0xff]
                %203 = vst [vmem:[%s149 + $0xd0] sm:$0xff] %v202
                %v204 = vld [vmem:[%s148 + $0x4e8] sm:$0xff]
                %205 = vst [vmem:[%s149 + $0xd8] sm:$0xff] %v204
                %v206 = vld [vmem:[%s148 + $0x540] sm:$0xff]
                %207 = vst [vmem:[%s149 + $0xe0] sm:$0xff] %v206
                %v208 = vld [vmem:[%s148 + $0x548] sm:$0xff]
                %209 = vst [vmem:[%s149 + $0xe8] sm:$0xff] %v208
                %v210 = vld [vmem:[%s148 + $0x5a0] sm:$0xff]
                %211 = vst [vmem:[%s149 + $0xf0] sm:$0xff] %v210
                %v212 = vld [vmem:[%s148 + $0x5a8] sm:$0xff]
                %213 = vst [vmem:[%s149 + $0xf8] sm:$0xff] %v212
                %v214 = vld [vmem:[%s148 + $0x600] sm:$0xff]
                %215 = vst [vmem:[%s149 + $0x100] sm:$0xff] %v214
                %v216 = vld [vmem:[%s148 + $0x608] sm:$0xff]
                %217 = vst [vmem:[%s149 + $0x108] sm:$0xff] %v216
                %v218 = vld [vmem:[%s148 + $0x660] sm:$0xff]
                %219 = vst [vmem:[%s149 + $0x110] sm:$0xff] %v218
                %v220 = vld [vmem:[%s148 + $0x668] sm:$0xff]
                %221 = vst [vmem:[%s149 + $0x118] sm:$0xff] %v220
                %v222 = vld [vmem:[%s148 + $0x6c0] sm:$0xff]
                %223 = vst [vmem:[%s149 + $0x120] sm:$0xff] %v222
                %v224 = vld [vmem:[%s148 + $0x6c8] sm:$0xff]
                %225 = vst [vmem:[%s149 + $0x128] sm:$0xff] %v224
                %v226 = vld [vmem:[%s148 + $0x720] sm:$0xff]
                %227 = vst [vmem:[%s149 + $0x130] sm:$0xff] %v226
                %v228 = vld [vmem:[%s148 + $0x728] sm:$0xff]
                %229 = vst [vmem:[%s149 + $0x138] sm:$0xff] %v228
                %v230 = vld [vmem:[%s148 + $0x780] sm:$0xff]
                %231 = vst [vmem:[%s149 + $0x140] sm:$0xff] %v230
                %v232 = vld [vmem:[%s148 + $0x788] sm:$0xff]
                %233 = vst [vmem:[%s149 + $0x148] sm:$0xff] %v232
                %v234 = vld [vmem:[%s148 + $0x7e0] sm:$0xff]
                %235 = vst [vmem:[%s149 + $0x150] sm:$0xff] %v234
                %v236 = vld [vmem:[%s148 + $0x7e8] sm:$0xff]
                %237 = vst [vmem:[%s149 + $0x158] sm:$0xff] %v236
                %v238 = vld [vmem:[%s148 + $0x840] sm:$0xff]
                %239 = vst [vmem:[%s149 + $0x160] sm:$0xff] %v238
                %v240 = vld [vmem:[%s148 + $0x848] sm:$0xff]
                %241 = vst [vmem:[%s149 + $0x168] sm:$0xff] %v240
                %v242 = vld [vmem:[%s148 + $0x8a0] sm:$0xff]
                %243 = vst [vmem:[%s149 + $0x170] sm:$0xff] %v242
                %v244 = vld [vmem:[%s148 + $0x8a8] sm:$0xff]
                %245 = vst [vmem:[%s149 + $0x178] sm:$0xff] %v244
                %v246 = vld [vmem:[%s148 + $0x900] sm:$0xff]
                %247 = vst [vmem:[%s149 + $0x180] sm:$0xff] %v246
                %v248 = vld [vmem:[%s148 + $0x908] sm:$0xff]
                %249 = vst [vmem:[%s149 + $0x188] sm:$0xff] %v248
                %v250 = vld [vmem:[%s148 + $0x960] sm:$0xff]
                %251 = vst [vmem:[%s149 + $0x190] sm:$0xff] %v250
                %v252 = vld [vmem:[%s148 + $0x968] sm:$0xff]
                %253 = vst [vmem:[%s149 + $0x198] sm:$0xff] %v252
                %v254 = vld [vmem:[%s148 + $0x9c0] sm:$0xff]
                %255 = vst [vmem:[%s149 + $0x1a0] sm:$0xff] %v254
                %v256 = vld [vmem:[%s148 + $0x9c8] sm:$0xff]
                %257 = vst [vmem:[%s149 + $0x1a8] sm:$0xff] %v256
                %v258 = vld [vmem:[%s148 + $0xa20] sm:$0xff]
                %259 = vst [vmem:[%s149 + $0x1b0] sm:$0xff] %v258
                %v260 = vld [vmem:[%s148 + $0xa28] sm:$0xff]
                %261 = vst [vmem:[%s149 + $0x1b8] sm:$0xff] %v260
                %v262 = vld [vmem:[%s148 + $0xa80] sm:$0xff]
                %263 = vst [vmem:[%s149 + $0x1c0] sm:$0xff] %v262
                %v264 = vld [vmem:[%s148 + $0xa88] sm:$0xff]
                %265 = vst [vmem:[%s149 + $0x1c8] sm:$0xff] %v264
                %v266 = vld [vmem:[%s148 + $0xae0] sm:$0xff]
                %267 = vst [vmem:[%s149 + $0x1d0] sm:$0xff] %v266
                %v268 = vld [vmem:[%s148 + $0xae8] sm:$0xff]
                %269 = vst [vmem:[%s149 + $0x1d8] sm:$0xff] %v268
                %v270 = vld [vmem:[%s148 + $0xb40] sm:$0xff]
                %271 = vst [vmem:[%s149 + $0x1e0] sm:$0xff] %v270
                %v272 = vld [vmem:[%s148 + $0xb48] sm:$0xff]
                %273 = vst [vmem:[%s149 + $0x1e8] sm:$0xff] %v272
                %v274 = vld [vmem:[%s148 + $0xba0] sm:$0xff]
                %275 = vst [vmem:[%s149 + $0x1f0] sm:$0xff] %v274
                %v276 = vld [vmem:[%s148 + $0xba8] sm:$0xff]
                %277 = vst [vmem:[%s149 + $0x1f8] sm:$0xff] %v276
                %v278 = vld [vmem:[%s148 + $0xc00] sm:$0xff]
                %279 = vst [vmem:[%s149 + $0x200] sm:$0xff] %v278
                %v280 = vld [vmem:[%s148 + $0xc08] sm:$0xff]
                %281 = vst [vmem:[%s149 + $0x208] sm:$0xff] %v280
                %v282 = vld [vmem:[%s148 + $0xc60] sm:$0xff]
                %283 = vst [vmem:[%s149 + $0x210] sm:$0xff] %v282
                %v284 = vld [vmem:[%s148 + $0xc68] sm:$0xff]
                %285 = vst [vmem:[%s149 + $0x218] sm:$0xff] %v284
                %v286 = vld [vmem:[%s148 + $0xcc0] sm:$0xff]
                %287 = vst [vmem:[%s149 + $0x220] sm:$0xff] %v286
                %v288 = vld [vmem:[%s148 + $0xcc8] sm:$0xff]
                %289 = vst [vmem:[%s149 + $0x228] sm:$0xff] %v288
                %v290 = vld [vmem:[%s148 + $0xd20] sm:$0xff]
                %291 = vst [vmem:[%s149 + $0x230] sm:$0xff] %v290
                %v292 = vld [vmem:[%s148 + $0xd28] sm:$0xff]
                %293 = vst [vmem:[%s149 + $0x238] sm:$0xff] %v292
                %v294 = vld [vmem:[%s148 + $0xd80] sm:$0xff]
                %295 = vst [vmem:[%s149 + $0x240] sm:$0xff] %v294
                %v296 = vld [vmem:[%s148 + $0xd88] sm:$0xff]
                %297 = vst [vmem:[%s149 + $0x248] sm:$0xff] %v296
                %v298 = vld [vmem:[%s148 + $0xde0] sm:$0xff]
                %299 = vst [vmem:[%s149 + $0x250] sm:$0xff] %v298
                %v300 = vld [vmem:[%s148 + $0xde8] sm:$0xff]
                %301 = vst [vmem:[%s149 + $0x258] sm:$0xff] %v300
                %v302 = vld [vmem:[%s148 + $0xe40] sm:$0xff]
                %303 = vst [vmem:[%s149 + $0x260] sm:$0xff] %v302
                %v304 = vld [vmem:[%s148 + $0xe48] sm:$0xff]
                %305 = vst [vmem:[%s149 + $0x268] sm:$0xff] %v304
                %v306 = vld [vmem:[%s148 + $0xea0] sm:$0xff]
                %307 = vst [vmem:[%s149 + $0x270] sm:$0xff] %v306
                %v308 = vld [vmem:[%s148 + $0xea8] sm:$0xff]
                %309 = vst [vmem:[%s149 + $0x278] sm:$0xff] %v308
                %v310 = vld [vmem:[%s148 + $0xf00] sm:$0xff]
                %311 = vst [vmem:[%s149 + $0x280] sm:$0xff] %v310
                %v312 = vld [vmem:[%s148 + $0xf08] sm:$0xff]
                %313 = vst [vmem:[%s149 + $0x288] sm:$0xff] %v312
                %v314 = vld [vmem:[%s148 + $0xf60] sm:$0xff]
                %315 = vst [vmem:[%s149 + $0x290] sm:$0xff] %v314
                %v316 = vld [vmem:[%s148 + $0xf68] sm:$0xff]
                %317 = vst [vmem:[%s149 + $0x298] sm:$0xff] %v316
                %v318 = vld [vmem:[%s148 + $0xfc0] sm:$0xff]
                %319 = vst [vmem:[%s149 + $0x2a0] sm:$0xff] %v318
                %v320 = vld [vmem:[%s148 + $0xfc8] sm:$0xff]
                %321 = vst [vmem:[%s149 + $0x2a8] sm:$0xff] %v320
                %v322 = vld [vmem:[%s148 + $0x1020] sm:$0xff]
                %323 = vst [vmem:[%s149 + $0x2b0] sm:$0xff] %v322
                %v324 = vld [vmem:[%s148 + $0x1028] sm:$0xff]
                %325 = vst [vmem:[%s149 + $0x2b8] sm:$0xff] %v324
                %v326 = vld [vmem:[%s148 + $0x1080] sm:$0xff]
                %327 = vst [vmem:[%s149 + $0x2c0] sm:$0xff] %v326
                %v328 = vld [vmem:[%s148 + $0x1088] sm:$0xff]
                %329 = vst [vmem:[%s149 + $0x2c8] sm:$0xff] %v328
                %v330 = vld [vmem:[%s148 + $0x10e0] sm:$0xff]
                %331 = vst [vmem:[%s149 + $0x2d0] sm:$0xff] %v330
                %v332 = vld [vmem:[%s148 + $0x10e8] sm:$0xff]
                %333 = vst [vmem:[%s149 + $0x2d8] sm:$0xff] %v332
                %v334 = vld [vmem:[%s148 + $0x1140] sm:$0xff]
                %335 = vst [vmem:[%s149 + $0x2e0] sm:$0xff] %v334
                %v336 = vld [vmem:[%s148 + $0x1148] sm:$0xff]
                %337 = vst [vmem:[%s149 + $0x2e8] sm:$0xff] %v336
                %v338 = vld [vmem:[%s148 + $0x11a0] sm:$0xff]
                %339 = vst [vmem:[%s149 + $0x2f0] sm:$0xff] %v338
                %v340 = vld [vmem:[%s148 + $0x11a8] sm:$0xff]
                %341 = vst [vmem:[%s149 + $0x2f8] sm:$0xff] %v340
                %v342 = vld [vmem:[%s148 + $0x1200] sm:$0xff]
                %343 = vst [vmem:[%s149 + $0x300] sm:$0xff] %v342
                %v344 = vld [vmem:[%s148 + $0x1208] sm:$0xff]
                %345 = vst [vmem:[%s149 + $0x308] sm:$0xff] %v344
                %v346 = vld [vmem:[%s148 + $0x1260] sm:$0xff]
                %347 = vst [vmem:[%s149 + $0x310] sm:$0xff] %v346
                %v348 = vld [vmem:[%s148 + $0x1268] sm:$0xff]
                %349 = vst [vmem:[%s149 + $0x318] sm:$0xff] %v348
                %v350 = vld [vmem:[%s148 + $0x12c0] sm:$0xff]
                %351 = vst [vmem:[%s149 + $0x320] sm:$0xff] %v350
                %v352 = vld [vmem:[%s148 + $0x12c8] sm:$0xff]
                %353 = vst [vmem:[%s149 + $0x328] sm:$0xff] %v352
                %v354 = vld [vmem:[%s148 + $0x1320] sm:$0xff]
                %355 = vst [vmem:[%s149 + $0x330] sm:$0xff] %v354
                %v356 = vld [vmem:[%s148 + $0x1328] sm:$0xff]
                %357 = vst [vmem:[%s149 + $0x338] sm:$0xff] %v356
                %v358 = vld [vmem:[%s148 + $0x1380] sm:$0xff]
                %359 = vst [vmem:[%s149 + $0x340] sm:$0xff] %v358
                %v360 = vld [vmem:[%s148 + $0x1388] sm:$0xff]
                %361 = vst [vmem:[%s149 + $0x348] sm:$0xff] %v360
                %v362 = vld [vmem:[%s148 + $0x13e0] sm:$0xff]
                %363 = vst [vmem:[%s149 + $0x350] sm:$0xff] %v362
                %v364 = vld [vmem:[%s148 + $0x13e8] sm:$0xff]
                %365 = vst [vmem:[%s149 + $0x358] sm:$0xff] %v364
                %v366 = vld [vmem:[%s148 + $0x1440] sm:$0xff]
                %367 = vst [vmem:[%s149 + $0x360] sm:$0xff] %v366
                %v368 = vld [vmem:[%s148 + $0x1448] sm:$0xff]
                %369 = vst [vmem:[%s149 + $0x368] sm:$0xff] %v368
                %v370 = vld [vmem:[%s148 + $0x14a0] sm:$0xff]
                %371 = vst [vmem:[%s149 + $0x370] sm:$0xff] %v370
                %v372 = vld [vmem:[%s148 + $0x14a8] sm:$0xff]
                %373 = vst [vmem:[%s149 + $0x378] sm:$0xff] %v372
                %v374 = vld [vmem:[%s148 + $0x1500] sm:$0xff]
                %375 = vst [vmem:[%s149 + $0x380] sm:$0xff] %v374
                %v376 = vld [vmem:[%s148 + $0x1508] sm:$0xff]
                %377 = vst [vmem:[%s149 + $0x388] sm:$0xff] %v376
                %v378 = vld [vmem:[%s148 + $0x1560] sm:$0xff]
                %379 = vst [vmem:[%s149 + $0x390] sm:$0xff] %v378
                %v380 = vld [vmem:[%s148 + $0x1568] sm:$0xff]
                %381 = vst [vmem:[%s149 + $0x398] sm:$0xff] %v380
                %v382 = vld [vmem:[%s148 + $0x15c0] sm:$0xff]
                %383 = vst [vmem:[%s149 + $0x3a0] sm:$0xff] %v382
                %v384 = vld [vmem:[%s148 + $0x15c8] sm:$0xff]
                %385 = vst [vmem:[%s149 + $0x3a8] sm:$0xff] %v384
                %v386 = vld [vmem:[%s148 + $0x1620] sm:$0xff]
                %387 = vst [vmem:[%s149 + $0x3b0] sm:$0xff] %v386
                %v388 = vld [vmem:[%s148 + $0x1628] sm:$0xff]
                %389 = vst [vmem:[%s149 + $0x3b8] sm:$0xff] %v388
                %v390 = vld [vmem:[%s148 + $0x1680] sm:$0xff]
                %391 = vst [vmem:[%s149 + $0x3c0] sm:$0xff] %v390
                %v392 = vld [vmem:[%s148 + $0x1688] sm:$0xff]
                %393 = vst [vmem:[%s149 + $0x3c8] sm:$0xff] %v392
                %v394 = vld [vmem:[%s148 + $0x16e0] sm:$0xff]
                %395 = vst [vmem:[%s149 + $0x3d0] sm:$0xff] %v394
                %v396 = vld [vmem:[%s148 + $0x16e8] sm:$0xff]
                %397 = vst [vmem:[%s149 + $0x3d8] sm:$0xff] %v396
                %v398 = vld [vmem:[%s148 + $0x1740] sm:$0xff]
                %399 = vst [vmem:[%s149 + $0x3e0] sm:$0xff] %v398
                %v400 = vld [vmem:[%s148 + $0x1748] sm:$0xff]
                %401 = vst [vmem:[%s149 + $0x3e8] sm:$0xff] %v400
                %v402 = vld [vmem:[%s148 + $0x17a0] sm:$0xff]
                %403 = vst [vmem:[%s149 + $0x3f0] sm:$0xff] %v402
                %v404 = vld [vmem:[%s148 + $0x17a8] sm:$0xff]
                %405 = vst [vmem:[%s149 + $0x3f8] sm:$0xff] %v404
                %v406 = vld [vmem:[%s148 + $0x1800] sm:$0xff]
                %407 = vst [vmem:[%s149 + $0x400] sm:$0xff] %v406
                %v408 = vld [vmem:[%s148 + $0x1808] sm:$0xff]
                %409 = vst [vmem:[%s149 + $0x408] sm:$0xff] %v408
                %v410 = vld [vmem:[%s148 + $0x1860] sm:$0xff]
                %411 = vst [vmem:[%s149 + $0x410] sm:$0xff] %v410
                %v412 = vld [vmem:[%s148 + $0x1868] sm:$0xff]
                %413 = vst [vmem:[%s149 + $0x418] sm:$0xff] %v412
                %v414 = vld [vmem:[%s148 + $0x18c0] sm:$0xff]
                %415 = vst [vmem:[%s149 + $0x420] sm:$0xff] %v414
                %v416 = vld [vmem:[%s148 + $0x18c8] sm:$0xff]
                %417 = vst [vmem:[%s149 + $0x428] sm:$0xff] %v416
                %v418 = vld [vmem:[%s148 + $0x1920] sm:$0xff]
                %419 = vst [vmem:[%s149 + $0x430] sm:$0xff] %v418
                %v420 = vld [vmem:[%s148 + $0x1928] sm:$0xff]
                %421 = vst [vmem:[%s149 + $0x438] sm:$0xff] %v420
                %v422 = vld [vmem:[%s148 + $0x1980] sm:$0xff]
                %423 = vst [vmem:[%s149 + $0x440] sm:$0xff] %v422
                %v424 = vld [vmem:[%s148 + $0x1988] sm:$0xff]
                %425 = vst [vmem:[%s149 + $0x448] sm:$0xff] %v424
                %v426 = vld [vmem:[%s148 + $0x19e0] sm:$0xff]
                %427 = vst [vmem:[%s149 + $0x450] sm:$0xff] %v426
                %v428 = vld [vmem:[%s148 + $0x19e8] sm:$0xff]
                %429 = vst [vmem:[%s149 + $0x458] sm:$0xff] %v428
                %v430 = vld [vmem:[%s148 + $0x1a40] sm:$0xff]
                %431 = vst [vmem:[%s149 + $0x460] sm:$0xff] %v430
                %v432 = vld [vmem:[%s148 + $0x1a48] sm:$0xff]
                %433 = vst [vmem:[%s149 + $0x468] sm:$0xff] %v432
                %v434 = vld [vmem:[%s148 + $0x1aa0] sm:$0xff]
                %435 = vst [vmem:[%s149 + $0x470] sm:$0xff] %v434
                %v436 = vld [vmem:[%s148 + $0x1aa8] sm:$0xff]
                %437 = vst [vmem:[%s149 + $0x478] sm:$0xff] %v436
                %v438 = vld [vmem:[%s148 + $0x1b00] sm:$0xff]
                %439 = vst [vmem:[%s149 + $0x480] sm:$0xff] %v438
                %v440 = vld [vmem:[%s148 + $0x1b08] sm:$0xff]
                %441 = vst [vmem:[%s149 + $0x488] sm:$0xff] %v440
                %v442 = vld [vmem:[%s148 + $0x1b60] sm:$0xff]
                %443 = vst [vmem:[%s149 + $0x490] sm:$0xff] %v442
                %v444 = vld [vmem:[%s148 + $0x1b68] sm:$0xff]
                %445 = vst [vmem:[%s149 + $0x498] sm:$0xff] %v444
                %v446 = vld [vmem:[%s148 + $0x1bc0] sm:$0xff]
                %447 = vst [vmem:[%s149 + $0x4a0] sm:$0xff] %v446
                %v448 = vld [vmem:[%s148 + $0x1bc8] sm:$0xff]
                %449 = vst [vmem:[%s149 + $0x4a8] sm:$0xff] %v448
                %v450 = vld [vmem:[%s148 + $0x1c20] sm:$0xff]
                %451 = vst [vmem:[%s149 + $0x4b0] sm:$0xff] %v450
                %v452 = vld [vmem:[%s148 + $0x1c28] sm:$0xff]
                %453 = vst [vmem:[%s149 + $0x4b8] sm:$0xff] %v452
                %v454 = vld [vmem:[%s148 + $0x1c80] sm:$0xff]
                %455 = vst [vmem:[%s149 + $0x4c0] sm:$0xff] %v454
                %v456 = vld [vmem:[%s148 + $0x1c88] sm:$0xff]
                %457 = vst [vmem:[%s149 + $0x4c8] sm:$0xff] %v456
                %v458 = vld [vmem:[%s148 + $0x1ce0] sm:$0xff]
                %459 = vst [vmem:[%s149 + $0x4d0] sm:$0xff] %v458
                %v460 = vld [vmem:[%s148 + $0x1ce8] sm:$0xff]
                %461 = vst [vmem:[%s149 + $0x4d8] sm:$0xff] %v460
                %v462 = vld [vmem:[%s148 + $0x1d40] sm:$0xff]
                %463 = vst [vmem:[%s149 + $0x4e0] sm:$0xff] %v462
                %v464 = vld [vmem:[%s148 + $0x1d48] sm:$0xff]
                %465 = vst [vmem:[%s149 + $0x4e8] sm:$0xff] %v464
                %v466 = vld [vmem:[%s148 + $0x1da0] sm:$0xff]
                %467 = vst [vmem:[%s149 + $0x4f0] sm:$0xff] %v466
                %v468 = vld [vmem:[%s148 + $0x1da8] sm:$0xff]
                %469 = vst [vmem:[%s149 + $0x4f8] sm:$0xff] %v468
              $region41: #{unet3d_forward.10} parent=35 // loop_footer
                %s147 = sadd.s32 1, %s143
              $region42: #{unet3d_forward.10} parent=35 // loop_footer_branch
                %142 = sbr.rel target = $region38
              $region43: #{unet3d_forward.10} parent=35 // loop_exit
                _
            $region36: #{unet3d_forward.10} parent=31 // pred_fallthru
              _
            // Predicated region
            $region44: #{unet3d_forward.10} parent=31 // pred_check
              _
            $region45: #{unet3d_forward.10} parent=31 // pred_check_branch
              %471 = sbr.rel target = $region47
            $region46: #{unet3d_forward.10} parent=31 // pred_region
              _
            $region47: #{unet3d_forward.10} parent=31 // pred_fallthru
              _
          $region32: #{unet3d_forward.10} parent=27 // pred_fallthru
            _
          %472 = vnop
        $region28: #{unet3d_forward.10} parent=23 // pred_fallthru
          _
      $region24: #{unet3d_forward.10} parent=5 // pred_fallthru
        _
      %p473 = scmp.le.s32.totalorder 1, %s9
      %p474 = scmp.lt.s32.totalorder %s9, 7
      %p475 = pnand %p473, %p474
      %p476 = pneg %p475
      // Predicated region
      $region48: #{unet3d_forward.10} parent=5 // pred_check
        _
      $region49: #{unet3d_forward.10} parent=5 // pred_check_branch
        %478 = sbr.rel (%p475) target = $region51
      $region50: #{unet3d_forward.10} parent=5 // pred_region
        %s479 = ssub.s32 %s9, 1
        %s480 = sand.u32 %s43, 1
        %s481 = sand.u32 %s43, 1
        %s482 = smul.addr %s481, 1280
        %s483 = scalar_lea.vmem [#allocation2], %s482
        // Predicated region
        $region52: #{unet3d_forward.10} parent=50 // pred_check
          %p484 = pneg %p56
        $region53: #{unet3d_forward.10} parent=50 // pred_check_branch
          %486 = sbr.rel (%p484) target = $region55
        $region54: #{unet3d_forward.10} parent=50 // pred_region
          _
        $region55: #{unet3d_forward.10} parent=50 // pred_fallthru
          _
        %p487 = pneg %p30
        %p488 = pneg %p27
        %s489 = sand.u32 %s43, 1
        %s490 = sand.u32 %s43, 1
        %s491 = smul.addr %s490, 1280
        %s492 = scalar_lea.vmem [#allocation2], %s491
        %p493 = pneg %p56
        %p494 = pneg %p53
        %p495 = pneg %p77
        %p496 = pneg %p74
        %p497 = pneg %p103
        %p498 = pneg %p100
        %s499 = sand.u32 %s90, 1
        %s500 = sand.u32 %s90, 1
        %s501 = smul.addr %s500, 64
        %s502 = scalar_lea.vmem [#allocation3], %s501
        %s503 = smul.u32 4, %s14
        %s504 = smul.u32 4, %s14
        %v506 = vld [vmem:[%s483] sm:$0xff]
        %v507 = vld [vmem:[%s483 + $0x8] sm:$0xff]
        %v508 = vld [vmem:[%s483 + $0x10] sm:$0xff]
        %v509 = vld [vmem:[%s483 + $0x18] sm:$0xff]
        %v510 = vld [vmem:[%s483 + $0x20] sm:$0xff]
        %v511 = vld [vmem:[%s483 + $0x28] sm:$0xff]
        %v512 = vld [vmem:[%s483 + $0x30] sm:$0xff]
        %v513 = vld [vmem:[%s483 + $0x38] sm:$0xff]
        %v514 = vld [vmem:[%s483 + $0x40] sm:$0xff]
        %v515 = vld [vmem:[%s483 + $0x48] sm:$0xff]
        %v516 = vld [vmem:[%s483 + $0x50] sm:$0xff]
        %v517 = vld [vmem:[%s483 + $0x58] sm:$0xff]
        %v518 = vld [vmem:[%s483 + $0x60] sm:$0xff]
        %v519 = vld [vmem:[%s483 + $0x68] sm:$0xff]
        %v520 = vld [vmem:[%s483 + $0x70] sm:$0xff]
        %v521 = vld [vmem:[%s483 + $0x78] sm:$0xff]
        %v522 = vld [vmem:[%s483 + $0x80] sm:$0xff]
        %v523 = vld [vmem:[%s483 + $0x88] sm:$0xff]
        %v524 = vld [vmem:[%s483 + $0x90] sm:$0xff]
        %v525 = vld [vmem:[%s483 + $0x98] sm:$0xff]
        %v526 = vld [vmem:[%s483 + $0xa0] sm:$0xff]
        %v527 = vld [vmem:[%s483 + $0xa8] sm:$0xff]
        %v528 = vld [vmem:[%s483 + $0xb0] sm:$0xff]
        %v529 = vld [vmem:[%s483 + $0xb8] sm:$0xff]
        %v530 = vld [vmem:[%s483 + $0xc0] sm:$0xff]
        %v531 = vld [vmem:[%s483 + $0xc8] sm:$0xff]
        %v532 = vld [vmem:[%s483 + $0xd0] sm:$0xff]
        %v533 = vld [vmem:[%s483 + $0xd8] sm:$0xff]
        %v534 = vld [vmem:[%s483 + $0xe0] sm:$0xff]
        %v535 = vld [vmem:[%s483 + $0xe8] sm:$0xff]
        %v536 = vld [vmem:[%s483 + $0xf0] sm:$0xff]
        %v537 = vld [vmem:[%s483 + $0xf8] sm:$0xff]
        %v538 = vld [vmem:[%s483 + $0x100] sm:$0xff]
        %v539 = vld [vmem:[%s483 + $0x108] sm:$0xff]
        %v540 = vld [vmem:[%s483 + $0x110] sm:$0xff]
        %v541 = vld [vmem:[%s483 + $0x118] sm:$0xff]
        %v542 = vld [vmem:[%s483 + $0x120] sm:$0xff]
        %v543 = vld [vmem:[%s483 + $0x128] sm:$0xff]
        %v544 = vld [vmem:[%s483 + $0x130] sm:$0xff]
        %v545 = vld [vmem:[%s483 + $0x138] sm:$0xff]
        %v546 = vld [vmem:[%s483 + $0x140] sm:$0xff]
        %v547 = vld [vmem:[%s483 + $0x148] sm:$0xff]
        %v548 = vld [vmem:[%s483 + $0x150] sm:$0xff]
        %v549 = vld [vmem:[%s483 + $0x158] sm:$0xff]
        %v550 = vld [vmem:[%s483 + $0x160] sm:$0xff]
        %v551 = vld [vmem:[%s483 + $0x168] sm:$0xff]
        %v552 = vld [vmem:[%s483 + $0x170] sm:$0xff]
        %v553 = vld [vmem:[%s483 + $0x178] sm:$0xff]
        %v554 = vld [vmem:[%s483 + $0x180] sm:$0xff]
        %v555 = vld [vmem:[%s483 + $0x188] sm:$0xff]
        %v556 = vld [vmem:[%s483 + $0x190] sm:$0xff]
        %v557 = vld [vmem:[%s483 + $0x198] sm:$0xff]
        %v558 = vld [vmem:[%s483 + $0x1a0] sm:$0xff]
        %v559 = vld [vmem:[%s483 + $0x1a8] sm:$0xff]
        %v560 = vld [vmem:[%s483 + $0x1b0] sm:$0xff]
        %v561 = vld [vmem:[%s483 + $0x1b8] sm:$0xff]
        %v562 = vld [vmem:[%s483 + $0x1c0] sm:$0xff]
        %v563 = vld [vmem:[%s483 + $0x1c8] sm:$0xff]
        %v564 = vld [vmem:[%s483 + $0x1d0] sm:$0xff]
        %v565 = vld [vmem:[%s483 + $0x1d8] sm:$0xff]
        %v566 = vld [vmem:[%s483 + $0x1e0] sm:$0xff]
        %v567 = vld [vmem:[%s483 + $0x1e8] sm:$0xff]
        %v568 = vld [vmem:[%s483 + $0x1f0] sm:$0xff]
        %v569 = vld [vmem:[%s483 + $0x1f8] sm:$0xff]
        %v570 = vld [vmem:[%s483 + $0x200] sm:$0xff]
        %v571 = vld [vmem:[%s483 + $0x208] sm:$0xff]
        %v572 = vld [vmem:[%s483 + $0x210] sm:$0xff]
        %v573 = vld [vmem:[%s483 + $0x218] sm:$0xff]
        %v574 = vld [vmem:[%s483 + $0x220] sm:$0xff]
        %v575 = vld [vmem:[%s483 + $0x228] sm:$0xff]
        %v576 = vld [vmem:[%s483 + $0x230] sm:$0xff]
        %v577 = vld [vmem:[%s483 + $0x238] sm:$0xff]
        %v578 = vld [vmem:[%s483 + $0x240] sm:$0xff]
        %v579 = vld [vmem:[%s483 + $0x248] sm:$0xff]
        %v580 = vld [vmem:[%s483 + $0x250] sm:$0xff]
        %v581 = vld [vmem:[%s483 + $0x258] sm:$0xff]
        %v582 = vld [vmem:[%s483 + $0x260] sm:$0xff]
        %v583 = vld [vmem:[%s483 + $0x268] sm:$0xff]
        %v584 = vld [vmem:[%s483 + $0x270] sm:$0xff]
        %v585 = vld [vmem:[%s483 + $0x278] sm:$0xff]
        %v586 = vld [vmem:[%s483 + $0x280] sm:$0xff]
        %v587 = vld [vmem:[%s483 + $0x288] sm:$0xff]
        %v588 = vld [vmem:[%s483 + $0x290] sm:$0xff]
        %v589 = vld [vmem:[%s483 + $0x298] sm:$0xff]
        %v590 = vld [vmem:[%s483 + $0x2a0] sm:$0xff]
        %v591 = vld [vmem:[%s483 + $0x2a8] sm:$0xff]
        %v592 = vld [vmem:[%s483 + $0x2b0] sm:$0xff]
        %v593 = vld [vmem:[%s483 + $0x2b8] sm:$0xff]
        %v594 = vld [vmem:[%s483 + $0x2c0] sm:$0xff]
        %v595 = vld [vmem:[%s483 + $0x2c8] sm:$0xff]
        %v596 = vld [vmem:[%s483 + $0x2d0] sm:$0xff]
        %v597 = vld [vmem:[%s483 + $0x2d8] sm:$0xff]
        %v598 = vld [vmem:[%s483 + $0x2e0] sm:$0xff]
        %v599 = vld [vmem:[%s483 + $0x2e8] sm:$0xff]
        %v600 = vld [vmem:[%s483 + $0x2f0] sm:$0xff]
        %v601 = vld [vmem:[%s483 + $0x2f8] sm:$0xff]
        %v602 = vld [vmem:[%s483 + $0x300] sm:$0xff]
        %v603 = vld [vmem:[%s483 + $0x308] sm:$0xff]
        %v604 = vld [vmem:[%s483 + $0x310] sm:$0xff]
        %v605 = vld [vmem:[%s483 + $0x318] sm:$0xff]
        %v606 = vld [vmem:[%s483 + $0x320] sm:$0xff]
        %v607 = vld [vmem:[%s483 + $0x328] sm:$0xff]
        %v608 = vld [vmem:[%s483 + $0x330] sm:$0xff]
        %v609 = vld [vmem:[%s483 + $0x338] sm:$0xff]
        %v610 = vld [vmem:[%s483 + $0x340] sm:$0xff]
        %v611 = vld [vmem:[%s483 + $0x348] sm:$0xff]
        %v612 = vld [vmem:[%s483 + $0x350] sm:$0xff]
        %v613 = vld [vmem:[%s483 + $0x358] sm:$0xff]
        %v614 = vld [vmem:[%s483 + $0x360] sm:$0xff]
        %v615 = vld [vmem:[%s483 + $0x368] sm:$0xff]
        %v616 = vld [vmem:[%s483 + $0x370] sm:$0xff]
        %v617 = vld [vmem:[%s483 + $0x378] sm:$0xff]
        %v618 = vld [vmem:[%s483 + $0x380] sm:$0xff]
        %v619 = vld [vmem:[%s483 + $0x388] sm:$0xff]
        %v620 = vld [vmem:[%s483 + $0x390] sm:$0xff]
        %v621 = vld [vmem:[%s483 + $0x398] sm:$0xff]
        %v622 = vld [vmem:[%s483 + $0x3a0] sm:$0xff]
        %v623 = vld [vmem:[%s483 + $0x3a8] sm:$0xff]
        %v624 = vld [vmem:[%s483 + $0x3b0] sm:$0xff]
        %v625 = vld [vmem:[%s483 + $0x3b8] sm:$0xff]
        %v626 = vld [vmem:[%s483 + $0x3c0] sm:$0xff]
        %v627 = vld [vmem:[%s483 + $0x3c8] sm:$0xff]
        %v628 = vld [vmem:[%s483 + $0x3d0] sm:$0xff]
        %v629 = vld [vmem:[%s483 + $0x3d8] sm:$0xff]
        %v630 = vld [vmem:[%s483 + $0x3e0] sm:$0xff]
        %v631 = vld [vmem:[%s483 + $0x3e8] sm:$0xff]
        %v632 = vld [vmem:[%s483 + $0x3f0] sm:$0xff]
        %v633 = vld [vmem:[%s483 + $0x3f8] sm:$0xff]
        %v634 = vld [vmem:[%s483 + $0x400] sm:$0xff]
        %v635 = vld [vmem:[%s483 + $0x408] sm:$0xff]
        %v636 = vld [vmem:[%s483 + $0x410] sm:$0xff]
        %v637 = vld [vmem:[%s483 + $0x418] sm:$0xff]
        %v638 = vld [vmem:[%s483 + $0x420] sm:$0xff]
        %v639 = vld [vmem:[%s483 + $0x428] sm:$0xff]
        %v640 = vld [vmem:[%s483 + $0x430] sm:$0xff]
        %v641 = vld [vmem:[%s483 + $0x438] sm:$0xff]
        %v642 = vld [vmem:[%s483 + $0x440] sm:$0xff]
        %v643 = vld [vmem:[%s483 + $0x448] sm:$0xff]
        %v644 = vld [vmem:[%s483 + $0x450] sm:$0xff]
        %v645 = vld [vmem:[%s483 + $0x458] sm:$0xff]
        %v646 = vld [vmem:[%s483 + $0x460] sm:$0xff]
        %v647 = vld [vmem:[%s483 + $0x468] sm:$0xff]
        %v648 = vld [vmem:[%s483 + $0x470] sm:$0xff]
        %v649 = vld [vmem:[%s483 + $0x478] sm:$0xff]
        %v650 = vld [vmem:[%s483 + $0x480] sm:$0xff]
        %v651 = vld [vmem:[%s483 + $0x488] sm:$0xff]
        %v652 = vld [vmem:[%s483 + $0x490] sm:$0xff]
        %v653 = vld [vmem:[%s483 + $0x498] sm:$0xff]
        %v654 = vld [vmem:[%s483 + $0x4a0] sm:$0xff]
        %v655 = vld [vmem:[%s483 + $0x4a8] sm:$0xff]
        %v656 = vld [vmem:[%s483 + $0x4b0] sm:$0xff]
        %v657 = vld [vmem:[%s483 + $0x4b8] sm:$0xff]
        %v658 = vld [vmem:[%s483 + $0x4c0] sm:$0xff]
        %v659 = vld [vmem:[%s483 + $0x4c8] sm:$0xff]
        %v660 = vld [vmem:[%s483 + $0x4d0] sm:$0xff]
        %v661 = vld [vmem:[%s483 + $0x4d8] sm:$0xff]
        %v662 = vld [vmem:[%s483 + $0x4e0] sm:$0xff]
        %v663 = vld [vmem:[%s483 + $0x4e8] sm:$0xff]
        %v664 = vld [vmem:[%s483 + $0x4f0] sm:$0xff]
        %v665 = vld [vmem:[%s483 + $0x4f8] sm:$0xff]
        %v666 = vld [vmem:[%s0] sm:$0xff]
        %v667 = vld [vmem:[%s0 + $0x8] sm:$0xff]
        %v668 = vld [vmem:[%s0 + $0x10] sm:$0xf]
        %v669 = vld [vmem:[%s0 + $0x14] sm:$0xff]
        %v670 = vld [vmem:[%s0 + $0x1c] sm:$0xff]
        %v671 = vld [vmem:[%s0 + $0x24] sm:$0xf]
        %v672 = vld [vmem:[%s2] sm:$0xff]
        %v673 = vld [vmem:[%s2 + $0x8] sm:$0xff]
        %675 = vset.pattern.permute.xlu0 0
        %676 = vperm.xlu0 %675, %v672
        %v677 = vpop.permute.xlu0 %676
        %680 = vset.pattern.permute.xlu0 0
        %681 = vperm.xlu0 %680, %v673
        %v682 = vpop.permute.xlu0 %681
        %v690 = vunpack.c.l.b16 %v666
        %v691 = vunpack.c.h.b16 %v666
        %v692 = vunpack.c.l.b16 %v667
        %v693 = vunpack.c.h.b16 %v667
        %v694 = vunpack.c.l.b16 %v668
        %v695 = vunpack.c.l.b16 %v669
        %v696 = vunpack.c.h.b16 %v669
        %v697 = vunpack.c.l.b16 %v670
        %v698 = vunpack.c.h.b16 %v670
        %v699 = vunpack.c.l.b16 %v671
        %v700 = vpack.c.b16 %v695, %v690
        %v701 = vpack.c.b16 %v696, %v691
        %v702 = vpack.c.b16 %v697, %v692
        %v703 = vpack.c.b16 %v698, %v693
        %v704 = vpack.c.b16 %v699, %v694
        %v870 = vunpack.c.l.b16 %v506
        %v871 = vunpack.c.h.b16 %v506
        %v872 = vunpack.c.l.b16 %v507
        %v873 = vunpack.c.h.b16 %v507
        %v874 = vunpack.c.l.b16 %v508
        %v875 = vunpack.c.h.b16 %v508
        %v876 = vunpack.c.l.b16 %v509
        %v877 = vunpack.c.h.b16 %v509
        %v878 = vunpack.c.l.b16 %v510
        %v879 = vunpack.c.h.b16 %v510
        %v880 = vunpack.c.l.b16 %v511
        %v881 = vunpack.c.h.b16 %v511
        %v882 = vunpack.c.l.b16 %v512
        %v883 = vunpack.c.h.b16 %v512
        %v884 = vunpack.c.l.b16 %v513
        %v885 = vunpack.c.h.b16 %v513
        %v886 = vunpack.c.l.b16 %v514
        %v887 = vunpack.c.h.b16 %v514
        %v888 = vunpack.c.l.b16 %v515
        %v889 = vunpack.c.h.b16 %v515
        %v890 = vunpack.c.l.b16 %v516
        %v891 = vunpack.c.h.b16 %v516
        %v892 = vunpack.c.l.b16 %v517
        %v893 = vunpack.c.h.b16 %v517
        %v894 = vunpack.c.l.b16 %v518
        %v895 = vunpack.c.h.b16 %v518
        %v896 = vunpack.c.l.b16 %v519
        %v897 = vunpack.c.h.b16 %v519
        %v898 = vunpack.c.l.b16 %v520
        %v899 = vunpack.c.h.b16 %v520
        %v900 = vunpack.c.l.b16 %v521
        %v901 = vunpack.c.h.b16 %v521
        %v902 = vunpack.c.l.b16 %v522
        %v903 = vunpack.c.h.b16 %v522
        %v904 = vunpack.c.l.b16 %v523
        %v905 = vunpack.c.h.b16 %v523
        %v906 = vunpack.c.l.b16 %v524
        %v907 = vunpack.c.h.b16 %v524
        %v908 = vunpack.c.l.b16 %v525
        %v909 = vunpack.c.h.b16 %v525
        %v910 = vunpack.c.l.b16 %v526
        %v911 = vunpack.c.h.b16 %v526
        %v912 = vunpack.c.l.b16 %v527
        %v913 = vunpack.c.h.b16 %v527
        %v914 = vunpack.c.l.b16 %v528
        %v915 = vunpack.c.h.b16 %v528
        %v916 = vunpack.c.l.b16 %v529
        %v917 = vunpack.c.h.b16 %v529
        %v918 = vunpack.c.l.b16 %v530
        %v919 = vunpack.c.h.b16 %v530
        %v920 = vunpack.c.l.b16 %v531
        %v921 = vunpack.c.h.b16 %v531
        %v922 = vunpack.c.l.b16 %v532
        %v923 = vunpack.c.h.b16 %v532
        %v924 = vunpack.c.l.b16 %v533
        %v925 = vunpack.c.h.b16 %v533
        %v926 = vunpack.c.l.b16 %v534
        %v927 = vunpack.c.h.b16 %v534
        %v928 = vunpack.c.l.b16 %v535
        %v929 = vunpack.c.h.b16 %v535
        %v930 = vunpack.c.l.b16 %v536
        %v931 = vunpack.c.h.b16 %v536
        %v932 = vunpack.c.l.b16 %v537
        %v933 = vunpack.c.h.b16 %v537
        %v934 = vunpack.c.l.b16 %v538
        %v935 = vunpack.c.h.b16 %v538
        %v936 = vunpack.c.l.b16 %v539
        %v937 = vunpack.c.h.b16 %v539
        %v938 = vunpack.c.l.b16 %v540
        %v939 = vunpack.c.h.b16 %v540
        %v940 = vunpack.c.l.b16 %v541
        %v941 = vunpack.c.h.b16 %v541
        %v942 = vunpack.c.l.b16 %v542
        %v943 = vunpack.c.h.b16 %v542
        %v944 = vunpack.c.l.b16 %v543
        %v945 = vunpack.c.h.b16 %v543
        %v946 = vunpack.c.l.b16 %v544
        %v947 = vunpack.c.h.b16 %v544
        %v948 = vunpack.c.l.b16 %v545
        %v949 = vunpack.c.h.b16 %v545
        %v950 = vunpack.c.l.b16 %v546
        %v951 = vunpack.c.h.b16 %v546
        %v952 = vunpack.c.l.b16 %v547
        %v953 = vunpack.c.h.b16 %v547
        %v954 = vunpack.c.l.b16 %v548
        %v955 = vunpack.c.h.b16 %v548
        %v956 = vunpack.c.l.b16 %v549
        %v957 = vunpack.c.h.b16 %v549
        %v958 = vunpack.c.l.b16 %v550
        %v959 = vunpack.c.h.b16 %v550
        %v960 = vunpack.c.l.b16 %v551
        %v961 = vunpack.c.h.b16 %v551
        %v962 = vunpack.c.l.b16 %v552
        %v963 = vunpack.c.h.b16 %v552
        %v964 = vunpack.c.l.b16 %v553
        %v965 = vunpack.c.h.b16 %v553
        %v966 = vunpack.c.l.b16 %v554
        %v967 = vunpack.c.h.b16 %v554
        %v968 = vunpack.c.l.b16 %v555
        %v969 = vunpack.c.h.b16 %v555
        %v970 = vunpack.c.l.b16 %v556
        %v971 = vunpack.c.h.b16 %v556
        %v972 = vunpack.c.l.b16 %v557
        %v973 = vunpack.c.h.b16 %v557
        %v974 = vunpack.c.l.b16 %v558
        %v975 = vunpack.c.h.b16 %v558
        %v976 = vunpack.c.l.b16 %v559
        %v977 = vunpack.c.h.b16 %v559
        %v978 = vunpack.c.l.b16 %v560
        %v979 = vunpack.c.h.b16 %v560
        %v980 = vunpack.c.l.b16 %v561
        %v981 = vunpack.c.h.b16 %v561
        %v982 = vunpack.c.l.b16 %v562
        %v983 = vunpack.c.h.b16 %v562
        %v984 = vunpack.c.l.b16 %v563
        %v985 = vunpack.c.h.b16 %v563
        %v986 = vunpack.c.l.b16 %v564
        %v987 = vunpack.c.h.b16 %v564
        %v988 = vunpack.c.l.b16 %v565
        %v989 = vunpack.c.h.b16 %v565
        %v990 = vunpack.c.l.b16 %v566
        %v991 = vunpack.c.h.b16 %v566
        %v992 = vunpack.c.l.b16 %v567
        %v993 = vunpack.c.h.b16 %v567
        %v994 = vunpack.c.l.b16 %v568
        %v995 = vunpack.c.h.b16 %v568
        %v996 = vunpack.c.l.b16 %v569
        %v997 = vunpack.c.h.b16 %v569
        %v998 = vunpack.c.l.b16 %v570
        %v999 = vunpack.c.h.b16 %v570
        %v1000 = vunpack.c.l.b16 %v571
        %v1001 = vunpack.c.h.b16 %v571
        %v1002 = vunpack.c.l.b16 %v572
        %v1003 = vunpack.c.h.b16 %v572
        %v1004 = vunpack.c.l.b16 %v573
        %v1005 = vunpack.c.h.b16 %v573
        %v1006 = vunpack.c.l.b16 %v574
        %v1007 = vunpack.c.h.b16 %v574
        %v1008 = vunpack.c.l.b16 %v575
        %v1009 = vunpack.c.h.b16 %v575
        %v1010 = vunpack.c.l.b16 %v576
        %v1011 = vunpack.c.h.b16 %v576
        %v1012 = vunpack.c.l.b16 %v577
        %v1013 = vunpack.c.h.b16 %v577
        %v1014 = vunpack.c.l.b16 %v578
        %v1015 = vunpack.c.h.b16 %v578
        %v1016 = vunpack.c.l.b16 %v579
        %v1017 = vunpack.c.h.b16 %v579
        %v1018 = vunpack.c.l.b16 %v580
        %v1019 = vunpack.c.h.b16 %v580
        %v1020 = vunpack.c.l.b16 %v581
        %v1021 = vunpack.c.h.b16 %v581
        %v1022 = vunpack.c.l.b16 %v582
        %v1023 = vunpack.c.h.b16 %v582
        %v1024 = vunpack.c.l.b16 %v583
        %v1025 = vunpack.c.h.b16 %v583
        %v1026 = vunpack.c.l.b16 %v584
        %v1027 = vunpack.c.h.b16 %v584
        %v1028 = vunpack.c.l.b16 %v585
        %v1029 = vunpack.c.h.b16 %v585
        %v1030 = vunpack.c.l.b16 %v586
        %v1031 = vunpack.c.h.b16 %v586
        %v1032 = vunpack.c.l.b16 %v587
        %v1033 = vunpack.c.h.b16 %v587
        %v1034 = vunpack.c.l.b16 %v588
        %v1035 = vunpack.c.h.b16 %v588
        %v1036 = vunpack.c.l.b16 %v589
        %v1037 = vunpack.c.h.b16 %v589
        %v1038 = vunpack.c.l.b16 %v590
        %v1039 = vunpack.c.h.b16 %v590
        %v1040 = vunpack.c.l.b16 %v591
        %v1041 = vunpack.c.h.b16 %v591
        %v1042 = vunpack.c.l.b16 %v592
        %v1043 = vunpack.c.h.b16 %v592
        %v1044 = vunpack.c.l.b16 %v593
        %v1045 = vunpack.c.h.b16 %v593
        %v1046 = vunpack.c.l.b16 %v594
        %v1047 = vunpack.c.h.b16 %v594
        %v1048 = vunpack.c.l.b16 %v595
        %v1049 = vunpack.c.h.b16 %v595
        %v1050 = vunpack.c.l.b16 %v596
        %v1051 = vunpack.c.h.b16 %v596
        %v1052 = vunpack.c.l.b16 %v597
        %v1053 = vunpack.c.h.b16 %v597
        %v1054 = vunpack.c.l.b16 %v598
        %v1055 = vunpack.c.h.b16 %v598
        %v1056 = vunpack.c.l.b16 %v599
        %v1057 = vunpack.c.h.b16 %v599
        %v1058 = vunpack.c.l.b16 %v600
        %v1059 = vunpack.c.h.b16 %v600
        %v1060 = vunpack.c.l.b16 %v601
        %v1061 = vunpack.c.h.b16 %v601
        %v1062 = vunpack.c.l.b16 %v602
        %v1063 = vunpack.c.h.b16 %v602
        %v1064 = vunpack.c.l.b16 %v603
        %v1065 = vunpack.c.h.b16 %v603
        %v1066 = vunpack.c.l.b16 %v604
        %v1067 = vunpack.c.h.b16 %v604
        %v1068 = vunpack.c.l.b16 %v605
        %v1069 = vunpack.c.h.b16 %v605
        %v1070 = vunpack.c.l.b16 %v606
        %v1071 = vunpack.c.h.b16 %v606
        %v1072 = vunpack.c.l.b16 %v607
        %v1073 = vunpack.c.h.b16 %v607
        %v1074 = vunpack.c.l.b16 %v608
        %v1075 = vunpack.c.h.b16 %v608
        %v1076 = vunpack.c.l.b16 %v609
        %v1077 = vunpack.c.h.b16 %v609
        %v1078 = vunpack.c.l.b16 %v610
        %v1079 = vunpack.c.h.b16 %v610
        %v1080 = vunpack.c.l.b16 %v611
        %v1081 = vunpack.c.h.b16 %v611
        %v1082 = vunpack.c.l.b16 %v612
        %v1083 = vunpack.c.h.b16 %v612
        %v1084 = vunpack.c.l.b16 %v613
        %v1085 = vunpack.c.h.b16 %v613
        %v1086 = vunpack.c.l.b16 %v614
        %v1087 = vunpack.c.h.b16 %v614
        %v1088 = vunpack.c.l.b16 %v615
        %v1089 = vunpack.c.h.b16 %v615
        %v1090 = vunpack.c.l.b16 %v616
        %v1091 = vunpack.c.h.b16 %v616
        %v1092 = vunpack.c.l.b16 %v617
        %v1093 = vunpack.c.h.b16 %v617
        %v1094 = vunpack.c.l.b16 %v618
        %v1095 = vunpack.c.h.b16 %v618
        %v1096 = vunpack.c.l.b16 %v619
        %v1097 = vunpack.c.h.b16 %v619
        %v1098 = vunpack.c.l.b16 %v620
        %v1099 = vunpack.c.h.b16 %v620
        %v1100 = vunpack.c.l.b16 %v621
        %v1101 = vunpack.c.h.b16 %v621
        %v1102 = vunpack.c.l.b16 %v622
        %v1103 = vunpack.c.h.b16 %v622
        %v1104 = vunpack.c.l.b16 %v623
        %v1105 = vunpack.c.h.b16 %v623
        %v1106 = vunpack.c.l.b16 %v624
        %v1107 = vunpack.c.h.b16 %v624
        %v1108 = vunpack.c.l.b16 %v625
        %v1109 = vunpack.c.h.b16 %v625
        %v1110 = vunpack.c.l.b16 %v626
        %v1111 = vunpack.c.h.b16 %v626
        %v1112 = vunpack.c.l.b16 %v627
        %v1113 = vunpack.c.h.b16 %v627
        %v1114 = vunpack.c.l.b16 %v628
        %v1115 = vunpack.c.h.b16 %v628
        %v1116 = vunpack.c.l.b16 %v629
        %v1117 = vunpack.c.h.b16 %v629
        %v1118 = vunpack.c.l.b16 %v630
        %v1119 = vunpack.c.h.b16 %v630
        %v1120 = vunpack.c.l.b16 %v631
        %v1121 = vunpack.c.h.b16 %v631
        %v1122 = vunpack.c.l.b16 %v632
        %v1123 = vunpack.c.h.b16 %v632
        %v1124 = vunpack.c.l.b16 %v633
        %v1125 = vunpack.c.h.b16 %v633
        %v1126 = vunpack.c.l.b16 %v634
        %v1127 = vunpack.c.h.b16 %v634
        %v1128 = vunpack.c.l.b16 %v635
        %v1129 = vunpack.c.h.b16 %v635
        %v1130 = vunpack.c.l.b16 %v636
        %v1131 = vunpack.c.h.b16 %v636
        %v1132 = vunpack.c.l.b16 %v637
        %v1133 = vunpack.c.h.b16 %v637
        %v1134 = vunpack.c.l.b16 %v638
        %v1135 = vunpack.c.h.b16 %v638
        %v1136 = vunpack.c.l.b16 %v639
        %v1137 = vunpack.c.h.b16 %v639
        %v1138 = vunpack.c.l.b16 %v640
        %v1139 = vunpack.c.h.b16 %v640
        %v1140 = vunpack.c.l.b16 %v641
        %v1141 = vunpack.c.h.b16 %v641
        %v1142 = vunpack.c.l.b16 %v642
        %v1143 = vunpack.c.h.b16 %v642
        %v1144 = vunpack.c.l.b16 %v643
        %v1145 = vunpack.c.h.b16 %v643
        %v1146 = vunpack.c.l.b16 %v644
        %v1147 = vunpack.c.h.b16 %v644
        %v1148 = vunpack.c.l.b16 %v645
        %v1149 = vunpack.c.h.b16 %v645
        %v1150 = vunpack.c.l.b16 %v646
        %v1151 = vunpack.c.h.b16 %v646
        %v1152 = vunpack.c.l.b16 %v647
        %v1153 = vunpack.c.h.b16 %v647
        %v1154 = vunpack.c.l.b16 %v648
        %v1155 = vunpack.c.h.b16 %v648
        %v1156 = vunpack.c.l.b16 %v649
        %v1157 = vunpack.c.h.b16 %v649
        %v1158 = vunpack.c.l.b16 %v650
        %v1159 = vunpack.c.h.b16 %v650
        %v1160 = vunpack.c.l.b16 %v651
        %v1161 = vunpack.c.h.b16 %v651
        %v1162 = vunpack.c.l.b16 %v652
        %v1163 = vunpack.c.h.b16 %v652
        %v1164 = vunpack.c.l.b16 %v653
        %v1165 = vunpack.c.h.b16 %v653
        %v1166 = vunpack.c.l.b16 %v654
        %v1167 = vunpack.c.h.b16 %v654
        %v1168 = vunpack.c.l.b16 %v655
        %v1169 = vunpack.c.h.b16 %v655
        %v1170 = vunpack.c.l.b16 %v656
        %v1171 = vunpack.c.h.b16 %v656
        %v1172 = vunpack.c.l.b16 %v657
        %v1173 = vunpack.c.h.b16 %v657
        %v1174 = vunpack.c.l.b16 %v658
        %v1175 = vunpack.c.h.b16 %v658
        %v1176 = vunpack.c.l.b16 %v659
        %v1177 = vunpack.c.h.b16 %v659
        %v1178 = vunpack.c.l.b16 %v660
        %v1179 = vunpack.c.h.b16 %v660
        %v1180 = vunpack.c.l.b16 %v661
        %v1181 = vunpack.c.h.b16 %v661
        %v1182 = vunpack.c.l.b16 %v662
        %v1183 = vunpack.c.h.b16 %v662
        %v1184 = vunpack.c.l.b16 %v663
        %v1185 = vunpack.c.h.b16 %v663
        %v1186 = vunpack.c.l.b16 %v664
        %v1187 = vunpack.c.h.b16 %v664
        %v1188 = vunpack.c.l.b16 %v665
        %v1189 = vunpack.c.h.b16 %v665
        %v1190 = vpack.c.b16 %v874, %v870
        %v1191 = vpack.c.b16 %v875, %v871
        %v1192 = vpack.c.b16 %v876, %v872
        %v1193 = vpack.c.b16 %v877, %v873
        %v1194 = vpack.c.b16 %v882, %v878
        %v1195 = vpack.c.b16 %v883, %v879
        %v1196 = vpack.c.b16 %v884, %v880
        %v1197 = vpack.c.b16 %v885, %v881
        %v1198 = vpack.c.b16 %v890, %v886
        %v1199 = vpack.c.b16 %v891, %v887
        %v1200 = vpack.c.b16 %v892, %v888
        %v1201 = vpack.c.b16 %v893, %v889
        %v1202 = vpack.c.b16 %v898, %v894
        %v1203 = vpack.c.b16 %v899, %v895
        %v1204 = vpack.c.b16 %v900, %v896
        %v1205 = vpack.c.b16 %v901, %v897
        %v1206 = vpack.c.b16 %v906, %v902
        %v1207 = vpack.c.b16 %v907, %v903
        %v1208 = vpack.c.b16 %v908, %v904
        %v1209 = vpack.c.b16 %v909, %v905
        %v1210 = vpack.c.b16 %v914, %v910
        %v1211 = vpack.c.b16 %v915, %v911
        %v1212 = vpack.c.b16 %v916, %v912
        %v1213 = vpack.c.b16 %v917, %v913
        %v1214 = vpack.c.b16 %v922, %v918
        %v1215 = vpack.c.b16 %v923, %v919
        %v1216 = vpack.c.b16 %v924, %v920
        %v1217 = vpack.c.b16 %v925, %v921
        %v1218 = vpack.c.b16 %v930, %v926
        %v1219 = vpack.c.b16 %v931, %v927
        %v1220 = vpack.c.b16 %v932, %v928
        %v1221 = vpack.c.b16 %v933, %v929
        %v1222 = vpack.c.b16 %v938, %v934
        %v1223 = vpack.c.b16 %v939, %v935
        %v1224 = vpack.c.b16 %v940, %v936
        %v1225 = vpack.c.b16 %v941, %v937
        %v1226 = vpack.c.b16 %v946, %v942
        %v1227 = vpack.c.b16 %v947, %v943
        %v1228 = vpack.c.b16 %v948, %v944
        %v1229 = vpack.c.b16 %v949, %v945
        %v1230 = vpack.c.b16 %v954, %v950
        %v1231 = vpack.c.b16 %v955, %v951
        %v1232 = vpack.c.b16 %v956, %v952
        %v1233 = vpack.c.b16 %v957, %v953
        %v1234 = vpack.c.b16 %v962, %v958
        %v1235 = vpack.c.b16 %v963, %v959
        %v1236 = vpack.c.b16 %v964, %v960
        %v1237 = vpack.c.b16 %v965, %v961
        %v1238 = vpack.c.b16 %v970, %v966
        %v1239 = vpack.c.b16 %v971, %v967
        %v1240 = vpack.c.b16 %v972, %v968
        %v1241 = vpack.c.b16 %v973, %v969
        %v1242 = vpack.c.b16 %v978, %v974
        %v1243 = vpack.c.b16 %v979, %v975
        %v1244 = vpack.c.b16 %v980, %v976
        %v1245 = vpack.c.b16 %v981, %v977
        %v1246 = vpack.c.b16 %v986, %v982
        %v1247 = vpack.c.b16 %v987, %v983
        %v1248 = vpack.c.b16 %v988, %v984
        %v1249 = vpack.c.b16 %v989, %v985
        %v1250 = vpack.c.b16 %v994, %v990
        %v1251 = vpack.c.b16 %v995, %v991
        %v1252 = vpack.c.b16 %v996, %v992
        %v1253 = vpack.c.b16 %v997, %v993
        %v1254 = vpack.c.b16 %v1002, %v998
        %v1255 = vpack.c.b16 %v1003, %v999
        %v1256 = vpack.c.b16 %v1004, %v1000
        %v1257 = vpack.c.b16 %v1005, %v1001
        %v1258 = vpack.c.b16 %v1010, %v1006
        %v1259 = vpack.c.b16 %v1011, %v1007
        %v1260 = vpack.c.b16 %v1012, %v1008
        %v1261 = vpack.c.b16 %v1013, %v1009
        %v1262 = vpack.c.b16 %v1018, %v1014
        %v1263 = vpack.c.b16 %v1019, %v1015
        %v1264 = vpack.c.b16 %v1020, %v1016
        %v1265 = vpack.c.b16 %v1021, %v1017
        %v1266 = vpack.c.b16 %v1026, %v1022
        %v1267 = vpack.c.b16 %v1027, %v1023
        %v1268 = vpack.c.b16 %v1028, %v1024
        %v1269 = vpack.c.b16 %v1029, %v1025
        %v1270 = vpack.c.b16 %v1034, %v1030
        %v1271 = vpack.c.b16 %v1035, %v1031
        %v1272 = vpack.c.b16 %v1036, %v1032
        %v1273 = vpack.c.b16 %v1037, %v1033
        %v1274 = vpack.c.b16 %v1042, %v1038
        %v1275 = vpack.c.b16 %v1043, %v1039
        %v1276 = vpack.c.b16 %v1044, %v1040
        %v1277 = vpack.c.b16 %v1045, %v1041
        %v1278 = vpack.c.b16 %v1050, %v1046
        %v1279 = vpack.c.b16 %v1051, %v1047
        %v1280 = vpack.c.b16 %v1052, %v1048
        %v1281 = vpack.c.b16 %v1053, %v1049
        %v1282 = vpack.c.b16 %v1058, %v1054
        %v1283 = vpack.c.b16 %v1059, %v1055
        %v1284 = vpack.c.b16 %v1060, %v1056
        %v1285 = vpack.c.b16 %v1061, %v1057
        %v1286 = vpack.c.b16 %v1066, %v1062
        %v1287 = vpack.c.b16 %v1067, %v1063
        %v1288 = vpack.c.b16 %v1068, %v1064
        %v1289 = vpack.c.b16 %v1069, %v1065
        %v1290 = vpack.c.b16 %v1074, %v1070
        %v1291 = vpack.c.b16 %v1075, %v1071
        %v1292 = vpack.c.b16 %v1076, %v1072
        %v1293 = vpack.c.b16 %v1077, %v1073
        %v1294 = vpack.c.b16 %v1082, %v1078
        %v1295 = vpack.c.b16 %v1083, %v1079
        %v1296 = vpack.c.b16 %v1084, %v1080
        %v1297 = vpack.c.b16 %v1085, %v1081
        %v1298 = vpack.c.b16 %v1090, %v1086
        %v1299 = vpack.c.b16 %v1091, %v1087
        %v1300 = vpack.c.b16 %v1092, %v1088
        %v1301 = vpack.c.b16 %v1093, %v1089
        %v1302 = vpack.c.b16 %v1098, %v1094
        %v1303 = vpack.c.b16 %v1099, %v1095
        %v1304 = vpack.c.b16 %v1100, %v1096
        %v1305 = vpack.c.b16 %v1101, %v1097
        %v1306 = vpack.c.b16 %v1106, %v1102
        %v1307 = vpack.c.b16 %v1107, %v1103
        %v1308 = vpack.c.b16 %v1108, %v1104
        %v1309 = vpack.c.b16 %v1109, %v1105
        %v1310 = vpack.c.b16 %v1114, %v1110
        %v1311 = vpack.c.b16 %v1115, %v1111
        %v1312 = vpack.c.b16 %v1116, %v1112
        %v1313 = vpack.c.b16 %v1117, %v1113
        %v1314 = vpack.c.b16 %v1122, %v1118
        %v1315 = vpack.c.b16 %v1123, %v1119
        %v1316 = vpack.c.b16 %v1124, %v1120
        %v1317 = vpack.c.b16 %v1125, %v1121
        %v1318 = vpack.c.b16 %v1130, %v1126
        %v1319 = vpack.c.b16 %v1131, %v1127
        %v1320 = vpack.c.b16 %v1132, %v1128
        %v1321 = vpack.c.b16 %v1133, %v1129
        %v1322 = vpack.c.b16 %v1138, %v1134
        %v1323 = vpack.c.b16 %v1139, %v1135
        %v1324 = vpack.c.b16 %v1140, %v1136
        %v1325 = vpack.c.b16 %v1141, %v1137
        %v1326 = vpack.c.b16 %v1146, %v1142
        %v1327 = vpack.c.b16 %v1147, %v1143
        %v1328 = vpack.c.b16 %v1148, %v1144
        %v1329 = vpack.c.b16 %v1149, %v1145
        %v1330 = vpack.c.b16 %v1154, %v1150
        %v1331 = vpack.c.b16 %v1155, %v1151
        %v1332 = vpack.c.b16 %v1156, %v1152
        %v1333 = vpack.c.b16 %v1157, %v1153
        %v1334 = vpack.c.b16 %v1162, %v1158
        %v1335 = vpack.c.b16 %v1163, %v1159
        %v1336 = vpack.c.b16 %v1164, %v1160
        %v1337 = vpack.c.b16 %v1165, %v1161
        %v1338 = vpack.c.b16 %v1170, %v1166
        %v1339 = vpack.c.b16 %v1171, %v1167
        %v1340 = vpack.c.b16 %v1172, %v1168
        %v1341 = vpack.c.b16 %v1173, %v1169
        %v1342 = vpack.c.b16 %v1178, %v1174
        %v1343 = vpack.c.b16 %v1179, %v1175
        %v1344 = vpack.c.b16 %v1180, %v1176
        %v1345 = vpack.c.b16 %v1181, %v1177
        %v1346 = vpack.c.b16 %v1186, %v1182
        %v1347 = vpack.c.b16 %v1187, %v1183
        %v1348 = vpack.c.b16 %v1188, %v1184
        %v1349 = vpack.c.b16 %v1189, %v1185
        %1510 = vmatprep.subr.bf16.mxu0 %v1191
        %1511 = vmatpush1.bf16.msra.mxu0 %v1190
        %1512 = vmatprep.subr.bf16.mxu0 %v1195
        %1513 = vmatpush1.bf16.msra.mxu0 %v1194
        %1514 = vmatprep.subr.bf16.mxu0 %v1199
        %1515 = vmatpush1.bf16.msra.mxu0 %v1198
        %1516 = vmatprep.subr.bf16.mxu0 %v1203
        %1517 = vmatpush1.bf16.msra.mxu0 %v1202
        %1518 = vmatprep.subr.bf16.mxu0 %v1207
        %1519 = vmatpush1.bf16.msra.mxu0 %v1206
        %1520 = vmatprep.subr.bf16.mxu0 %v1211
        %1521 = vmatpush1.bf16.msra.mxu0 %v1210
        %1522 = vmatprep.subr.bf16.mxu0 %v1215
        %1523 = vmatpush1.bf16.msra.mxu0 %v1214
        %1524 = vmatprep.subr.bf16.mxu0 %v1219
        %1525 = vmatpush1.bf16.msra.mxu0 %v1218
        %1526 = vmatprep.subr.bf16.mxu0 %v1223
        %1527 = vmatpush1.bf16.msra.mxu0 %v1222
        %1528 = vmatprep.subr.bf16.mxu0 %v1227
        %1529 = vmatpush1.bf16.msra.mxu0 %v1226
        %1530 = vmatprep.subr.bf16.mxu0 %v1231
        %1531 = vmatpush1.bf16.msra.mxu0 %v1230
        %1532 = vmatprep.subr.bf16.mxu0 %v1235
        %1533 = vmatpush1.bf16.msra.mxu0 %v1234
        %1534 = vmatprep.subr.bf16.mxu0 %v1239
        %1535 = vmatpush1.bf16.msra.mxu0 %v1238
        %1536 = vmatprep.subr.bf16.mxu0 %v1243
        %1537 = vmatpush1.bf16.msra.mxu0 %v1242
        %1538 = vmatprep.subr.bf16.mxu0 %v1247
        %1539 = vmatpush1.bf16.msra.mxu0 %v1246
        %1540 = vmatprep.subr.bf16.mxu0 %v1251
        %1541 = vmatpush1.bf16.msra.mxu0 %v1250
        %1542 = vmatprep.mubr.bf16.mxu0 %v701
        %1543 = vmatmul.mubr.bf16.gmra.mrb[0].mxu0 %v700
        %v1544 = vpop.f32.mrb[0].mxu0
        %v1545 = vadd.f32 %v677, %v1544
        %v1546 = vpop.f32.mrb[0].mxu0
        %v1547 = vadd.f32 %v677, %v1546
        %v1548 = vpop.f32.mrb[0].mxu0
        %v1549 = vadd.f32 %v682, %v1548
        %v1550 = vpop.f32.mrb[0].mxu0
        %v1551 = vadd.f32 %v682, %v1550
        %1552 = vdwg.mxu0
        %1553 = vmatprep.subr.bf16.mxu0 %v1255
        %1554 = vmatpush1.bf16.msra.mxu0 %v1254
        %1555 = vmatprep.subr.bf16.mxu0 %v1259
        %1556 = vmatpush1.bf16.msra.mxu0 %v1258
        %1557 = vmatprep.subr.bf16.mxu0 %v1263
        %1558 = vmatpush1.bf16.msra.mxu0 %v1262
        %1559 = vmatprep.subr.bf16.mxu0 %v1267
        %1560 = vmatpush1.bf16.msra.mxu0 %v1266
        %1561 = vmatprep.subr.bf16.mxu0 %v1271
        %1562 = vmatpush1.bf16.msra.mxu0 %v1270
        %1563 = vmatprep.subr.bf16.mxu0 %v1275
        %1564 = vmatpush1.bf16.msra.mxu0 %v1274
        %1565 = vmatprep.subr.bf16.mxu0 %v1279
        %1566 = vmatpush1.bf16.msra.mxu0 %v1278
        %1567 = vmatprep.subr.bf16.mxu0 %v1283
        %1568 = vmatpush1.bf16.msra.mxu0 %v1282
        %1569 = vmatprep.subr.bf16.mxu0 %v1287
        %1570 = vmatpush1.bf16.msra.mxu0 %v1286
        %1571 = vmatprep.subr.bf16.mxu0 %v1291
        %1572 = vmatpush1.bf16.msra.mxu0 %v1290
        %1573 = vmatprep.subr.bf16.mxu0 %v1295
        %1574 = vmatpush1.bf16.msra.mxu0 %v1294
        %1575 = vmatprep.subr.bf16.mxu0 %v1299
        %1576 = vmatpush1.bf16.msra.mxu0 %v1298
        %1577 = vmatprep.subr.bf16.mxu0 %v1303
        %1578 = vmatpush1.bf16.msra.mxu0 %v1302
        %1579 = vmatprep.subr.bf16.mxu0 %v1307
        %1580 = vmatpush1.bf16.msra.mxu0 %v1306
        %1581 = vmatprep.subr.bf16.mxu0 %v1311
        %1582 = vmatpush1.bf16.msra.mxu0 %v1310
        %1583 = vmatprep.subr.bf16.mxu0 %v1315
        %1584 = vmatpush1.bf16.msra.mxu0 %v1314
        %1585 = vmatprep.mubr.bf16.mxu0 %v703
        %1586 = vmatmul.mubr.bf16.gmra.mrb[0].mxu0 %v702
        %v1587 = vpop.f32.mrb[0].mxu0
        %v1588 = vadd.f32 %v1545, %v1587
        %v1589 = vpop.f32.mrb[0].mxu0
        %v1590 = vadd.f32 %v1547, %v1589
        %v1591 = vpop.f32.mrb[0].mxu0
        %v1592 = vadd.f32 %v1549, %v1591
        %v1593 = vpop.f32.mrb[0].mxu0
        %v1594 = vadd.f32 %v1551, %v1593
        %1595 = vdwg.mxu0
        %1596 = vmatprep.subr.bf16.mxu0 %v1319
        %1597 = vmatpush1.bf16.msra.mxu0 %v1318
        %1598 = vmatprep.subr.bf16.mxu0 %v1323
        %1599 = vmatpush1.bf16.msra.mxu0 %v1322
        %1600 = vmatprep.subr.bf16.mxu0 %v1327
        %1601 = vmatpush1.bf16.msra.mxu0 %v1326
        %1602 = vmatprep.subr.bf16.mxu0 %v1331
        %1603 = vmatpush1.bf16.msra.mxu0 %v1330
        %1604 = vmatprep.subr.bf16.mxu0 %v1335
        %1605 = vmatpush1.bf16.msra.mxu0 %v1334
        %1606 = vmatprep.subr.bf16.mxu0 %v1339
        %1607 = vmatpush1.bf16.msra.mxu0 %v1338
        %1608 = vmatprep.subr.bf16.mxu0 %v1343
        %1609 = vmatpush1.bf16.msra.mxu0 %v1342
        %1610 = vmatprep.subr.bf16.mxu0 %v1347
        %1611 = vmatpush1.bf16.msra.mxu0 %v1346
        %1612 = vmatprep.subr.bf16.mxu0 0
        %1613 = vmatpush1.bf16.msra.mxu0 0
        %1614 = vmatprep.subr.bf16.mxu0 0
        %1615 = vmatpush1.bf16.msra.mxu0 0
        %1616 = vmatprep.subr.bf16.mxu0 0
        %1617 = vmatpush1.bf16.msra.mxu0 0
        %1618 = vmatprep.subr.bf16.mxu0 0
        %1619 = vmatpush1.bf16.msra.mxu0 0
        %1620 = vmatprep.subr.bf16.mxu0 0
        %1621 = vmatpush1.bf16.msra.mxu0 0
        %1622 = vmatprep.subr.bf16.mxu0 0
        %1623 = vmatpush1.bf16.msra.mxu0 0
        %1624 = vmatprep.subr.bf16.mxu0 0
        %1625 = vmatpush1.bf16.msra.mxu0 0
        %1626 = vmatprep.subr.bf16.mxu0 0
        %1627 = vmatpush1.bf16.msra.mxu0 0
        %1628 = vmatprep.mubr.bf16.mxu0 0
        %1629 = vmatmul.mubr.bf16.gmra.mrb[0].mxu0 %v704
        %v1630 = vpop.f32.mrb[0].mxu0
        %v1631 = vadd.f32 %v1588, %v1630
        %v1632 = vpop.f32.mrb[0].mxu0
        %v1633 = vadd.f32 %v1590, %v1632
        %v1634 = vpop.f32.mrb[0].mxu0
        %v1635 = vadd.f32 %v1592, %v1634
        %v1636 = vpop.f32.mrb[0].mxu0
        %v1637 = vadd.f32 %v1594, %v1636
        %1638 = vdwg.mxu0
        %1639 = vmatprep.subr.bf16.mxu0 %v1193
        %1640 = vmatpush1.bf16.msra.mxu0 %v1192
        %1641 = vmatprep.subr.bf16.mxu0 %v1197
        %1642 = vmatpush1.bf16.msra.mxu0 %v1196
        %1643 = vmatprep.subr.bf16.mxu0 %v1201
        %1644 = vmatpush1.bf16.msra.mxu0 %v1200
        %1645 = vmatprep.subr.bf16.mxu0 %v1205
        %1646 = vmatpush1.bf16.msra.mxu0 %v1204
        %1647 = vmatprep.subr.bf16.mxu0 %v1209
        %1648 = vmatpush1.bf16.msra.mxu0 %v1208
        %1649 = vmatprep.subr.bf16.mxu0 %v1213
        %1650 = vmatpush1.bf16.msra.mxu0 %v1212
        %1651 = vmatprep.subr.bf16.mxu0 %v1217
        %1652 = vmatpush1.bf16.msra.mxu0 %v1216
        %1653 = vmatprep.subr.bf16.mxu0 %v1221
        %1654 = vmatpush1.bf16.msra.mxu0 %v1220
        %1655 = vmatprep.subr.bf16.mxu0 %v1225
        %1656 = vmatpush1.bf16.msra.mxu0 %v1224
        %1657 = vmatprep.subr.bf16.mxu0 %v1229
        %1658 = vmatpush1.bf16.msra.mxu0 %v1228
        %1659 = vmatprep.subr.bf16.mxu0 %v1233
        %1660 = vmatpush1.bf16.msra.mxu0 %v1232
        %1661 = vmatprep.subr.bf16.mxu0 %v1237
        %1662 = vmatpush1.bf16.msra.mxu0 %v1236
        %1663 = vmatprep.subr.bf16.mxu0 %v1241
        %1664 = vmatpush1.bf16.msra.mxu0 %v1240
        %1665 = vmatprep.subr.bf16.mxu0 %v1245
        %1666 = vmatpush1.bf16.msra.mxu0 %v1244
        %1667 = vmatprep.subr.bf16.mxu0 %v1249
        %1668 = vmatpush1.bf16.msra.mxu0 %v1248
        %1669 = vmatprep.subr.bf16.mxu0 %v1253
        %1670 = vmatpush1.bf16.msra.mxu0 %v1252
        %1671 = vmatprep.mubr.bf16.mxu0 %v701
        %1672 = vmatmul.mubr.bf16.gmra.mrb[0].mxu0 %v700
        %v1673 = vpop.f32.mrb[0].mxu0
        %v1674 = vadd.f32 %v677, %v1673
        %v1675 = vpop.f32.mrb[0].mxu0
        %v1676 = vadd.f32 %v677, %v1675
        %v1677 = vpop.f32.mrb[0].mxu0
        %v1678 = vadd.f32 %v682, %v1677
        %v1679 = vpop.f32.mrb[0].mxu0
        %v1680 = vadd.f32 %v682, %v1679
        %1681 = vdwg.mxu0
        %1682 = vmatprep.subr.bf16.mxu0 %v1257
        %1683 = vmatpush1.bf16.msra.mxu0 %v1256
        %1684 = vmatprep.subr.bf16.mxu0 %v1261
        %1685 = vmatpush1.bf16.msra.mxu0 %v1260
        %1686 = vmatprep.subr.bf16.mxu0 %v1265
        %1687 = vmatpush1.bf16.msra.mxu0 %v1264
        %1688 = vmatprep.subr.bf16.mxu0 %v1269
        %1689 = vmatpush1.bf16.msra.mxu0 %v1268
        %1690 = vmatprep.subr.bf16.mxu0 %v1273
        %1691 = vmatpush1.bf16.msra.mxu0 %v1272
        %1692 = vmatprep.subr.bf16.mxu0 %v1277
        %1693 = vmatpush1.bf16.msra.mxu0 %v1276
        %1694 = vmatprep.subr.bf16.mxu0 %v1281
        %1695 = vmatpush1.bf16.msra.mxu0 %v1280
        %1696 = vmatprep.subr.bf16.mxu0 %v1285
        %1697 = vmatpush1.bf16.msra.mxu0 %v1284
        %1698 = vmatprep.subr.bf16.mxu0 %v1289
        %1699 = vmatpush1.bf16.msra.mxu0 %v1288
        %1700 = vmatprep.subr.bf16.mxu0 %v1293
        %1701 = vmatpush1.bf16.msra.mxu0 %v1292
        %1702 = vmatprep.subr.bf16.mxu0 %v1297
        %1703 = vmatpush1.bf16.msra.mxu0 %v1296
        %1704 = vmatprep.subr.bf16.mxu0 %v1301
        %1705 = vmatpush1.bf16.msra.mxu0 %v1300
        %1706 = vmatprep.subr.bf16.mxu0 %v1305
        %1707 = vmatpush1.bf16.msra.mxu0 %v1304
        %1708 = vmatprep.subr.bf16.mxu0 %v1309
        %1709 = vmatpush1.bf16.msra.mxu0 %v1308
        %1710 = vmatprep.subr.bf16.mxu0 %v1313
        %1711 = vmatpush1.bf16.msra.mxu0 %v1312
        %1712 = vmatprep.subr.bf16.mxu0 %v1317
        %1713 = vmatpush1.bf16.msra.mxu0 %v1316
        %1714 = vmatprep.mubr.bf16.mxu0 %v703
        %1715 = vmatmul.mubr.bf16.gmra.mrb[0].mxu0 %v702
        %v1716 = vpop.f32.mrb[0].mxu0
        %v1717 = vadd.f32 %v1674, %v1716
        %v1718 = vpop.f32.mrb[0].mxu0
        %v1719 = vadd.f32 %v1676, %v1718
        %v1720 = vpop.f32.mrb[0].mxu0
        %v1721 = vadd.f32 %v1678, %v1720
        %v1722 = vpop.f32.mrb[0].mxu0
        %v1723 = vadd.f32 %v1680, %v1722
        %1724 = vdwg.mxu0
        %1725 = vmatprep.subr.bf16.mxu0 %v1321
        %1726 = vmatpush1.bf16.msra.mxu0 %v1320
        %1727 = vmatprep.subr.bf16.mxu0 %v1325
        %1728 = vmatpush1.bf16.msra.mxu0 %v1324
        %1729 = vmatprep.subr.bf16.mxu0 %v1329
        %1730 = vmatpush1.bf16.msra.mxu0 %v1328
        %1731 = vmatprep.subr.bf16.mxu0 %v1333
        %1732 = vmatpush1.bf16.msra.mxu0 %v1332
        %1733 = vmatprep.subr.bf16.mxu0 %v1337
        %1734 = vmatpush1.bf16.msra.mxu0 %v1336
        %1735 = vmatprep.subr.bf16.mxu0 %v1341
        %1736 = vmatpush1.bf16.msra.mxu0 %v1340
        %1737 = vmatprep.subr.bf16.mxu0 %v1345
        %1738 = vmatpush1.bf16.msra.mxu0 %v1344
        %1739 = vmatprep.subr.bf16.mxu0 %v1349
        %1740 = vmatpush1.bf16.msra.mxu0 %v1348
        %1741 = vmatprep.subr.bf16.mxu0 0
        %1742 = vmatpush1.bf16.msra.mxu0 0
        %1743 = vmatprep.subr.bf16.mxu0 0
        %1744 = vmatpush1.bf16.msra.mxu0 0
        %1745 = vmatprep.subr.bf16.mxu0 0
        %1746 = vmatpush1.bf16.msra.mxu0 0
        %1747 = vmatprep.subr.bf16.mxu0 0
        %1748 = vmatpush1.bf16.msra.mxu0 0
        %1749 = vmatprep.subr.bf16.mxu0 0
        %1750 = vmatpush1.bf16.msra.mxu0 0
        %1751 = vmatprep.subr.bf16.mxu0 0
        %1752 = vmatpush1.bf16.msra.mxu0 0
        %1753 = vmatprep.subr.bf16.mxu0 0
        %1754 = vmatpush1.bf16.msra.mxu0 0
        %1755 = vmatprep.subr.bf16.mxu0 0
        %1756 = vmatpush1.bf16.msra.mxu0 0
        %1757 = vmatprep.mubr.bf16.mxu0 0
        %1758 = vmatmul.mubr.bf16.gmra.mrb[0].mxu0 %v704
        %v1759 = vpop.f32.mrb[0].mxu0
        %v1760 = vadd.f32 %v1717, %v1759
        %v1761 = vpop.f32.mrb[0].mxu0
        %v1762 = vadd.f32 %v1719, %v1761
        %v1763 = vpop.f32.mrb[0].mxu0
        %v1764 = vadd.f32 %v1721, %v1763
        %v1765 = vpop.f32.mrb[0].mxu0
        %v1766 = vadd.f32 %v1723, %v1765
        %1767 = vdwg.mxu0
        %1768 = vst [vmem:[%s502] sm:$0xff] %v1631
        %1769 = vst [vmem:[%s502 + $0x8] sm:$0xff] %v1633
        %1770 = vst [vmem:[%s502 + $0x10] sm:$0xff] %v1760
        %1771 = vst [vmem:[%s502 + $0x18] sm:$0xff] %v1762
        %1772 = vst [vmem:[%s502 + $0x20] sm:$0xff] %v1635
        %1773 = vst [vmem:[%s502 + $0x28] sm:$0xff] %v1637
        %1774 = vst [vmem:[%s502 + $0x30] sm:$0xff] %v1764
        %1775 = vst [vmem:[%s502 + $0x38] sm:$0xff] %v1766
        %s1776 = sand.u32 %s90, 1
        %s1777 = sand.u32 %s90, 1
        %s1778 = smul.addr %s1777, 64
        %s1779 = scalar_lea.vmem [#allocation3], %s1778
        // Predicated region
        $region56: #{unet3d_forward.10} parent=50 // pred_check
          %p1780 = pneg %p100
        $region57: #{unet3d_forward.10} parent=50 // pred_check_branch
          %1782 = sbr.rel (%p1780) target = $region59
        $region58: #{unet3d_forward.10} parent=50 // pred_region
          %s1783 = smul.u32 4, %s14
          %s1784 = smul.addr %s1783, 8
          %s1785 = scalar_lea.vmem %s3, %s1784
          // Predicated region
          $region60: #{unet3d_forward.10} parent=58 // pred_check
            _
          $region61: #{unet3d_forward.10} parent=58 // pred_check_branch
            %1787 = sbr.rel (0) target = $region63
          $region62: #{unet3d_forward.10} parent=58 // pred_region
            // Predicated region
            $region64: #{unet3d_forward.10} parent=62 // pred_check
              _
            $region65: #{unet3d_forward.10} parent=62 // pred_check_branch
              %1789 = sbr.rel (0) target = $region67
            $region66: #{unet3d_forward.10} parent=62 // pred_region
              loop: start=0, step=1, limit=1
              $region68: #{unet3d_forward.10} parent=66 // loop_pre_header
                _
              $region69: #{unet3d_forward.10} parent=66 // loop_header
                %s1791 = sphi 0, %s1795
                %p1792 = scmp.ge.s32.totalorder %s1791, 1
                %s1796 = sphi %s1779, %s1779
                %s1797 = sphi %s1785, %s1785
              $region70: #{unet3d_forward.10} parent=66 // loop_header_branch
                %1794 = sbr.rel (%p1792) target = $region74
              $region71: #{unet3d_forward.10} parent=66 // loop_body
                %v1798 = vld [vmem:[%s1796] sm:$0xff]
                %1799 = vst [vmem:[%s1797] sm:$0xff] %v1798
                %v1800 = vld [vmem:[%s1796 + $0x8] sm:$0xff]
                %1801 = vst [vmem:[%s1797 + $0x8] sm:$0xff] %v1800
                %v1802 = vld [vmem:[%s1796 + $0x10] sm:$0xff]
                %1803 = vst [vmem:[%s1797 + $0x10] sm:$0xff] %v1802
                %v1804 = vld [vmem:[%s1796 + $0x18] sm:$0xff]
                %1805 = vst [vmem:[%s1797 + $0x18] sm:$0xff] %v1804
                %v1806 = vld [vmem:[%s1796 + $0x20] sm:$0xff]
                %1807 = vst [vmem:[%s1797 + $0xc0] sm:$0xff] %v1806
                %v1808 = vld [vmem:[%s1796 + $0x28] sm:$0xff]
                %1809 = vst [vmem:[%s1797 + $0xc8] sm:$0xff] %v1808
                %v1810 = vld [vmem:[%s1796 + $0x30] sm:$0xff]
                %1811 = vst [vmem:[%s1797 + $0xd0] sm:$0xff] %v1810
                %v1812 = vld [vmem:[%s1796 + $0x38] sm:$0xff]
                %1813 = vst [vmem:[%s1797 + $0xd8] sm:$0xff] %v1812
              $region72: #{unet3d_forward.10} parent=66 // loop_footer
                %s1795 = sadd.s32 1, %s1791
              $region73: #{unet3d_forward.10} parent=66 // loop_footer_branch
                %1790 = sbr.rel target = $region69
              $region74: #{unet3d_forward.10} parent=66 // loop_exit
                _
            $region67: #{unet3d_forward.10} parent=62 // pred_fallthru
              _
            // Predicated region
            $region75: #{unet3d_forward.10} parent=62 // pred_check
              _
            $region76: #{unet3d_forward.10} parent=62 // pred_check_branch
              %1815 = sbr.rel target = $region78
            $region77: #{unet3d_forward.10} parent=62 // pred_region
              _
            $region78: #{unet3d_forward.10} parent=62 // pred_fallthru
              _
          $region63: #{unet3d_forward.10} parent=58 // pred_fallthru
            _
          %1816 = vnop
        $region59: #{unet3d_forward.10} parent=50 // pred_fallthru
          _
      $region51: #{unet3d_forward.10} parent=5 // pred_fallthru
        _
      %p1817 = scmp.le.s32.totalorder 2, %s9
      // Predicated region
      $region79: #{unet3d_forward.10} parent=5 // pred_check
        %p1818 = pneg %p1817
      $region80: #{unet3d_forward.10} parent=5 // pred_check_branch
        %1820 = sbr.rel (%p1818) target = $region82
      $region81: #{unet3d_forward.10} parent=5 // pred_region
        %s1821 = ssub.s32 %s9, 2
        // Predicated region
        $region83: #{unet3d_forward.10} parent=81 // pred_check
          %p1822 = pneg %p106
        $region84: #{unet3d_forward.10} parent=81 // pred_check_branch
          %1824 = sbr.rel (%p1822) target = $region86
        $region85: #{unet3d_forward.10} parent=81 // pred_region
          %s1825 = sand.u32 %s91, 1
          %s1826 = sand.u32 %s91, 1
          %s1827 = smul.addr %s1826, 64
          %s1828 = scalar_lea.vmem [#allocation3], %s1827
        $region86: #{unet3d_forward.10} parent=81 // pred_fallthru
          _
      $region82: #{unet3d_forward.10} parent=5 // pred_fallthru
        _
    $region6: #{unet3d_forward.10} parent=1 // loop_footer
      %s13 = sadd.s32 1, %s9
    $region7: #{unet3d_forward.10} parent=1 // loop_footer_branch
      %8 = sbr.rel target = $region3
    $region8: #{unet3d_forward.10} parent=1 // loop_exit
      _

// kernel: unet3d_forward.11
$region0: #{unet3d_forward.11}
  #allocation0 [shape = 'u32[]', space=smem, size = 0x4, offset = 0x4, fixed_abs, tag = 'smem constant byte address 0x4 - core index']
  #allocation1 [shape = 'u32[144,128]{1,0:T(1,128)}', space=vmem, size = 0x12000, scoped, tag = 'internal scratch']
  %s0 = inlined_call_operand.vmem [shape: bf16[16,256], index: 0, kind: input, shape index: {}]
  %s1 = inlined_call_operand.vmem [shape: bf16[256,512], index: 1, kind: input, shape index: {}]
  %s2 = inlined_call_operand.vmem [shape: f32[16,1], index: 2, kind: input, shape index: {}]
  %s3 = inlined_call_operand.vmem [shape: f32[16,512], index: 3, kind: output, shape index: {}]
  %s4 = sld [smem:[#allocation0]]
  $region22: #{unet3d_forward.11} parent=0
    _
  %s6 = ssub.s32 1, %s4
  %s7 = scalar_select 0, %s6, %s4
  // Predicated region
  $region2: #{unet3d_forward.11} parent=0 // pred_check
    _
  $region3: #{unet3d_forward.11} parent=0 // pred_check_branch
    %9 = sbr.rel (0) target = $region5
  $region4: #{unet3d_forward.11} parent=0 // pred_region
    _
  $region5: #{unet3d_forward.11} parent=0 // pred_fallthru
    _
  // Predicated region
  $region6: #{unet3d_forward.11} parent=0 // pred_check
    _
  $region7: #{unet3d_forward.11} parent=0 // pred_check_branch
    %11 = sbr.rel (0) target = $region9
  $region8: #{unet3d_forward.11} parent=0 // pred_region
    _
  $region9: #{unet3d_forward.11} parent=0 // pred_fallthru
    _
  // Predicated region
  $region10: #{unet3d_forward.11} parent=0 // pred_check
    _
  $region11: #{unet3d_forward.11} parent=0 // pred_check_branch
    %13 = sbr.rel (0) target = $region13
  $region12: #{unet3d_forward.11} parent=0 // pred_region
    _
  $region13: #{unet3d_forward.11} parent=0 // pred_fallthru
    _
  %v16 = vld [vmem:[%s1] sm:$0xff]
  %v17 = vld [vmem:[%s1 + $0x8] sm:$0xff]
  %v18 = vld [vmem:[%s1 + $0x10] sm:$0xff]
  %v19 = vld [vmem:[%s1 + $0x18] sm:$0xff]
  %v20 = vld [vmem:[%s1 + $0x20] sm:$0xff]
  %v21 = vld [vmem:[%s1 + $0x28] sm:$0xff]
  %v22 = vld [vmem:[%s1 + $0x30] sm:$0xff]
  %v23 = vld [vmem:[%s1 + $0x38] sm:$0xff]
  %v24 = vld [vmem:[%s1 + $0x40] sm:$0xff]
  %v25 = vld [vmem:[%s1 + $0x48] sm:$0xff]
  %v26 = vld [vmem:[%s1 + $0x50] sm:$0xff]
  %v27 = vld [vmem:[%s1 + $0x58] sm:$0xff]
  %v28 = vld [vmem:[%s1 + $0x60] sm:$0xff]
  %v29 = vld [vmem:[%s1 + $0x68] sm:$0xff]
  %v30 = vld [vmem:[%s1 + $0x70] sm:$0xff]
  %v31 = vld [vmem:[%s1 + $0x78] sm:$0xff]
  %v32 = vld [vmem:[%s1 + $0x80] sm:$0xff]
  %v33 = vld [vmem:[%s1 + $0x88] sm:$0xff]
  %v34 = vld [vmem:[%s1 + $0x90] sm:$0xff]
  %v35 = vld [vmem:[%s1 + $0x98] sm:$0xff]
  %v36 = vld [vmem:[%s1 + $0xa0] sm:$0xff]
  %v37 = vld [vmem:[%s1 + $0xa8] sm:$0xff]
  %v38 = vld [vmem:[%s1 + $0xb0] sm:$0xff]
  %v39 = vld [vmem:[%s1 + $0xb8] sm:$0xff]
  %v40 = vld [vmem:[%s1 + $0xc0] sm:$0xff]
  %v41 = vld [vmem:[%s1 + $0xc8] sm:$0xff]
  %v42 = vld [vmem:[%s1 + $0xd0] sm:$0xff]
  %v43 = vld [vmem:[%s1 + $0xd8] sm:$0xff]
  %v44 = vld [vmem:[%s1 + $0xe0] sm:$0xff]
  %v45 = vld [vmem:[%s1 + $0xe8] sm:$0xff]
  %v46 = vld [vmem:[%s1 + $0xf0] sm:$0xff]
  %v47 = vld [vmem:[%s1 + $0xf8] sm:$0xff]
  %v48 = vld [vmem:[%s1 + $0x100] sm:$0xff]
  %v49 = vld [vmem:[%s1 + $0x108] sm:$0xff]
  %v50 = vld [vmem:[%s1 + $0x110] sm:$0xff]
  %v51 = vld [vmem:[%s1 + $0x118] sm:$0xff]
  %v52 = vld [vmem:[%s1 + $0x120] sm:$0xff]
  %v53 = vld [vmem:[%s1 + $0x128] sm:$0xff]
  %v54 = vld [vmem:[%s1 + $0x130] sm:$0xff]
  %v55 = vld [vmem:[%s1 + $0x138] sm:$0xff]
  %v56 = vld [vmem:[%s1 + $0x140] sm:$0xff]
  %v57 = vld [vmem:[%s1 + $0x148] sm:$0xff]
  %v58 = vld [vmem:[%s1 + $0x150] sm:$0xff]
  %v59 = vld [vmem:[%s1 + $0x158] sm:$0xff]
  %v60 = vld [vmem:[%s1 + $0x160] sm:$0xff]
  %v61 = vld [vmem:[%s1 + $0x168] sm:$0xff]
  %v62 = vld [vmem:[%s1 + $0x170] sm:$0xff]
  %v63 = vld [vmem:[%s1 + $0x178] sm:$0xff]
  %v64 = vld [vmem:[%s1 + $0x180] sm:$0xff]
  %v65 = vld [vmem:[%s1 + $0x188] sm:$0xff]
  %v66 = vld [vmem:[%s1 + $0x190] sm:$0xff]
  %v67 = vld [vmem:[%s1 + $0x198] sm:$0xff]
  %v68 = vld [vmem:[%s1 + $0x1a0] sm:$0xff]
  %v69 = vld [vmem:[%s1 + $0x1a8] sm:$0xff]
  %v70 = vld [vmem:[%s1 + $0x1b0] sm:$0xff]
  %v71 = vld [vmem:[%s1 + $0x1b8] sm:$0xff]
  %v72 = vld [vmem:[%s1 + $0x1c0] sm:$0xff]
  %v73 = vld [vmem:[%s1 + $0x1c8] sm:$0xff]
  %v74 = vld [vmem:[%s1 + $0x1d0] sm:$0xff]
  %v75 = vld [vmem:[%s1 + $0x1d8] sm:$0xff]
  %v76 = vld [vmem:[%s1 + $0x1e0] sm:$0xff]
  %v77 = vld [vmem:[%s1 + $0x1e8] sm:$0xff]
  %v78 = vld [vmem:[%s1 + $0x1f0] sm:$0xff]
  %v79 = vld [vmem:[%s1 + $0x1f8] sm:$0xff]
  %vm80 = vcmp.gt.bf16.partialorder %v16, 0
  %vm81 = vcmp.gt.bf16.partialorder %v17, 0
  %vm82 = vcmp.gt.bf16.partialorder %v18, 0
  %vm83 = vcmp.gt.bf16.partialorder %v19, 0
  %vm84 = vcmp.gt.bf16.partialorder %v20, 0
  %vm85 = vcmp.gt.bf16.partialorder %v21, 0
  %vm86 = vcmp.gt.bf16.partialorder %v22, 0
  %vm87 = vcmp.gt.bf16.partialorder %v23, 0
  %vm88 = vcmp.gt.bf16.partialorder %v24, 0
  %vm89 = vcmp.gt.bf16.partialorder %v25, 0
  %vm90 = vcmp.gt.bf16.partialorder %v26, 0
  %vm91 = vcmp.gt.bf16.partialorder %v27, 0
  %vm92 = vcmp.gt.bf16.partialorder %v28, 0
  %vm93 = vcmp.gt.bf16.partialorder %v29, 0
  %vm94 = vcmp.gt.bf16.partialorder %v30, 0
  %vm95 = vcmp.gt.bf16.partialorder %v31, 0
  %vm96 = vcmp.gt.bf16.partialorder %v32, 0
  %vm97 = vcmp.gt.bf16.partialorder %v33, 0
  %vm98 = vcmp.gt.bf16.partialorder %v34, 0
  %vm99 = vcmp.gt.bf16.partialorder %v35, 0
  %vm100 = vcmp.gt.bf16.partialorder %v36, 0
  %vm101 = vcmp.gt.bf16.partialorder %v37, 0
  %vm102 = vcmp.gt.bf16.partialorder %v38, 0
  %vm103 = vcmp.gt.bf16.partialorder %v39, 0
  %vm104 = vcmp.gt.bf16.partialorder %v40, 0
  %vm105 = vcmp.gt.bf16.partialorder %v41, 0
  %vm106 = vcmp.gt.bf16.partialorder %v42, 0
  %vm107 = vcmp.gt.bf16.partialorder %v43, 0
  %vm108 = vcmp.gt.bf16.partialorder %v44, 0
  %vm109 = vcmp.gt.bf16.partialorder %v45, 0
  %vm110 = vcmp.gt.bf16.partialorder %v46, 0
  %vm111 = vcmp.gt.bf16.partialorder %v47, 0
  %vm112 = vcmp.gt.bf16.partialorder %v48, 0
  %vm113 = vcmp.gt.bf16.partialorder %v49, 0
  %vm114 = vcmp.gt.bf16.partialorder %v50, 0
  %vm115 = vcmp.gt.bf16.partialorder %v51, 0
  %vm116 = vcmp.gt.bf16.partialorder %v52, 0
  %vm117 = vcmp.gt.bf16.partialorder %v53, 0
  %vm118 = vcmp.gt.bf16.partialorder %v54, 0
  %vm119 = vcmp.gt.bf16.partialorder %v55, 0
  %vm120 = vcmp.gt.bf16.partialorder %v56, 0
  %vm121 = vcmp.gt.bf16.partialorder %v57, 0
  %vm122 = vcmp.gt.bf16.partialorder %v58, 0
  %vm123 = vcmp.gt.bf16.partialorder %v59, 0
  %vm124 = vcmp.gt.bf16.partialorder %v60, 0
  %vm125 = vcmp.gt.bf16.partialorder %v61, 0
  %vm126 = vcmp.gt.bf16.partialorder %v62, 0
  %vm127 = vcmp.gt.bf16.partialorder %v63, 0
  %vm128 = vcmp.gt.bf16.partialorder %v64, 0
  %vm129 = vcmp.gt.bf16.partialorder %v65, 0
  %vm130 = vcmp.gt.bf16.partialorder %v66, 0
  %vm131 = vcmp.gt.bf16.partialorder %v67, 0
  %vm132 = vcmp.gt.bf16.partialorder %v68, 0
  %vm133 = vcmp.gt.bf16.partialorder %v69, 0
  %vm134 = vcmp.gt.bf16.partialorder %v70, 0
  %vm135 = vcmp.gt.bf16.partialorder %v71, 0
  %vm136 = vcmp.gt.bf16.partialorder %v72, 0
  %vm137 = vcmp.gt.bf16.partialorder %v73, 0
  %vm138 = vcmp.gt.bf16.partialorder %v74, 0
  %vm139 = vcmp.gt.bf16.partialorder %v75, 0
  %vm140 = vcmp.gt.bf16.partialorder %v76, 0
  %vm141 = vcmp.gt.bf16.partialorder %v77, 0
  %vm142 = vcmp.gt.bf16.partialorder %v78, 0
  %vm143 = vcmp.gt.bf16.partialorder %v79, 0
  %v144 = vmul.bf16 %v16, 1045249613
  %v145 = vmul.bf16 %v17, 1045249613
  %v146 = vmul.bf16 %v18, 1045249613
  %v147 = vmul.bf16 %v19, 1045249613
  %v148 = vmul.bf16 %v20, 1045249613
  %v149 = vmul.bf16 %v21, 1045249613
  %v150 = vmul.bf16 %v22, 1045249613
  %v151 = vmul.bf16 %v23, 1045249613
  %v152 = vmul.bf16 %v24, 1045249613
  %v153 = vmul.bf16 %v25, 1045249613
  %v154 = vmul.bf16 %v26, 1045249613
  %v155 = vmul.bf16 %v27, 1045249613
  %v156 = vmul.bf16 %v28, 1045249613
  %v157 = vmul.bf16 %v29, 1045249613
  %v158 = vmul.bf16 %v30, 1045249613
  %v159 = vmul.bf16 %v31, 1045249613
  %v160 = vmul.bf16 %v32, 1045249613
  %v161 = vmul.bf16 %v33, 1045249613
  %v162 = vmul.bf16 %v34, 1045249613
  %v163 = vmul.bf16 %v35, 1045249613
  %v164 = vmul.bf16 %v36, 1045249613
  %v165 = vmul.bf16 %v37, 1045249613
  %v166 = vmul.bf16 %v38, 1045249613
  %v167 = vmul.bf16 %v39, 1045249613
  %v168 = vmul.bf16 %v40, 1045249613
  %v169 = vmul.bf16 %v41, 1045249613
  %v170 = vmul.bf16 %v42, 1045249613
  %v171 = vmul.bf16 %v43, 1045249613
  %v172 = vmul.bf16 %v44, 1045249613
  %v173 = vmul.bf16 %v45, 1045249613
  %v174 = vmul.bf16 %v46, 1045249613
  %v175 = vmul.bf16 %v47, 1045249613
  %v176 = vmul.bf16 %v48, 1045249613
  %v177 = vmul.bf16 %v49, 1045249613
  %v178 = vmul.bf16 %v50, 1045249613
  %v179 = vmul.bf16 %v51, 1045249613
  %v180 = vmul.bf16 %v52, 1045249613
  %v181 = vmul.bf16 %v53, 1045249613
  %v182 = vmul.bf16 %v54, 1045249613
  %v183 = vmul.bf16 %v55, 1045249613
  %v184 = vmul.bf16 %v56, 1045249613
  %v185 = vmul.bf16 %v57, 1045249613
  %v186 = vmul.bf16 %v58, 1045249613
  %v187 = vmul.bf16 %v59, 1045249613
  %v188 = vmul.bf16 %v60, 1045249613
  %v189 = vmul.bf16 %v61, 1045249613
  %v190 = vmul.bf16 %v62, 1045249613
  %v191 = vmul.bf16 %v63, 1045249613
  %v192 = vmul.bf16 %v64, 1045249613
  %v193 = vmul.bf16 %v65, 1045249613
  %v194 = vmul.bf16 %v66, 1045249613
  %v195 = vmul.bf16 %v67, 1045249613
  %v196 = vmul.bf16 %v68, 1045249613
  %v197 = vmul.bf16 %v69, 1045249613
  %v198 = vmul.bf16 %v70, 1045249613
  %v199 = vmul.bf16 %v71, 1045249613
  %v200 = vmul.bf16 %v72, 1045249613
  %v201 = vmul.bf16 %v73, 1045249613
  %v202 = vmul.bf16 %v74, 1045249613
  %v203 = vmul.bf16 %v75, 1045249613
  %v204 = vmul.bf16 %v76, 1045249613
  %v205 = vmul.bf16 %v77, 1045249613
  %v206 = vmul.bf16 %v78, 1045249613
  %v207 = vmul.bf16 %v79, 1045249613
  %v208 = vsel %vm80, %v16, %v144
  %v209 = vsel %vm81, %v17, %v145
  %v210 = vsel %vm82, %v18, %v146
  %v211 = vsel %vm83, %v19, %v147
  %v212 = vsel %vm84, %v20, %v148
  %v213 = vsel %vm85, %v21, %v149
  %v214 = vsel %vm86, %v22, %v150
  %v215 = vsel %vm87, %v23, %v151
  %v216 = vsel %vm88, %v24, %v152
  %v217 = vsel %vm89, %v25, %v153
  %v218 = vsel %vm90, %v26, %v154
  %v219 = vsel %vm91, %v27, %v155
  %v220 = vsel %vm92, %v28, %v156
  %v221 = vsel %vm93, %v29, %v157
  %v222 = vsel %vm94, %v30, %v158
  %v223 = vsel %vm95, %v31, %v159
  %v224 = vsel %vm96, %v32, %v160
  %v225 = vsel %vm97, %v33, %v161
  %v226 = vsel %vm98, %v34, %v162
  %v227 = vsel %vm99, %v35, %v163
  %v228 = vsel %vm100, %v36, %v164
  %v229 = vsel %vm101, %v37, %v165
  %v230 = vsel %vm102, %v38, %v166
  %v231 = vsel %vm103, %v39, %v167
  %v232 = vsel %vm104, %v40, %v168
  %v233 = vsel %vm105, %v41, %v169
  %v234 = vsel %vm106, %v42, %v170
  %v235 = vsel %vm107, %v43, %v171
  %v236 = vsel %vm108, %v44, %v172
  %v237 = vsel %vm109, %v45, %v173
  %v238 = vsel %vm110, %v46, %v174
  %v239 = vsel %vm111, %v47, %v175
  %v240 = vsel %vm112, %v48, %v176
  %v241 = vsel %vm113, %v49, %v177
  %v242 = vsel %vm114, %v50, %v178
  %v243 = vsel %vm115, %v51, %v179
  %v244 = vsel %vm116, %v52, %v180
  %v245 = vsel %vm117, %v53, %v181
  %v246 = vsel %vm118, %v54, %v182
  %v247 = vsel %vm119, %v55, %v183
  %v248 = vsel %vm120, %v56, %v184
  %v249 = vsel %vm121, %v57, %v185
  %v250 = vsel %vm122, %v58, %v186
  %v251 = vsel %vm123, %v59, %v187
  %v252 = vsel %vm124, %v60, %v188
  %v253 = vsel %vm125, %v61, %v189
  %v254 = vsel %vm126, %v62, %v190
  %v255 = vsel %vm127, %v63, %v191
  %v256 = vsel %vm128, %v64, %v192
  %v257 = vsel %vm129, %v65, %v193
  %v258 = vsel %vm130, %v66, %v194
  %v259 = vsel %vm131, %v67, %v195
  %v260 = vsel %vm132, %v68, %v196
  %v261 = vsel %vm133, %v69, %v197
  %v262 = vsel %vm134, %v70, %v198
  %v263 = vsel %vm135, %v71, %v199
  %v264 = vsel %vm136, %v72, %v200
  %v265 = vsel %vm137, %v73, %v201
  %v266 = vsel %vm138, %v74, %v202
  %v267 = vsel %vm139, %v75, %v203
  %v268 = vsel %vm140, %v76, %v204
  %v269 = vsel %vm141, %v77, %v205
  %v270 = vsel %vm142, %v78, %v206
  %v271 = vsel %vm143, %v79, %v207
  %v272 = vld [vmem:[%s0] sm:$0xff]
  %v273 = vld [vmem:[%s0 + $0x8] sm:$0xff]
  %v274 = vld [vmem:[%s2] sm:$0xff]
  %v275 = vld [vmem:[%s2 + $0x8] sm:$0xff]
  %277 = vset.pattern.permute.xlu0 0
  %278 = vperm.xlu0 %277, %v274
  %v279 = vpop.permute.xlu0 %278
  %282 = vset.pattern.permute.xlu0 0
  %283 = vperm.xlu0 %282, %v275
  %v284 = vpop.permute.xlu0 %283
  %v288 = vunpack.c.l.b16 %v272
  %v289 = vunpack.c.h.b16 %v272
  %v290 = vunpack.c.l.b16 %v273
  %v291 = vunpack.c.h.b16 %v273
  %v292 = vpack.c.b16 %v290, %v288
  %v293 = vpack.c.b16 %v291, %v289
  %v360 = vunpack.c.l.b16 %v208
  %v361 = vunpack.c.h.b16 %v208
  %v362 = vunpack.c.l.b16 %v209
  %v363 = vunpack.c.h.b16 %v209
  %v364 = vunpack.c.l.b16 %v210
  %v365 = vunpack.c.h.b16 %v210
  %v366 = vunpack.c.l.b16 %v211
  %v367 = vunpack.c.h.b16 %v211
  %v368 = vunpack.c.l.b16 %v212
  %v369 = vunpack.c.h.b16 %v212
  %v370 = vunpack.c.l.b16 %v213
  %v371 = vunpack.c.h.b16 %v213
  %v372 = vunpack.c.l.b16 %v214
  %v373 = vunpack.c.h.b16 %v214
  %v374 = vunpack.c.l.b16 %v215
  %v375 = vunpack.c.h.b16 %v215
  %v376 = vunpack.c.l.b16 %v216
  %v377 = vunpack.c.h.b16 %v216
  %v378 = vunpack.c.l.b16 %v217
  %v379 = vunpack.c.h.b16 %v217
  %v380 = vunpack.c.l.b16 %v218
  %v381 = vunpack.c.h.b16 %v218
  %v382 = vunpack.c.l.b16 %v219
  %v383 = vunpack.c.h.b16 %v219
  %v384 = vunpack.c.l.b16 %v220
  %v385 = vunpack.c.h.b16 %v220
  %v386 = vunpack.c.l.b16 %v221
  %v387 = vunpack.c.h.b16 %v221
  %v388 = vunpack.c.l.b16 %v222
  %v389 = vunpack.c.h.b16 %v222
  %v390 = vunpack.c.l.b16 %v223
  %v391 = vunpack.c.h.b16 %v223
  %v392 = vunpack.c.l.b16 %v224
  %v393 = vunpack.c.h.b16 %v224
  %v394 = vunpack.c.l.b16 %v225
  %v395 = vunpack.c.h.b16 %v225
  %v396 = vunpack.c.l.b16 %v226
  %v397 = vunpack.c.h.b16 %v226
  %v398 = vunpack.c.l.b16 %v227
  %v399 = vunpack.c.h.b16 %v227
  %v400 = vunpack.c.l.b16 %v228
  %v401 = vunpack.c.h.b16 %v228
  %v402 = vunpack.c.l.b16 %v229
  %v403 = vunpack.c.h.b16 %v229
  %v404 = vunpack.c.l.b16 %v230
  %v405 = vunpack.c.h.b16 %v230
  %v406 = vunpack.c.l.b16 %v231
  %v407 = vunpack.c.h.b16 %v231
  %v408 = vunpack.c.l.b16 %v232
  %v409 = vunpack.c.h.b16 %v232
  %v410 = vunpack.c.l.b16 %v233
  %v411 = vunpack.c.h.b16 %v233
  %v412 = vunpack.c.l.b16 %v234
  %v413 = vunpack.c.h.b16 %v234
  %v414 = vunpack.c.l.b16 %v235
  %v415 = vunpack.c.h.b16 %v235
  %v416 = vunpack.c.l.b16 %v236
  %v417 = vunpack.c.h.b16 %v236
  %v418 = vunpack.c.l.b16 %v237
  %v419 = vunpack.c.h.b16 %v237
  %v420 = vunpack.c.l.b16 %v238
  %v421 = vunpack.c.h.b16 %v238
  %v422 = vunpack.c.l.b16 %v239
  %v423 = vunpack.c.h.b16 %v239
  %v424 = vunpack.c.l.b16 %v240
  %v425 = vunpack.c.h.b16 %v240
  %v426 = vunpack.c.l.b16 %v241
  %v427 = vunpack.c.h.b16 %v241
  %v428 = vunpack.c.l.b16 %v242
  %v429 = vunpack.c.h.b16 %v242
  %v430 = vunpack.c.l.b16 %v243
  %v431 = vunpack.c.h.b16 %v243
  %v432 = vunpack.c.l.b16 %v244
  %v433 = vunpack.c.h.b16 %v244
  %v434 = vunpack.c.l.b16 %v245
  %v435 = vunpack.c.h.b16 %v245
  %v436 = vunpack.c.l.b16 %v246
  %v437 = vunpack.c.h.b16 %v246
  %v438 = vunpack.c.l.b16 %v247
  %v439 = vunpack.c.h.b16 %v247
  %v440 = vunpack.c.l.b16 %v248
  %v441 = vunpack.c.h.b16 %v248
  %v442 = vunpack.c.l.b16 %v249
  %v443 = vunpack.c.h.b16 %v249
  %v444 = vunpack.c.l.b16 %v250
  %v445 = vunpack.c.h.b16 %v250
  %v446 = vunpack.c.l.b16 %v251
  %v447 = vunpack.c.h.b16 %v251
  %v448 = vunpack.c.l.b16 %v252
  %v449 = vunpack.c.h.b16 %v252
  %v450 = vunpack.c.l.b16 %v253
  %v451 = vunpack.c.h.b16 %v253
  %v452 = vunpack.c.l.b16 %v254
  %v453 = vunpack.c.h.b16 %v254
  %v454 = vunpack.c.l.b16 %v255
  %v455 = vunpack.c.h.b16 %v255
  %v456 = vunpack.c.l.b16 %v256
  %v457 = vunpack.c.h.b16 %v256
  %v458 = vunpack.c.l.b16 %v257
  %v459 = vunpack.c.h.b16 %v257
  %v460 = vunpack.c.l.b16 %v258
  %v461 = vunpack.c.h.b16 %v258
  %v462 = vunpack.c.l.b16 %v259
  %v463 = vunpack.c.h.b16 %v259
  %v464 = vunpack.c.l.b16 %v260
  %v465 = vunpack.c.h.b16 %v260
  %v466 = vunpack.c.l.b16 %v261
  %v467 = vunpack.c.h.b16 %v261
  %v468 = vunpack.c.l.b16 %v262
  %v469 = vunpack.c.h.b16 %v262
  %v470 = vunpack.c.l.b16 %v263
  %v471 = vunpack.c.h.b16 %v263
  %v472 = vunpack.c.l.b16 %v264
  %v473 = vunpack.c.h.b16 %v264
  %v474 = vunpack.c.l.b16 %v265
  %v475 = vunpack.c.h.b16 %v265
  %v476 = vunpack.c.l.b16 %v266
  %v477 = vunpack.c.h.b16 %v266
  %v478 = vunpack.c.l.b16 %v267
  %v479 = vunpack.c.h.b16 %v267
  %v480 = vunpack.c.l.b16 %v268
  %v481 = vunpack.c.h.b16 %v268
  %v482 = vunpack.c.l.b16 %v269
  %v483 = vunpack.c.h.b16 %v269
  %v484 = vunpack.c.l.b16 %v270
  %v485 = vunpack.c.h.b16 %v270
  %v486 = vunpack.c.l.b16 %v271
  %v487 = vunpack.c.h.b16 %v271
  %v488 = vpack.c.b16 %v364, %v360
  %v489 = vpack.c.b16 %v365, %v361
  %v490 = vpack.c.b16 %v366, %v362
  %v491 = vpack.c.b16 %v367, %v363
  %v492 = vpack.c.b16 %v372, %v368
  %v493 = vpack.c.b16 %v373, %v369
  %v494 = vpack.c.b16 %v374, %v370
  %v495 = vpack.c.b16 %v375, %v371
  %v496 = vpack.c.b16 %v380, %v376
  %v497 = vpack.c.b16 %v381, %v377
  %v498 = vpack.c.b16 %v382, %v378
  %v499 = vpack.c.b16 %v383, %v379
  %v500 = vpack.c.b16 %v388, %v384
  %v501 = vpack.c.b16 %v389, %v385
  %v502 = vpack.c.b16 %v390, %v386
  %v503 = vpack.c.b16 %v391, %v387
  %v504 = vpack.c.b16 %v396, %v392
  %v505 = vpack.c.b16 %v397, %v393
  %v506 = vpack.c.b16 %v398, %v394
  %v507 = vpack.c.b16 %v399, %v395
  %v508 = vpack.c.b16 %v404, %v400
  %v509 = vpack.c.b16 %v405, %v401
  %v510 = vpack.c.b16 %v406, %v402
  %v511 = vpack.c.b16 %v407, %v403
  %v512 = vpack.c.b16 %v412, %v408
  %v513 = vpack.c.b16 %v413, %v409
  %v514 = vpack.c.b16 %v414, %v410
  %v515 = vpack.c.b16 %v415, %v411
  %v516 = vpack.c.b16 %v420, %v416
  %v517 = vpack.c.b16 %v421, %v417
  %v518 = vpack.c.b16 %v422, %v418
  %v519 = vpack.c.b16 %v423, %v419
  %v520 = vpack.c.b16 %v428, %v424
  %v521 = vpack.c.b16 %v429, %v425
  %v522 = vpack.c.b16 %v430, %v426
  %v523 = vpack.c.b16 %v431, %v427
  %v524 = vpack.c.b16 %v436, %v432
  %v525 = vpack.c.b16 %v437, %v433
  %v526 = vpack.c.b16 %v438, %v434
  %v527 = vpack.c.b16 %v439, %v435
  %v528 = vpack.c.b16 %v444, %v440
  %v529 = vpack.c.b16 %v445, %v441
  %v530 = vpack.c.b16 %v446, %v442
  %v531 = vpack.c.b16 %v447, %v443
  %v532 = vpack.c.b16 %v452, %v448
  %v533 = vpack.c.b16 %v453, %v449
  %v534 = vpack.c.b16 %v454, %v450
  %v535 = vpack.c.b16 %v455, %v451
  %v536 = vpack.c.b16 %v460, %v456
  %v537 = vpack.c.b16 %v461, %v457
  %v538 = vpack.c.b16 %v462, %v458
  %v539 = vpack.c.b16 %v463, %v459
  %v540 = vpack.c.b16 %v468, %v464
  %v541 = vpack.c.b16 %v469, %v465
  %v542 = vpack.c.b16 %v470, %v466
  %v543 = vpack.c.b16 %v471, %v467
  %v544 = vpack.c.b16 %v476, %v472
  %v545 = vpack.c.b16 %v477, %v473
  %v546 = vpack.c.b16 %v478, %v474
  %v547 = vpack.c.b16 %v479, %v475
  %v548 = vpack.c.b16 %v484, %v480
  %v549 = vpack.c.b16 %v485, %v481
  %v550 = vpack.c.b16 %v486, %v482
  %v551 = vpack.c.b16 %v487, %v483
  %616 = vmatprep.subr.bf16.mxu0 %v489
  %617 = vmatpush1.bf16.msra.mxu0 %v488
  %618 = vmatprep.subr.bf16.mxu0 %v493
  %619 = vmatpush1.bf16.msra.mxu0 %v492
  %620 = vmatprep.subr.bf16.mxu0 %v497
  %621 = vmatpush1.bf16.msra.mxu0 %v496
  %622 = vmatprep.subr.bf16.mxu0 %v501
  %623 = vmatpush1.bf16.msra.mxu0 %v500
  %624 = vmatprep.subr.bf16.mxu0 %v505
  %625 = vmatpush1.bf16.msra.mxu0 %v504
  %626 = vmatprep.subr.bf16.mxu0 %v509
  %627 = vmatpush1.bf16.msra.mxu0 %v508
  %628 = vmatprep.subr.bf16.mxu0 %v513
  %629 = vmatpush1.bf16.msra.mxu0 %v512
  %630 = vmatprep.subr.bf16.mxu0 %v517
  %631 = vmatpush1.bf16.msra.mxu0 %v516
  %632 = vmatprep.subr.bf16.mxu0 %v521
  %633 = vmatpush1.bf16.msra.mxu0 %v520
  %634 = vmatprep.subr.bf16.mxu0 %v525
  %635 = vmatpush1.bf16.msra.mxu0 %v524
  %636 = vmatprep.subr.bf16.mxu0 %v529
  %637 = vmatpush1.bf16.msra.mxu0 %v528
  %638 = vmatprep.subr.bf16.mxu0 %v533
  %639 = vmatpush1.bf16.msra.mxu0 %v532
  %640 = vmatprep.subr.bf16.mxu0 %v537
  %641 = vmatpush1.bf16.msra.mxu0 %v536
  %642 = vmatprep.subr.bf16.mxu0 %v541
  %643 = vmatpush1.bf16.msra.mxu0 %v540
  %644 = vmatprep.subr.bf16.mxu0 %v545
  %645 = vmatpush1.bf16.msra.mxu0 %v544
  %646 = vmatprep.subr.bf16.mxu0 %v549
  %647 = vmatpush1.bf16.msra.mxu0 %v548
  %648 = vmatprep.mubr.bf16.mxu0 %v293
  %649 = vmatmul.mubr.bf16.gmra.mrb[0].mxu0 %v292
  %v650 = vpop.f32.mrb[0].mxu0
  %v651 = vadd.f32 %v279, %v650
  %v652 = vpop.f32.mrb[0].mxu0
  %v653 = vadd.f32 %v279, %v652
  %v654 = vpop.f32.mrb[0].mxu0
  %v655 = vadd.f32 %v284, %v654
  %v656 = vpop.f32.mrb[0].mxu0
  %v657 = vadd.f32 %v284, %v656
  %658 = vdwg.mxu0
  %659 = vmatprep.subr.bf16.mxu0 %v491
  %660 = vmatpush1.bf16.msra.mxu0 %v490
  %661 = vmatprep.subr.bf16.mxu0 %v495
  %662 = vmatpush1.bf16.msra.mxu0 %v494
  %663 = vmatprep.subr.bf16.mxu0 %v499
  %664 = vmatpush1.bf16.msra.mxu0 %v498
  %665 = vmatprep.subr.bf16.mxu0 %v503
  %666 = vmatpush1.bf16.msra.mxu0 %v502
  %667 = vmatprep.subr.bf16.mxu0 %v507
  %668 = vmatpush1.bf16.msra.mxu0 %v506
  %669 = vmatprep.subr.bf16.mxu0 %v511
  %670 = vmatpush1.bf16.msra.mxu0 %v510
  %671 = vmatprep.subr.bf16.mxu0 %v515
  %672 = vmatpush1.bf16.msra.mxu0 %v514
  %673 = vmatprep.subr.bf16.mxu0 %v519
  %674 = vmatpush1.bf16.msra.mxu0 %v518
  %675 = vmatprep.subr.bf16.mxu0 %v523
  %676 = vmatpush1.bf16.msra.mxu0 %v522
  %677 = vmatprep.subr.bf16.mxu0 %v527
  %678 = vmatpush1.bf16.msra.mxu0 %v526
  %679 = vmatprep.subr.bf16.mxu0 %v531
  %680 = vmatpush1.bf16.msra.mxu0 %v530
  %681 = vmatprep.subr.bf16.mxu0 %v535
  %682 = vmatpush1.bf16.msra.mxu0 %v534
  %683 = vmatprep.subr.bf16.mxu0 %v539
  %684 = vmatpush1.bf16.msra.mxu0 %v538
  %685 = vmatprep.subr.bf16.mxu0 %v543
  %686 = vmatpush1.bf16.msra.mxu0 %v542
  %687 = vmatprep.subr.bf16.mxu0 %v547
  %688 = vmatpush1.bf16.msra.mxu0 %v546
  %689 = vmatprep.subr.bf16.mxu0 %v551
  %690 = vmatpush1.bf16.msra.mxu0 %v550
  %691 = vmatprep.mubr.bf16.mxu0 %v293
  %692 = vmatmul.mubr.bf16.gmra.mrb[0].mxu0 %v292
  %v693 = vpop.f32.mrb[0].mxu0
  %v694 = vadd.f32 %v279, %v693
  %v695 = vpop.f32.mrb[0].mxu0
  %v696 = vadd.f32 %v279, %v695
  %v697 = vpop.f32.mrb[0].mxu0
  %v698 = vadd.f32 %v284, %v697
  %v699 = vpop.f32.mrb[0].mxu0
  %v700 = vadd.f32 %v284, %v699
  %701 = vdwg.mxu0
  %702 = vst [vmem:[%s3] sm:$0xff] %v651
  %703 = vst [vmem:[%s3 + $0x8] sm:$0xff] %v653
  %704 = vst [vmem:[%s3 + $0x10] sm:$0xff] %v694
  %705 = vst [vmem:[%s3 + $0x18] sm:$0xff] %v696
  %706 = vst [vmem:[%s3 + $0x20] sm:$0xff] %v655
  %707 = vst [vmem:[%s3 + $0x28] sm:$0xff] %v657
  %708 = vst [vmem:[%s3 + $0x30] sm:$0xff] %v698
  %709 = vst [vmem:[%s3 + $0x38] sm:$0xff] %v700
  // Predicated region
  $region14: #{unet3d_forward.11} parent=0 // pred_check
    _
  $region15: #{unet3d_forward.11} parent=0 // pred_check_branch
    %711 = sbr.rel (0) target = $region17
  $region16: #{unet3d_forward.11} parent=0 // pred_region
    _
  $region17: #{unet3d_forward.11} parent=0 // pred_fallthru
    _
  // Predicated region
  $region18: #{unet3d_forward.11} parent=0 // pred_check
    _
  $region19: #{unet3d_forward.11} parent=0 // pred_check_branch
    %713 = sbr.rel (0) target = $region21
  $region20: #{unet3d_forward.11} parent=0 // pred_region
    _
  $region21: #{unet3d_forward.11} parent=0 // pred_fallthru
    _

// kernel: unet3d_forward.12
$region0: #{unet3d_forward.12}
  #allocation0 [shape = 'u32[]', space=smem, size = 0x4, offset = 0x4, fixed_abs, tag = 'smem constant byte address 0x4 - core index']
  #allocation1 [shape = 'u32[144,128]{1,0:T(1,128)}', space=vmem, size = 0x12000, scoped, tag = 'internal scratch']
  %s0 = inlined_call_operand.vmem [shape: bf16[16,512], index: 0, kind: input, shape index: {}]
  %s1 = inlined_call_operand.vmem [shape: bf16[512,128], index: 1, kind: input, shape index: {}]
  %s2 = inlined_call_operand.vmem [shape: f32[16,1], index: 2, kind: input, shape index: {}]
  %s3 = inlined_call_operand.vmem [shape: f32[16,128], index: 3, kind: output, shape index: {}]
  %s4 = sld [smem:[#allocation0]]
  $region22: #{unet3d_forward.12} parent=0
    _
  %s6 = ssub.s32 1, %s4
  %s7 = scalar_select 0, %s6, %s4
  // Predicated region
  $region2: #{unet3d_forward.12} parent=0 // pred_check
    _
  $region3: #{unet3d_forward.12} parent=0 // pred_check_branch
    %9 = sbr.rel (0) target = $region5
  $region4: #{unet3d_forward.12} parent=0 // pred_region
    _
  $region5: #{unet3d_forward.12} parent=0 // pred_fallthru
    _
  // Predicated region
  $region6: #{unet3d_forward.12} parent=0 // pred_check
    _
  $region7: #{unet3d_forward.12} parent=0 // pred_check_branch
    %11 = sbr.rel (0) target = $region9
  $region8: #{unet3d_forward.12} parent=0 // pred_region
    _
  $region9: #{unet3d_forward.12} parent=0 // pred_fallthru
    _
  // Predicated region
  $region10: #{unet3d_forward.12} parent=0 // pred_check
    _
  $region11: #{unet3d_forward.12} parent=0 // pred_check_branch
    %13 = sbr.rel (0) target = $region13
  $region12: #{unet3d_forward.12} parent=0 // pred_region
    _
  $region13: #{unet3d_forward.12} parent=0 // pred_fallthru
    _
  %v16 = vld [vmem:[%s1] sm:$0xf]
  %v17 = vld [vmem:[%s1 + $0x4] sm:$0xf]
  %v18 = vld [vmem:[%s1 + $0x8] sm:$0xf]
  %v19 = vld [vmem:[%s1 + $0xc] sm:$0xf]
  %v20 = vld [vmem:[%s1 + $0x10] sm:$0xf]
  %v21 = vld [vmem:[%s1 + $0x14] sm:$0xf]
  %v22 = vld [vmem:[%s1 + $0x18] sm:$0xf]
  %v23 = vld [vmem:[%s1 + $0x1c] sm:$0xf]
  %v24 = vld [vmem:[%s1 + $0x20] sm:$0xf]
  %v25 = vld [vmem:[%s1 + $0x24] sm:$0xf]
  %v26 = vld [vmem:[%s1 + $0x28] sm:$0xf]
  %v27 = vld [vmem:[%s1 + $0x2c] sm:$0xf]
  %v28 = vld [vmem:[%s1 + $0x30] sm:$0xf]
  %v29 = vld [vmem:[%s1 + $0x34] sm:$0xf]
  %v30 = vld [vmem:[%s1 + $0x38] sm:$0xf]
  %v31 = vld [vmem:[%s1 + $0x3c] sm:$0xf]
  %v32 = vld [vmem:[%s1 + $0x40] sm:$0xf]
  %v33 = vld [vmem:[%s1 + $0x44] sm:$0xf]
  %v34 = vld [vmem:[%s1 + $0x48] sm:$0xf]
  %v35 = vld [vmem:[%s1 + $0x4c] sm:$0xf]
  %v36 = vld [vmem:[%s1 + $0x50] sm:$0xf]
  %v37 = vld [vmem:[%s1 + $0x54] sm:$0xf]
  %v38 = vld [vmem:[%s1 + $0x58] sm:$0xf]
  %v39 = vld [vmem:[%s1 + $0x5c] sm:$0xf]
  %v40 = vld [vmem:[%s1 + $0x60] sm:$0xf]
  %v41 = vld [vmem:[%s1 + $0x64] sm:$0xf]
  %v42 = vld [vmem:[%s1 + $0x68] sm:$0xf]
  %v43 = vld [vmem:[%s1 + $0x6c] sm:$0xf]
  %v44 = vld [vmem:[%s1 + $0x70] sm:$0xf]
  %v45 = vld [vmem:[%s1 + $0x74] sm:$0xf]
  %v46 = vld [vmem:[%s1 + $0x78] sm:$0xf]
  %v47 = vld [vmem:[%s1 + $0x7c] sm:$0xf]
  %v48 = vld [vmem:[%s1 + $0x80] sm:$0xf]
  %v49 = vld [vmem:[%s1 + $0x84] sm:$0xf]
  %v50 = vld [vmem:[%s1 + $0x88] sm:$0xf]
  %v51 = vld [vmem:[%s1 + $0x8c] sm:$0xf]
  %v52 = vld [vmem:[%s1 + $0x90] sm:$0xf]
  %v53 = vld [vmem:[%s1 + $0x94] sm:$0xf]
  %v54 = vld [vmem:[%s1 + $0x98] sm:$0xf]
  %v55 = vld [vmem:[%s1 + $0x9c] sm:$0xf]
  %v56 = vld [vmem:[%s1 + $0xa0] sm:$0xf]
  %v57 = vld [vmem:[%s1 + $0xa4] sm:$0xf]
  %v58 = vld [vmem:[%s1 + $0xa8] sm:$0xf]
  %v59 = vld [vmem:[%s1 + $0xac] sm:$0xf]
  %v60 = vld [vmem:[%s1 + $0xb0] sm:$0xf]
  %v61 = vld [vmem:[%s1 + $0xb4] sm:$0xf]
  %v62 = vld [vmem:[%s1 + $0xb8] sm:$0xf]
  %v63 = vld [vmem:[%s1 + $0xbc] sm:$0xf]
  %v64 = vld [vmem:[%s1 + $0xc0] sm:$0xf]
  %v65 = vld [vmem:[%s1 + $0xc4] sm:$0xf]
  %v66 = vld [vmem:[%s1 + $0xc8] sm:$0xf]
  %v67 = vld [vmem:[%s1 + $0xcc] sm:$0xf]
  %v68 = vld [vmem:[%s1 + $0xd0] sm:$0xf]
  %v69 = vld [vmem:[%s1 + $0xd4] sm:$0xf]
  %v70 = vld [vmem:[%s1 + $0xd8] sm:$0xf]
  %v71 = vld [vmem:[%s1 + $0xdc] sm:$0xf]
  %v72 = vld [vmem:[%s1 + $0xe0] sm:$0xf]
  %v73 = vld [vmem:[%s1 + $0xe4] sm:$0xf]
  %v74 = vld [vmem:[%s1 + $0xe8] sm:$0xf]
  %v75 = vld [vmem:[%s1 + $0xec] sm:$0xf]
  %v76 = vld [vmem:[%s1 + $0xf0] sm:$0xf]
  %v77 = vld [vmem:[%s1 + $0xf4] sm:$0xf]
  %v78 = vld [vmem:[%s1 + $0xf8] sm:$0xf]
  %v79 = vld [vmem:[%s1 + $0xfc] sm:$0xf]
  %vm80 = vcmp.gt.bf16.partialorder %v16, 0
  %vm81 = vcmp.gt.bf16.partialorder %v17, 0
  %vm82 = vcmp.gt.bf16.partialorder %v18, 0
  %vm83 = vcmp.gt.bf16.partialorder %v19, 0
  %vm84 = vcmp.gt.bf16.partialorder %v20, 0
  %vm85 = vcmp.gt.bf16.partialorder %v21, 0
  %vm86 = vcmp.gt.bf16.partialorder %v22, 0
  %vm87 = vcmp.gt.bf16.partialorder %v23, 0
  %vm88 = vcmp.gt.bf16.partialorder %v24, 0
  %vm89 = vcmp.gt.bf16.partialorder %v25, 0
  %vm90 = vcmp.gt.bf16.partialorder %v26, 0
  %vm91 = vcmp.gt.bf16.partialorder %v27, 0
  %vm92 = vcmp.gt.bf16.partialorder %v28, 0
  %vm93 = vcmp.gt.bf16.partialorder %v29, 0
  %vm94 = vcmp.gt.bf16.partialorder %v30, 0
  %vm95 = vcmp.gt.bf16.partialorder %v31, 0
  %vm96 = vcmp.gt.bf16.partialorder %v32, 0
  %vm97 = vcmp.gt.bf16.partialorder %v33, 0
  %vm98 = vcmp.gt.bf16.partialorder %v34, 0
  %vm99 = vcmp.gt.bf16.partialorder %v35, 0
  %vm100 = vcmp.gt.bf16.partialorder %v36, 0
  %vm101 = vcmp.gt.bf16.partialorder %v37, 0
  %vm102 = vcmp.gt.bf16.partialorder %v38, 0
  %vm103 = vcmp.gt.bf16.partialorder %v39, 0
  %vm104 = vcmp.gt.bf16.partialorder %v40, 0
  %vm105 = vcmp.gt.bf16.partialorder %v41, 0
  %vm106 = vcmp.gt.bf16.partialorder %v42, 0
  %vm107 = vcmp.gt.bf16.partialorder %v43, 0
  %vm108 = vcmp.gt.bf16.partialorder %v44, 0
  %vm109 = vcmp.gt.bf16.partialorder %v45, 0
  %vm110 = vcmp.gt.bf16.partialorder %v46, 0
  %vm111 = vcmp.gt.bf16.partialorder %v47, 0
  %vm112 = vcmp.gt.bf16.partialorder %v48, 0
  %vm113 = vcmp.gt.bf16.partialorder %v49, 0
  %vm114 = vcmp.gt.bf16.partialorder %v50, 0
  %vm115 = vcmp.gt.bf16.partialorder %v51, 0
  %vm116 = vcmp.gt.bf16.partialorder %v52, 0
  %vm117 = vcmp.gt.bf16.partialorder %v53, 0
  %vm118 = vcmp.gt.bf16.partialorder %v54, 0
  %vm119 = vcmp.gt.bf16.partialorder %v55, 0
  %vm120 = vcmp.gt.bf16.partialorder %v56, 0
  %vm121 = vcmp.gt.bf16.partialorder %v57, 0
  %vm122 = vcmp.gt.bf16.partialorder %v58, 0
  %vm123 = vcmp.gt.bf16.partialorder %v59, 0
  %vm124 = vcmp.gt.bf16.partialorder %v60, 0
  %vm125 = vcmp.gt.bf16.partialorder %v61, 0
  %vm126 = vcmp.gt.bf16.partialorder %v62, 0
  %vm127 = vcmp.gt.bf16.partialorder %v63, 0
  %vm128 = vcmp.gt.bf16.partialorder %v64, 0
  %vm129 = vcmp.gt.bf16.partialorder %v65, 0
  %vm130 = vcmp.gt.bf16.partialorder %v66, 0
  %vm131 = vcmp.gt.bf16.partialorder %v67, 0
  %vm132 = vcmp.gt.bf16.partialorder %v68, 0
  %vm133 = vcmp.gt.bf16.partialorder %v69, 0
  %vm134 = vcmp.gt.bf16.partialorder %v70, 0
  %vm135 = vcmp.gt.bf16.partialorder %v71, 0
  %vm136 = vcmp.gt.bf16.partialorder %v72, 0
  %vm137 = vcmp.gt.bf16.partialorder %v73, 0
  %vm138 = vcmp.gt.bf16.partialorder %v74, 0
  %vm139 = vcmp.gt.bf16.partialorder %v75, 0
  %vm140 = vcmp.gt.bf16.partialorder %v76, 0
  %vm141 = vcmp.gt.bf16.partialorder %v77, 0
  %vm142 = vcmp.gt.bf16.partialorder %v78, 0
  %vm143 = vcmp.gt.bf16.partialorder %v79, 0
  %v144 = vmul.bf16 %v16, 1045249613
  %v145 = vmul.bf16 %v17, 1045249613
  %v146 = vmul.bf16 %v18, 1045249613
  %v147 = vmul.bf16 %v19, 1045249613
  %v148 = vmul.bf16 %v20, 1045249613
  %v149 = vmul.bf16 %v21, 1045249613
  %v150 = vmul.bf16 %v22, 1045249613
  %v151 = vmul.bf16 %v23, 1045249613
  %v152 = vmul.bf16 %v24, 1045249613
  %v153 = vmul.bf16 %v25, 1045249613
  %v154 = vmul.bf16 %v26, 1045249613
  %v155 = vmul.bf16 %v27, 1045249613
  %v156 = vmul.bf16 %v28, 1045249613
  %v157 = vmul.bf16 %v29, 1045249613
  %v158 = vmul.bf16 %v30, 1045249613
  %v159 = vmul.bf16 %v31, 1045249613
  %v160 = vmul.bf16 %v32, 1045249613
  %v161 = vmul.bf16 %v33, 1045249613
  %v162 = vmul.bf16 %v34, 1045249613
  %v163 = vmul.bf16 %v35, 1045249613
  %v164 = vmul.bf16 %v36, 1045249613
  %v165 = vmul.bf16 %v37, 1045249613
  %v166 = vmul.bf16 %v38, 1045249613
  %v167 = vmul.bf16 %v39, 1045249613
  %v168 = vmul.bf16 %v40, 1045249613
  %v169 = vmul.bf16 %v41, 1045249613
  %v170 = vmul.bf16 %v42, 1045249613
  %v171 = vmul.bf16 %v43, 1045249613
  %v172 = vmul.bf16 %v44, 1045249613
  %v173 = vmul.bf16 %v45, 1045249613
  %v174 = vmul.bf16 %v46, 1045249613
  %v175 = vmul.bf16 %v47, 1045249613
  %v176 = vmul.bf16 %v48, 1045249613
  %v177 = vmul.bf16 %v49, 1045249613
  %v178 = vmul.bf16 %v50, 1045249613
  %v179 = vmul.bf16 %v51, 1045249613
  %v180 = vmul.bf16 %v52, 1045249613
  %v181 = vmul.bf16 %v53, 1045249613
  %v182 = vmul.bf16 %v54, 1045249613
  %v183 = vmul.bf16 %v55, 1045249613
  %v184 = vmul.bf16 %v56, 1045249613
  %v185 = vmul.bf16 %v57, 1045249613
  %v186 = vmul.bf16 %v58, 1045249613
  %v187 = vmul.bf16 %v59, 1045249613
  %v188 = vmul.bf16 %v60, 1045249613
  %v189 = vmul.bf16 %v61, 1045249613
  %v190 = vmul.bf16 %v62, 1045249613
  %v191 = vmul.bf16 %v63, 1045249613
  %v192 = vmul.bf16 %v64, 1045249613
  %v193 = vmul.bf16 %v65, 1045249613
  %v194 = vmul.bf16 %v66, 1045249613
  %v195 = vmul.bf16 %v67, 1045249613
  %v196 = vmul.bf16 %v68, 1045249613
  %v197 = vmul.bf16 %v69, 1045249613
  %v198 = vmul.bf16 %v70, 1045249613
  %v199 = vmul.bf16 %v71, 1045249613
  %v200 = vmul.bf16 %v72, 1045249613
  %v201 = vmul.bf16 %v73, 1045249613
  %v202 = vmul.bf16 %v74, 1045249613
  %v203 = vmul.bf16 %v75, 1045249613
  %v204 = vmul.bf16 %v76, 1045249613
  %v205 = vmul.bf16 %v77, 1045249613
  %v206 = vmul.bf16 %v78, 1045249613
  %v207 = vmul.bf16 %v79, 1045249613
  %v208 = vsel %vm80, %v16, %v144
  %v209 = vsel %vm81, %v17, %v145
  %v210 = vsel %vm82, %v18, %v146
  %v211 = vsel %vm83, %v19, %v147
  %v212 = vsel %vm84, %v20, %v148
  %v213 = vsel %vm85, %v21, %v149
  %v214 = vsel %vm86, %v22, %v150
  %v215 = vsel %vm87, %v23, %v151
  %v216 = vsel %vm88, %v24, %v152
  %v217 = vsel %vm89, %v25, %v153
  %v218 = vsel %vm90, %v26, %v154
  %v219 = vsel %vm91, %v27, %v155
  %v220 = vsel %vm92, %v28, %v156
  %v221 = vsel %vm93, %v29, %v157
  %v222 = vsel %vm94, %v30, %v158
  %v223 = vsel %vm95, %v31, %v159
  %v224 = vsel %vm96, %v32, %v160
  %v225 = vsel %vm97, %v33, %v161
  %v226 = vsel %vm98, %v34, %v162
  %v227 = vsel %vm99, %v35, %v163
  %v228 = vsel %vm100, %v36, %v164
  %v229 = vsel %vm101, %v37, %v165
  %v230 = vsel %vm102, %v38, %v166
  %v231 = vsel %vm103, %v39, %v167
  %v232 = vsel %vm104, %v40, %v168
  %v233 = vsel %vm105, %v41, %v169
  %v234 = vsel %vm106, %v42, %v170
  %v235 = vsel %vm107, %v43, %v171
  %v236 = vsel %vm108, %v44, %v172
  %v237 = vsel %vm109, %v45, %v173
  %v238 = vsel %vm110, %v46, %v174
  %v239 = vsel %vm111, %v47, %v175
  %v240 = vsel %vm112, %v48, %v176
  %v241 = vsel %vm113, %v49, %v177
  %v242 = vsel %vm114, %v50, %v178
  %v243 = vsel %vm115, %v51, %v179
  %v244 = vsel %vm116, %v52, %v180
  %v245 = vsel %vm117, %v53, %v181
  %v246 = vsel %vm118, %v54, %v182
  %v247 = vsel %vm119, %v55, %v183
  %v248 = vsel %vm120, %v56, %v184
  %v249 = vsel %vm121, %v57, %v185
  %v250 = vsel %vm122, %v58, %v186
  %v251 = vsel %vm123, %v59, %v187
  %v252 = vsel %vm124, %v60, %v188
  %v253 = vsel %vm125, %v61, %v189
  %v254 = vsel %vm126, %v62, %v190
  %v255 = vsel %vm127, %v63, %v191
  %v256 = vsel %vm128, %v64, %v192
  %v257 = vsel %vm129, %v65, %v193
  %v258 = vsel %vm130, %v66, %v194
  %v259 = vsel %vm131, %v67, %v195
  %v260 = vsel %vm132, %v68, %v196
  %v261 = vsel %vm133, %v69, %v197
  %v262 = vsel %vm134, %v70, %v198
  %v263 = vsel %vm135, %v71, %v199
  %v264 = vsel %vm136, %v72, %v200
  %v265 = vsel %vm137, %v73, %v201
  %v266 = vsel %vm138, %v74, %v202
  %v267 = vsel %vm139, %v75, %v203
  %v268 = vsel %vm140, %v76, %v204
  %v269 = vsel %vm141, %v77, %v205
  %v270 = vsel %vm142, %v78, %v206
  %v271 = vsel %vm143, %v79, %v207
  %v272 = vld [vmem:[%s0] sm:$0xff]
  %v273 = vld [vmem:[%s0 + $0x8] sm:$0xff]
  %v274 = vld [vmem:[%s0 + $0x10] sm:$0xff]
  %v275 = vld [vmem:[%s0 + $0x18] sm:$0xff]
  %v276 = vld [vmem:[%s2] sm:$0xff]
  %v277 = vld [vmem:[%s2 + $0x8] sm:$0xff]
  %279 = vset.pattern.permute.xlu0 0
  %280 = vperm.xlu0 %279, %v276
  %v281 = vpop.permute.xlu0 %280
  %284 = vset.pattern.permute.xlu0 0
  %285 = vperm.xlu0 %284, %v277
  %v286 = vpop.permute.xlu0 %285
  %v292 = vunpack.c.l.b16 %v272
  %v293 = vunpack.c.h.b16 %v272
  %v294 = vunpack.c.l.b16 %v273
  %v295 = vunpack.c.h.b16 %v273
  %v296 = vunpack.c.l.b16 %v274
  %v297 = vunpack.c.h.b16 %v274
  %v298 = vunpack.c.l.b16 %v275
  %v299 = vunpack.c.h.b16 %v275
  %v300 = vpack.c.b16 %v296, %v292
  %v301 = vpack.c.b16 %v297, %v293
  %v302 = vpack.c.b16 %v298, %v294
  %v303 = vpack.c.b16 %v299, %v295
  %v372 = vunpack.c.l.b16 %v208
  %v373 = vunpack.c.l.b16 %v209
  %v374 = vunpack.c.l.b16 %v210
  %v375 = vunpack.c.l.b16 %v211
  %v376 = vunpack.c.l.b16 %v212
  %v377 = vunpack.c.l.b16 %v213
  %v378 = vunpack.c.l.b16 %v214
  %v379 = vunpack.c.l.b16 %v215
  %v380 = vunpack.c.l.b16 %v216
  %v381 = vunpack.c.l.b16 %v217
  %v382 = vunpack.c.l.b16 %v218
  %v383 = vunpack.c.l.b16 %v219
  %v384 = vunpack.c.l.b16 %v220
  %v385 = vunpack.c.l.b16 %v221
  %v386 = vunpack.c.l.b16 %v222
  %v387 = vunpack.c.l.b16 %v223
  %v388 = vunpack.c.l.b16 %v224
  %v389 = vunpack.c.l.b16 %v225
  %v390 = vunpack.c.l.b16 %v226
  %v391 = vunpack.c.l.b16 %v227
  %v392 = vunpack.c.l.b16 %v228
  %v393 = vunpack.c.l.b16 %v229
  %v394 = vunpack.c.l.b16 %v230
  %v395 = vunpack.c.l.b16 %v231
  %v396 = vunpack.c.l.b16 %v232
  %v397 = vunpack.c.l.b16 %v233
  %v398 = vunpack.c.l.b16 %v234
  %v399 = vunpack.c.l.b16 %v235
  %v400 = vunpack.c.l.b16 %v236
  %v401 = vunpack.c.l.b16 %v237
  %v402 = vunpack.c.l.b16 %v238
  %v403 = vunpack.c.l.b16 %v239
  %v404 = vunpack.c.l.b16 %v240
  %v405 = vunpack.c.l.b16 %v241
  %v406 = vunpack.c.l.b16 %v242
  %v407 = vunpack.c.l.b16 %v243
  %v408 = vunpack.c.l.b16 %v244
  %v409 = vunpack.c.l.b16 %v245
  %v410 = vunpack.c.l.b16 %v246
  %v411 = vunpack.c.l.b16 %v247
  %v412 = vunpack.c.l.b16 %v248
  %v413 = vunpack.c.l.b16 %v249
  %v414 = vunpack.c.l.b16 %v250
  %v415 = vunpack.c.l.b16 %v251
  %v416 = vunpack.c.l.b16 %v252
  %v417 = vunpack.c.l.b16 %v253
  %v418 = vunpack.c.l.b16 %v254
  %v419 = vunpack.c.l.b16 %v255
  %v420 = vunpack.c.l.b16 %v256
  %v421 = vunpack.c.l.b16 %v257
  %v422 = vunpack.c.l.b16 %v258
  %v423 = vunpack.c.l.b16 %v259
  %v424 = vunpack.c.l.b16 %v260
  %v425 = vunpack.c.l.b16 %v261
  %v426 = vunpack.c.l.b16 %v262
  %v427 = vunpack.c.l.b16 %v263
  %v428 = vunpack.c.l.b16 %v264
  %v429 = vunpack.c.l.b16 %v265
  %v430 = vunpack.c.l.b16 %v266
  %v431 = vunpack.c.l.b16 %v267
  %v432 = vunpack.c.l.b16 %v268
  %v433 = vunpack.c.l.b16 %v269
  %v434 = vunpack.c.l.b16 %v270
  %v435 = vunpack.c.l.b16 %v271
  %v436 = vpack.c.b16 %v373, %v372
  %v437 = vpack.c.b16 %v375, %v374
  %v438 = vpack.c.b16 %v377, %v376
  %v439 = vpack.c.b16 %v379, %v378
  %v440 = vpack.c.b16 %v381, %v380
  %v441 = vpack.c.b16 %v383, %v382
  %v442 = vpack.c.b16 %v385, %v384
  %v443 = vpack.c.b16 %v387, %v386
  %v444 = vpack.c.b16 %v389, %v388
  %v445 = vpack.c.b16 %v391, %v390
  %v446 = vpack.c.b16 %v393, %v392
  %v447 = vpack.c.b16 %v395, %v394
  %v448 = vpack.c.b16 %v397, %v396
  %v449 = vpack.c.b16 %v399, %v398
  %v450 = vpack.c.b16 %v401, %v400
  %v451 = vpack.c.b16 %v403, %v402
  %v452 = vpack.c.b16 %v405, %v404
  %v453 = vpack.c.b16 %v407, %v406
  %v454 = vpack.c.b16 %v409, %v408
  %v455 = vpack.c.b16 %v411, %v410
  %v456 = vpack.c.b16 %v413, %v412
  %v457 = vpack.c.b16 %v415, %v414
  %v458 = vpack.c.b16 %v417, %v416
  %v459 = vpack.c.b16 %v419, %v418
  %v460 = vpack.c.b16 %v421, %v420
  %v461 = vpack.c.b16 %v423, %v422
  %v462 = vpack.c.b16 %v425, %v424
  %v463 = vpack.c.b16 %v427, %v426
  %v464 = vpack.c.b16 %v429, %v428
  %v465 = vpack.c.b16 %v431, %v430
  %v466 = vpack.c.b16 %v433, %v432
  %v467 = vpack.c.b16 %v435, %v434
  %500 = vmatprep.subr.bf16.mxu0 0
  %501 = vmatpush1.bf16.msra.mxu0 %v436
  %502 = vmatprep.subr.bf16.mxu0 0
  %503 = vmatpush1.bf16.msra.mxu0 %v437
  %504 = vmatprep.subr.bf16.mxu0 0
  %505 = vmatpush1.bf16.msra.mxu0 %v438
  %506 = vmatprep.subr.bf16.mxu0 0
  %507 = vmatpush1.bf16.msra.mxu0 %v439
  %508 = vmatprep.subr.bf16.mxu0 0
  %509 = vmatpush1.bf16.msra.mxu0 %v440
  %510 = vmatprep.subr.bf16.mxu0 0
  %511 = vmatpush1.bf16.msra.mxu0 %v441
  %512 = vmatprep.subr.bf16.mxu0 0
  %513 = vmatpush1.bf16.msra.mxu0 %v442
  %514 = vmatprep.subr.bf16.mxu0 0
  %515 = vmatpush1.bf16.msra.mxu0 %v443
  %516 = vmatprep.subr.bf16.mxu0 0
  %517 = vmatpush1.bf16.msra.mxu0 %v444
  %518 = vmatprep.subr.bf16.mxu0 0
  %519 = vmatpush1.bf16.msra.mxu0 %v445
  %520 = vmatprep.subr.bf16.mxu0 0
  %521 = vmatpush1.bf16.msra.mxu0 %v446
  %522 = vmatprep.subr.bf16.mxu0 0
  %523 = vmatpush1.bf16.msra.mxu0 %v447
  %524 = vmatprep.subr.bf16.mxu0 0
  %525 = vmatpush1.bf16.msra.mxu0 %v448
  %526 = vmatprep.subr.bf16.mxu0 0
  %527 = vmatpush1.bf16.msra.mxu0 %v449
  %528 = vmatprep.subr.bf16.mxu0 0
  %529 = vmatpush1.bf16.msra.mxu0 %v450
  %530 = vmatprep.subr.bf16.mxu0 0
  %531 = vmatpush1.bf16.msra.mxu0 %v451
  %532 = vmatprep.mubr.bf16.mxu0 %v301
  %533 = vmatmul.mubr.bf16.gmra.mrb[0].mxu0 %v300
  %v534 = vpop.f32.mrb[0].mxu0
  %v535 = vadd.f32 %v281, %v534
  %v536 = vpop.f32.mrb[0].mxu0
  %v537 = vpop.f32.mrb[0].mxu0
  %v538 = vadd.f32 %v286, %v537
  %v539 = vpop.f32.mrb[0].mxu0
  %540 = vdwg.mxu0
  %541 = vmatprep.subr.bf16.mxu0 0
  %542 = vmatpush1.bf16.msra.mxu0 %v452
  %543 = vmatprep.subr.bf16.mxu0 0
  %544 = vmatpush1.bf16.msra.mxu0 %v453
  %545 = vmatprep.subr.bf16.mxu0 0
  %546 = vmatpush1.bf16.msra.mxu0 %v454
  %547 = vmatprep.subr.bf16.mxu0 0
  %548 = vmatpush1.bf16.msra.mxu0 %v455
  %549 = vmatprep.subr.bf16.mxu0 0
  %550 = vmatpush1.bf16.msra.mxu0 %v456
  %551 = vmatprep.subr.bf16.mxu0 0
  %552 = vmatpush1.bf16.msra.mxu0 %v457
  %553 = vmatprep.subr.bf16.mxu0 0
  %554 = vmatpush1.bf16.msra.mxu0 %v458
  %555 = vmatprep.subr.bf16.mxu0 0
  %556 = vmatpush1.bf16.msra.mxu0 %v459
  %557 = vmatprep.subr.bf16.mxu0 0
  %558 = vmatpush1.bf16.msra.mxu0 %v460
  %559 = vmatprep.subr.bf16.mxu0 0
  %560 = vmatpush1.bf16.msra.mxu0 %v461
  %561 = vmatprep.subr.bf16.mxu0 0
  %562 = vmatpush1.bf16.msra.mxu0 %v462
  %563 = vmatprep.subr.bf16.mxu0 0
  %564 = vmatpush1.bf16.msra.mxu0 %v463
  %565 = vmatprep.subr.bf16.mxu0 0
  %566 = vmatpush1.bf16.msra.mxu0 %v464
  %567 = vmatprep.subr.bf16.mxu0 0
  %568 = vmatpush1.bf16.msra.mxu0 %v465
  %569 = vmatprep.subr.bf16.mxu0 0
  %570 = vmatpush1.bf16.msra.mxu0 %v466
  %571 = vmatprep.subr.bf16.mxu0 0
  %572 = vmatpush1.bf16.msra.mxu0 %v467
  %573 = vmatprep.mubr.bf16.mxu0 %v303
  %574 = vmatmul.mubr.bf16.gmra.mrb[0].mxu0 %v302
  %v575 = vpop.f32.mrb[0].mxu0
  %v576 = vadd.f32 %v535, %v575
  %v577 = vpop.f32.mrb[0].mxu0
  %v578 = vpop.f32.mrb[0].mxu0
  %v579 = vadd.f32 %v538, %v578
  %v580 = vpop.f32.mrb[0].mxu0
  %581 = vdwg.mxu0
  %582 = vst [vmem:[%s3] sm:$0xff] %v576
  %583 = vst [vmem:[%s3 + $0x8] sm:$0xff] %v579
  // Predicated region
  $region14: #{unet3d_forward.12} parent=0 // pred_check
    _
  $region15: #{unet3d_forward.12} parent=0 // pred_check_branch
    %585 = sbr.rel (0) target = $region17
  $region16: #{unet3d_forward.12} parent=0 // pred_region
    _
  $region17: #{unet3d_forward.12} parent=0 // pred_fallthru
    _
  // Predicated region
  $region18: #{unet3d_forward.12} parent=0 // pred_check
    _
  $region19: #{unet3d_forward.12} parent=0 // pred_check_branch
    %587 = sbr.rel (0) target = $region21
  $region20: #{unet3d_forward.12} parent=0 // pred_region
    _
  $region21: #{unet3d_forward.12} parent=0 // pred_fallthru
    _

// kernel: unet3d_forward.13
$region0: #{unet3d_forward.13}
  #allocation0 [shape = 'u32[]', space=smem, size = 0x4, offset = 0x4, fixed_abs, tag = 'smem constant byte address 0x4 - core index']
  #allocation1 [shape = 'u32[144,128]{1,0:T(1,128)}', space=vmem, size = 0x12000, scoped, tag = 'internal scratch']
  %s0 = inlined_call_operand.vmem [shape: bf16[32,800], index: 0, kind: input, shape index: {}]
  %s1 = inlined_call_operand.vmem [shape: bf16[800,128], index: 1, kind: input, shape index: {}]
  %s2 = inlined_call_operand.vmem [shape: f32[32,1], index: 2, kind: input, shape index: {}]
  %s3 = inlined_call_operand.vmem [shape: f32[32,128], index: 3, kind: output, shape index: {}]
  %s4 = sld [smem:[#allocation0]]
  $region22: #{unet3d_forward.13} parent=0
    _
  %s6 = ssub.s32 1, %s4
  %s7 = scalar_select 0, %s6, %s4
  // Predicated region
  $region2: #{unet3d_forward.13} parent=0 // pred_check
    _
  $region3: #{unet3d_forward.13} parent=0 // pred_check_branch
    %9 = sbr.rel (0) target = $region5
  $region4: #{unet3d_forward.13} parent=0 // pred_region
    _
  $region5: #{unet3d_forward.13} parent=0 // pred_fallthru
    _
  // Predicated region
  $region6: #{unet3d_forward.13} parent=0 // pred_check
    _
  $region7: #{unet3d_forward.13} parent=0 // pred_check_branch
    %11 = sbr.rel (0) target = $region9
  $region8: #{unet3d_forward.13} parent=0 // pred_region
    _
  $region9: #{unet3d_forward.13} parent=0 // pred_fallthru
    _
  // Predicated region
  $region10: #{unet3d_forward.13} parent=0 // pred_check
    _
  $region11: #{unet3d_forward.13} parent=0 // pred_check_branch
    %13 = sbr.rel (0) target = $region13
  $region12: #{unet3d_forward.13} parent=0 // pred_region
    _
  $region13: #{unet3d_forward.13} parent=0 // pred_fallthru
    _
  %v16 = vld [vmem:[%s1] sm:$0xf]
  %v17 = vld [vmem:[%s1 + $0x4] sm:$0xf]
  %v18 = vld [vmem:[%s1 + $0x8] sm:$0xf]
  %v19 = vld [vmem:[%s1 + $0xc] sm:$0xf]
  %v20 = vld [vmem:[%s1 + $0x10] sm:$0xf]
  %v21 = vld [vmem:[%s1 + $0x14] sm:$0xf]
  %v22 = vld [vmem:[%s1 + $0x18] sm:$0xf]
  %v23 = vld [vmem:[%s1 + $0x1c] sm:$0xf]
  %v24 = vld [vmem:[%s1 + $0x20] sm:$0xf]
  %v25 = vld [vmem:[%s1 + $0x24] sm:$0xf]
  %v26 = vld [vmem:[%s1 + $0x28] sm:$0xf]
  %v27 = vld [vmem:[%s1 + $0x2c] sm:$0xf]
  %v28 = vld [vmem:[%s1 + $0x30] sm:$0xf]
  %v29 = vld [vmem:[%s1 + $0x34] sm:$0xf]
  %v30 = vld [vmem:[%s1 + $0x38] sm:$0xf]
  %v31 = vld [vmem:[%s1 + $0x3c] sm:$0xf]
  %v32 = vld [vmem:[%s1 + $0x40] sm:$0xf]
  %v33 = vld [vmem:[%s1 + $0x44] sm:$0xf]
  %v34 = vld [vmem:[%s1 + $0x48] sm:$0xf]
  %v35 = vld [vmem:[%s1 + $0x4c] sm:$0xf]
  %v36 = vld [vmem:[%s1 + $0x50] sm:$0xf]
  %v37 = vld [vmem:[%s1 + $0x54] sm:$0xf]
  %v38 = vld [vmem:[%s1 + $0x58] sm:$0xf]
  %v39 = vld [vmem:[%s1 + $0x5c] sm:$0xf]
  %v40 = vld [vmem:[%s1 + $0x60] sm:$0xf]
  %v41 = vld [vmem:[%s1 + $0x64] sm:$0xf]
  %v42 = vld [vmem:[%s1 + $0x68] sm:$0xf]
  %v43 = vld [vmem:[%s1 + $0x6c] sm:$0xf]
  %v44 = vld [vmem:[%s1 + $0x70] sm:$0xf]
  %v45 = vld [vmem:[%s1 + $0x74] sm:$0xf]
  %v46 = vld [vmem:[%s1 + $0x78] sm:$0xf]
  %v47 = vld [vmem:[%s1 + $0x7c] sm:$0xf]
  %v48 = vld [vmem:[%s1 + $0x80] sm:$0xf]
  %v49 = vld [vmem:[%s1 + $0x84] sm:$0xf]
  %v50 = vld [vmem:[%s1 + $0x88] sm:$0xf]
  %v51 = vld [vmem:[%s1 + $0x8c] sm:$0xf]
  %v52 = vld [vmem:[%s1 + $0x90] sm:$0xf]
  %v53 = vld [vmem:[%s1 + $0x94] sm:$0xf]
  %v54 = vld [vmem:[%s1 + $0x98] sm:$0xf]
  %v55 = vld [vmem:[%s1 + $0x9c] sm:$0xf]
  %v56 = vld [vmem:[%s1 + $0xa0] sm:$0xf]
  %v57 = vld [vmem:[%s1 + $0xa4] sm:$0xf]
  %v58 = vld [vmem:[%s1 + $0xa8] sm:$0xf]
  %v59 = vld [vmem:[%s1 + $0xac] sm:$0xf]
  %v60 = vld [vmem:[%s1 + $0xb0] sm:$0xf]
  %v61 = vld [vmem:[%s1 + $0xb4] sm:$0xf]
  %v62 = vld [vmem:[%s1 + $0xb8] sm:$0xf]
  %v63 = vld [vmem:[%s1 + $0xbc] sm:$0xf]
  %v64 = vld [vmem:[%s1 + $0xc0] sm:$0xf]
  %v65 = vld [vmem:[%s1 + $0xc4] sm:$0xf]
  %v66 = vld [vmem:[%s1 + $0xc8] sm:$0xf]
  %v67 = vld [vmem:[%s1 + $0xcc] sm:$0xf]
  %v68 = vld [vmem:[%s1 + $0xd0] sm:$0xf]
  %v69 = vld [vmem:[%s1 + $0xd4] sm:$0xf]
  %v70 = vld [vmem:[%s1 + $0xd8] sm:$0xf]
  %v71 = vld [vmem:[%s1 + $0xdc] sm:$0xf]
  %v72 = vld [vmem:[%s1 + $0xe0] sm:$0xf]
  %v73 = vld [vmem:[%s1 + $0xe4] sm:$0xf]
  %v74 = vld [vmem:[%s1 + $0xe8] sm:$0xf]
  %v75 = vld [vmem:[%s1 + $0xec] sm:$0xf]
  %v76 = vld [vmem:[%s1 + $0xf0] sm:$0xf]
  %v77 = vld [vmem:[%s1 + $0xf4] sm:$0xf]
  %v78 = vld [vmem:[%s1 + $0xf8] sm:$0xf]
  %v79 = vld [vmem:[%s1 + $0xfc] sm:$0xf]
  %v80 = vld [vmem:[%s1 + $0x100] sm:$0xf]
  %v81 = vld [vmem:[%s1 + $0x104] sm:$0xf]
  %v82 = vld [vmem:[%s1 + $0x108] sm:$0xf]
  %v83 = vld [vmem:[%s1 + $0x10c] sm:$0xf]
  %v84 = vld [vmem:[%s1 + $0x110] sm:$0xf]
  %v85 = vld [vmem:[%s1 + $0x114] sm:$0xf]
  %v86 = vld [vmem:[%s1 + $0x118] sm:$0xf]
  %v87 = vld [vmem:[%s1 + $0x11c] sm:$0xf]
  %v88 = vld [vmem:[%s1 + $0x120] sm:$0xf]
  %v89 = vld [vmem:[%s1 + $0x124] sm:$0xf]
  %v90 = vld [vmem:[%s1 + $0x128] sm:$0xf]
  %v91 = vld [vmem:[%s1 + $0x12c] sm:$0xf]
  %v92 = vld [vmem:[%s1 + $0x130] sm:$0xf]
  %v93 = vld [vmem:[%s1 + $0x134] sm:$0xf]
  %v94 = vld [vmem:[%s1 + $0x138] sm:$0xf]
  %v95 = vld [vmem:[%s1 + $0x13c] sm:$0xf]
  %v96 = vld [vmem:[%s1 + $0x140] sm:$0xf]
  %v97 = vld [vmem:[%s1 + $0x144] sm:$0xf]
  %v98 = vld [vmem:[%s1 + $0x148] sm:$0xf]
  %v99 = vld [vmem:[%s1 + $0x14c] sm:$0xf]
  %v100 = vld [vmem:[%s1 + $0x150] sm:$0xf]
  %v101 = vld [vmem:[%s1 + $0x154] sm:$0xf]
  %v102 = vld [vmem:[%s1 + $0x158] sm:$0xf]
  %v103 = vld [vmem:[%s1 + $0x15c] sm:$0xf]
  %v104 = vld [vmem:[%s1 + $0x160] sm:$0xf]
  %v105 = vld [vmem:[%s1 + $0x164] sm:$0xf]
  %v106 = vld [vmem:[%s1 + $0x168] sm:$0xf]
  %v107 = vld [vmem:[%s1 + $0x16c] sm:$0xf]
  %v108 = vld [vmem:[%s1 + $0x170] sm:$0xf]
  %v109 = vld [vmem:[%s1 + $0x174] sm:$0xf]
  %v110 = vld [vmem:[%s1 + $0x178] sm:$0xf]
  %v111 = vld [vmem:[%s1 + $0x17c] sm:$0xf]
  %v112 = vld [vmem:[%s1 + $0x180] sm:$0xf]
  %v113 = vld [vmem:[%s1 + $0x184] sm:$0xf]
  %v114 = vld [vmem:[%s1 + $0x188] sm:$0xf]
  %v115 = vld [vmem:[%s1 + $0x18c] sm:$0xf]
  %vm116 = vcmp.gt.bf16.partialorder %v16, 0
  %vm117 = vcmp.gt.bf16.partialorder %v17, 0
  %vm118 = vcmp.gt.bf16.partialorder %v18, 0
  %vm119 = vcmp.gt.bf16.partialorder %v19, 0
  %vm120 = vcmp.gt.bf16.partialorder %v20, 0
  %vm121 = vcmp.gt.bf16.partialorder %v21, 0
  %vm122 = vcmp.gt.bf16.partialorder %v22, 0
  %vm123 = vcmp.gt.bf16.partialorder %v23, 0
  %vm124 = vcmp.gt.bf16.partialorder %v24, 0
  %vm125 = vcmp.gt.bf16.partialorder %v25, 0
  %vm126 = vcmp.gt.bf16.partialorder %v26, 0
  %vm127 = vcmp.gt.bf16.partialorder %v27, 0
  %vm128 = vcmp.gt.bf16.partialorder %v28, 0
  %vm129 = vcmp.gt.bf16.partialorder %v29, 0
  %vm130 = vcmp.gt.bf16.partialorder %v30, 0
  %vm131 = vcmp.gt.bf16.partialorder %v31, 0
  %vm132 = vcmp.gt.bf16.partialorder %v32, 0
  %vm133 = vcmp.gt.bf16.partialorder %v33, 0
  %vm134 = vcmp.gt.bf16.partialorder %v34, 0
  %vm135 = vcmp.gt.bf16.partialorder %v35, 0
  %vm136 = vcmp.gt.bf16.partialorder %v36, 0
  %vm137 = vcmp.gt.bf16.partialorder %v37, 0
  %vm138 = vcmp.gt.bf16.partialorder %v38, 0
  %vm139 = vcmp.gt.bf16.partialorder %v39, 0
  %vm140 = vcmp.gt.bf16.partialorder %v40, 0
  %vm141 = vcmp.gt.bf16.partialorder %v41, 0
  %vm142 = vcmp.gt.bf16.partialorder %v42, 0
  %vm143 = vcmp.gt.bf16.partialorder %v43, 0
  %vm144 = vcmp.gt.bf16.partialorder %v44, 0
  %vm145 = vcmp.gt.bf16.partialorder %v45, 0
  %vm146 = vcmp.gt.bf16.partialorder %v46, 0
  %vm147 = vcmp.gt.bf16.partialorder %v47, 0
  %vm148 = vcmp.gt.bf16.partialorder %v48, 0
  %vm149 = vcmp.gt.bf16.partialorder %v49, 0
  %vm150 = vcmp.gt.bf16.partialorder %v50, 0
  %vm151 = vcmp.gt.bf16.partialorder %v51, 0
  %vm152 = vcmp.gt.bf16.partialorder %v52, 0
  %vm153 = vcmp.gt.bf16.partialorder %v53, 0
  %vm154 = vcmp.gt.bf16.partialorder %v54, 0
  %vm155 = vcmp.gt.bf16.partialorder %v55, 0
  %vm156 = vcmp.gt.bf16.partialorder %v56, 0
  %vm157 = vcmp.gt.bf16.partialorder %v57, 0
  %vm158 = vcmp.gt.bf16.partialorder %v58, 0
  %vm159 = vcmp.gt.bf16.partialorder %v59, 0
  %vm160 = vcmp.gt.bf16.partialorder %v60, 0
  %vm161 = vcmp.gt.bf16.partialorder %v61, 0
  %vm162 = vcmp.gt.bf16.partialorder %v62, 0
  %vm163 = vcmp.gt.bf16.partialorder %v63, 0
  %vm164 = vcmp.gt.bf16.partialorder %v64, 0
  %vm165 = vcmp.gt.bf16.partialorder %v65, 0
  %vm166 = vcmp.gt.bf16.partialorder %v66, 0
  %vm167 = vcmp.gt.bf16.partialorder %v67, 0
  %vm168 = vcmp.gt.bf16.partialorder %v68, 0
  %vm169 = vcmp.gt.bf16.partialorder %v69, 0
  %vm170 = vcmp.gt.bf16.partialorder %v70, 0
  %vm171 = vcmp.gt.bf16.partialorder %v71, 0
  %vm172 = vcmp.gt.bf16.partialorder %v72, 0
  %vm173 = vcmp.gt.bf16.partialorder %v73, 0
  %vm174 = vcmp.gt.bf16.partialorder %v74, 0
  %vm175 = vcmp.gt.bf16.partialorder %v75, 0
  %vm176 = vcmp.gt.bf16.partialorder %v76, 0
  %vm177 = vcmp.gt.bf16.partialorder %v77, 0
  %vm178 = vcmp.gt.bf16.partialorder %v78, 0
  %vm179 = vcmp.gt.bf16.partialorder %v79, 0
  %vm180 = vcmp.gt.bf16.partialorder %v80, 0
  %vm181 = vcmp.gt.bf16.partialorder %v81, 0
  %vm182 = vcmp.gt.bf16.partialorder %v82, 0
  %vm183 = vcmp.gt.bf16.partialorder %v83, 0
  %vm184 = vcmp.gt.bf16.partialorder %v84, 0
  %vm185 = vcmp.gt.bf16.partialorder %v85, 0
  %vm186 = vcmp.gt.bf16.partialorder %v86, 0
  %vm187 = vcmp.gt.bf16.partialorder %v87, 0
  %vm188 = vcmp.gt.bf16.partialorder %v88, 0
  %vm189 = vcmp.gt.bf16.partialorder %v89, 0
  %vm190 = vcmp.gt.bf16.partialorder %v90, 0
  %vm191 = vcmp.gt.bf16.partialorder %v91, 0
  %vm192 = vcmp.gt.bf16.partialorder %v92, 0
  %vm193 = vcmp.gt.bf16.partialorder %v93, 0
  %vm194 = vcmp.gt.bf16.partialorder %v94, 0
  %vm195 = vcmp.gt.bf16.partialorder %v95, 0
  %vm196 = vcmp.gt.bf16.partialorder %v96, 0
  %vm197 = vcmp.gt.bf16.partialorder %v97, 0
  %vm198 = vcmp.gt.bf16.partialorder %v98, 0
  %vm199 = vcmp.gt.bf16.partialorder %v99, 0
  %vm200 = vcmp.gt.bf16.partialorder %v100, 0
  %vm201 = vcmp.gt.bf16.partialorder %v101, 0
  %vm202 = vcmp.gt.bf16.partialorder %v102, 0
  %vm203 = vcmp.gt.bf16.partialorder %v103, 0
  %vm204 = vcmp.gt.bf16.partialorder %v104, 0
  %vm205 = vcmp.gt.bf16.partialorder %v105, 0
  %vm206 = vcmp.gt.bf16.partialorder %v106, 0
  %vm207 = vcmp.gt.bf16.partialorder %v107, 0
  %vm208 = vcmp.gt.bf16.partialorder %v108, 0
  %vm209 = vcmp.gt.bf16.partialorder %v109, 0
  %vm210 = vcmp.gt.bf16.partialorder %v110, 0
  %vm211 = vcmp.gt.bf16.partialorder %v111, 0
  %vm212 = vcmp.gt.bf16.partialorder %v112, 0
  %vm213 = vcmp.gt.bf16.partialorder %v113, 0
  %vm214 = vcmp.gt.bf16.partialorder %v114, 0
  %vm215 = vcmp.gt.bf16.partialorder %v115, 0
  %v216 = vmul.bf16 %v16, 1045249613
  %v217 = vmul.bf16 %v17, 1045249613
  %v218 = vmul.bf16 %v18, 1045249613
  %v219 = vmul.bf16 %v19, 1045249613
  %v220 = vmul.bf16 %v20, 1045249613
  %v221 = vmul.bf16 %v21, 1045249613
  %v222 = vmul.bf16 %v22, 1045249613
  %v223 = vmul.bf16 %v23, 1045249613
  %v224 = vmul.bf16 %v24, 1045249613
  %v225 = vmul.bf16 %v25, 1045249613
  %v226 = vmul.bf16 %v26, 1045249613
  %v227 = vmul.bf16 %v27, 1045249613
  %v228 = vmul.bf16 %v28, 1045249613
  %v229 = vmul.bf16 %v29, 1045249613
  %v230 = vmul.bf16 %v30, 1045249613
  %v231 = vmul.bf16 %v31, 1045249613
  %v232 = vmul.bf16 %v32, 1045249613
  %v233 = vmul.bf16 %v33, 1045249613
  %v234 = vmul.bf16 %v34, 1045249613
  %v235 = vmul.bf16 %v35, 1045249613
  %v236 = vmul.bf16 %v36, 1045249613
  %v237 = vmul.bf16 %v37, 1045249613
  %v238 = vmul.bf16 %v38, 1045249613
  %v239 = vmul.bf16 %v39, 1045249613
  %v240 = vmul.bf16 %v40, 1045249613
  %v241 = vmul.bf16 %v41, 1045249613
  %v242 = vmul.bf16 %v42, 1045249613
  %v243 = vmul.bf16 %v43, 1045249613
  %v244 = vmul.bf16 %v44, 1045249613
  %v245 = vmul.bf16 %v45, 1045249613
  %v246 = vmul.bf16 %v46, 1045249613
  %v247 = vmul.bf16 %v47, 1045249613
  %v248 = vmul.bf16 %v48, 1045249613
  %v249 = vmul.bf16 %v49, 1045249613
  %v250 = vmul.bf16 %v50, 1045249613
  %v251 = vmul.bf16 %v51, 1045249613
  %v252 = vmul.bf16 %v52, 1045249613
  %v253 = vmul.bf16 %v53, 1045249613
  %v254 = vmul.bf16 %v54, 1045249613
  %v255 = vmul.bf16 %v55, 1045249613
  %v256 = vmul.bf16 %v56, 1045249613
  %v257 = vmul.bf16 %v57, 1045249613
  %v258 = vmul.bf16 %v58, 1045249613
  %v259 = vmul.bf16 %v59, 1045249613
  %v260 = vmul.bf16 %v60, 1045249613
  %v261 = vmul.bf16 %v61, 1045249613
  %v262 = vmul.bf16 %v62, 1045249613
  %v263 = vmul.bf16 %v63, 1045249613
  %v264 = vmul.bf16 %v64, 1045249613
  %v265 = vmul.bf16 %v65, 1045249613
  %v266 = vmul.bf16 %v66, 1045249613
  %v267 = vmul.bf16 %v67, 1045249613
  %v268 = vmul.bf16 %v68, 1045249613
  %v269 = vmul.bf16 %v69, 1045249613
  %v270 = vmul.bf16 %v70, 1045249613
  %v271 = vmul.bf16 %v71, 1045249613
  %v272 = vmul.bf16 %v72, 1045249613
  %v273 = vmul.bf16 %v73, 1045249613
  %v274 = vmul.bf16 %v74, 1045249613
  %v275 = vmul.bf16 %v75, 1045249613
  %v276 = vmul.bf16 %v76, 1045249613
  %v277 = vmul.bf16 %v77, 1045249613
  %v278 = vmul.bf16 %v78, 1045249613
  %v279 = vmul.bf16 %v79, 1045249613
  %v280 = vmul.bf16 %v80, 1045249613
  %v281 = vmul.bf16 %v81, 1045249613
  %v282 = vmul.bf16 %v82, 1045249613
  %v283 = vmul.bf16 %v83, 1045249613
  %v284 = vmul.bf16 %v84, 1045249613
  %v285 = vmul.bf16 %v85, 1045249613
  %v286 = vmul.bf16 %v86, 1045249613
  %v287 = vmul.bf16 %v87, 1045249613
  %v288 = vmul.bf16 %v88, 1045249613
  %v289 = vmul.bf16 %v89, 1045249613
  %v290 = vmul.bf16 %v90, 1045249613
  %v291 = vmul.bf16 %v91, 1045249613
  %v292 = vmul.bf16 %v92, 1045249613
  %v293 = vmul.bf16 %v93, 1045249613
  %v294 = vmul.bf16 %v94, 1045249613
  %v295 = vmul.bf16 %v95, 1045249613
  %v296 = vmul.bf16 %v96, 1045249613
  %v297 = vmul.bf16 %v97, 1045249613
  %v298 = vmul.bf16 %v98, 1045249613
  %v299 = vmul.bf16 %v99, 1045249613
  %v300 = vmul.bf16 %v100, 1045249613
  %v301 = vmul.bf16 %v101, 1045249613
  %v302 = vmul.bf16 %v102, 1045249613
  %v303 = vmul.bf16 %v103, 1045249613
  %v304 = vmul.bf16 %v104, 1045249613
  %v305 = vmul.bf16 %v105, 1045249613
  %v306 = vmul.bf16 %v106, 1045249613
  %v307 = vmul.bf16 %v107, 1045249613
  %v308 = vmul.bf16 %v108, 1045249613
  %v309 = vmul.bf16 %v109, 1045249613
  %v310 = vmul.bf16 %v110, 1045249613
  %v311 = vmul.bf16 %v111, 1045249613
  %v312 = vmul.bf16 %v112, 1045249613
  %v313 = vmul.bf16 %v113, 1045249613
  %v314 = vmul.bf16 %v114, 1045249613
  %v315 = vmul.bf16 %v115, 1045249613
  %v316 = vsel %vm116, %v16, %v216
  %v317 = vsel %vm117, %v17, %v217
  %v318 = vsel %vm118, %v18, %v218
  %v319 = vsel %vm119, %v19, %v219
  %v320 = vsel %vm120, %v20, %v220
  %v321 = vsel %vm121, %v21, %v221
  %v322 = vsel %vm122, %v22, %v222
  %v323 = vsel %vm123, %v23, %v223
  %v324 = vsel %vm124, %v24, %v224
  %v325 = vsel %vm125, %v25, %v225
  %v326 = vsel %vm126, %v26, %v226
  %v327 = vsel %vm127, %v27, %v227
  %v328 = vsel %vm128, %v28, %v228
  %v329 = vsel %vm129, %v29, %v229
  %v330 = vsel %vm130, %v30, %v230
  %v331 = vsel %vm131, %v31, %v231
  %v332 = vsel %vm132, %v32, %v232
  %v333 = vsel %vm133, %v33, %v233
  %v334 = vsel %vm134, %v34, %v234
  %v335 = vsel %vm135, %v35, %v235
  %v336 = vsel %vm136, %v36, %v236
  %v337 = vsel %vm137, %v37, %v237
  %v338 = vsel %vm138, %v38, %v238
  %v339 = vsel %vm139, %v39, %v239
  %v340 = vsel %vm140, %v40, %v240
  %v341 = vsel %vm141, %v41, %v241
  %v342 = vsel %vm142, %v42, %v242
  %v343 = vsel %vm143, %v43, %v243
  %v344 = vsel %vm144, %v44, %v244
  %v345 = vsel %vm145, %v45, %v245
  %v346 = vsel %vm146, %v46, %v246
  %v347 = vsel %vm147, %v47, %v247
  %v348 = vsel %vm148, %v48, %v248
  %v349 = vsel %vm149, %v49, %v249
  %v350 = vsel %vm150, %v50, %v250
  %v351 = vsel %vm151, %v51, %v251
  %v352 = vsel %vm152, %v52, %v252
  %v353 = vsel %vm153, %v53, %v253
  %v354 = vsel %vm154, %v54, %v254
  %v355 = vsel %vm155, %v55, %v255
  %v356 = vsel %vm156, %v56, %v256
  %v357 = vsel %vm157, %v57, %v257
  %v358 = vsel %vm158, %v58, %v258
  %v359 = vsel %vm159, %v59, %v259
  %v360 = vsel %vm160, %v60, %v260
  %v361 = vsel %vm161, %v61, %v261
  %v362 = vsel %vm162, %v62, %v262
  %v363 = vsel %vm163, %v63, %v263
  %v364 = vsel %vm164, %v64, %v264
  %v365 = vsel %vm165, %v65, %v265
  %v366 = vsel %vm166, %v66, %v266
  %v367 = vsel %vm167, %v67, %v267
  %v368 = vsel %vm168, %v68, %v268
  %v369 = vsel %vm169, %v69, %v269
  %v370 = vsel %vm170, %v70, %v270
  %v371 = vsel %vm171, %v71, %v271
  %v372 = vsel %vm172, %v72, %v272
  %v373 = vsel %vm173, %v73, %v273
  %v374 = vsel %vm174, %v74, %v274
  %v375 = vsel %vm175, %v75, %v275
  %v376 = vsel %vm176, %v76, %v276
  %v377 = vsel %vm177, %v77, %v277
  %v378 = vsel %vm178, %v78, %v278
  %v379 = vsel %vm179, %v79, %v279
  %v380 = vsel %vm180, %v80, %v280
  %v381 = vsel %vm181, %v81, %v281
  %v382 = vsel %vm182, %v82, %v282
  %v383 = vsel %vm183, %v83, %v283
  %v384 = vsel %vm184, %v84, %v284
  %v385 = vsel %vm185, %v85, %v285
  %v386 = vsel %vm186, %v86, %v286
  %v387 = vsel %vm187, %v87, %v287
  %v388 = vsel %vm188, %v88, %v288
  %v389 = vsel %vm189, %v89, %v289
  %v390 = vsel %vm190, %v90, %v290
  %v391 = vsel %vm191, %v91, %v291
  %v392 = vsel %vm192, %v92, %v292
  %v393 = vsel %vm193, %v93, %v293
  %v394 = vsel %vm194, %v94, %v294
  %v395 = vsel %vm195, %v95, %v295
  %v396 = vsel %vm196, %v96, %v296
  %v397 = vsel %vm197, %v97, %v297
  %v398 = vsel %vm198, %v98, %v298
  %v399 = vsel %vm199, %v99, %v299
  %v400 = vsel %vm200, %v100, %v300
  %v401 = vsel %vm201, %v101, %v301
  %v402 = vsel %vm202, %v102, %v302
  %v403 = vsel %vm203, %v103, %v303
  %v404 = vsel %vm204, %v104, %v304
  %v405 = vsel %vm205, %v105, %v305
  %v406 = vsel %vm206, %v106, %v306
  %v407 = vsel %vm207, %v107, %v307
  %v408 = vsel %vm208, %v108, %v308
  %v409 = vsel %vm209, %v109, %v309
  %v410 = vsel %vm210, %v110, %v310
  %v411 = vsel %vm211, %v111, %v311
  %v412 = vsel %vm212, %v112, %v312
  %v413 = vsel %vm213, %v113, %v313
  %v414 = vsel %vm214, %v114, %v314
  %v415 = vsel %vm215, %v115, %v315
  %v416 = vld [vmem:[%s0] sm:$0xff]
  %v417 = vld [vmem:[%s0 + $0x8] sm:$0xff]
  %v418 = vld [vmem:[%s0 + $0x10] sm:$0xff]
  %v419 = vld [vmem:[%s0 + $0x18] sm:$0xf]
  %v420 = vld [vmem:[%s0 + $0x1c] sm:$0xff]
  %v421 = vld [vmem:[%s0 + $0x24] sm:$0xff]
  %v422 = vld [vmem:[%s0 + $0x2c] sm:$0xff]
  %v423 = vld [vmem:[%s0 + $0x34] sm:$0xf]
  %v424 = vld [vmem:[%s0 + $0x38] sm:$0xff]
  %v425 = vld [vmem:[%s0 + $0x40] sm:$0xff]
  %v426 = vld [vmem:[%s0 + $0x48] sm:$0xff]
  %v427 = vld [vmem:[%s0 + $0x50] sm:$0xf]
  %v428 = vld [vmem:[%s0 + $0x54] sm:$0xff]
  %v429 = vld [vmem:[%s0 + $0x5c] sm:$0xff]
  %v430 = vld [vmem:[%s0 + $0x64] sm:$0xff]
  %v431 = vld [vmem:[%s0 + $0x6c] sm:$0xf]
  %v432 = vld [vmem:[%s2] sm:$0xff]
  %v433 = vld [vmem:[%s2 + $0x8] sm:$0xff]
  %v434 = vld [vmem:[%s2 + $0x10] sm:$0xff]
  %v435 = vld [vmem:[%s2 + $0x18] sm:$0xff]
  %437 = vset.pattern.permute.xlu0 0
  %438 = vperm.xlu0 %437, %v432
  %v439 = vpop.permute.xlu0 %438
  %442 = vset.pattern.permute.xlu0 0
  %443 = vperm.xlu0 %442, %v433
  %v444 = vpop.permute.xlu0 %443
  %447 = vset.pattern.permute.xlu0 0
  %448 = vperm.xlu0 %447, %v434
  %v449 = vpop.permute.xlu0 %448
  %452 = vset.pattern.permute.xlu0 0
  %453 = vperm.xlu0 %452, %v435
  %v454 = vpop.permute.xlu0 %453
  %v472 = vunpack.c.l.b16 %v416
  %v473 = vunpack.c.h.b16 %v416
  %v474 = vunpack.c.l.b16 %v417
  %v475 = vunpack.c.h.b16 %v417
  %v476 = vunpack.c.l.b16 %v418
  %v477 = vunpack.c.h.b16 %v418
  %v478 = vunpack.c.l.b16 %v419
  %v479 = vunpack.c.l.b16 %v420
  %v480 = vunpack.c.h.b16 %v420
  %v481 = vunpack.c.l.b16 %v421
  %v482 = vunpack.c.h.b16 %v421
  %v483 = vunpack.c.l.b16 %v422
  %v484 = vunpack.c.h.b16 %v422
  %v485 = vunpack.c.l.b16 %v423
  %v486 = vunpack.c.l.b16 %v424
  %v487 = vunpack.c.h.b16 %v424
  %v488 = vunpack.c.l.b16 %v425
  %v489 = vunpack.c.h.b16 %v425
  %v490 = vunpack.c.l.b16 %v426
  %v491 = vunpack.c.h.b16 %v426
  %v492 = vunpack.c.l.b16 %v427
  %v493 = vunpack.c.l.b16 %v428
  %v494 = vunpack.c.h.b16 %v428
  %v495 = vunpack.c.l.b16 %v429
  %v496 = vunpack.c.h.b16 %v429
  %v497 = vunpack.c.l.b16 %v430
  %v498 = vunpack.c.h.b16 %v430
  %v499 = vunpack.c.l.b16 %v431
  %v500 = vpack.c.b16 %v479, %v472
  %v501 = vpack.c.b16 %v480, %v473
  %v502 = vpack.c.b16 %v481, %v474
  %v503 = vpack.c.b16 %v482, %v475
  %v504 = vpack.c.b16 %v483, %v476
  %v505 = vpack.c.b16 %v484, %v477
  %v506 = vpack.c.b16 %v485, %v478
  %v507 = vpack.c.b16 %v493, %v486
  %v508 = vpack.c.b16 %v494, %v487
  %v509 = vpack.c.b16 %v495, %v488
  %v510 = vpack.c.b16 %v496, %v489
  %v511 = vpack.c.b16 %v497, %v490
  %v512 = vpack.c.b16 %v498, %v491
  %v513 = vpack.c.b16 %v499, %v492
  %v626 = vunpack.c.l.b16 %v316
  %v627 = vunpack.c.l.b16 %v317
  %v628 = vunpack.c.l.b16 %v318
  %v629 = vunpack.c.l.b16 %v319
  %v630 = vunpack.c.l.b16 %v320
  %v631 = vunpack.c.l.b16 %v321
  %v632 = vunpack.c.l.b16 %v322
  %v633 = vunpack.c.l.b16 %v323
  %v634 = vunpack.c.l.b16 %v324
  %v635 = vunpack.c.l.b16 %v325
  %v636 = vunpack.c.l.b16 %v326
  %v637 = vunpack.c.l.b16 %v327
  %v638 = vunpack.c.l.b16 %v328
  %v639 = vunpack.c.l.b16 %v329
  %v640 = vunpack.c.l.b16 %v330
  %v641 = vunpack.c.l.b16 %v331
  %v642 = vunpack.c.l.b16 %v332
  %v643 = vunpack.c.l.b16 %v333
  %v644 = vunpack.c.l.b16 %v334
  %v645 = vunpack.c.l.b16 %v335
  %v646 = vunpack.c.l.b16 %v336
  %v647 = vunpack.c.l.b16 %v337
  %v648 = vunpack.c.l.b16 %v338
  %v649 = vunpack.c.l.b16 %v339
  %v650 = vunpack.c.l.b16 %v340
  %v651 = vunpack.c.l.b16 %v341
  %v652 = vunpack.c.l.b16 %v342
  %v653 = vunpack.c.l.b16 %v343
  %v654 = vunpack.c.l.b16 %v344
  %v655 = vunpack.c.l.b16 %v345
  %v656 = vunpack.c.l.b16 %v346
  %v657 = vunpack.c.l.b16 %v347
  %v658 = vunpack.c.l.b16 %v348
  %v659 = vunpack.c.l.b16 %v349
  %v660 = vunpack.c.l.b16 %v350
  %v661 = vunpack.c.l.b16 %v351
  %v662 = vunpack.c.l.b16 %v352
  %v663 = vunpack.c.l.b16 %v353
  %v664 = vunpack.c.l.b16 %v354
  %v665 = vunpack.c.l.b16 %v355
  %v666 = vunpack.c.l.b16 %v356
  %v667 = vunpack.c.l.b16 %v357
  %v668 = vunpack.c.l.b16 %v358
  %v669 = vunpack.c.l.b16 %v359
  %v670 = vunpack.c.l.b16 %v360
  %v671 = vunpack.c.l.b16 %v361
  %v672 = vunpack.c.l.b16 %v362
  %v673 = vunpack.c.l.b16 %v363
  %v674 = vunpack.c.l.b16 %v364
  %v675 = vunpack.c.l.b16 %v365
  %v676 = vunpack.c.l.b16 %v366
  %v677 = vunpack.c.l.b16 %v367
  %v678 = vunpack.c.l.b16 %v368
  %v679 = vunpack.c.l.b16 %v369
  %v680 = vunpack.c.l.b16 %v370
  %v681 = vunpack.c.l.b16 %v371
  %v682 = vunpack.c.l.b16 %v372
  %v683 = vunpack.c.l.b16 %v373
  %v684 = vunpack.c.l.b16 %v374
  %v685 = vunpack.c.l.b16 %v375
  %v686 = vunpack.c.l.b16 %v376
  %v687 = vunpack.c.l.b16 %v377
  %v688 = vunpack.c.l.b16 %v378
  %v689 = vunpack.c.l.b16 %v379
  %v690 = vunpack.c.l.b16 %v380
  %v691 = vunpack.c.l.b16 %v381
  %v692 = vunpack.c.l.b16 %v382
  %v693 = vunpack.c.l.b16 %v383
  %v694 = vunpack.c.l.b16 %v384
  %v695 = vunpack.c.l.b16 %v385
  %v696 = vunpack.c.l.b16 %v386
  %v697 = vunpack.c.l.b16 %v387
  %v698 = vunpack.c.l.b16 %v388
  %v699 = vunpack.c.l.b16 %v389
  %v700 = vunpack.c.l.b16 %v390
  %v701 = vunpack.c.l.b16 %v391
  %v702 = vunpack.c.l.b16 %v392
  %v703 = vunpack.c.l.b16 %v393
  %v704 = vunpack.c.l.b16 %v394
  %v705 = vunpack.c.l.b16 %v395
  %v706 = vunpack.c.l.b16 %v396
  %v707 = vunpack.c.l.b16 %v397
  %v708 = vunpack.c.l.b16 %v398
  %v709 = vunpack.c.l.b16 %v399
  %v710 = vunpack.c.l.b16 %v400
  %v711 = vunpack.c.l.b16 %v401
  %v712 = vunpack.c.l.b16 %v402
  %v713 = vunpack.c.l.b16 %v403
  %v714 = vunpack.c.l.b16 %v404
  %v715 = vunpack.c.l.b16 %v405
  %v716 = vunpack.c.l.b16 %v406
  %v717 = vunpack.c.l.b16 %v407
  %v718 = vunpack.c.l.b16 %v408
  %v719 = vunpack.c.l.b16 %v409
  %v720 = vunpack.c.l.b16 %v410
  %v721 = vunpack.c.l.b16 %v411
  %v722 = vunpack.c.l.b16 %v412
  %v723 = vunpack.c.l.b16 %v413
  %v724 = vunpack.c.l.b16 %v414
  %v725 = vunpack.c.l.b16 %v415
  %v726 = vpack.c.b16 %v627, %v626
  %v727 = vpack.c.b16 %v629, %v628
  %v728 = vpack.c.b16 %v631, %v630
  %v729 = vpack.c.b16 %v633, %v632
  %v730 = vpack.c.b16 %v635, %v634
  %v731 = vpack.c.b16 %v637, %v636
  %v732 = vpack.c.b16 %v639, %v638
  %v733 = vpack.c.b16 %v641, %v640
  %v734 = vpack.c.b16 %v643, %v642
  %v735 = vpack.c.b16 %v645, %v644
  %v736 = vpack.c.b16 %v647, %v646
  %v737 = vpack.c.b16 %v649, %v648
  %v738 = vpack.c.b16 %v651, %v650
  %v739 = vpack.c.b16 %v653, %v652
  %v740 = vpack.c.b16 %v655, %v654
  %v741 = vpack.c.b16 %v657, %v656
  %v742 = vpack.c.b16 %v659, %v658
  %v743 = vpack.c.b16 %v661, %v660
  %v744 = vpack.c.b16 %v663, %v662
  %v745 = vpack.c.b16 %v665, %v664
  %v746 = vpack.c.b16 %v667, %v666
  %v747 = vpack.c.b16 %v669, %v668
  %v748 = vpack.c.b16 %v671, %v670
  %v749 = vpack.c.b16 %v673, %v672
  %v750 = vpack.c.b16 %v675, %v674
  %v751 = vpack.c.b16 %v677, %v676
  %v752 = vpack.c.b16 %v679, %v678
  %v753 = vpack.c.b16 %v681, %v680
  %v754 = vpack.c.b16 %v683, %v682
  %v755 = vpack.c.b16 %v685, %v684
  %v756 = vpack.c.b16 %v687, %v686
  %v757 = vpack.c.b16 %v689, %v688
  %v758 = vpack.c.b16 %v691, %v690
  %v759 = vpack.c.b16 %v693, %v692
  %v760 = vpack.c.b16 %v695, %v694
  %v761 = vpack.c.b16 %v697, %v696
  %v762 = vpack.c.b16 %v699, %v698
  %v763 = vpack.c.b16 %v701, %v700
  %v764 = vpack.c.b16 %v703, %v702
  %v765 = vpack.c.b16 %v705, %v704
  %v766 = vpack.c.b16 %v707, %v706
  %v767 = vpack.c.b16 %v709, %v708
  %v768 = vpack.c.b16 %v711, %v710
  %v769 = vpack.c.b16 %v713, %v712
  %v770 = vpack.c.b16 %v715, %v714
  %v771 = vpack.c.b16 %v717, %v716
  %v772 = vpack.c.b16 %v719, %v718
  %v773 = vpack.c.b16 %v721, %v720
  %v774 = vpack.c.b16 %v723, %v722
  %v775 = vpack.c.b16 %v725, %v724
  %vm826 = vcmask 261120
  %v828 = vsel %vm826, %v506, 0
  %v831 = vsel %vm826, %v513, 0
  %833 = vmatprep.subr.bf16.mxu0 0
  %834 = vmatpush1.bf16.msra.mxu0 %v726
  %835 = vmatprep.subr.bf16.mxu0 0
  %836 = vmatpush1.bf16.msra.mxu0 %v727
  %837 = vmatprep.subr.bf16.mxu0 0
  %838 = vmatpush1.bf16.msra.mxu0 %v728
  %839 = vmatprep.subr.bf16.mxu0 0
  %840 = vmatpush1.bf16.msra.mxu0 %v729
  %841 = vmatprep.subr.bf16.mxu0 0
  %842 = vmatpush1.bf16.msra.mxu0 %v730
  %843 = vmatprep.subr.bf16.mxu0 0
  %844 = vmatpush1.bf16.msra.mxu0 %v731
  %845 = vmatprep.subr.bf16.mxu0 0
  %846 = vmatpush1.bf16.msra.mxu0 %v732
  %847 = vmatprep.subr.bf16.mxu0 0
  %848 = vmatpush1.bf16.msra.mxu0 %v733
  %849 = vmatprep.subr.bf16.mxu0 0
  %850 = vmatpush1.bf16.msra.mxu0 %v734
  %851 = vmatprep.subr.bf16.mxu0 0
  %852 = vmatpush1.bf16.msra.mxu0 %v735
  %853 = vmatprep.subr.bf16.mxu0 0
  %854 = vmatpush1.bf16.msra.mxu0 %v736
  %855 = vmatprep.subr.bf16.mxu0 0
  %856 = vmatpush1.bf16.msra.mxu0 %v737
  %857 = vmatprep.subr.bf16.mxu0 0
  %858 = vmatpush1.bf16.msra.mxu0 %v738
  %859 = vmatprep.subr.bf16.mxu0 0
  %860 = vmatpush1.bf16.msra.mxu0 %v739
  %861 = vmatprep.subr.bf16.mxu0 0
  %862 = vmatpush1.bf16.msra.mxu0 %v740
  %863 = vmatprep.subr.bf16.mxu0 0
  %864 = vmatpush1.bf16.msra.mxu0 %v741
  %865 = vmatprep.mubr.bf16.mxu0 %v501
  %866 = vmatmul.mubr.bf16.gmra.mrb[0].mxu0 %v500
  %v867 = vpop.f32.mrb[0].mxu0
  %v868 = vadd.f32 %v439, %v867
  %v869 = vpop.f32.mrb[0].mxu0
  %v870 = vpop.f32.mrb[0].mxu0
  %v871 = vadd.f32 %v444, %v870
  %v872 = vpop.f32.mrb[0].mxu0
  %873 = vmatprep.mubr.bf16.mxu0 %v508
  %874 = vmatmul.mubr.bf16.gmra.mrb[0].mxu0 %v507
  %v875 = vpop.f32.mrb[0].mxu0
  %v876 = vadd.f32 %v449, %v875
  %v877 = vpop.f32.mrb[0].mxu0
  %v878 = vpop.f32.mrb[0].mxu0
  %v879 = vadd.f32 %v454, %v878
  %v880 = vpop.f32.mrb[0].mxu0
  %881 = vdwg.mxu0
  %882 = vmatprep.subr.bf16.mxu0 0
  %883 = vmatpush1.bf16.msra.mxu0 %v742
  %884 = vmatprep.subr.bf16.mxu0 0
  %885 = vmatpush1.bf16.msra.mxu0 %v743
  %886 = vmatprep.subr.bf16.mxu0 0
  %887 = vmatpush1.bf16.msra.mxu0 %v744
  %888 = vmatprep.subr.bf16.mxu0 0
  %889 = vmatpush1.bf16.msra.mxu0 %v745
  %890 = vmatprep.subr.bf16.mxu0 0
  %891 = vmatpush1.bf16.msra.mxu0 %v746
  %892 = vmatprep.subr.bf16.mxu0 0
  %893 = vmatpush1.bf16.msra.mxu0 %v747
  %894 = vmatprep.subr.bf16.mxu0 0
  %895 = vmatpush1.bf16.msra.mxu0 %v748
  %896 = vmatprep.subr.bf16.mxu0 0
  %897 = vmatpush1.bf16.msra.mxu0 %v749
  %898 = vmatprep.subr.bf16.mxu0 0
  %899 = vmatpush1.bf16.msra.mxu0 %v750
  %900 = vmatprep.subr.bf16.mxu0 0
  %901 = vmatpush1.bf16.msra.mxu0 %v751
  %902 = vmatprep.subr.bf16.mxu0 0
  %903 = vmatpush1.bf16.msra.mxu0 %v752
  %904 = vmatprep.subr.bf16.mxu0 0
  %905 = vmatpush1.bf16.msra.mxu0 %v753
  %906 = vmatprep.subr.bf16.mxu0 0
  %907 = vmatpush1.bf16.msra.mxu0 %v754
  %908 = vmatprep.subr.bf16.mxu0 0
  %909 = vmatpush1.bf16.msra.mxu0 %v755
  %910 = vmatprep.subr.bf16.mxu0 0
  %911 = vmatpush1.bf16.msra.mxu0 %v756
  %912 = vmatprep.subr.bf16.mxu0 0
  %913 = vmatpush1.bf16.msra.mxu0 %v757
  %914 = vmatprep.mubr.bf16.mxu0 %v503
  %915 = vmatmul.mubr.bf16.gmra.mrb[0].mxu0 %v502
  %v916 = vpop.f32.mrb[0].mxu0
  %v917 = vadd.f32 %v868, %v916
  %v918 = vpop.f32.mrb[0].mxu0
  %v919 = vpop.f32.mrb[0].mxu0
  %v920 = vadd.f32 %v871, %v919
  %v921 = vpop.f32.mrb[0].mxu0
  %922 = vmatprep.mubr.bf16.mxu0 %v510
  %923 = vmatmul.mubr.bf16.gmra.mrb[0].mxu0 %v509
  %v924 = vpop.f32.mrb[0].mxu0
  %v925 = vadd.f32 %v876, %v924
  %v926 = vpop.f32.mrb[0].mxu0
  %v927 = vpop.f32.mrb[0].mxu0
  %v928 = vadd.f32 %v879, %v927
  %v929 = vpop.f32.mrb[0].mxu0
  %930 = vdwg.mxu0
  %931 = vmatprep.subr.bf16.mxu0 0
  %932 = vmatpush1.bf16.msra.mxu0 %v758
  %933 = vmatprep.subr.bf16.mxu0 0
  %934 = vmatpush1.bf16.msra.mxu0 %v759
  %935 = vmatprep.subr.bf16.mxu0 0
  %936 = vmatpush1.bf16.msra.mxu0 %v760
  %937 = vmatprep.subr.bf16.mxu0 0
  %938 = vmatpush1.bf16.msra.mxu0 %v761
  %939 = vmatprep.subr.bf16.mxu0 0
  %940 = vmatpush1.bf16.msra.mxu0 %v762
  %941 = vmatprep.subr.bf16.mxu0 0
  %942 = vmatpush1.bf16.msra.mxu0 %v763
  %943 = vmatprep.subr.bf16.mxu0 0
  %944 = vmatpush1.bf16.msra.mxu0 %v764
  %945 = vmatprep.subr.bf16.mxu0 0
  %946 = vmatpush1.bf16.msra.mxu0 %v765
  %947 = vmatprep.subr.bf16.mxu0 0
  %948 = vmatpush1.bf16.msra.mxu0 %v766
  %949 = vmatprep.subr.bf16.mxu0 0
  %950 = vmatpush1.bf16.msra.mxu0 %v767
  %951 = vmatprep.subr.bf16.mxu0 0
  %952 = vmatpush1.bf16.msra.mxu0 %v768
  %953 = vmatprep.subr.bf16.mxu0 0
  %954 = vmatpush1.bf16.msra.mxu0 %v769
  %955 = vmatprep.subr.bf16.mxu0 0
  %956 = vmatpush1.bf16.msra.mxu0 %v770
  %957 = vmatprep.subr.bf16.mxu0 0
  %958 = vmatpush1.bf16.msra.mxu0 %v771
  %959 = vmatprep.subr.bf16.mxu0 0
  %960 = vmatpush1.bf16.msra.mxu0 %v772
  %961 = vmatprep.subr.bf16.mxu0 0
  %962 = vmatpush1.bf16.msra.mxu0 %v773
  %963 = vmatprep.mubr.bf16.mxu0 %v505
  %964 = vmatmul.mubr.bf16.gmra.mrb[0].mxu0 %v504
  %v965 = vpop.f32.mrb[0].mxu0
  %v966 = vadd.f32 %v917, %v965
  %v967 = vpop.f32.mrb[0].mxu0
  %v968 = vpop.f32.mrb[0].mxu0
  %v969 = vadd.f32 %v920, %v968
  %v970 = vpop.f32.mrb[0].mxu0
  %971 = vmatprep.mubr.bf16.mxu0 %v512
  %972 = vmatmul.mubr.bf16.gmra.mrb[0].mxu0 %v511
  %v973 = vpop.f32.mrb[0].mxu0
  %v974 = vadd.f32 %v925, %v973
  %v975 = vpop.f32.mrb[0].mxu0
  %v976 = vpop.f32.mrb[0].mxu0
  %v977 = vadd.f32 %v928, %v976
  %v978 = vpop.f32.mrb[0].mxu0
  %979 = vdwg.mxu0
  %980 = vmatprep.subr.bf16.mxu0 0
  %981 = vmatpush1.bf16.msra.mxu0 %v774
  %982 = vmatprep.subr.bf16.mxu0 0
  %983 = vmatpush1.bf16.msra.mxu0 %v775
  %984 = vmatprep.subr.bf16.mxu0 0
  %985 = vmatpush1.bf16.msra.mxu0 0
  %986 = vmatprep.subr.bf16.mxu0 0
  %987 = vmatpush1.bf16.msra.mxu0 0
  %988 = vmatprep.subr.bf16.mxu0 0
  %989 = vmatpush1.bf16.msra.mxu0 0
  %990 = vmatprep.subr.bf16.mxu0 0
  %991 = vmatpush1.bf16.msra.mxu0 0
  %992 = vmatprep.subr.bf16.mxu0 0
  %993 = vmatpush1.bf16.msra.mxu0 0
  %994 = vmatprep.subr.bf16.mxu0 0
  %995 = vmatpush1.bf16.msra.mxu0 0
  %996 = vmatprep.subr.bf16.mxu0 0
  %997 = vmatpush1.bf16.msra.mxu0 0
  %998 = vmatprep.subr.bf16.mxu0 0
  %999 = vmatpush1.bf16.msra.mxu0 0
  %1000 = vmatprep.subr.bf16.mxu0 0
  %1001 = vmatpush1.bf16.msra.mxu0 0
  %1002 = vmatprep.subr.bf16.mxu0 0
  %1003 = vmatpush1.bf16.msra.mxu0 0
  %1004 = vmatprep.subr.bf16.mxu0 0
  %1005 = vmatpush1.bf16.msra.mxu0 0
  %1006 = vmatprep.subr.bf16.mxu0 0
  %1007 = vmatpush1.bf16.msra.mxu0 0
  %1008 = vmatprep.subr.bf16.mxu0 0
  %1009 = vmatpush1.bf16.msra.mxu0 0
  %1010 = vmatprep.subr.bf16.mxu0 0
  %1011 = vmatpush1.bf16.msra.mxu0 0
  %1012 = vmatprep.mubr.bf16.mxu0 0
  %1013 = vmatmul.mubr.bf16.gmra.mrb[0].mxu0 %v828
  %v1014 = vpop.f32.mrb[0].mxu0
  %v1015 = vadd.f32 %v966, %v1014
  %v1016 = vpop.f32.mrb[0].mxu0
  %v1017 = vpop.f32.mrb[0].mxu0
  %v1018 = vadd.f32 %v969, %v1017
  %v1019 = vpop.f32.mrb[0].mxu0
  %1020 = vmatprep.mubr.bf16.mxu0 0
  %1021 = vmatmul.mubr.bf16.gmra.mrb[0].mxu0 %v831
  %v1022 = vpop.f32.mrb[0].mxu0
  %v1023 = vadd.f32 %v974, %v1022
  %v1024 = vpop.f32.mrb[0].mxu0
  %v1025 = vpop.f32.mrb[0].mxu0
  %v1026 = vadd.f32 %v977, %v1025
  %v1027 = vpop.f32.mrb[0].mxu0
  %1028 = vdwg.mxu0
  %1029 = vst [vmem:[%s3] sm:$0xff] %v1015
  %1030 = vst [vmem:[%s3 + $0x8] sm:$0xff] %v1018
  %1031 = vst [vmem:[%s3 + $0x10] sm:$0xff] %v1023
  %1032 = vst [vmem:[%s3 + $0x18] sm:$0xff] %v1026
  // Predicated region
  $region14: #{unet3d_forward.13} parent=0 // pred_check
    _
  $region15: #{unet3d_forward.13} parent=0 // pred_check_branch
    %1034 = sbr.rel (0) target = $region17
  $region16: #{unet3d_forward.13} parent=0 // pred_region
    _
  $region17: #{unet3d_forward.13} parent=0 // pred_fallthru
    _
  // Predicated region
  $region18: #{unet3d_forward.13} parent=0 // pred_check
    _
  $region19: #{unet3d_forward.13} parent=0 // pred_check_branch
    %1036 = sbr.rel (0) target = $region21
  $region20: #{unet3d_forward.13} parent=0 // pred_region
    _
  $region21: #{unet3d_forward.13} parent=0 // pred_fallthru
    _

// kernel: unet3d_forward.14
$region0: #{unet3d_forward.14}
  #allocation0 [shape = 'u32[]', space=smem, size = 0x4, offset = 0x4, fixed_abs, tag = 'smem constant byte address 0x4 - core index']
  #allocation1 [shape = 'u32[144,128]{1,0:T(1,128)}', space=vmem, size = 0x12000, scoped, tag = 'internal scratch']
  %s0 = inlined_call_operand.vmem [shape: bf16[64,512], index: 0, kind: input, shape index: {}]
  %s1 = inlined_call_operand.vmem [shape: bf16[512,128], index: 1, kind: input, shape index: {}]
  %s2 = inlined_call_operand.vmem [shape: f32[64,1], index: 2, kind: input, shape index: {}]
  %s3 = inlined_call_operand.vmem [shape: f32[64,128], index: 3, kind: output, shape index: {}]
  %s4 = sld [smem:[#allocation0]]
  $region22: #{unet3d_forward.14} parent=0
    _
  %s6 = ssub.s32 1, %s4
  %s7 = scalar_select 0, %s6, %s4
  // Predicated region
  $region2: #{unet3d_forward.14} parent=0 // pred_check
    _
  $region3: #{unet3d_forward.14} parent=0 // pred_check_branch
    %9 = sbr.rel (0) target = $region5
  $region4: #{unet3d_forward.14} parent=0 // pred_region
    _
  $region5: #{unet3d_forward.14} parent=0 // pred_fallthru
    _
  // Predicated region
  $region6: #{unet3d_forward.14} parent=0 // pred_check
    _
  $region7: #{unet3d_forward.14} parent=0 // pred_check_branch
    %11 = sbr.rel (0) target = $region9
  $region8: #{unet3d_forward.14} parent=0 // pred_region
    _
  $region9: #{unet3d_forward.14} parent=0 // pred_fallthru
    _
  // Predicated region
  $region10: #{unet3d_forward.14} parent=0 // pred_check
    _
  $region11: #{unet3d_forward.14} parent=0 // pred_check_branch
    %13 = sbr.rel (0) target = $region13
  $region12: #{unet3d_forward.14} parent=0 // pred_region
    _
  $region13: #{unet3d_forward.14} parent=0 // pred_fallthru
    _
  %v16 = vld [vmem:[%s1] sm:$0xf]
  %v17 = vld [vmem:[%s1 + $0x4] sm:$0xf]
  %v18 = vld [vmem:[%s1 + $0x8] sm:$0xf]
  %v19 = vld [vmem:[%s1 + $0xc] sm:$0xf]
  %v20 = vld [vmem:[%s1 + $0x10] sm:$0xf]
  %v21 = vld [vmem:[%s1 + $0x14] sm:$0xf]
  %v22 = vld [vmem:[%s1 + $0x18] sm:$0xf]
  %v23 = vld [vmem:[%s1 + $0x1c] sm:$0xf]
  %v24 = vld [vmem:[%s1 + $0x20] sm:$0xf]
  %v25 = vld [vmem:[%s1 + $0x24] sm:$0xf]
  %v26 = vld [vmem:[%s1 + $0x28] sm:$0xf]
  %v27 = vld [vmem:[%s1 + $0x2c] sm:$0xf]
  %v28 = vld [vmem:[%s1 + $0x30] sm:$0xf]
  %v29 = vld [vmem:[%s1 + $0x34] sm:$0xf]
  %v30 = vld [vmem:[%s1 + $0x38] sm:$0xf]
  %v31 = vld [vmem:[%s1 + $0x3c] sm:$0xf]
  %v32 = vld [vmem:[%s1 + $0x40] sm:$0xf]
  %v33 = vld [vmem:[%s1 + $0x44] sm:$0xf]
  %v34 = vld [vmem:[%s1 + $0x48] sm:$0xf]
  %v35 = vld [vmem:[%s1 + $0x4c] sm:$0xf]
  %v36 = vld [vmem:[%s1 + $0x50] sm:$0xf]
  %v37 = vld [vmem:[%s1 + $0x54] sm:$0xf]
  %v38 = vld [vmem:[%s1 + $0x58] sm:$0xf]
  %v39 = vld [vmem:[%s1 + $0x5c] sm:$0xf]
  %v40 = vld [vmem:[%s1 + $0x60] sm:$0xf]
  %v41 = vld [vmem:[%s1 + $0x64] sm:$0xf]
  %v42 = vld [vmem:[%s1 + $0x68] sm:$0xf]
  %v43 = vld [vmem:[%s1 + $0x6c] sm:$0xf]
  %v44 = vld [vmem:[%s1 + $0x70] sm:$0xf]
  %v45 = vld [vmem:[%s1 + $0x74] sm:$0xf]
  %v46 = vld [vmem:[%s1 + $0x78] sm:$0xf]
  %v47 = vld [vmem:[%s1 + $0x7c] sm:$0xf]
  %v48 = vld [vmem:[%s1 + $0x80] sm:$0xf]
  %v49 = vld [vmem:[%s1 + $0x84] sm:$0xf]
  %v50 = vld [vmem:[%s1 + $0x88] sm:$0xf]
  %v51 = vld [vmem:[%s1 + $0x8c] sm:$0xf]
  %v52 = vld [vmem:[%s1 + $0x90] sm:$0xf]
  %v53 = vld [vmem:[%s1 + $0x94] sm:$0xf]
  %v54 = vld [vmem:[%s1 + $0x98] sm:$0xf]
  %v55 = vld [vmem:[%s1 + $0x9c] sm:$0xf]
  %v56 = vld [vmem:[%s1 + $0xa0] sm:$0xf]
  %v57 = vld [vmem:[%s1 + $0xa4] sm:$0xf]
  %v58 = vld [vmem:[%s1 + $0xa8] sm:$0xf]
  %v59 = vld [vmem:[%s1 + $0xac] sm:$0xf]
  %v60 = vld [vmem:[%s1 + $0xb0] sm:$0xf]
  %v61 = vld [vmem:[%s1 + $0xb4] sm:$0xf]
  %v62 = vld [vmem:[%s1 + $0xb8] sm:$0xf]
  %v63 = vld [vmem:[%s1 + $0xbc] sm:$0xf]
  %v64 = vld [vmem:[%s1 + $0xc0] sm:$0xf]
  %v65 = vld [vmem:[%s1 + $0xc4] sm:$0xf]
  %v66 = vld [vmem:[%s1 + $0xc8] sm:$0xf]
  %v67 = vld [vmem:[%s1 + $0xcc] sm:$0xf]
  %v68 = vld [vmem:[%s1 + $0xd0] sm:$0xf]
  %v69 = vld [vmem:[%s1 + $0xd4] sm:$0xf]
  %v70 = vld [vmem:[%s1 + $0xd8] sm:$0xf]
  %v71 = vld [vmem:[%s1 + $0xdc] sm:$0xf]
  %v72 = vld [vmem:[%s1 + $0xe0] sm:$0xf]
  %v73 = vld [vmem:[%s1 + $0xe4] sm:$0xf]
  %v74 = vld [vmem:[%s1 + $0xe8] sm:$0xf]
  %v75 = vld [vmem:[%s1 + $0xec] sm:$0xf]
  %v76 = vld [vmem:[%s1 + $0xf0] sm:$0xf]
  %v77 = vld [vmem:[%s1 + $0xf4] sm:$0xf]
  %v78 = vld [vmem:[%s1 + $0xf8] sm:$0xf]
  %v79 = vld [vmem:[%s1 + $0xfc] sm:$0xf]
  %vm80 = vcmp.gt.bf16.partialorder %v16, 0
  %vm81 = vcmp.gt.bf16.partialorder %v17, 0
  %vm82 = vcmp.gt.bf16.partialorder %v18, 0
  %vm83 = vcmp.gt.bf16.partialorder %v19, 0
  %vm84 = vcmp.gt.bf16.partialorder %v20, 0
  %vm85 = vcmp.gt.bf16.partialorder %v21, 0
  %vm86 = vcmp.gt.bf16.partialorder %v22, 0
  %vm87 = vcmp.gt.bf16.partialorder %v23, 0
  %vm88 = vcmp.gt.bf16.partialorder %v24, 0
  %vm89 = vcmp.gt.bf16.partialorder %v25, 0
  %vm90 = vcmp.gt.bf16.partialorder %v26, 0
  %vm91 = vcmp.gt.bf16.partialorder %v27, 0
  %vm92 = vcmp.gt.bf16.partialorder %v28, 0
  %vm93 = vcmp.gt.bf16.partialorder %v29, 0
  %vm94 = vcmp.gt.bf16.partialorder %v30, 0
  %vm95 = vcmp.gt.bf16.partialorder %v31, 0
  %vm96 = vcmp.gt.bf16.partialorder %v32, 0
  %vm97 = vcmp.gt.bf16.partialorder %v33, 0
  %vm98 = vcmp.gt.bf16.partialorder %v34, 0
  %vm99 = vcmp.gt.bf16.partialorder %v35, 0
  %vm100 = vcmp.gt.bf16.partialorder %v36, 0
  %vm101 = vcmp.gt.bf16.partialorder %v37, 0
  %vm102 = vcmp.gt.bf16.partialorder %v38, 0
  %vm103 = vcmp.gt.bf16.partialorder %v39, 0
  %vm104 = vcmp.gt.bf16.partialorder %v40, 0
  %vm105 = vcmp.gt.bf16.partialorder %v41, 0
  %vm106 = vcmp.gt.bf16.partialorder %v42, 0
  %vm107 = vcmp.gt.bf16.partialorder %v43, 0
  %vm108 = vcmp.gt.bf16.partialorder %v44, 0
  %vm109 = vcmp.gt.bf16.partialorder %v45, 0
  %vm110 = vcmp.gt.bf16.partialorder %v46, 0
  %vm111 = vcmp.gt.bf16.partialorder %v47, 0
  %vm112 = vcmp.gt.bf16.partialorder %v48, 0
  %vm113 = vcmp.gt.bf16.partialorder %v49, 0
  %vm114 = vcmp.gt.bf16.partialorder %v50, 0
  %vm115 = vcmp.gt.bf16.partialorder %v51, 0
  %vm116 = vcmp.gt.bf16.partialorder %v52, 0
  %vm117 = vcmp.gt.bf16.partialorder %v53, 0
  %vm118 = vcmp.gt.bf16.partialorder %v54, 0
  %vm119 = vcmp.gt.bf16.partialorder %v55, 0
  %vm120 = vcmp.gt.bf16.partialorder %v56, 0
  %vm121 = vcmp.gt.bf16.partialorder %v57, 0
  %vm122 = vcmp.gt.bf16.partialorder %v58, 0
  %vm123 = vcmp.gt.bf16.partialorder %v59, 0
  %vm124 = vcmp.gt.bf16.partialorder %v60, 0
  %vm125 = vcmp.gt.bf16.partialorder %v61, 0
  %vm126 = vcmp.gt.bf16.partialorder %v62, 0
  %vm127 = vcmp.gt.bf16.partialorder %v63, 0
  %vm128 = vcmp.gt.bf16.partialorder %v64, 0
  %vm129 = vcmp.gt.bf16.partialorder %v65, 0
  %vm130 = vcmp.gt.bf16.partialorder %v66, 0
  %vm131 = vcmp.gt.bf16.partialorder %v67, 0
  %vm132 = vcmp.gt.bf16.partialorder %v68, 0
  %vm133 = vcmp.gt.bf16.partialorder %v69, 0
  %vm134 = vcmp.gt.bf16.partialorder %v70, 0
  %vm135 = vcmp.gt.bf16.partialorder %v71, 0
  %vm136 = vcmp.gt.bf16.partialorder %v72, 0
  %vm137 = vcmp.gt.bf16.partialorder %v73, 0
  %vm138 = vcmp.gt.bf16.partialorder %v74, 0
  %vm139 = vcmp.gt.bf16.partialorder %v75, 0
  %vm140 = vcmp.gt.bf16.partialorder %v76, 0
  %vm141 = vcmp.gt.bf16.partialorder %v77, 0
  %vm142 = vcmp.gt.bf16.partialorder %v78, 0
  %vm143 = vcmp.gt.bf16.partialorder %v79, 0
  %v144 = vmul.bf16 %v16, 1045249613
  %v145 = vmul.bf16 %v17, 1045249613
  %v146 = vmul.bf16 %v18, 1045249613
  %v147 = vmul.bf16 %v19, 1045249613
  %v148 = vmul.bf16 %v20, 1045249613
  %v149 = vmul.bf16 %v21, 1045249613
  %v150 = vmul.bf16 %v22, 1045249613
  %v151 = vmul.bf16 %v23, 1045249613
  %v152 = vmul.bf16 %v24, 1045249613
  %v153 = vmul.bf16 %v25, 1045249613
  %v154 = vmul.bf16 %v26, 1045249613
  %v155 = vmul.bf16 %v27, 1045249613
  %v156 = vmul.bf16 %v28, 1045249613
  %v157 = vmul.bf16 %v29, 1045249613
  %v158 = vmul.bf16 %v30, 1045249613
  %v159 = vmul.bf16 %v31, 1045249613
  %v160 = vmul.bf16 %v32, 1045249613
  %v161 = vmul.bf16 %v33, 1045249613
  %v162 = vmul.bf16 %v34, 1045249613
  %v163 = vmul.bf16 %v35, 1045249613
  %v164 = vmul.bf16 %v36, 1045249613
  %v165 = vmul.bf16 %v37, 1045249613
  %v166 = vmul.bf16 %v38, 1045249613
  %v167 = vmul.bf16 %v39, 1045249613
  %v168 = vmul.bf16 %v40, 1045249613
  %v169 = vmul.bf16 %v41, 1045249613
  %v170 = vmul.bf16 %v42, 1045249613
  %v171 = vmul.bf16 %v43, 1045249613
  %v172 = vmul.bf16 %v44, 1045249613
  %v173 = vmul.bf16 %v45, 1045249613
  %v174 = vmul.bf16 %v46, 1045249613
  %v175 = vmul.bf16 %v47, 1045249613
  %v176 = vmul.bf16 %v48, 1045249613
  %v177 = vmul.bf16 %v49, 1045249613
  %v178 = vmul.bf16 %v50, 1045249613
  %v179 = vmul.bf16 %v51, 1045249613
  %v180 = vmul.bf16 %v52, 1045249613
  %v181 = vmul.bf16 %v53, 1045249613
  %v182 = vmul.bf16 %v54, 1045249613
  %v183 = vmul.bf16 %v55, 1045249613
  %v184 = vmul.bf16 %v56, 1045249613
  %v185 = vmul.bf16 %v57, 1045249613
  %v186 = vmul.bf16 %v58, 1045249613
  %v187 = vmul.bf16 %v59, 1045249613
  %v188 = vmul.bf16 %v60, 1045249613
  %v189 = vmul.bf16 %v61, 1045249613
  %v190 = vmul.bf16 %v62, 1045249613
  %v191 = vmul.bf16 %v63, 1045249613
  %v192 = vmul.bf16 %v64, 1045249613
  %v193 = vmul.bf16 %v65, 1045249613
  %v194 = vmul.bf16 %v66, 1045249613
  %v195 = vmul.bf16 %v67, 1045249613
  %v196 = vmul.bf16 %v68, 1045249613
  %v197 = vmul.bf16 %v69, 1045249613
  %v198 = vmul.bf16 %v70, 1045249613
  %v199 = vmul.bf16 %v71, 1045249613
  %v200 = vmul.bf16 %v72, 1045249613
  %v201 = vmul.bf16 %v73, 1045249613
  %v202 = vmul.bf16 %v74, 1045249613
  %v203 = vmul.bf16 %v75, 1045249613
  %v204 = vmul.bf16 %v76, 1045249613
  %v205 = vmul.bf16 %v77, 1045249613
  %v206 = vmul.bf16 %v78, 1045249613
  %v207 = vmul.bf16 %v79, 1045249613
  %v208 = vsel %vm80, %v16, %v144
  %v209 = vsel %vm81, %v17, %v145
  %v210 = vsel %vm82, %v18, %v146
  %v211 = vsel %vm83, %v19, %v147
  %v212 = vsel %vm84, %v20, %v148
  %v213 = vsel %vm85, %v21, %v149
  %v214 = vsel %vm86, %v22, %v150
  %v215 = vsel %vm87, %v23, %v151
  %v216 = vsel %vm88, %v24, %v152
  %v217 = vsel %vm89, %v25, %v153
  %v218 = vsel %vm90, %v26, %v154
  %v219 = vsel %vm91, %v27, %v155
  %v220 = vsel %vm92, %v28, %v156
  %v221 = vsel %vm93, %v29, %v157
  %v222 = vsel %vm94, %v30, %v158
  %v223 = vsel %vm95, %v31, %v159
  %v224 = vsel %vm96, %v32, %v160
  %v225 = vsel %vm97, %v33, %v161
  %v226 = vsel %vm98, %v34, %v162
  %v227 = vsel %vm99, %v35, %v163
  %v228 = vsel %vm100, %v36, %v164
  %v229 = vsel %vm101, %v37, %v165
  %v230 = vsel %vm102, %v38, %v166
  %v231 = vsel %vm103, %v39, %v167
  %v232 = vsel %vm104, %v40, %v168
  %v233 = vsel %vm105, %v41, %v169
  %v234 = vsel %vm106, %v42, %v170
  %v235 = vsel %vm107, %v43, %v171
  %v236 = vsel %vm108, %v44, %v172
  %v237 = vsel %vm109, %v45, %v173
  %v238 = vsel %vm110, %v46, %v174
  %v239 = vsel %vm111, %v47, %v175
  %v240 = vsel %vm112, %v48, %v176
  %v241 = vsel %vm113, %v49, %v177
  %v242 = vsel %vm114, %v50, %v178
  %v243 = vsel %vm115, %v51, %v179
  %v244 = vsel %vm116, %v52, %v180
  %v245 = vsel %vm117, %v53, %v181
  %v246 = vsel %vm118, %v54, %v182
  %v247 = vsel %vm119, %v55, %v183
  %v248 = vsel %vm120, %v56, %v184
  %v249 = vsel %vm121, %v57, %v185
  %v250 = vsel %vm122, %v58, %v186
  %v251 = vsel %vm123, %v59, %v187
  %v252 = vsel %vm124, %v60, %v188
  %v253 = vsel %vm125, %v61, %v189
  %v254 = vsel %vm126, %v62, %v190
  %v255 = vsel %vm127, %v63, %v191
  %v256 = vsel %vm128, %v64, %v192
  %v257 = vsel %vm129, %v65, %v193
  %v258 = vsel %vm130, %v66, %v194
  %v259 = vsel %vm131, %v67, %v195
  %v260 = vsel %vm132, %v68, %v196
  %v261 = vsel %vm133, %v69, %v197
  %v262 = vsel %vm134, %v70, %v198
  %v263 = vsel %vm135, %v71, %v199
  %v264 = vsel %vm136, %v72, %v200
  %v265 = vsel %vm137, %v73, %v201
  %v266 = vsel %vm138, %v74, %v202
  %v267 = vsel %vm139, %v75, %v203
  %v268 = vsel %vm140, %v76, %v204
  %v269 = vsel %vm141, %v77, %v205
  %v270 = vsel %vm142, %v78, %v206
  %v271 = vsel %vm143, %v79, %v207
  %v272 = vld [vmem:[%s0] sm:$0xff]
  %v273 = vld [vmem:[%s0 + $0x8] sm:$0xff]
  %v274 = vld [vmem:[%s0 + $0x10] sm:$0xff]
  %v275 = vld [vmem:[%s0 + $0x18] sm:$0xff]
  %v276 = vld [vmem:[%s0 + $0x20] sm:$0xff]
  %v277 = vld [vmem:[%s0 + $0x28] sm:$0xff]
  %v278 = vld [vmem:[%s0 + $0x30] sm:$0xff]
  %v279 = vld [vmem:[%s0 + $0x38] sm:$0xff]
  %v280 = vld [vmem:[%s0 + $0x40] sm:$0xff]
  %v281 = vld [vmem:[%s0 + $0x48] sm:$0xff]
  %v282 = vld [vmem:[%s0 + $0x50] sm:$0xff]
  %v283 = vld [vmem:[%s0 + $0x58] sm:$0xff]
  %v284 = vld [vmem:[%s0 + $0x60] sm:$0xff]
  %v285 = vld [vmem:[%s0 + $0x68] sm:$0xff]
  %v286 = vld [vmem:[%s0 + $0x70] sm:$0xff]
  %v287 = vld [vmem:[%s0 + $0x78] sm:$0xff]
  %v288 = vld [vmem:[%s2] sm:$0xff]
  %v289 = vld [vmem:[%s2 + $0x8] sm:$0xff]
  %v290 = vld [vmem:[%s2 + $0x10] sm:$0xff]
  %v291 = vld [vmem:[%s2 + $0x18] sm:$0xff]
  %v292 = vld [vmem:[%s2 + $0x20] sm:$0xff]
  %v293 = vld [vmem:[%s2 + $0x28] sm:$0xff]
  %v294 = vld [vmem:[%s2 + $0x30] sm:$0xff]
  %v295 = vld [vmem:[%s2 + $0x38] sm:$0xff]
  %297 = vset.pattern.permute.xlu0 0
  %298 = vperm.xlu0 %297, %v288
  %v299 = vpop.permute.xlu0 %298
  %302 = vset.pattern.permute.xlu0 0
  %303 = vperm.xlu0 %302, %v289
  %v304 = vpop.permute.xlu0 %303
  %307 = vset.pattern.permute.xlu0 0
  %308 = vperm.xlu0 %307, %v290
  %v309 = vpop.permute.xlu0 %308
  %312 = vset.pattern.permute.xlu0 0
  %313 = vperm.xlu0 %312, %v291
  %v314 = vpop.permute.xlu0 %313
  %317 = vset.pattern.permute.xlu0 0
  %318 = vperm.xlu0 %317, %v292
  %v319 = vpop.permute.xlu0 %318
  %322 = vset.pattern.permute.xlu0 0
  %323 = vperm.xlu0 %322, %v293
  %v324 = vpop.permute.xlu0 %323
  %327 = vset.pattern.permute.xlu0 0
  %328 = vperm.xlu0 %327, %v294
  %v329 = vpop.permute.xlu0 %328
  %332 = vset.pattern.permute.xlu0 0
  %333 = vperm.xlu0 %332, %v295
  %v334 = vpop.permute.xlu0 %333
  %v352 = vunpack.c.l.b16 %v272
  %v353 = vunpack.c.h.b16 %v272
  %v354 = vunpack.c.l.b16 %v273
  %v355 = vunpack.c.h.b16 %v273
  %v356 = vunpack.c.l.b16 %v274
  %v357 = vunpack.c.h.b16 %v274
  %v358 = vunpack.c.l.b16 %v275
  %v359 = vunpack.c.h.b16 %v275
  %v360 = vunpack.c.l.b16 %v276
  %v361 = vunpack.c.h.b16 %v276
  %v362 = vunpack.c.l.b16 %v277
  %v363 = vunpack.c.h.b16 %v277
  %v364 = vunpack.c.l.b16 %v278
  %v365 = vunpack.c.h.b16 %v278
  %v366 = vunpack.c.l.b16 %v279
  %v367 = vunpack.c.h.b16 %v279
  %v368 = vunpack.c.l.b16 %v280
  %v369 = vunpack.c.h.b16 %v280
  %v370 = vunpack.c.l.b16 %v281
  %v371 = vunpack.c.h.b16 %v281
  %v372 = vunpack.c.l.b16 %v282
  %v373 = vunpack.c.h.b16 %v282
  %v374 = vunpack.c.l.b16 %v283
  %v375 = vunpack.c.h.b16 %v283
  %v376 = vunpack.c.l.b16 %v284
  %v377 = vunpack.c.h.b16 %v284
  %v378 = vunpack.c.l.b16 %v285
  %v379 = vunpack.c.h.b16 %v285
  %v380 = vunpack.c.l.b16 %v286
  %v381 = vunpack.c.h.b16 %v286
  %v382 = vunpack.c.l.b16 %v287
  %v383 = vunpack.c.h.b16 %v287
  %v384 = vpack.c.b16 %v356, %v352
  %v385 = vpack.c.b16 %v357, %v353
  %v386 = vpack.c.b16 %v358, %v354
  %v387 = vpack.c.b16 %v359, %v355
  %v388 = vpack.c.b16 %v364, %v360
  %v389 = vpack.c.b16 %v365, %v361
  %v390 = vpack.c.b16 %v366, %v362
  %v391 = vpack.c.b16 %v367, %v363
  %v392 = vpack.c.b16 %v372, %v368
  %v393 = vpack.c.b16 %v373, %v369
  %v394 = vpack.c.b16 %v374, %v370
  %v395 = vpack.c.b16 %v375, %v371
  %v396 = vpack.c.b16 %v380, %v376
  %v397 = vpack.c.b16 %v381, %v377
  %v398 = vpack.c.b16 %v382, %v378
  %v399 = vpack.c.b16 %v383, %v379
  %v480 = vunpack.c.l.b16 %v208
  %v481 = vunpack.c.l.b16 %v209
  %v482 = vunpack.c.l.b16 %v210
  %v483 = vunpack.c.l.b16 %v211
  %v484 = vunpack.c.l.b16 %v212
  %v485 = vunpack.c.l.b16 %v213
  %v486 = vunpack.c.l.b16 %v214
  %v487 = vunpack.c.l.b16 %v215
  %v488 = vunpack.c.l.b16 %v216
  %v489 = vunpack.c.l.b16 %v217
  %v490 = vunpack.c.l.b16 %v218
  %v491 = vunpack.c.l.b16 %v219
  %v492 = vunpack.c.l.b16 %v220
  %v493 = vunpack.c.l.b16 %v221
  %v494 = vunpack.c.l.b16 %v222
  %v495 = vunpack.c.l.b16 %v223
  %v496 = vunpack.c.l.b16 %v224
  %v497 = vunpack.c.l.b16 %v225
  %v498 = vunpack.c.l.b16 %v226
  %v499 = vunpack.c.l.b16 %v227
  %v500 = vunpack.c.l.b16 %v228
  %v501 = vunpack.c.l.b16 %v229
  %v502 = vunpack.c.l.b16 %v230
  %v503 = vunpack.c.l.b16 %v231
  %v504 = vunpack.c.l.b16 %v232
  %v505 = vunpack.c.l.b16 %v233
  %v506 = vunpack.c.l.b16 %v234
  %v507 = vunpack.c.l.b16 %v235
  %v508 = vunpack.c.l.b16 %v236
  %v509 = vunpack.c.l.b16 %v237
  %v510 = vunpack.c.l.b16 %v238
  %v511 = vunpack.c.l.b16 %v239
  %v512 = vunpack.c.l.b16 %v240
  %v513 = vunpack.c.l.b16 %v241
  %v514 = vunpack.c.l.b16 %v242
  %v515 = vunpack.c.l.b16 %v243
  %v516 = vunpack.c.l.b16 %v244
  %v517 = vunpack.c.l.b16 %v245
  %v518 = vunpack.c.l.b16 %v246
  %v519 = vunpack.c.l.b16 %v247
  %v520 = vunpack.c.l.b16 %v248
  %v521 = vunpack.c.l.b16 %v249
  %v522 = vunpack.c.l.b16 %v250
  %v523 = vunpack.c.l.b16 %v251
  %v524 = vunpack.c.l.b16 %v252
  %v525 = vunpack.c.l.b16 %v253
  %v526 = vunpack.c.l.b16 %v254
  %v527 = vunpack.c.l.b16 %v255
  %v528 = vunpack.c.l.b16 %v256
  %v529 = vunpack.c.l.b16 %v257
  %v530 = vunpack.c.l.b16 %v258
  %v531 = vunpack.c.l.b16 %v259
  %v532 = vunpack.c.l.b16 %v260
  %v533 = vunpack.c.l.b16 %v261
  %v534 = vunpack.c.l.b16 %v262
  %v535 = vunpack.c.l.b16 %v263
  %v536 = vunpack.c.l.b16 %v264
  %v537 = vunpack.c.l.b16 %v265
  %v538 = vunpack.c.l.b16 %v266
  %v539 = vunpack.c.l.b16 %v267
  %v540 = vunpack.c.l.b16 %v268
  %v541 = vunpack.c.l.b16 %v269
  %v542 = vunpack.c.l.b16 %v270
  %v543 = vunpack.c.l.b16 %v271
  %v544 = vpack.c.b16 %v481, %v480
  %v545 = vpack.c.b16 %v483, %v482
  %v546 = vpack.c.b16 %v485, %v484
  %v547 = vpack.c.b16 %v487, %v486
  %v548 = vpack.c.b16 %v489, %v488
  %v549 = vpack.c.b16 %v491, %v490
  %v550 = vpack.c.b16 %v493, %v492
  %v551 = vpack.c.b16 %v495, %v494
  %v552 = vpack.c.b16 %v497, %v496
  %v553 = vpack.c.b16 %v499, %v498
  %v554 = vpack.c.b16 %v501, %v500
  %v555 = vpack.c.b16 %v503, %v502
  %v556 = vpack.c.b16 %v505, %v504
  %v557 = vpack.c.b16 %v507, %v506
  %v558 = vpack.c.b16 %v509, %v508
  %v559 = vpack.c.b16 %v511, %v510
  %v560 = vpack.c.b16 %v513, %v512
  %v561 = vpack.c.b16 %v515, %v514
  %v562 = vpack.c.b16 %v517, %v516
  %v563 = vpack.c.b16 %v519, %v518
  %v564 = vpack.c.b16 %v521, %v520
  %v565 = vpack.c.b16 %v523, %v522
  %v566 = vpack.c.b16 %v525, %v524
  %v567 = vpack.c.b16 %v527, %v526
  %v568 = vpack.c.b16 %v529, %v528
  %v569 = vpack.c.b16 %v531, %v530
  %v570 = vpack.c.b16 %v533, %v532
  %v571 = vpack.c.b16 %v535, %v534
  %v572 = vpack.c.b16 %v537, %v536
  %v573 = vpack.c.b16 %v539, %v538
  %v574 = vpack.c.b16 %v541, %v540
  %v575 = vpack.c.b16 %v543, %v542
  %608 = vmatprep.subr.bf16.mxu0 0
  %609 = vmatpush1.bf16.msra.mxu0 %v544
  %610 = vmatprep.subr.bf16.mxu0 0
  %611 = vmatpush1.bf16.msra.mxu0 %v545
  %612 = vmatprep.subr.bf16.mxu0 0
  %613 = vmatpush1.bf16.msra.mxu0 %v546
  %614 = vmatprep.subr.bf16.mxu0 0
  %615 = vmatpush1.bf16.msra.mxu0 %v547
  %616 = vmatprep.subr.bf16.mxu0 0
  %617 = vmatpush1.bf16.msra.mxu0 %v548
  %618 = vmatprep.subr.bf16.mxu0 0
  %619 = vmatpush1.bf16.msra.mxu0 %v549
  %620 = vmatprep.subr.bf16.mxu0 0
  %621 = vmatpush1.bf16.msra.mxu0 %v550
  %622 = vmatprep.subr.bf16.mxu0 0
  %623 = vmatpush1.bf16.msra.mxu0 %v551
  %624 = vmatprep.subr.bf16.mxu0 0
  %625 = vmatpush1.bf16.msra.mxu0 %v552
  %626 = vmatprep.subr.bf16.mxu0 0
  %627 = vmatpush1.bf16.msra.mxu0 %v553
  %628 = vmatprep.subr.bf16.mxu0 0
  %629 = vmatpush1.bf16.msra.mxu0 %v554
  %630 = vmatprep.subr.bf16.mxu0 0
  %631 = vmatpush1.bf16.msra.mxu0 %v555
  %632 = vmatprep.subr.bf16.mxu0 0
  %633 = vmatpush1.bf16.msra.mxu0 %v556
  %634 = vmatprep.subr.bf16.mxu0 0
  %635 = vmatpush1.bf16.msra.mxu0 %v557
  %636 = vmatprep.subr.bf16.mxu0 0
  %637 = vmatpush1.bf16.msra.mxu0 %v558
  %638 = vmatprep.subr.bf16.mxu0 0
  %639 = vmatpush1.bf16.msra.mxu0 %v559
  %640 = vmatprep.mubr.bf16.mxu0 %v385
  %641 = vmatmul.mubr.bf16.gmra.mrb[0].mxu0 %v384
  %v642 = vpop.f32.mrb[0].mxu0
  %v643 = vadd.f32 %v299, %v642
  %v644 = vpop.f32.mrb[0].mxu0
  %v645 = vpop.f32.mrb[0].mxu0
  %v646 = vadd.f32 %v304, %v645
  %v647 = vpop.f32.mrb[0].mxu0
  %648 = vmatprep.mubr.bf16.mxu0 %v389
  %649 = vmatmul.mubr.bf16.gmra.mrb[0].mxu0 %v388
  %v650 = vpop.f32.mrb[0].mxu0
  %v651 = vadd.f32 %v309, %v650
  %v652 = vpop.f32.mrb[0].mxu0
  %v653 = vpop.f32.mrb[0].mxu0
  %v654 = vadd.f32 %v314, %v653
  %v655 = vpop.f32.mrb[0].mxu0
  %656 = vmatprep.mubr.bf16.mxu0 %v393
  %657 = vmatmul.mubr.bf16.gmra.mrb[0].mxu0 %v392
  %v658 = vpop.f32.mrb[0].mxu0
  %v659 = vadd.f32 %v319, %v658
  %v660 = vpop.f32.mrb[0].mxu0
  %v661 = vpop.f32.mrb[0].mxu0
  %v662 = vadd.f32 %v324, %v661
  %v663 = vpop.f32.mrb[0].mxu0
  %664 = vmatprep.mubr.bf16.mxu0 %v397
  %665 = vmatmul.mubr.bf16.gmra.mrb[0].mxu0 %v396
  %v666 = vpop.f32.mrb[0].mxu0
  %v667 = vadd.f32 %v329, %v666
  %v668 = vpop.f32.mrb[0].mxu0
  %v669 = vpop.f32.mrb[0].mxu0
  %v670 = vadd.f32 %v334, %v669
  %v671 = vpop.f32.mrb[0].mxu0
  %672 = vdwg.mxu0
  %673 = vmatprep.subr.bf16.mxu0 0
  %674 = vmatpush1.bf16.msra.mxu0 %v560
  %675 = vmatprep.subr.bf16.mxu0 0
  %676 = vmatpush1.bf16.msra.mxu0 %v561
  %677 = vmatprep.subr.bf16.mxu0 0
  %678 = vmatpush1.bf16.msra.mxu0 %v562
  %679 = vmatprep.subr.bf16.mxu0 0
  %680 = vmatpush1.bf16.msra.mxu0 %v563
  %681 = vmatprep.subr.bf16.mxu0 0
  %682 = vmatpush1.bf16.msra.mxu0 %v564
  %683 = vmatprep.subr.bf16.mxu0 0
  %684 = vmatpush1.bf16.msra.mxu0 %v565
  %685 = vmatprep.subr.bf16.mxu0 0
  %686 = vmatpush1.bf16.msra.mxu0 %v566
  %687 = vmatprep.subr.bf16.mxu0 0
  %688 = vmatpush1.bf16.msra.mxu0 %v567
  %689 = vmatprep.subr.bf16.mxu0 0
  %690 = vmatpush1.bf16.msra.mxu0 %v568
  %691 = vmatprep.subr.bf16.mxu0 0
  %692 = vmatpush1.bf16.msra.mxu0 %v569
  %693 = vmatprep.subr.bf16.mxu0 0
  %694 = vmatpush1.bf16.msra.mxu0 %v570
  %695 = vmatprep.subr.bf16.mxu0 0
  %696 = vmatpush1.bf16.msra.mxu0 %v571
  %697 = vmatprep.subr.bf16.mxu0 0
  %698 = vmatpush1.bf16.msra.mxu0 %v572
  %699 = vmatprep.subr.bf16.mxu0 0
  %700 = vmatpush1.bf16.msra.mxu0 %v573
  %701 = vmatprep.subr.bf16.mxu0 0
  %702 = vmatpush1.bf16.msra.mxu0 %v574
  %703 = vmatprep.subr.bf16.mxu0 0
  %704 = vmatpush1.bf16.msra.mxu0 %v575
  %705 = vmatprep.mubr.bf16.mxu0 %v387
  %706 = vmatmul.mubr.bf16.gmra.mrb[0].mxu0 %v386
  %v707 = vpop.f32.mrb[0].mxu0
  %v708 = vadd.f32 %v643, %v707
  %v709 = vpop.f32.mrb[0].mxu0
  %v710 = vpop.f32.mrb[0].mxu0
  %v711 = vadd.f32 %v646, %v710
  %v712 = vpop.f32.mrb[0].mxu0
  %713 = vmatprep.mubr.bf16.mxu0 %v391
  %714 = vmatmul.mubr.bf16.gmra.mrb[0].mxu0 %v390
  %v715 = vpop.f32.mrb[0].mxu0
  %v716 = vadd.f32 %v651, %v715
  %v717 = vpop.f32.mrb[0].mxu0
  %v718 = vpop.f32.mrb[0].mxu0
  %v719 = vadd.f32 %v654, %v718
  %v720 = vpop.f32.mrb[0].mxu0
  %721 = vmatprep.mubr.bf16.mxu0 %v395
  %722 = vmatmul.mubr.bf16.gmra.mrb[0].mxu0 %v394
  %v723 = vpop.f32.mrb[0].mxu0
  %v724 = vadd.f32 %v659, %v723
  %v725 = vpop.f32.mrb[0].mxu0
  %v726 = vpop.f32.mrb[0].mxu0
  %v727 = vadd.f32 %v662, %v726
  %v728 = vpop.f32.mrb[0].mxu0
  %729 = vmatprep.mubr.bf16.mxu0 %v399
  %730 = vmatmul.mubr.bf16.gmra.mrb[0].mxu0 %v398
  %v731 = vpop.f32.mrb[0].mxu0
  %v732 = vadd.f32 %v667, %v731
  %v733 = vpop.f32.mrb[0].mxu0
  %v734 = vpop.f32.mrb[0].mxu0
  %v735 = vadd.f32 %v670, %v734
  %v736 = vpop.f32.mrb[0].mxu0
  %737 = vdwg.mxu0
  %738 = vst [vmem:[%s3] sm:$0xff] %v708
  %739 = vst [vmem:[%s3 + $0x8] sm:$0xff] %v711
  %740 = vst [vmem:[%s3 + $0x10] sm:$0xff] %v716
  %741 = vst [vmem:[%s3 + $0x18] sm:$0xff] %v719
  %742 = vst [vmem:[%s3 + $0x20] sm:$0xff] %v724
  %743 = vst [vmem:[%s3 + $0x28] sm:$0xff] %v727
  %744 = vst [vmem:[%s3 + $0x30] sm:$0xff] %v732
  %745 = vst [vmem:[%s3 + $0x38] sm:$0xff] %v735
  // Predicated region
  $region14: #{unet3d_forward.14} parent=0 // pred_check
    _
  $region15: #{unet3d_forward.14} parent=0 // pred_check_branch
    %747 = sbr.rel (0) target = $region17
  $region16: #{unet3d_forward.14} parent=0 // pred_region
    _
  $region17: #{unet3d_forward.14} parent=0 // pred_fallthru
    _
  // Predicated region
  $region18: #{unet3d_forward.14} parent=0 // pred_check
    _
  $region19: #{unet3d_forward.14} parent=0 // pred_check_branch
    %749 = sbr.rel (0) target = $region21
  $region20: #{unet3d_forward.14} parent=0 // pred_region
    _
  $region21: #{unet3d_forward.14} parent=0 // pred_fallthru
    _

// kernel: unet3d_forward.15
$region0: #{unet3d_forward.15}
  #allocation0 [shape = 'u32[]', space=smem, size = 0x4, offset = 0x4, fixed_abs, tag = 'smem constant byte address 0x4 - core index']
  #allocation1 [shape = 'u32[144,128]{1,0:T(1,128)}', space=vmem, size = 0x12000, scoped, tag = 'internal scratch']
  %s0 = inlined_call_operand.vmem [shape: bf16[32,1152], index: 0, kind: input, shape index: {}]
  %s1 = inlined_call_operand.vmem [shape: bf16[1152,128], index: 1, kind: input, shape index: {}]
  %s2 = inlined_call_operand.vmem [shape: f32[32,1], index: 2, kind: input, shape index: {}]
  %s3 = inlined_call_operand.vmem [shape: f32[32,128], index: 3, kind: output, shape index: {}]
  %s4 = sld [smem:[#allocation0]]
  $region22: #{unet3d_forward.15} parent=0
    _
  %s6 = ssub.s32 1, %s4
  %s7 = scalar_select 0, %s6, %s4
  // Predicated region
  $region2: #{unet3d_forward.15} parent=0 // pred_check
    _
  $region3: #{unet3d_forward.15} parent=0 // pred_check_branch
    %9 = sbr.rel (0) target = $region5
  $region4: #{unet3d_forward.15} parent=0 // pred_region
    _
  $region5: #{unet3d_forward.15} parent=0 // pred_fallthru
    _
  // Predicated region
  $region6: #{unet3d_forward.15} parent=0 // pred_check
    _
  $region7: #{unet3d_forward.15} parent=0 // pred_check_branch
    %11 = sbr.rel (0) target = $region9
  $region8: #{unet3d_forward.15} parent=0 // pred_region
    _
  $region9: #{unet3d_forward.15} parent=0 // pred_fallthru
    _
  // Predicated region
  $region10: #{unet3d_forward.15} parent=0 // pred_check
    _
  $region11: #{unet3d_forward.15} parent=0 // pred_check_branch
    %13 = sbr.rel (0) target = $region13
  $region12: #{unet3d_forward.15} parent=0 // pred_region
    _
  $region13: #{unet3d_forward.15} parent=0 // pred_fallthru
    _
  %v15 = vld [vmem:[%s1] sm:$0xf]
  %v16 = vld [vmem:[%s1 + $0x4] sm:$0xf]
  %v17 = vld [vmem:[%s1 + $0x8] sm:$0xf]
  %v18 = vld [vmem:[%s1 + $0xc] sm:$0xf]
  %v19 = vld [vmem:[%s1 + $0x10] sm:$0xf]
  %v20 = vld [vmem:[%s1 + $0x14] sm:$0xf]
  %v21 = vld [vmem:[%s1 + $0x18] sm:$0xf]
  %v22 = vld [vmem:[%s1 + $0x1c] sm:$0xf]
  %v23 = vld [vmem:[%s1 + $0x20] sm:$0xf]
  %v24 = vld [vmem:[%s1 + $0x24] sm:$0xf]
  %v25 = vld [vmem:[%s1 + $0x28] sm:$0xf]
  %v26 = vld [vmem:[%s1 + $0x2c] sm:$0xf]
  %v27 = vld [vmem:[%s1 + $0x30] sm:$0xf]
  %v28 = vld [vmem:[%s1 + $0x34] sm:$0xf]
  %v29 = vld [vmem:[%s1 + $0x38] sm:$0xf]
  %v30 = vld [vmem:[%s1 + $0x3c] sm:$0xf]
  %v31 = vld [vmem:[%s1 + $0x40] sm:$0xf]
  %v32 = vld [vmem:[%s1 + $0x44] sm:$0xf]
  %v33 = vld [vmem:[%s1 + $0x48] sm:$0xf]
  %v34 = vld [vmem:[%s1 + $0x4c] sm:$0xf]
  %v35 = vld [vmem:[%s1 + $0x50] sm:$0xf]
  %v36 = vld [vmem:[%s1 + $0x54] sm:$0xf]
  %v37 = vld [vmem:[%s1 + $0x58] sm:$0xf]
  %v38 = vld [vmem:[%s1 + $0x5c] sm:$0xf]
  %v39 = vld [vmem:[%s1 + $0x60] sm:$0xf]
  %v40 = vld [vmem:[%s1 + $0x64] sm:$0xf]
  %v41 = vld [vmem:[%s1 + $0x68] sm:$0xf]
  %v42 = vld [vmem:[%s1 + $0x6c] sm:$0xf]
  %v43 = vld [vmem:[%s1 + $0x70] sm:$0xf]
  %v44 = vld [vmem:[%s1 + $0x74] sm:$0xf]
  %v45 = vld [vmem:[%s1 + $0x78] sm:$0xf]
  %v46 = vld [vmem:[%s1 + $0x7c] sm:$0xf]
  %v47 = vld [vmem:[%s1 + $0x80] sm:$0xf]
  %v48 = vld [vmem:[%s1 + $0x84] sm:$0xf]
  %v49 = vld [vmem:[%s1 + $0x88] sm:$0xf]
  %v50 = vld [vmem:[%s1 + $0x8c] sm:$0xf]
  %v51 = vld [vmem:[%s1 + $0x90] sm:$0xf]
  %v52 = vld [vmem:[%s1 + $0x94] sm:$0xf]
  %v53 = vld [vmem:[%s1 + $0x98] sm:$0xf]
  %v54 = vld [vmem:[%s1 + $0x9c] sm:$0xf]
  %v55 = vld [vmem:[%s1 + $0xa0] sm:$0xf]
  %v56 = vld [vmem:[%s1 + $0xa4] sm:$0xf]
  %v57 = vld [vmem:[%s1 + $0xa8] sm:$0xf]
  %v58 = vld [vmem:[%s1 + $0xac] sm:$0xf]
  %v59 = vld [vmem:[%s1 + $0xb0] sm:$0xf]
  %v60 = vld [vmem:[%s1 + $0xb4] sm:$0xf]
  %v61 = vld [vmem:[%s1 + $0xb8] sm:$0xf]
  %v62 = vld [vmem:[%s1 + $0xbc] sm:$0xf]
  %v63 = vld [vmem:[%s1 + $0xc0] sm:$0xf]
  %v64 = vld [vmem:[%s1 + $0xc4] sm:$0xf]
  %v65 = vld [vmem:[%s1 + $0xc8] sm:$0xf]
  %v66 = vld [vmem:[%s1 + $0xcc] sm:$0xf]
  %v67 = vld [vmem:[%s1 + $0xd0] sm:$0xf]
  %v68 = vld [vmem:[%s1 + $0xd4] sm:$0xf]
  %v69 = vld [vmem:[%s1 + $0xd8] sm:$0xf]
  %v70 = vld [vmem:[%s1 + $0xdc] sm:$0xf]
  %v71 = vld [vmem:[%s1 + $0xe0] sm:$0xf]
  %v72 = vld [vmem:[%s1 + $0xe4] sm:$0xf]
  %v73 = vld [vmem:[%s1 + $0xe8] sm:$0xf]
  %v74 = vld [vmem:[%s1 + $0xec] sm:$0xf]
  %v75 = vld [vmem:[%s1 + $0xf0] sm:$0xf]
  %v76 = vld [vmem:[%s1 + $0xf4] sm:$0xf]
  %v77 = vld [vmem:[%s1 + $0xf8] sm:$0xf]
  %v78 = vld [vmem:[%s1 + $0xfc] sm:$0xf]
  %v79 = vld [vmem:[%s1 + $0x100] sm:$0xf]
  %v80 = vld [vmem:[%s1 + $0x104] sm:$0xf]
  %v81 = vld [vmem:[%s1 + $0x108] sm:$0xf]
  %v82 = vld [vmem:[%s1 + $0x10c] sm:$0xf]
  %v83 = vld [vmem:[%s1 + $0x110] sm:$0xf]
  %v84 = vld [vmem:[%s1 + $0x114] sm:$0xf]
  %v85 = vld [vmem:[%s1 + $0x118] sm:$0xf]
  %v86 = vld [vmem:[%s1 + $0x11c] sm:$0xf]
  %v87 = vld [vmem:[%s1 + $0x120] sm:$0xf]
  %v88 = vld [vmem:[%s1 + $0x124] sm:$0xf]
  %v89 = vld [vmem:[%s1 + $0x128] sm:$0xf]
  %v90 = vld [vmem:[%s1 + $0x12c] sm:$0xf]
  %v91 = vld [vmem:[%s1 + $0x130] sm:$0xf]
  %v92 = vld [vmem:[%s1 + $0x134] sm:$0xf]
  %v93 = vld [vmem:[%s1 + $0x138] sm:$0xf]
  %v94 = vld [vmem:[%s1 + $0x13c] sm:$0xf]
  %v95 = vld [vmem:[%s1 + $0x140] sm:$0xf]
  %v96 = vld [vmem:[%s1 + $0x144] sm:$0xf]
  %v97 = vld [vmem:[%s1 + $0x148] sm:$0xf]
  %v98 = vld [vmem:[%s1 + $0x14c] sm:$0xf]
  %v99 = vld [vmem:[%s1 + $0x150] sm:$0xf]
  %v100 = vld [vmem:[%s1 + $0x154] sm:$0xf]
  %v101 = vld [vmem:[%s1 + $0x158] sm:$0xf]
  %v102 = vld [vmem:[%s1 + $0x15c] sm:$0xf]
  %v103 = vld [vmem:[%s1 + $0x160] sm:$0xf]
  %v104 = vld [vmem:[%s1 + $0x164] sm:$0xf]
  %v105 = vld [vmem:[%s1 + $0x168] sm:$0xf]
  %v106 = vld [vmem:[%s1 + $0x16c] sm:$0xf]
  %v107 = vld [vmem:[%s1 + $0x170] sm:$0xf]
  %v108 = vld [vmem:[%s1 + $0x174] sm:$0xf]
  %v109 = vld [vmem:[%s1 + $0x178] sm:$0xf]
  %v110 = vld [vmem:[%s1 + $0x17c] sm:$0xf]
  %v111 = vld [vmem:[%s1 + $0x180] sm:$0xf]
  %v112 = vld [vmem:[%s1 + $0x184] sm:$0xf]
  %v113 = vld [vmem:[%s1 + $0x188] sm:$0xf]
  %v114 = vld [vmem:[%s1 + $0x18c] sm:$0xf]
  %v115 = vld [vmem:[%s1 + $0x190] sm:$0xf]
  %v116 = vld [vmem:[%s1 + $0x194] sm:$0xf]
  %v117 = vld [vmem:[%s1 + $0x198] sm:$0xf]
  %v118 = vld [vmem:[%s1 + $0x19c] sm:$0xf]
  %v119 = vld [vmem:[%s1 + $0x1a0] sm:$0xf]
  %v120 = vld [vmem:[%s1 + $0x1a4] sm:$0xf]
  %v121 = vld [vmem:[%s1 + $0x1a8] sm:$0xf]
  %v122 = vld [vmem:[%s1 + $0x1ac] sm:$0xf]
  %v123 = vld [vmem:[%s1 + $0x1b0] sm:$0xf]
  %v124 = vld [vmem:[%s1 + $0x1b4] sm:$0xf]
  %v125 = vld [vmem:[%s1 + $0x1b8] sm:$0xf]
  %v126 = vld [vmem:[%s1 + $0x1bc] sm:$0xf]
  %v127 = vld [vmem:[%s1 + $0x1c0] sm:$0xf]
  %v128 = vld [vmem:[%s1 + $0x1c4] sm:$0xf]
  %v129 = vld [vmem:[%s1 + $0x1c8] sm:$0xf]
  %v130 = vld [vmem:[%s1 + $0x1cc] sm:$0xf]
  %v131 = vld [vmem:[%s1 + $0x1d0] sm:$0xf]
  %v132 = vld [vmem:[%s1 + $0x1d4] sm:$0xf]
  %v133 = vld [vmem:[%s1 + $0x1d8] sm:$0xf]
  %v134 = vld [vmem:[%s1 + $0x1dc] sm:$0xf]
  %v135 = vld [vmem:[%s1 + $0x1e0] sm:$0xf]
  %v136 = vld [vmem:[%s1 + $0x1e4] sm:$0xf]
  %v137 = vld [vmem:[%s1 + $0x1e8] sm:$0xf]
  %v138 = vld [vmem:[%s1 + $0x1ec] sm:$0xf]
  %v139 = vld [vmem:[%s1 + $0x1f0] sm:$0xf]
  %v140 = vld [vmem:[%s1 + $0x1f4] sm:$0xf]
  %v141 = vld [vmem:[%s1 + $0x1f8] sm:$0xf]
  %v142 = vld [vmem:[%s1 + $0x1fc] sm:$0xf]
  %v143 = vld [vmem:[%s1 + $0x200] sm:$0xf]
  %v144 = vld [vmem:[%s1 + $0x204] sm:$0xf]
  %v145 = vld [vmem:[%s1 + $0x208] sm:$0xf]
  %v146 = vld [vmem:[%s1 + $0x20c] sm:$0xf]
  %v147 = vld [vmem:[%s1 + $0x210] sm:$0xf]
  %v148 = vld [vmem:[%s1 + $0x214] sm:$0xf]
  %v149 = vld [vmem:[%s1 + $0x218] sm:$0xf]
  %v150 = vld [vmem:[%s1 + $0x21c] sm:$0xf]
  %v151 = vld [vmem:[%s1 + $0x220] sm:$0xf]
  %v152 = vld [vmem:[%s1 + $0x224] sm:$0xf]
  %v153 = vld [vmem:[%s1 + $0x228] sm:$0xf]
  %v154 = vld [vmem:[%s1 + $0x22c] sm:$0xf]
  %v155 = vld [vmem:[%s1 + $0x230] sm:$0xf]
  %v156 = vld [vmem:[%s1 + $0x234] sm:$0xf]
  %v157 = vld [vmem:[%s1 + $0x238] sm:$0xf]
  %v158 = vld [vmem:[%s1 + $0x23c] sm:$0xf]
  %v159 = vld [vmem:[%s0] sm:$0xff]
  %v160 = vld [vmem:[%s0 + $0x8] sm:$0xff]
  %v161 = vld [vmem:[%s0 + $0x10] sm:$0xff]
  %v162 = vld [vmem:[%s0 + $0x18] sm:$0xff]
  %v163 = vld [vmem:[%s0 + $0x20] sm:$0xf]
  %v164 = vld [vmem:[%s0 + $0x24] sm:$0xff]
  %v165 = vld [vmem:[%s0 + $0x2c] sm:$0xff]
  %v166 = vld [vmem:[%s0 + $0x34] sm:$0xff]
  %v167 = vld [vmem:[%s0 + $0x3c] sm:$0xff]
  %v168 = vld [vmem:[%s0 + $0x44] sm:$0xf]
  %v169 = vld [vmem:[%s0 + $0x48] sm:$0xff]
  %v170 = vld [vmem:[%s0 + $0x50] sm:$0xff]
  %v171 = vld [vmem:[%s0 + $0x58] sm:$0xff]
  %v172 = vld [vmem:[%s0 + $0x60] sm:$0xff]
  %v173 = vld [vmem:[%s0 + $0x68] sm:$0xf]
  %v174 = vld [vmem:[%s0 + $0x6c] sm:$0xff]
  %v175 = vld [vmem:[%s0 + $0x74] sm:$0xff]
  %v176 = vld [vmem:[%s0 + $0x7c] sm:$0xff]
  %v177 = vld [vmem:[%s0 + $0x84] sm:$0xff]
  %v178 = vld [vmem:[%s0 + $0x8c] sm:$0xf]
  %v179 = vld [vmem:[%s2] sm:$0xff]
  %v180 = vld [vmem:[%s2 + $0x8] sm:$0xff]
  %v181 = vld [vmem:[%s2 + $0x10] sm:$0xff]
  %v182 = vld [vmem:[%s2 + $0x18] sm:$0xff]
  %184 = vset.pattern.permute.xlu0 0
  %185 = vperm.xlu0 %184, %v179
  %v186 = vpop.permute.xlu0 %185
  %189 = vset.pattern.permute.xlu0 0
  %190 = vperm.xlu0 %189, %v180
  %v191 = vpop.permute.xlu0 %190
  %194 = vset.pattern.permute.xlu0 0
  %195 = vperm.xlu0 %194, %v181
  %v196 = vpop.permute.xlu0 %195
  %199 = vset.pattern.permute.xlu0 0
  %200 = vperm.xlu0 %199, %v182
  %v201 = vpop.permute.xlu0 %200
  %v223 = vunpack.c.l.b16 %v159
  %v224 = vunpack.c.h.b16 %v159
  %v225 = vunpack.c.l.b16 %v160
  %v226 = vunpack.c.h.b16 %v160
  %v227 = vunpack.c.l.b16 %v161
  %v228 = vunpack.c.h.b16 %v161
  %v229 = vunpack.c.l.b16 %v162
  %v230 = vunpack.c.h.b16 %v162
  %v231 = vunpack.c.l.b16 %v163
  %v232 = vunpack.c.l.b16 %v164
  %v233 = vunpack.c.h.b16 %v164
  %v234 = vunpack.c.l.b16 %v165
  %v235 = vunpack.c.h.b16 %v165
  %v236 = vunpack.c.l.b16 %v166
  %v237 = vunpack.c.h.b16 %v166
  %v238 = vunpack.c.l.b16 %v167
  %v239 = vunpack.c.h.b16 %v167
  %v240 = vunpack.c.l.b16 %v168
  %v241 = vunpack.c.l.b16 %v169
  %v242 = vunpack.c.h.b16 %v169
  %v243 = vunpack.c.l.b16 %v170
  %v244 = vunpack.c.h.b16 %v170
  %v245 = vunpack.c.l.b16 %v171
  %v246 = vunpack.c.h.b16 %v171
  %v247 = vunpack.c.l.b16 %v172
  %v248 = vunpack.c.h.b16 %v172
  %v249 = vunpack.c.l.b16 %v173
  %v250 = vunpack.c.l.b16 %v174
  %v251 = vunpack.c.h.b16 %v174
  %v252 = vunpack.c.l.b16 %v175
  %v253 = vunpack.c.h.b16 %v175
  %v254 = vunpack.c.l.b16 %v176
  %v255 = vunpack.c.h.b16 %v176
  %v256 = vunpack.c.l.b16 %v177
  %v257 = vunpack.c.h.b16 %v177
  %v258 = vunpack.c.l.b16 %v178
  %v259 = vpack.c.b16 %v232, %v223
  %v260 = vpack.c.b16 %v233, %v224
  %v261 = vpack.c.b16 %v234, %v225
  %v262 = vpack.c.b16 %v235, %v226
  %v263 = vpack.c.b16 %v236, %v227
  %v264 = vpack.c.b16 %v237, %v228
  %v265 = vpack.c.b16 %v238, %v229
  %v266 = vpack.c.b16 %v239, %v230
  %v267 = vpack.c.b16 %v240, %v231
  %v268 = vpack.c.b16 %v250, %v241
  %v269 = vpack.c.b16 %v251, %v242
  %v270 = vpack.c.b16 %v252, %v243
  %v271 = vpack.c.b16 %v253, %v244
  %v272 = vpack.c.b16 %v254, %v245
  %v273 = vpack.c.b16 %v255, %v246
  %v274 = vpack.c.b16 %v256, %v247
  %v275 = vpack.c.b16 %v257, %v248
  %v276 = vpack.c.b16 %v258, %v249
  %v439 = vunpack.c.l.b16 %v15
  %v440 = vunpack.c.l.b16 %v16
  %v441 = vunpack.c.l.b16 %v17
  %v442 = vunpack.c.l.b16 %v18
  %v443 = vunpack.c.l.b16 %v19
  %v444 = vunpack.c.l.b16 %v20
  %v445 = vunpack.c.l.b16 %v21
  %v446 = vunpack.c.l.b16 %v22
  %v447 = vunpack.c.l.b16 %v23
  %v448 = vunpack.c.l.b16 %v24
  %v449 = vunpack.c.l.b16 %v25
  %v450 = vunpack.c.l.b16 %v26
  %v451 = vunpack.c.l.b16 %v27
  %v452 = vunpack.c.l.b16 %v28
  %v453 = vunpack.c.l.b16 %v29
  %v454 = vunpack.c.l.b16 %v30
  %v455 = vunpack.c.l.b16 %v31
  %v456 = vunpack.c.l.b16 %v32
  %v457 = vunpack.c.l.b16 %v33
  %v458 = vunpack.c.l.b16 %v34
  %v459 = vunpack.c.l.b16 %v35
  %v460 = vunpack.c.l.b16 %v36
  %v461 = vunpack.c.l.b16 %v37
  %v462 = vunpack.c.l.b16 %v38
  %v463 = vunpack.c.l.b16 %v39
  %v464 = vunpack.c.l.b16 %v40
  %v465 = vunpack.c.l.b16 %v41
  %v466 = vunpack.c.l.b16 %v42
  %v467 = vunpack.c.l.b16 %v43
  %v468 = vunpack.c.l.b16 %v44
  %v469 = vunpack.c.l.b16 %v45
  %v470 = vunpack.c.l.b16 %v46
  %v471 = vunpack.c.l.b16 %v47
  %v472 = vunpack.c.l.b16 %v48
  %v473 = vunpack.c.l.b16 %v49
  %v474 = vunpack.c.l.b16 %v50
  %v475 = vunpack.c.l.b16 %v51
  %v476 = vunpack.c.l.b16 %v52
  %v477 = vunpack.c.l.b16 %v53
  %v478 = vunpack.c.l.b16 %v54
  %v479 = vunpack.c.l.b16 %v55
  %v480 = vunpack.c.l.b16 %v56
  %v481 = vunpack.c.l.b16 %v57
  %v482 = vunpack.c.l.b16 %v58
  %v483 = vunpack.c.l.b16 %v59
  %v484 = vunpack.c.l.b16 %v60
  %v485 = vunpack.c.l.b16 %v61
  %v486 = vunpack.c.l.b16 %v62
  %v487 = vunpack.c.l.b16 %v63
  %v488 = vunpack.c.l.b16 %v64
  %v489 = vunpack.c.l.b16 %v65
  %v490 = vunpack.c.l.b16 %v66
  %v491 = vunpack.c.l.b16 %v67
  %v492 = vunpack.c.l.b16 %v68
  %v493 = vunpack.c.l.b16 %v69
  %v494 = vunpack.c.l.b16 %v70
  %v495 = vunpack.c.l.b16 %v71
  %v496 = vunpack.c.l.b16 %v72
  %v497 = vunpack.c.l.b16 %v73
  %v498 = vunpack.c.l.b16 %v74
  %v499 = vunpack.c.l.b16 %v75
  %v500 = vunpack.c.l.b16 %v76
  %v501 = vunpack.c.l.b16 %v77
  %v502 = vunpack.c.l.b16 %v78
  %v503 = vunpack.c.l.b16 %v79
  %v504 = vunpack.c.l.b16 %v80
  %v505 = vunpack.c.l.b16 %v81
  %v506 = vunpack.c.l.b16 %v82
  %v507 = vunpack.c.l.b16 %v83
  %v508 = vunpack.c.l.b16 %v84
  %v509 = vunpack.c.l.b16 %v85
  %v510 = vunpack.c.l.b16 %v86
  %v511 = vunpack.c.l.b16 %v87
  %v512 = vunpack.c.l.b16 %v88
  %v513 = vunpack.c.l.b16 %v89
  %v514 = vunpack.c.l.b16 %v90
  %v515 = vunpack.c.l.b16 %v91
  %v516 = vunpack.c.l.b16 %v92
  %v517 = vunpack.c.l.b16 %v93
  %v518 = vunpack.c.l.b16 %v94
  %v519 = vunpack.c.l.b16 %v95
  %v520 = vunpack.c.l.b16 %v96
  %v521 = vunpack.c.l.b16 %v97
  %v522 = vunpack.c.l.b16 %v98
  %v523 = vunpack.c.l.b16 %v99
  %v524 = vunpack.c.l.b16 %v100
  %v525 = vunpack.c.l.b16 %v101
  %v526 = vunpack.c.l.b16 %v102
  %v527 = vunpack.c.l.b16 %v103
  %v528 = vunpack.c.l.b16 %v104
  %v529 = vunpack.c.l.b16 %v105
  %v530 = vunpack.c.l.b16 %v106
  %v531 = vunpack.c.l.b16 %v107
  %v532 = vunpack.c.l.b16 %v108
  %v533 = vunpack.c.l.b16 %v109
  %v534 = vunpack.c.l.b16 %v110
  %v535 = vunpack.c.l.b16 %v111
  %v536 = vunpack.c.l.b16 %v112
  %v537 = vunpack.c.l.b16 %v113
  %v538 = vunpack.c.l.b16 %v114
  %v539 = vunpack.c.l.b16 %v115
  %v540 = vunpack.c.l.b16 %v116
  %v541 = vunpack.c.l.b16 %v117
  %v542 = vunpack.c.l.b16 %v118
  %v543 = vunpack.c.l.b16 %v119
  %v544 = vunpack.c.l.b16 %v120
  %v545 = vunpack.c.l.b16 %v121
  %v546 = vunpack.c.l.b16 %v122
  %v547 = vunpack.c.l.b16 %v123
  %v548 = vunpack.c.l.b16 %v124
  %v549 = vunpack.c.l.b16 %v125
  %v550 = vunpack.c.l.b16 %v126
  %v551 = vunpack.c.l.b16 %v127
  %v552 = vunpack.c.l.b16 %v128
  %v553 = vunpack.c.l.b16 %v129
  %v554 = vunpack.c.l.b16 %v130
  %v555 = vunpack.c.l.b16 %v131
  %v556 = vunpack.c.l.b16 %v132
  %v557 = vunpack.c.l.b16 %v133
  %v558 = vunpack.c.l.b16 %v134
  %v559 = vunpack.c.l.b16 %v135
  %v560 = vunpack.c.l.b16 %v136
  %v561 = vunpack.c.l.b16 %v137
  %v562 = vunpack.c.l.b16 %v138
  %v563 = vunpack.c.l.b16 %v139
  %v564 = vunpack.c.l.b16 %v140
  %v565 = vunpack.c.l.b16 %v141
  %v566 = vunpack.c.l.b16 %v142
  %v567 = vunpack.c.l.b16 %v143
  %v568 = vunpack.c.l.b16 %v144
  %v569 = vunpack.c.l.b16 %v145
  %v570 = vunpack.c.l.b16 %v146
  %v571 = vunpack.c.l.b16 %v147
  %v572 = vunpack.c.l.b16 %v148
  %v573 = vunpack.c.l.b16 %v149
  %v574 = vunpack.c.l.b16 %v150
  %v575 = vunpack.c.l.b16 %v151
  %v576 = vunpack.c.l.b16 %v152
  %v577 = vunpack.c.l.b16 %v153
  %v578 = vunpack.c.l.b16 %v154
  %v579 = vunpack.c.l.b16 %v155
  %v580 = vunpack.c.l.b16 %v156
  %v581 = vunpack.c.l.b16 %v157
  %v582 = vunpack.c.l.b16 %v158
  %v583 = vpack.c.b16 %v440, %v439
  %v584 = vpack.c.b16 %v442, %v441
  %v585 = vpack.c.b16 %v444, %v443
  %v586 = vpack.c.b16 %v446, %v445
  %v587 = vpack.c.b16 %v448, %v447
  %v588 = vpack.c.b16 %v450, %v449
  %v589 = vpack.c.b16 %v452, %v451
  %v590 = vpack.c.b16 %v454, %v453
  %v591 = vpack.c.b16 %v456, %v455
  %v592 = vpack.c.b16 %v458, %v457
  %v593 = vpack.c.b16 %v460, %v459
  %v594 = vpack.c.b16 %v462, %v461
  %v595 = vpack.c.b16 %v464, %v463
  %v596 = vpack.c.b16 %v466, %v465
  %v597 = vpack.c.b16 %v468, %v467
  %v598 = vpack.c.b16 %v470, %v469
  %v599 = vpack.c.b16 %v472, %v471
  %v600 = vpack.c.b16 %v474, %v473
  %v601 = vpack.c.b16 %v476, %v475
  %v602 = vpack.c.b16 %v478, %v477
  %v603 = vpack.c.b16 %v480, %v479
  %v604 = vpack.c.b16 %v482, %v481
  %v605 = vpack.c.b16 %v484, %v483
  %v606 = vpack.c.b16 %v486, %v485
  %v607 = vpack.c.b16 %v488, %v487
  %v608 = vpack.c.b16 %v490, %v489
  %v609 = vpack.c.b16 %v492, %v491
  %v610 = vpack.c.b16 %v494, %v493
  %v611 = vpack.c.b16 %v496, %v495
  %v612 = vpack.c.b16 %v498, %v497
  %v613 = vpack.c.b16 %v500, %v499
  %v614 = vpack.c.b16 %v502, %v501
  %v615 = vpack.c.b16 %v504, %v503
  %v616 = vpack.c.b16 %v506, %v505
  %v617 = vpack.c.b16 %v508, %v507
  %v618 = vpack.c.b16 %v510, %v509
  %v619 = vpack.c.b16 %v512, %v511
  %v620 = vpack.c.b16 %v514, %v513
  %v621 = vpack.c.b16 %v516, %v515
  %v622 = vpack.c.b16 %v518, %v517
  %v623 = vpack.c.b16 %v520, %v519
  %v624 = vpack.c.b16 %v522, %v521
  %v625 = vpack.c.b16 %v524, %v523
  %v626 = vpack.c.b16 %v526, %v525
  %v627 = vpack.c.b16 %v528, %v527
  %v628 = vpack.c.b16 %v530, %v529
  %v629 = vpack.c.b16 %v532, %v531
  %v630 = vpack.c.b16 %v534, %v533
  %v631 = vpack.c.b16 %v536, %v535
  %v632 = vpack.c.b16 %v538, %v537
  %v633 = vpack.c.b16 %v540, %v539
  %v634 = vpack.c.b16 %v542, %v541
  %v635 = vpack.c.b16 %v544, %v543
  %v636 = vpack.c.b16 %v546, %v545
  %v637 = vpack.c.b16 %v548, %v547
  %v638 = vpack.c.b16 %v550, %v549
  %v639 = vpack.c.b16 %v552, %v551
  %v640 = vpack.c.b16 %v554, %v553
  %v641 = vpack.c.b16 %v556, %v555
  %v642 = vpack.c.b16 %v558, %v557
  %v643 = vpack.c.b16 %v560, %v559
  %v644 = vpack.c.b16 %v562, %v561
  %v645 = vpack.c.b16 %v564, %v563
  %v646 = vpack.c.b16 %v566, %v565
  %v647 = vpack.c.b16 %v568, %v567
  %v648 = vpack.c.b16 %v570, %v569
  %v649 = vpack.c.b16 %v572, %v571
  %v650 = vpack.c.b16 %v574, %v573
  %v651 = vpack.c.b16 %v576, %v575
  %v652 = vpack.c.b16 %v578, %v577
  %v653 = vpack.c.b16 %v580, %v579
  %v654 = vpack.c.b16 %v582, %v581
  %727 = vmatprep.subr.bf16.mxu0 0
  %728 = vmatpush1.bf16.msra.mxu0 %v583
  %729 = vmatprep.subr.bf16.mxu0 0
  %730 = vmatpush1.bf16.msra.mxu0 %v584
  %731 = vmatprep.subr.bf16.mxu0 0
  %732 = vmatpush1.bf16.msra.mxu0 %v585
  %733 = vmatprep.subr.bf16.mxu0 0
  %734 = vmatpush1.bf16.msra.mxu0 %v586
  %735 = vmatprep.subr.bf16.mxu0 0
  %736 = vmatpush1.bf16.msra.mxu0 %v587
  %737 = vmatprep.subr.bf16.mxu0 0
  %738 = vmatpush1.bf16.msra.mxu0 %v588
  %739 = vmatprep.subr.bf16.mxu0 0
  %740 = vmatpush1.bf16.msra.mxu0 %v589
  %741 = vmatprep.subr.bf16.mxu0 0
  %742 = vmatpush1.bf16.msra.mxu0 %v590
  %743 = vmatprep.subr.bf16.mxu0 0
  %744 = vmatpush1.bf16.msra.mxu0 %v591
  %745 = vmatprep.subr.bf16.mxu0 0
  %746 = vmatpush1.bf16.msra.mxu0 %v592
  %747 = vmatprep.subr.bf16.mxu0 0
  %748 = vmatpush1.bf16.msra.mxu0 %v593
  %749 = vmatprep.subr.bf16.mxu0 0
  %750 = vmatpush1.bf16.msra.mxu0 %v594
  %751 = vmatprep.subr.bf16.mxu0 0
  %752 = vmatpush1.bf16.msra.mxu0 %v595
  %753 = vmatprep.subr.bf16.mxu0 0
  %754 = vmatpush1.bf16.msra.mxu0 %v596
  %755 = vmatprep.subr.bf16.mxu0 0
  %756 = vmatpush1.bf16.msra.mxu0 %v597
  %757 = vmatprep.subr.bf16.mxu0 0
  %758 = vmatpush1.bf16.msra.mxu0 %v598
  %759 = vmatprep.mubr.bf16.mxu0 %v260
  %760 = vmatmul.mubr.bf16.gmra.mrb[0].mxu0 %v259
  %v761 = vpop.f32.mrb[0].mxu0
  %v762 = vadd.f32 %v186, %v761
  %v763 = vpop.f32.mrb[0].mxu0
  %v764 = vpop.f32.mrb[0].mxu0
  %v765 = vadd.f32 %v191, %v764
  %v766 = vpop.f32.mrb[0].mxu0
  %767 = vmatprep.mubr.bf16.mxu0 %v269
  %768 = vmatmul.mubr.bf16.gmra.mrb[0].mxu0 %v268
  %v769 = vpop.f32.mrb[0].mxu0
  %v770 = vadd.f32 %v196, %v769
  %v771 = vpop.f32.mrb[0].mxu0
  %v772 = vpop.f32.mrb[0].mxu0
  %v773 = vadd.f32 %v201, %v772
  %v774 = vpop.f32.mrb[0].mxu0
  %775 = vdwg.mxu0
  %776 = vmatprep.subr.bf16.mxu0 0
  %777 = vmatpush1.bf16.msra.mxu0 %v599
  %778 = vmatprep.subr.bf16.mxu0 0
  %779 = vmatpush1.bf16.msra.mxu0 %v600
  %780 = vmatprep.subr.bf16.mxu0 0
  %781 = vmatpush1.bf16.msra.mxu0 %v601
  %782 = vmatprep.subr.bf16.mxu0 0
  %783 = vmatpush1.bf16.msra.mxu0 %v602
  %784 = vmatprep.subr.bf16.mxu0 0
  %785 = vmatpush1.bf16.msra.mxu0 %v603
  %786 = vmatprep.subr.bf16.mxu0 0
  %787 = vmatpush1.bf16.msra.mxu0 %v604
  %788 = vmatprep.subr.bf16.mxu0 0
  %789 = vmatpush1.bf16.msra.mxu0 %v605
  %790 = vmatprep.subr.bf16.mxu0 0
  %791 = vmatpush1.bf16.msra.mxu0 %v606
  %792 = vmatprep.subr.bf16.mxu0 0
  %793 = vmatpush1.bf16.msra.mxu0 %v607
  %794 = vmatprep.subr.bf16.mxu0 0
  %795 = vmatpush1.bf16.msra.mxu0 %v608
  %796 = vmatprep.subr.bf16.mxu0 0
  %797 = vmatpush1.bf16.msra.mxu0 %v609
  %798 = vmatprep.subr.bf16.mxu0 0
  %799 = vmatpush1.bf16.msra.mxu0 %v610
  %800 = vmatprep.subr.bf16.mxu0 0
  %801 = vmatpush1.bf16.msra.mxu0 %v611
  %802 = vmatprep.subr.bf16.mxu0 0
  %803 = vmatpush1.bf16.msra.mxu0 %v612
  %804 = vmatprep.subr.bf16.mxu0 0
  %805 = vmatpush1.bf16.msra.mxu0 %v613
  %806 = vmatprep.subr.bf16.mxu0 0
  %807 = vmatpush1.bf16.msra.mxu0 %v614
  %808 = vmatprep.mubr.bf16.mxu0 %v262
  %809 = vmatmul.mubr.bf16.gmra.mrb[0].mxu0 %v261
  %v810 = vpop.f32.mrb[0].mxu0
  %v811 = vadd.f32 %v762, %v810
  %v812 = vpop.f32.mrb[0].mxu0
  %v813 = vpop.f32.mrb[0].mxu0
  %v814 = vadd.f32 %v765, %v813
  %v815 = vpop.f32.mrb[0].mxu0
  %816 = vmatprep.mubr.bf16.mxu0 %v271
  %817 = vmatmul.mubr.bf16.gmra.mrb[0].mxu0 %v270
  %v818 = vpop.f32.mrb[0].mxu0
  %v819 = vadd.f32 %v770, %v818
  %v820 = vpop.f32.mrb[0].mxu0
  %v821 = vpop.f32.mrb[0].mxu0
  %v822 = vadd.f32 %v773, %v821
  %v823 = vpop.f32.mrb[0].mxu0
  %824 = vdwg.mxu0
  %825 = vmatprep.subr.bf16.mxu0 0
  %826 = vmatpush1.bf16.msra.mxu0 %v615
  %827 = vmatprep.subr.bf16.mxu0 0
  %828 = vmatpush1.bf16.msra.mxu0 %v616
  %829 = vmatprep.subr.bf16.mxu0 0
  %830 = vmatpush1.bf16.msra.mxu0 %v617
  %831 = vmatprep.subr.bf16.mxu0 0
  %832 = vmatpush1.bf16.msra.mxu0 %v618
  %833 = vmatprep.subr.bf16.mxu0 0
  %834 = vmatpush1.bf16.msra.mxu0 %v619
  %835 = vmatprep.subr.bf16.mxu0 0
  %836 = vmatpush1.bf16.msra.mxu0 %v620
  %837 = vmatprep.subr.bf16.mxu0 0
  %838 = vmatpush1.bf16.msra.mxu0 %v621
  %839 = vmatprep.subr.bf16.mxu0 0
  %840 = vmatpush1.bf16.msra.mxu0 %v622
  %841 = vmatprep.subr.bf16.mxu0 0
  %842 = vmatpush1.bf16.msra.mxu0 %v623
  %843 = vmatprep.subr.bf16.mxu0 0
  %844 = vmatpush1.bf16.msra.mxu0 %v624
  %845 = vmatprep.subr.bf16.mxu0 0
  %846 = vmatpush1.bf16.msra.mxu0 %v625
  %847 = vmatprep.subr.bf16.mxu0 0
  %848 = vmatpush1.bf16.msra.mxu0 %v626
  %849 = vmatprep.subr.bf16.mxu0 0
  %850 = vmatpush1.bf16.msra.mxu0 %v627
  %851 = vmatprep.subr.bf16.mxu0 0
  %852 = vmatpush1.bf16.msra.mxu0 %v628
  %853 = vmatprep.subr.bf16.mxu0 0
  %854 = vmatpush1.bf16.msra.mxu0 %v629
  %855 = vmatprep.subr.bf16.mxu0 0
  %856 = vmatpush1.bf16.msra.mxu0 %v630
  %857 = vmatprep.mubr.bf16.mxu0 %v264
  %858 = vmatmul.mubr.bf16.gmra.mrb[0].mxu0 %v263
  %v859 = vpop.f32.mrb[0].mxu0
  %v860 = vadd.f32 %v811, %v859
  %v861 = vpop.f32.mrb[0].mxu0
  %v862 = vpop.f32.mrb[0].mxu0
  %v863 = vadd.f32 %v814, %v862
  %v864 = vpop.f32.mrb[0].mxu0
  %865 = vmatprep.mubr.bf16.mxu0 %v273
  %866 = vmatmul.mubr.bf16.gmra.mrb[0].mxu0 %v272
  %v867 = vpop.f32.mrb[0].mxu0
  %v868 = vadd.f32 %v819, %v867
  %v869 = vpop.f32.mrb[0].mxu0
  %v870 = vpop.f32.mrb[0].mxu0
  %v871 = vadd.f32 %v822, %v870
  %v872 = vpop.f32.mrb[0].mxu0
  %873 = vdwg.mxu0
  %874 = vmatprep.subr.bf16.mxu0 0
  %875 = vmatpush1.bf16.msra.mxu0 %v631
  %876 = vmatprep.subr.bf16.mxu0 0
  %877 = vmatpush1.bf16.msra.mxu0 %v632
  %878 = vmatprep.subr.bf16.mxu0 0
  %879 = vmatpush1.bf16.msra.mxu0 %v633
  %880 = vmatprep.subr.bf16.mxu0 0
  %881 = vmatpush1.bf16.msra.mxu0 %v634
  %882 = vmatprep.subr.bf16.mxu0 0
  %883 = vmatpush1.bf16.msra.mxu0 %v635
  %884 = vmatprep.subr.bf16.mxu0 0
  %885 = vmatpush1.bf16.msra.mxu0 %v636
  %886 = vmatprep.subr.bf16.mxu0 0
  %887 = vmatpush1.bf16.msra.mxu0 %v637
  %888 = vmatprep.subr.bf16.mxu0 0
  %889 = vmatpush1.bf16.msra.mxu0 %v638
  %890 = vmatprep.subr.bf16.mxu0 0
  %891 = vmatpush1.bf16.msra.mxu0 %v639
  %892 = vmatprep.subr.bf16.mxu0 0
  %893 = vmatpush1.bf16.msra.mxu0 %v640
  %894 = vmatprep.subr.bf16.mxu0 0
  %895 = vmatpush1.bf16.msra.mxu0 %v641
  %896 = vmatprep.subr.bf16.mxu0 0
  %897 = vmatpush1.bf16.msra.mxu0 %v642
  %898 = vmatprep.subr.bf16.mxu0 0
  %899 = vmatpush1.bf16.msra.mxu0 %v643
  %900 = vmatprep.subr.bf16.mxu0 0
  %901 = vmatpush1.bf16.msra.mxu0 %v644
  %902 = vmatprep.subr.bf16.mxu0 0
  %903 = vmatpush1.bf16.msra.mxu0 %v645
  %904 = vmatprep.subr.bf16.mxu0 0
  %905 = vmatpush1.bf16.msra.mxu0 %v646
  %906 = vmatprep.mubr.bf16.mxu0 %v266
  %907 = vmatmul.mubr.bf16.gmra.mrb[0].mxu0 %v265
  %v908 = vpop.f32.mrb[0].mxu0
  %v909 = vadd.f32 %v860, %v908
  %v910 = vpop.f32.mrb[0].mxu0
  %v911 = vpop.f32.mrb[0].mxu0
  %v912 = vadd.f32 %v863, %v911
  %v913 = vpop.f32.mrb[0].mxu0
  %914 = vmatprep.mubr.bf16.mxu0 %v275
  %915 = vmatmul.mubr.bf16.gmra.mrb[0].mxu0 %v274
  %v916 = vpop.f32.mrb[0].mxu0
  %v917 = vadd.f32 %v868, %v916
  %v918 = vpop.f32.mrb[0].mxu0
  %v919 = vpop.f32.mrb[0].mxu0
  %v920 = vadd.f32 %v871, %v919
  %v921 = vpop.f32.mrb[0].mxu0
  %922 = vdwg.mxu0
  %923 = vmatprep.subr.bf16.mxu0 0
  %924 = vmatpush1.bf16.msra.mxu0 %v647
  %925 = vmatprep.subr.bf16.mxu0 0
  %926 = vmatpush1.bf16.msra.mxu0 %v648
  %927 = vmatprep.subr.bf16.mxu0 0
  %928 = vmatpush1.bf16.msra.mxu0 %v649
  %929 = vmatprep.subr.bf16.mxu0 0
  %930 = vmatpush1.bf16.msra.mxu0 %v650
  %931 = vmatprep.subr.bf16.mxu0 0
  %932 = vmatpush1.bf16.msra.mxu0 %v651
  %933 = vmatprep.subr.bf16.mxu0 0
  %934 = vmatpush1.bf16.msra.mxu0 %v652
  %935 = vmatprep.subr.bf16.mxu0 0
  %936 = vmatpush1.bf16.msra.mxu0 %v653
  %937 = vmatprep.subr.bf16.mxu0 0
  %938 = vmatpush1.bf16.msra.mxu0 %v654
  %939 = vmatprep.subr.bf16.mxu0 0
  %940 = vmatpush1.bf16.msra.mxu0 0
  %941 = vmatprep.subr.bf16.mxu0 0
  %942 = vmatpush1.bf16.msra.mxu0 0
  %943 = vmatprep.subr.bf16.mxu0 0
  %944 = vmatpush1.bf16.msra.mxu0 0
  %945 = vmatprep.subr.bf16.mxu0 0
  %946 = vmatpush1.bf16.msra.mxu0 0
  %947 = vmatprep.subr.bf16.mxu0 0
  %948 = vmatpush1.bf16.msra.mxu0 0
  %949 = vmatprep.subr.bf16.mxu0 0
  %950 = vmatpush1.bf16.msra.mxu0 0
  %951 = vmatprep.subr.bf16.mxu0 0
  %952 = vmatpush1.bf16.msra.mxu0 0
  %953 = vmatprep.subr.bf16.mxu0 0
  %954 = vmatpush1.bf16.msra.mxu0 0
  %955 = vmatprep.mubr.bf16.mxu0 0
  %956 = vmatmul.mubr.bf16.gmra.mrb[0].mxu0 %v267
  %v957 = vpop.f32.mrb[0].mxu0
  %v958 = vadd.f32 %v909, %v957
  %v959 = vpop.f32.mrb[0].mxu0
  %v960 = vpop.f32.mrb[0].mxu0
  %v961 = vadd.f32 %v912, %v960
  %v962 = vpop.f32.mrb[0].mxu0
  %963 = vmatprep.mubr.bf16.mxu0 0
  %964 = vmatmul.mubr.bf16.gmra.mrb[0].mxu0 %v276
  %v965 = vpop.f32.mrb[0].mxu0
  %v966 = vadd.f32 %v917, %v965
  %v967 = vpop.f32.mrb[0].mxu0
  %v968 = vpop.f32.mrb[0].mxu0
  %v969 = vadd.f32 %v920, %v968
  %v970 = vpop.f32.mrb[0].mxu0
  %971 = vdwg.mxu0
  %972 = vst [vmem:[%s3] sm:$0xff] %v958
  %973 = vst [vmem:[%s3 + $0x8] sm:$0xff] %v961
  %974 = vst [vmem:[%s3 + $0x10] sm:$0xff] %v966
  %975 = vst [vmem:[%s3 + $0x18] sm:$0xff] %v969
  // Predicated region
  $region14: #{unet3d_forward.15} parent=0 // pred_check
    _
  $region15: #{unet3d_forward.15} parent=0 // pred_check_branch
    %977 = sbr.rel (0) target = $region17
  $region16: #{unet3d_forward.15} parent=0 // pred_region
    _
  $region17: #{unet3d_forward.15} parent=0 // pred_fallthru
    _
  // Predicated region
  $region18: #{unet3d_forward.15} parent=0 // pred_check
    _
  $region19: #{unet3d_forward.15} parent=0 // pred_check_branch
    %979 = sbr.rel (0) target = $region21
  $region20: #{unet3d_forward.15} parent=0 // pred_region
    _
  $region21: #{unet3d_forward.15} parent=0 // pred_fallthru
    _

// kernel: unet3d_forward.16
$region0: #{unet3d_forward.16}
  #allocation0 [shape = 'u32[]', space=smem, size = 0x4, offset = 0x4, fixed_abs, tag = 'smem constant byte address 0x4 - core index']
  #allocation1 [shape = 'u32[144,128]{1,0:T(1,128)}', space=vmem, size = 0x12000, scoped, tag = 'internal scratch']
  %s0 = inlined_call_operand.vmem [shape: bf16[16,2304], index: 0, kind: input, shape index: {}]
  %s1 = inlined_call_operand.vmem [shape: bf16[2304,128], index: 1, kind: input, shape index: {}]
  %s2 = inlined_call_operand.vmem [shape: f32[16,1], index: 2, kind: input, shape index: {}]
  %s3 = inlined_call_operand.vmem [shape: f32[16,128], index: 3, kind: output, shape index: {}]
  %s4 = sld [smem:[#allocation0]]
  $region22: #{unet3d_forward.16} parent=0
    _
  %s6 = ssub.s32 1, %s4
  %s7 = scalar_select 0, %s6, %s4
  // Predicated region
  $region2: #{unet3d_forward.16} parent=0 // pred_check
    _
  $region3: #{unet3d_forward.16} parent=0 // pred_check_branch
    %9 = sbr.rel (0) target = $region5
  $region4: #{unet3d_forward.16} parent=0 // pred_region
    _
  $region5: #{unet3d_forward.16} parent=0 // pred_fallthru
    _
  // Predicated region
  $region6: #{unet3d_forward.16} parent=0 // pred_check
    _
  $region7: #{unet3d_forward.16} parent=0 // pred_check_branch
    %11 = sbr.rel (0) target = $region9
  $region8: #{unet3d_forward.16} parent=0 // pred_region
    _
  $region9: #{unet3d_forward.16} parent=0 // pred_fallthru
    _
  // Predicated region
  $region10: #{unet3d_forward.16} parent=0 // pred_check
    _
  $region11: #{unet3d_forward.16} parent=0 // pred_check_branch
    %13 = sbr.rel (0) target = $region13
  $region12: #{unet3d_forward.16} parent=0 // pred_region
    _
  $region13: #{unet3d_forward.16} parent=0 // pred_fallthru
    _
  %v15 = vld [vmem:[%s1] sm:$0xf]
  %v16 = vld [vmem:[%s1 + $0x4] sm:$0xf]
  %v17 = vld [vmem:[%s1 + $0x8] sm:$0xf]
  %v18 = vld [vmem:[%s1 + $0xc] sm:$0xf]
  %v19 = vld [vmem:[%s1 + $0x10] sm:$0xf]
  %v20 = vld [vmem:[%s1 + $0x14] sm:$0xf]
  %v21 = vld [vmem:[%s1 + $0x18] sm:$0xf]
  %v22 = vld [vmem:[%s1 + $0x1c] sm:$0xf]
  %v23 = vld [vmem:[%s1 + $0x20] sm:$0xf]
  %v24 = vld [vmem:[%s1 + $0x24] sm:$0xf]
  %v25 = vld [vmem:[%s1 + $0x28] sm:$0xf]
  %v26 = vld [vmem:[%s1 + $0x2c] sm:$0xf]
  %v27 = vld [vmem:[%s1 + $0x30] sm:$0xf]
  %v28 = vld [vmem:[%s1 + $0x34] sm:$0xf]
  %v29 = vld [vmem:[%s1 + $0x38] sm:$0xf]
  %v30 = vld [vmem:[%s1 + $0x3c] sm:$0xf]
  %v31 = vld [vmem:[%s1 + $0x40] sm:$0xf]
  %v32 = vld [vmem:[%s1 + $0x44] sm:$0xf]
  %v33 = vld [vmem:[%s1 + $0x48] sm:$0xf]
  %v34 = vld [vmem:[%s1 + $0x4c] sm:$0xf]
  %v35 = vld [vmem:[%s1 + $0x50] sm:$0xf]
  %v36 = vld [vmem:[%s1 + $0x54] sm:$0xf]
  %v37 = vld [vmem:[%s1 + $0x58] sm:$0xf]
  %v38 = vld [vmem:[%s1 + $0x5c] sm:$0xf]
  %v39 = vld [vmem:[%s1 + $0x60] sm:$0xf]
  %v40 = vld [vmem:[%s1 + $0x64] sm:$0xf]
  %v41 = vld [vmem:[%s1 + $0x68] sm:$0xf]
  %v42 = vld [vmem:[%s1 + $0x6c] sm:$0xf]
  %v43 = vld [vmem:[%s1 + $0x70] sm:$0xf]
  %v44 = vld [vmem:[%s1 + $0x74] sm:$0xf]
  %v45 = vld [vmem:[%s1 + $0x78] sm:$0xf]
  %v46 = vld [vmem:[%s1 + $0x7c] sm:$0xf]
  %v47 = vld [vmem:[%s1 + $0x80] sm:$0xf]
  %v48 = vld [vmem:[%s1 + $0x84] sm:$0xf]
  %v49 = vld [vmem:[%s1 + $0x88] sm:$0xf]
  %v50 = vld [vmem:[%s1 + $0x8c] sm:$0xf]
  %v51 = vld [vmem:[%s1 + $0x90] sm:$0xf]
  %v52 = vld [vmem:[%s1 + $0x94] sm:$0xf]
  %v53 = vld [vmem:[%s1 + $0x98] sm:$0xf]
  %v54 = vld [vmem:[%s1 + $0x9c] sm:$0xf]
  %v55 = vld [vmem:[%s1 + $0xa0] sm:$0xf]
  %v56 = vld [vmem:[%s1 + $0xa4] sm:$0xf]
  %v57 = vld [vmem:[%s1 + $0xa8] sm:$0xf]
  %v58 = vld [vmem:[%s1 + $0xac] sm:$0xf]
  %v59 = vld [vmem:[%s1 + $0xb0] sm:$0xf]
  %v60 = vld [vmem:[%s1 + $0xb4] sm:$0xf]
  %v61 = vld [vmem:[%s1 + $0xb8] sm:$0xf]
  %v62 = vld [vmem:[%s1 + $0xbc] sm:$0xf]
  %v63 = vld [vmem:[%s1 + $0xc0] sm:$0xf]
  %v64 = vld [vmem:[%s1 + $0xc4] sm:$0xf]
  %v65 = vld [vmem:[%s1 + $0xc8] sm:$0xf]
  %v66 = vld [vmem:[%s1 + $0xcc] sm:$0xf]
  %v67 = vld [vmem:[%s1 + $0xd0] sm:$0xf]
  %v68 = vld [vmem:[%s1 + $0xd4] sm:$0xf]
  %v69 = vld [vmem:[%s1 + $0xd8] sm:$0xf]
  %v70 = vld [vmem:[%s1 + $0xdc] sm:$0xf]
  %v71 = vld [vmem:[%s1 + $0xe0] sm:$0xf]
  %v72 = vld [vmem:[%s1 + $0xe4] sm:$0xf]
  %v73 = vld [vmem:[%s1 + $0xe8] sm:$0xf]
  %v74 = vld [vmem:[%s1 + $0xec] sm:$0xf]
  %v75 = vld [vmem:[%s1 + $0xf0] sm:$0xf]
  %v76 = vld [vmem:[%s1 + $0xf4] sm:$0xf]
  %v77 = vld [vmem:[%s1 + $0xf8] sm:$0xf]
  %v78 = vld [vmem:[%s1 + $0xfc] sm:$0xf]
  %v79 = vld [vmem:[%s1 + $0x100] sm:$0xf]
  %v80 = vld [vmem:[%s1 + $0x104] sm:$0xf]
  %v81 = vld [vmem:[%s1 + $0x108] sm:$0xf]
  %v82 = vld [vmem:[%s1 + $0x10c] sm:$0xf]
  %v83 = vld [vmem:[%s1 + $0x110] sm:$0xf]
  %v84 = vld [vmem:[%s1 + $0x114] sm:$0xf]
  %v85 = vld [vmem:[%s1 + $0x118] sm:$0xf]
  %v86 = vld [vmem:[%s1 + $0x11c] sm:$0xf]
  %v87 = vld [vmem:[%s1 + $0x120] sm:$0xf]
  %v88 = vld [vmem:[%s1 + $0x124] sm:$0xf]
  %v89 = vld [vmem:[%s1 + $0x128] sm:$0xf]
  %v90 = vld [vmem:[%s1 + $0x12c] sm:$0xf]
  %v91 = vld [vmem:[%s1 + $0x130] sm:$0xf]
  %v92 = vld [vmem:[%s1 + $0x134] sm:$0xf]
  %v93 = vld [vmem:[%s1 + $0x138] sm:$0xf]
  %v94 = vld [vmem:[%s1 + $0x13c] sm:$0xf]
  %v95 = vld [vmem:[%s1 + $0x140] sm:$0xf]
  %v96 = vld [vmem:[%s1 + $0x144] sm:$0xf]
  %v97 = vld [vmem:[%s1 + $0x148] sm:$0xf]
  %v98 = vld [vmem:[%s1 + $0x14c] sm:$0xf]
  %v99 = vld [vmem:[%s1 + $0x150] sm:$0xf]
  %v100 = vld [vmem:[%s1 + $0x154] sm:$0xf]
  %v101 = vld [vmem:[%s1 + $0x158] sm:$0xf]
  %v102 = vld [vmem:[%s1 + $0x15c] sm:$0xf]
  %v103 = vld [vmem:[%s1 + $0x160] sm:$0xf]
  %v104 = vld [vmem:[%s1 + $0x164] sm:$0xf]
  %v105 = vld [vmem:[%s1 + $0x168] sm:$0xf]
  %v106 = vld [vmem:[%s1 + $0x16c] sm:$0xf]
  %v107 = vld [vmem:[%s1 + $0x170] sm:$0xf]
  %v108 = vld [vmem:[%s1 + $0x174] sm:$0xf]
  %v109 = vld [vmem:[%s1 + $0x178] sm:$0xf]
  %v110 = vld [vmem:[%s1 + $0x17c] sm:$0xf]
  %v111 = vld [vmem:[%s1 + $0x180] sm:$0xf]
  %v112 = vld [vmem:[%s1 + $0x184] sm:$0xf]
  %v113 = vld [vmem:[%s1 + $0x188] sm:$0xf]
  %v114 = vld [vmem:[%s1 + $0x18c] sm:$0xf]
  %v115 = vld [vmem:[%s1 + $0x190] sm:$0xf]
  %v116 = vld [vmem:[%s1 + $0x194] sm:$0xf]
  %v117 = vld [vmem:[%s1 + $0x198] sm:$0xf]
  %v118 = vld [vmem:[%s1 + $0x19c] sm:$0xf]
  %v119 = vld [vmem:[%s1 + $0x1a0] sm:$0xf]
  %v120 = vld [vmem:[%s1 + $0x1a4] sm:$0xf]
  %v121 = vld [vmem:[%s1 + $0x1a8] sm:$0xf]
  %v122 = vld [vmem:[%s1 + $0x1ac] sm:$0xf]
  %v123 = vld [vmem:[%s1 + $0x1b0] sm:$0xf]
  %v124 = vld [vmem:[%s1 + $0x1b4] sm:$0xf]
  %v125 = vld [vmem:[%s1 + $0x1b8] sm:$0xf]
  %v126 = vld [vmem:[%s1 + $0x1bc] sm:$0xf]
  %v127 = vld [vmem:[%s1 + $0x1c0] sm:$0xf]
  %v128 = vld [vmem:[%s1 + $0x1c4] sm:$0xf]
  %v129 = vld [vmem:[%s1 + $0x1c8] sm:$0xf]
  %v130 = vld [vmem:[%s1 + $0x1cc] sm:$0xf]
  %v131 = vld [vmem:[%s1 + $0x1d0] sm:$0xf]
  %v132 = vld [vmem:[%s1 + $0x1d4] sm:$0xf]
  %v133 = vld [vmem:[%s1 + $0x1d8] sm:$0xf]
  %v134 = vld [vmem:[%s1 + $0x1dc] sm:$0xf]
  %v135 = vld [vmem:[%s1 + $0x1e0] sm:$0xf]
  %v136 = vld [vmem:[%s1 + $0x1e4] sm:$0xf]
  %v137 = vld [vmem:[%s1 + $0x1e8] sm:$0xf]
  %v138 = vld [vmem:[%s1 + $0x1ec] sm:$0xf]
  %v139 = vld [vmem:[%s1 + $0x1f0] sm:$0xf]
  %v140 = vld [vmem:[%s1 + $0x1f4] sm:$0xf]
  %v141 = vld [vmem:[%s1 + $0x1f8] sm:$0xf]
  %v142 = vld [vmem:[%s1 + $0x1fc] sm:$0xf]
  %v143 = vld [vmem:[%s1 + $0x200] sm:$0xf]
  %v144 = vld [vmem:[%s1 + $0x204] sm:$0xf]
  %v145 = vld [vmem:[%s1 + $0x208] sm:$0xf]
  %v146 = vld [vmem:[%s1 + $0x20c] sm:$0xf]
  %v147 = vld [vmem:[%s1 + $0x210] sm:$0xf]
  %v148 = vld [vmem:[%s1 + $0x214] sm:$0xf]
  %v149 = vld [vmem:[%s1 + $0x218] sm:$0xf]
  %v150 = vld [vmem:[%s1 + $0x21c] sm:$0xf]
  %v151 = vld [vmem:[%s1 + $0x220] sm:$0xf]
  %v152 = vld [vmem:[%s1 + $0x224] sm:$0xf]
  %v153 = vld [vmem:[%s1 + $0x228] sm:$0xf]
  %v154 = vld [vmem:[%s1 + $0x22c] sm:$0xf]
  %v155 = vld [vmem:[%s1 + $0x230] sm:$0xf]
  %v156 = vld [vmem:[%s1 + $0x234] sm:$0xf]
  %v157 = vld [vmem:[%s1 + $0x238] sm:$0xf]
  %v158 = vld [vmem:[%s1 + $0x23c] sm:$0xf]
  %v159 = vld [vmem:[%s1 + $0x240] sm:$0xf]
  %v160 = vld [vmem:[%s1 + $0x244] sm:$0xf]
  %v161 = vld [vmem:[%s1 + $0x248] sm:$0xf]
  %v162 = vld [vmem:[%s1 + $0x24c] sm:$0xf]
  %v163 = vld [vmem:[%s1 + $0x250] sm:$0xf]
  %v164 = vld [vmem:[%s1 + $0x254] sm:$0xf]
  %v165 = vld [vmem:[%s1 + $0x258] sm:$0xf]
  %v166 = vld [vmem:[%s1 + $0x25c] sm:$0xf]
  %v167 = vld [vmem:[%s1 + $0x260] sm:$0xf]
  %v168 = vld [vmem:[%s1 + $0x264] sm:$0xf]
  %v169 = vld [vmem:[%s1 + $0x268] sm:$0xf]
  %v170 = vld [vmem:[%s1 + $0x26c] sm:$0xf]
  %v171 = vld [vmem:[%s1 + $0x270] sm:$0xf]
  %v172 = vld [vmem:[%s1 + $0x274] sm:$0xf]
  %v173 = vld [vmem:[%s1 + $0x278] sm:$0xf]
  %v174 = vld [vmem:[%s1 + $0x27c] sm:$0xf]
  %v175 = vld [vmem:[%s1 + $0x280] sm:$0xf]
  %v176 = vld [vmem:[%s1 + $0x284] sm:$0xf]
  %v177 = vld [vmem:[%s1 + $0x288] sm:$0xf]
  %v178 = vld [vmem:[%s1 + $0x28c] sm:$0xf]
  %v179 = vld [vmem:[%s1 + $0x290] sm:$0xf]
  %v180 = vld [vmem:[%s1 + $0x294] sm:$0xf]
  %v181 = vld [vmem:[%s1 + $0x298] sm:$0xf]
  %v182 = vld [vmem:[%s1 + $0x29c] sm:$0xf]
  %v183 = vld [vmem:[%s1 + $0x2a0] sm:$0xf]
  %v184 = vld [vmem:[%s1 + $0x2a4] sm:$0xf]
  %v185 = vld [vmem:[%s1 + $0x2a8] sm:$0xf]
  %v186 = vld [vmem:[%s1 + $0x2ac] sm:$0xf]
  %v187 = vld [vmem:[%s1 + $0x2b0] sm:$0xf]
  %v188 = vld [vmem:[%s1 + $0x2b4] sm:$0xf]
  %v189 = vld [vmem:[%s1 + $0x2b8] sm:$0xf]
  %v190 = vld [vmem:[%s1 + $0x2bc] sm:$0xf]
  %v191 = vld [vmem:[%s1 + $0x2c0] sm:$0xf]
  %v192 = vld [vmem:[%s1 + $0x2c4] sm:$0xf]
  %v193 = vld [vmem:[%s1 + $0x2c8] sm:$0xf]
  %v194 = vld [vmem:[%s1 + $0x2cc] sm:$0xf]
  %v195 = vld [vmem:[%s1 + $0x2d0] sm:$0xf]
  %v196 = vld [vmem:[%s1 + $0x2d4] sm:$0xf]
  %v197 = vld [vmem:[%s1 + $0x2d8] sm:$0xf]
  %v198 = vld [vmem:[%s1 + $0x2dc] sm:$0xf]
  %v199 = vld [vmem:[%s1 + $0x2e0] sm:$0xf]
  %v200 = vld [vmem:[%s1 + $0x2e4] sm:$0xf]
  %v201 = vld [vmem:[%s1 + $0x2e8] sm:$0xf]
  %v202 = vld [vmem:[%s1 + $0x2ec] sm:$0xf]
  %v203 = vld [vmem:[%s1 + $0x2f0] sm:$0xf]
  %v204 = vld [vmem:[%s1 + $0x2f4] sm:$0xf]
  %v205 = vld [vmem:[%s1 + $0x2f8] sm:$0xf]
  %v206 = vld [vmem:[%s1 + $0x2fc] sm:$0xf]
  %v207 = vld [vmem:[%s1 + $0x300] sm:$0xf]
  %v208 = vld [vmem:[%s1 + $0x304] sm:$0xf]
  %v209 = vld [vmem:[%s1 + $0x308] sm:$0xf]
  %v210 = vld [vmem:[%s1 + $0x30c] sm:$0xf]
  %v211 = vld [vmem:[%s1 + $0x310] sm:$0xf]
  %v212 = vld [vmem:[%s1 + $0x314] sm:$0xf]
  %v213 = vld [vmem:[%s1 + $0x318] sm:$0xf]
  %v214 = vld [vmem:[%s1 + $0x31c] sm:$0xf]
  %v215 = vld [vmem:[%s1 + $0x320] sm:$0xf]
  %v216 = vld [vmem:[%s1 + $0x324] sm:$0xf]
  %v217 = vld [vmem:[%s1 + $0x328] sm:$0xf]
  %v218 = vld [vmem:[%s1 + $0x32c] sm:$0xf]
  %v219 = vld [vmem:[%s1 + $0x330] sm:$0xf]
  %v220 = vld [vmem:[%s1 + $0x334] sm:$0xf]
  %v221 = vld [vmem:[%s1 + $0x338] sm:$0xf]
  %v222 = vld [vmem:[%s1 + $0x33c] sm:$0xf]
  %v223 = vld [vmem:[%s1 + $0x340] sm:$0xf]
  %v224 = vld [vmem:[%s1 + $0x344] sm:$0xf]
  %v225 = vld [vmem:[%s1 + $0x348] sm:$0xf]
  %v226 = vld [vmem:[%s1 + $0x34c] sm:$0xf]
  %v227 = vld [vmem:[%s1 + $0x350] sm:$0xf]
  %v228 = vld [vmem:[%s1 + $0x354] sm:$0xf]
  %v229 = vld [vmem:[%s1 + $0x358] sm:$0xf]
  %v230 = vld [vmem:[%s1 + $0x35c] sm:$0xf]
  %v231 = vld [vmem:[%s1 + $0x360] sm:$0xf]
  %v232 = vld [vmem:[%s1 + $0x364] sm:$0xf]
  %v233 = vld [vmem:[%s1 + $0x368] sm:$0xf]
  %v234 = vld [vmem:[%s1 + $0x36c] sm:$0xf]
  %v235 = vld [vmem:[%s1 + $0x370] sm:$0xf]
  %v236 = vld [vmem:[%s1 + $0x374] sm:$0xf]
  %v237 = vld [vmem:[%s1 + $0x378] sm:$0xf]
  %v238 = vld [vmem:[%s1 + $0x37c] sm:$0xf]
  %v239 = vld [vmem:[%s1 + $0x380] sm:$0xf]
  %v240 = vld [vmem:[%s1 + $0x384] sm:$0xf]
  %v241 = vld [vmem:[%s1 + $0x388] sm:$0xf]
  %v242 = vld [vmem:[%s1 + $0x38c] sm:$0xf]
  %v243 = vld [vmem:[%s1 + $0x390] sm:$0xf]
  %v244 = vld [vmem:[%s1 + $0x394] sm:$0xf]
  %v245 = vld [vmem:[%s1 + $0x398] sm:$0xf]
  %v246 = vld [vmem:[%s1 + $0x39c] sm:$0xf]
  %v247 = vld [vmem:[%s1 + $0x3a0] sm:$0xf]
  %v248 = vld [vmem:[%s1 + $0x3a4] sm:$0xf]
  %v249 = vld [vmem:[%s1 + $0x3a8] sm:$0xf]
  %v250 = vld [vmem:[%s1 + $0x3ac] sm:$0xf]
  %v251 = vld [vmem:[%s1 + $0x3b0] sm:$0xf]
  %v252 = vld [vmem:[%s1 + $0x3b4] sm:$0xf]
  %v253 = vld [vmem:[%s1 + $0x3b8] sm:$0xf]
  %v254 = vld [vmem:[%s1 + $0x3bc] sm:$0xf]
  %v255 = vld [vmem:[%s1 + $0x3c0] sm:$0xf]
  %v256 = vld [vmem:[%s1 + $0x3c4] sm:$0xf]
  %v257 = vld [vmem:[%s1 + $0x3c8] sm:$0xf]
  %v258 = vld [vmem:[%s1 + $0x3cc] sm:$0xf]
  %v259 = vld [vmem:[%s1 + $0x3d0] sm:$0xf]
  %v260 = vld [vmem:[%s1 + $0x3d4] sm:$0xf]
  %v261 = vld [vmem:[%s1 + $0x3d8] sm:$0xf]
  %v262 = vld [vmem:[%s1 + $0x3dc] sm:$0xf]
  %v263 = vld [vmem:[%s1 + $0x3e0] sm:$0xf]
  %v264 = vld [vmem:[%s1 + $0x3e4] sm:$0xf]
  %v265 = vld [vmem:[%s1 + $0x3e8] sm:$0xf]
  %v266 = vld [vmem:[%s1 + $0x3ec] sm:$0xf]
  %v267 = vld [vmem:[%s1 + $0x3f0] sm:$0xf]
  %v268 = vld [vmem:[%s1 + $0x3f4] sm:$0xf]
  %v269 = vld [vmem:[%s1 + $0x3f8] sm:$0xf]
  %v270 = vld [vmem:[%s1 + $0x3fc] sm:$0xf]
  %v271 = vld [vmem:[%s1 + $0x400] sm:$0xf]
  %v272 = vld [vmem:[%s1 + $0x404] sm:$0xf]
  %v273 = vld [vmem:[%s1 + $0x408] sm:$0xf]
  %v274 = vld [vmem:[%s1 + $0x40c] sm:$0xf]
  %v275 = vld [vmem:[%s1 + $0x410] sm:$0xf]
  %v276 = vld [vmem:[%s1 + $0x414] sm:$0xf]
  %v277 = vld [vmem:[%s1 + $0x418] sm:$0xf]
  %v278 = vld [vmem:[%s1 + $0x41c] sm:$0xf]
  %v279 = vld [vmem:[%s1 + $0x420] sm:$0xf]
  %v280 = vld [vmem:[%s1 + $0x424] sm:$0xf]
  %v281 = vld [vmem:[%s1 + $0x428] sm:$0xf]
  %v282 = vld [vmem:[%s1 + $0x42c] sm:$0xf]
  %v283 = vld [vmem:[%s1 + $0x430] sm:$0xf]
  %v284 = vld [vmem:[%s1 + $0x434] sm:$0xf]
  %v285 = vld [vmem:[%s1 + $0x438] sm:$0xf]
  %v286 = vld [vmem:[%s1 + $0x43c] sm:$0xf]
  %v287 = vld [vmem:[%s1 + $0x440] sm:$0xf]
  %v288 = vld [vmem:[%s1 + $0x444] sm:$0xf]
  %v289 = vld [vmem:[%s1 + $0x448] sm:$0xf]
  %v290 = vld [vmem:[%s1 + $0x44c] sm:$0xf]
  %v291 = vld [vmem:[%s1 + $0x450] sm:$0xf]
  %v292 = vld [vmem:[%s1 + $0x454] sm:$0xf]
  %v293 = vld [vmem:[%s1 + $0x458] sm:$0xf]
  %v294 = vld [vmem:[%s1 + $0x45c] sm:$0xf]
  %v295 = vld [vmem:[%s1 + $0x460] sm:$0xf]
  %v296 = vld [vmem:[%s1 + $0x464] sm:$0xf]
  %v297 = vld [vmem:[%s1 + $0x468] sm:$0xf]
  %v298 = vld [vmem:[%s1 + $0x46c] sm:$0xf]
  %v299 = vld [vmem:[%s1 + $0x470] sm:$0xf]
  %v300 = vld [vmem:[%s1 + $0x474] sm:$0xf]
  %v301 = vld [vmem:[%s1 + $0x478] sm:$0xf]
  %v302 = vld [vmem:[%s1 + $0x47c] sm:$0xf]
  %v303 = vld [vmem:[%s0] sm:$0xff]
  %v304 = vld [vmem:[%s0 + $0x8] sm:$0xff]
  %v305 = vld [vmem:[%s0 + $0x10] sm:$0xff]
  %v306 = vld [vmem:[%s0 + $0x18] sm:$0xff]
  %v307 = vld [vmem:[%s0 + $0x20] sm:$0xff]
  %v308 = vld [vmem:[%s0 + $0x28] sm:$0xff]
  %v309 = vld [vmem:[%s0 + $0x30] sm:$0xff]
  %v310 = vld [vmem:[%s0 + $0x38] sm:$0xff]
  %v311 = vld [vmem:[%s0 + $0x40] sm:$0xff]
  %v312 = vld [vmem:[%s0 + $0x48] sm:$0xff]
  %v313 = vld [vmem:[%s0 + $0x50] sm:$0xff]
  %v314 = vld [vmem:[%s0 + $0x58] sm:$0xff]
  %v315 = vld [vmem:[%s0 + $0x60] sm:$0xff]
  %v316 = vld [vmem:[%s0 + $0x68] sm:$0xff]
  %v317 = vld [vmem:[%s0 + $0x70] sm:$0xff]
  %v318 = vld [vmem:[%s0 + $0x78] sm:$0xff]
  %v319 = vld [vmem:[%s0 + $0x80] sm:$0xff]
  %v320 = vld [vmem:[%s0 + $0x88] sm:$0xff]
  %v321 = vld [vmem:[%s2] sm:$0xff]
  %v322 = vld [vmem:[%s2 + $0x8] sm:$0xff]
  %324 = vset.pattern.permute.xlu0 0
  %325 = vperm.xlu0 %324, %v321
  %v326 = vpop.permute.xlu0 %325
  %329 = vset.pattern.permute.xlu0 0
  %330 = vperm.xlu0 %329, %v322
  %v331 = vpop.permute.xlu0 %330
  %v351 = vunpack.c.l.b16 %v303
  %v352 = vunpack.c.h.b16 %v303
  %v353 = vunpack.c.l.b16 %v304
  %v354 = vunpack.c.h.b16 %v304
  %v355 = vunpack.c.l.b16 %v305
  %v356 = vunpack.c.h.b16 %v305
  %v357 = vunpack.c.l.b16 %v306
  %v358 = vunpack.c.h.b16 %v306
  %v359 = vunpack.c.l.b16 %v307
  %v360 = vunpack.c.h.b16 %v307
  %v361 = vunpack.c.l.b16 %v308
  %v362 = vunpack.c.h.b16 %v308
  %v363 = vunpack.c.l.b16 %v309
  %v364 = vunpack.c.h.b16 %v309
  %v365 = vunpack.c.l.b16 %v310
  %v366 = vunpack.c.h.b16 %v310
  %v367 = vunpack.c.l.b16 %v311
  %v368 = vunpack.c.h.b16 %v311
  %v369 = vunpack.c.l.b16 %v312
  %v370 = vunpack.c.h.b16 %v312
  %v371 = vunpack.c.l.b16 %v313
  %v372 = vunpack.c.h.b16 %v313
  %v373 = vunpack.c.l.b16 %v314
  %v374 = vunpack.c.h.b16 %v314
  %v375 = vunpack.c.l.b16 %v315
  %v376 = vunpack.c.h.b16 %v315
  %v377 = vunpack.c.l.b16 %v316
  %v378 = vunpack.c.h.b16 %v316
  %v379 = vunpack.c.l.b16 %v317
  %v380 = vunpack.c.h.b16 %v317
  %v381 = vunpack.c.l.b16 %v318
  %v382 = vunpack.c.h.b16 %v318
  %v383 = vunpack.c.l.b16 %v319
  %v384 = vunpack.c.h.b16 %v319
  %v385 = vunpack.c.l.b16 %v320
  %v386 = vunpack.c.h.b16 %v320
  %v387 = vpack.c.b16 %v369, %v351
  %v388 = vpack.c.b16 %v370, %v352
  %v389 = vpack.c.b16 %v371, %v353
  %v390 = vpack.c.b16 %v372, %v354
  %v391 = vpack.c.b16 %v373, %v355
  %v392 = vpack.c.b16 %v374, %v356
  %v393 = vpack.c.b16 %v375, %v357
  %v394 = vpack.c.b16 %v376, %v358
  %v395 = vpack.c.b16 %v377, %v359
  %v396 = vpack.c.b16 %v378, %v360
  %v397 = vpack.c.b16 %v379, %v361
  %v398 = vpack.c.b16 %v380, %v362
  %v399 = vpack.c.b16 %v381, %v363
  %v400 = vpack.c.b16 %v382, %v364
  %v401 = vpack.c.b16 %v383, %v365
  %v402 = vpack.c.b16 %v384, %v366
  %v403 = vpack.c.b16 %v385, %v367
  %v404 = vpack.c.b16 %v386, %v368
  %v711 = vunpack.c.l.b16 %v15
  %v712 = vunpack.c.l.b16 %v16
  %v713 = vunpack.c.l.b16 %v17
  %v714 = vunpack.c.l.b16 %v18
  %v715 = vunpack.c.l.b16 %v19
  %v716 = vunpack.c.l.b16 %v20
  %v717 = vunpack.c.l.b16 %v21
  %v718 = vunpack.c.l.b16 %v22
  %v719 = vunpack.c.l.b16 %v23
  %v720 = vunpack.c.l.b16 %v24
  %v721 = vunpack.c.l.b16 %v25
  %v722 = vunpack.c.l.b16 %v26
  %v723 = vunpack.c.l.b16 %v27
  %v724 = vunpack.c.l.b16 %v28
  %v725 = vunpack.c.l.b16 %v29
  %v726 = vunpack.c.l.b16 %v30
  %v727 = vunpack.c.l.b16 %v31
  %v728 = vunpack.c.l.b16 %v32
  %v729 = vunpack.c.l.b16 %v33
  %v730 = vunpack.c.l.b16 %v34
  %v731 = vunpack.c.l.b16 %v35
  %v732 = vunpack.c.l.b16 %v36
  %v733 = vunpack.c.l.b16 %v37
  %v734 = vunpack.c.l.b16 %v38
  %v735 = vunpack.c.l.b16 %v39
  %v736 = vunpack.c.l.b16 %v40
  %v737 = vunpack.c.l.b16 %v41
  %v738 = vunpack.c.l.b16 %v42
  %v739 = vunpack.c.l.b16 %v43
  %v740 = vunpack.c.l.b16 %v44
  %v741 = vunpack.c.l.b16 %v45
  %v742 = vunpack.c.l.b16 %v46
  %v743 = vunpack.c.l.b16 %v47
  %v744 = vunpack.c.l.b16 %v48
  %v745 = vunpack.c.l.b16 %v49
  %v746 = vunpack.c.l.b16 %v50
  %v747 = vunpack.c.l.b16 %v51
  %v748 = vunpack.c.l.b16 %v52
  %v749 = vunpack.c.l.b16 %v53
  %v750 = vunpack.c.l.b16 %v54
  %v751 = vunpack.c.l.b16 %v55
  %v752 = vunpack.c.l.b16 %v56
  %v753 = vunpack.c.l.b16 %v57
  %v754 = vunpack.c.l.b16 %v58
  %v755 = vunpack.c.l.b16 %v59
  %v756 = vunpack.c.l.b16 %v60
  %v757 = vunpack.c.l.b16 %v61
  %v758 = vunpack.c.l.b16 %v62
  %v759 = vunpack.c.l.b16 %v63
  %v760 = vunpack.c.l.b16 %v64
  %v761 = vunpack.c.l.b16 %v65
  %v762 = vunpack.c.l.b16 %v66
  %v763 = vunpack.c.l.b16 %v67
  %v764 = vunpack.c.l.b16 %v68
  %v765 = vunpack.c.l.b16 %v69
  %v766 = vunpack.c.l.b16 %v70
  %v767 = vunpack.c.l.b16 %v71
  %v768 = vunpack.c.l.b16 %v72
  %v769 = vunpack.c.l.b16 %v73
  %v770 = vunpack.c.l.b16 %v74
  %v771 = vunpack.c.l.b16 %v75
  %v772 = vunpack.c.l.b16 %v76
  %v773 = vunpack.c.l.b16 %v77
  %v774 = vunpack.c.l.b16 %v78
  %v775 = vunpack.c.l.b16 %v79
  %v776 = vunpack.c.l.b16 %v80
  %v777 = vunpack.c.l.b16 %v81
  %v778 = vunpack.c.l.b16 %v82
  %v779 = vunpack.c.l.b16 %v83
  %v780 = vunpack.c.l.b16 %v84
  %v781 = vunpack.c.l.b16 %v85
  %v782 = vunpack.c.l.b16 %v86
  %v783 = vunpack.c.l.b16 %v87
  %v784 = vunpack.c.l.b16 %v88
  %v785 = vunpack.c.l.b16 %v89
  %v786 = vunpack.c.l.b16 %v90
  %v787 = vunpack.c.l.b16 %v91
  %v788 = vunpack.c.l.b16 %v92
  %v789 = vunpack.c.l.b16 %v93
  %v790 = vunpack.c.l.b16 %v94
  %v791 = vunpack.c.l.b16 %v95
  %v792 = vunpack.c.l.b16 %v96
  %v793 = vunpack.c.l.b16 %v97
  %v794 = vunpack.c.l.b16 %v98
  %v795 = vunpack.c.l.b16 %v99
  %v796 = vunpack.c.l.b16 %v100
  %v797 = vunpack.c.l.b16 %v101
  %v798 = vunpack.c.l.b16 %v102
  %v799 = vunpack.c.l.b16 %v103
  %v800 = vunpack.c.l.b16 %v104
  %v801 = vunpack.c.l.b16 %v105
  %v802 = vunpack.c.l.b16 %v106
  %v803 = vunpack.c.l.b16 %v107
  %v804 = vunpack.c.l.b16 %v108
  %v805 = vunpack.c.l.b16 %v109
  %v806 = vunpack.c.l.b16 %v110
  %v807 = vunpack.c.l.b16 %v111
  %v808 = vunpack.c.l.b16 %v112
  %v809 = vunpack.c.l.b16 %v113
  %v810 = vunpack.c.l.b16 %v114
  %v811 = vunpack.c.l.b16 %v115
  %v812 = vunpack.c.l.b16 %v116
  %v813 = vunpack.c.l.b16 %v117
  %v814 = vunpack.c.l.b16 %v118
  %v815 = vunpack.c.l.b16 %v119
  %v816 = vunpack.c.l.b16 %v120
  %v817 = vunpack.c.l.b16 %v121
  %v818 = vunpack.c.l.b16 %v122
  %v819 = vunpack.c.l.b16 %v123
  %v820 = vunpack.c.l.b16 %v124
  %v821 = vunpack.c.l.b16 %v125
  %v822 = vunpack.c.l.b16 %v126
  %v823 = vunpack.c.l.b16 %v127
  %v824 = vunpack.c.l.b16 %v128
  %v825 = vunpack.c.l.b16 %v129
  %v826 = vunpack.c.l.b16 %v130
  %v827 = vunpack.c.l.b16 %v131
  %v828 = vunpack.c.l.b16 %v132
  %v829 = vunpack.c.l.b16 %v133
  %v830 = vunpack.c.l.b16 %v134
  %v831 = vunpack.c.l.b16 %v135
  %v832 = vunpack.c.l.b16 %v136
  %v833 = vunpack.c.l.b16 %v137
  %v834 = vunpack.c.l.b16 %v138
  %v835 = vunpack.c.l.b16 %v139
  %v836 = vunpack.c.l.b16 %v140
  %v837 = vunpack.c.l.b16 %v141
  %v838 = vunpack.c.l.b16 %v142
  %v839 = vunpack.c.l.b16 %v143
  %v840 = vunpack.c.l.b16 %v144
  %v841 = vunpack.c.l.b16 %v145
  %v842 = vunpack.c.l.b16 %v146
  %v843 = vunpack.c.l.b16 %v147
  %v844 = vunpack.c.l.b16 %v148
  %v845 = vunpack.c.l.b16 %v149
  %v846 = vunpack.c.l.b16 %v150
  %v847 = vunpack.c.l.b16 %v151
  %v848 = vunpack.c.l.b16 %v152
  %v849 = vunpack.c.l.b16 %v153
  %v850 = vunpack.c.l.b16 %v154
  %v851 = vunpack.c.l.b16 %v155
  %v852 = vunpack.c.l.b16 %v156
  %v853 = vunpack.c.l.b16 %v157
  %v854 = vunpack.c.l.b16 %v158
  %v855 = vunpack.c.l.b16 %v159
  %v856 = vunpack.c.l.b16 %v160
  %v857 = vunpack.c.l.b16 %v161
  %v858 = vunpack.c.l.b16 %v162
  %v859 = vunpack.c.l.b16 %v163
  %v860 = vunpack.c.l.b16 %v164
  %v861 = vunpack.c.l.b16 %v165
  %v862 = vunpack.c.l.b16 %v166
  %v863 = vunpack.c.l.b16 %v167
  %v864 = vunpack.c.l.b16 %v168
  %v865 = vunpack.c.l.b16 %v169
  %v866 = vunpack.c.l.b16 %v170
  %v867 = vunpack.c.l.b16 %v171
  %v868 = vunpack.c.l.b16 %v172
  %v869 = vunpack.c.l.b16 %v173
  %v870 = vunpack.c.l.b16 %v174
  %v871 = vunpack.c.l.b16 %v175
  %v872 = vunpack.c.l.b16 %v176
  %v873 = vunpack.c.l.b16 %v177
  %v874 = vunpack.c.l.b16 %v178
  %v875 = vunpack.c.l.b16 %v179
  %v876 = vunpack.c.l.b16 %v180
  %v877 = vunpack.c.l.b16 %v181
  %v878 = vunpack.c.l.b16 %v182
  %v879 = vunpack.c.l.b16 %v183
  %v880 = vunpack.c.l.b16 %v184
  %v881 = vunpack.c.l.b16 %v185
  %v882 = vunpack.c.l.b16 %v186
  %v883 = vunpack.c.l.b16 %v187
  %v884 = vunpack.c.l.b16 %v188
  %v885 = vunpack.c.l.b16 %v189
  %v886 = vunpack.c.l.b16 %v190
  %v887 = vunpack.c.l.b16 %v191
  %v888 = vunpack.c.l.b16 %v192
  %v889 = vunpack.c.l.b16 %v193
  %v890 = vunpack.c.l.b16 %v194
  %v891 = vunpack.c.l.b16 %v195
  %v892 = vunpack.c.l.b16 %v196
  %v893 = vunpack.c.l.b16 %v197
  %v894 = vunpack.c.l.b16 %v198
  %v895 = vunpack.c.l.b16 %v199
  %v896 = vunpack.c.l.b16 %v200
  %v897 = vunpack.c.l.b16 %v201
  %v898 = vunpack.c.l.b16 %v202
  %v899 = vunpack.c.l.b16 %v203
  %v900 = vunpack.c.l.b16 %v204
  %v901 = vunpack.c.l.b16 %v205
  %v902 = vunpack.c.l.b16 %v206
  %v903 = vunpack.c.l.b16 %v207
  %v904 = vunpack.c.l.b16 %v208
  %v905 = vunpack.c.l.b16 %v209
  %v906 = vunpack.c.l.b16 %v210
  %v907 = vunpack.c.l.b16 %v211
  %v908 = vunpack.c.l.b16 %v212
  %v909 = vunpack.c.l.b16 %v213
  %v910 = vunpack.c.l.b16 %v214
  %v911 = vunpack.c.l.b16 %v215
  %v912 = vunpack.c.l.b16 %v216
  %v913 = vunpack.c.l.b16 %v217
  %v914 = vunpack.c.l.b16 %v218
  %v915 = vunpack.c.l.b16 %v219
  %v916 = vunpack.c.l.b16 %v220
  %v917 = vunpack.c.l.b16 %v221
  %v918 = vunpack.c.l.b16 %v222
  %v919 = vunpack.c.l.b16 %v223
  %v920 = vunpack.c.l.b16 %v224
  %v921 = vunpack.c.l.b16 %v225
  %v922 = vunpack.c.l.b16 %v226
  %v923 = vunpack.c.l.b16 %v227
  %v924 = vunpack.c.l.b16 %v228
  %v925 = vunpack.c.l.b16 %v229
  %v926 = vunpack.c.l.b16 %v230
  %v927 = vunpack.c.l.b16 %v231
  %v928 = vunpack.c.l.b16 %v232
  %v929 = vunpack.c.l.b16 %v233
  %v930 = vunpack.c.l.b16 %v234
  %v931 = vunpack.c.l.b16 %v235
  %v932 = vunpack.c.l.b16 %v236
  %v933 = vunpack.c.l.b16 %v237
  %v934 = vunpack.c.l.b16 %v238
  %v935 = vunpack.c.l.b16 %v239
  %v936 = vunpack.c.l.b16 %v240
  %v937 = vunpack.c.l.b16 %v241
  %v938 = vunpack.c.l.b16 %v242
  %v939 = vunpack.c.l.b16 %v243
  %v940 = vunpack.c.l.b16 %v244
  %v941 = vunpack.c.l.b16 %v245
  %v942 = vunpack.c.l.b16 %v246
  %v943 = vunpack.c.l.b16 %v247
  %v944 = vunpack.c.l.b16 %v248
  %v945 = vunpack.c.l.b16 %v249
  %v946 = vunpack.c.l.b16 %v250
  %v947 = vunpack.c.l.b16 %v251
  %v948 = vunpack.c.l.b16 %v252
  %v949 = vunpack.c.l.b16 %v253
  %v950 = vunpack.c.l.b16 %v254
  %v951 = vunpack.c.l.b16 %v255
  %v952 = vunpack.c.l.b16 %v256
  %v953 = vunpack.c.l.b16 %v257
  %v954 = vunpack.c.l.b16 %v258
  %v955 = vunpack.c.l.b16 %v259
  %v956 = vunpack.c.l.b16 %v260
  %v957 = vunpack.c.l.b16 %v261
  %v958 = vunpack.c.l.b16 %v262
  %v959 = vunpack.c.l.b16 %v263
  %v960 = vunpack.c.l.b16 %v264
  %v961 = vunpack.c.l.b16 %v265
  %v962 = vunpack.c.l.b16 %v266
  %v963 = vunpack.c.l.b16 %v267
  %v964 = vunpack.c.l.b16 %v268
  %v965 = vunpack.c.l.b16 %v269
  %v966 = vunpack.c.l.b16 %v270
  %v967 = vunpack.c.l.b16 %v271
  %v968 = vunpack.c.l.b16 %v272
  %v969 = vunpack.c.l.b16 %v273
  %v970 = vunpack.c.l.b16 %v274
  %v971 = vunpack.c.l.b16 %v275
  %v972 = vunpack.c.l.b16 %v276
  %v973 = vunpack.c.l.b16 %v277
  %v974 = vunpack.c.l.b16 %v278
  %v975 = vunpack.c.l.b16 %v279
  %v976 = vunpack.c.l.b16 %v280
  %v977 = vunpack.c.l.b16 %v281
  %v978 = vunpack.c.l.b16 %v282
  %v979 = vunpack.c.l.b16 %v283
  %v980 = vunpack.c.l.b16 %v284
  %v981 = vunpack.c.l.b16 %v285
  %v982 = vunpack.c.l.b16 %v286
  %v983 = vunpack.c.l.b16 %v287
  %v984 = vunpack.c.l.b16 %v288
  %v985 = vunpack.c.l.b16 %v289
  %v986 = vunpack.c.l.b16 %v290
  %v987 = vunpack.c.l.b16 %v291
  %v988 = vunpack.c.l.b16 %v292
  %v989 = vunpack.c.l.b16 %v293
  %v990 = vunpack.c.l.b16 %v294
  %v991 = vunpack.c.l.b16 %v295
  %v992 = vunpack.c.l.b16 %v296
  %v993 = vunpack.c.l.b16 %v297
  %v994 = vunpack.c.l.b16 %v298
  %v995 = vunpack.c.l.b16 %v299
  %v996 = vunpack.c.l.b16 %v300
  %v997 = vunpack.c.l.b16 %v301
  %v998 = vunpack.c.l.b16 %v302
  %v999 = vpack.c.b16 %v712, %v711
  %v1000 = vpack.c.b16 %v714, %v713
  %v1001 = vpack.c.b16 %v716, %v715
  %v1002 = vpack.c.b16 %v718, %v717
  %v1003 = vpack.c.b16 %v720, %v719
  %v1004 = vpack.c.b16 %v722, %v721
  %v1005 = vpack.c.b16 %v724, %v723
  %v1006 = vpack.c.b16 %v726, %v725
  %v1007 = vpack.c.b16 %v728, %v727
  %v1008 = vpack.c.b16 %v730, %v729
  %v1009 = vpack.c.b16 %v732, %v731
  %v1010 = vpack.c.b16 %v734, %v733
  %v1011 = vpack.c.b16 %v736, %v735
  %v1012 = vpack.c.b16 %v738, %v737
  %v1013 = vpack.c.b16 %v740, %v739
  %v1014 = vpack.c.b16 %v742, %v741
  %v1015 = vpack.c.b16 %v744, %v743
  %v1016 = vpack.c.b16 %v746, %v745
  %v1017 = vpack.c.b16 %v748, %v747
  %v1018 = vpack.c.b16 %v750, %v749
  %v1019 = vpack.c.b16 %v752, %v751
  %v1020 = vpack.c.b16 %v754, %v753
  %v1021 = vpack.c.b16 %v756, %v755
  %v1022 = vpack.c.b16 %v758, %v757
  %v1023 = vpack.c.b16 %v760, %v759
  %v1024 = vpack.c.b16 %v762, %v761
  %v1025 = vpack.c.b16 %v764, %v763
  %v1026 = vpack.c.b16 %v766, %v765
  %v1027 = vpack.c.b16 %v768, %v767
  %v1028 = vpack.c.b16 %v770, %v769
  %v1029 = vpack.c.b16 %v772, %v771
  %v1030 = vpack.c.b16 %v774, %v773
  %v1031 = vpack.c.b16 %v776, %v775
  %v1032 = vpack.c.b16 %v778, %v777
  %v1033 = vpack.c.b16 %v780, %v779
  %v1034 = vpack.c.b16 %v782, %v781
  %v1035 = vpack.c.b16 %v784, %v783
  %v1036 = vpack.c.b16 %v786, %v785
  %v1037 = vpack.c.b16 %v788, %v787
  %v1038 = vpack.c.b16 %v790, %v789
  %v1039 = vpack.c.b16 %v792, %v791
  %v1040 = vpack.c.b16 %v794, %v793
  %v1041 = vpack.c.b16 %v796, %v795
  %v1042 = vpack.c.b16 %v798, %v797
  %v1043 = vpack.c.b16 %v800, %v799
  %v1044 = vpack.c.b16 %v802, %v801
  %v1045 = vpack.c.b16 %v804, %v803
  %v1046 = vpack.c.b16 %v806, %v805
  %v1047 = vpack.c.b16 %v808, %v807
  %v1048 = vpack.c.b16 %v810, %v809
  %v1049 = vpack.c.b16 %v812, %v811
  %v1050 = vpack.c.b16 %v814, %v813
  %v1051 = vpack.c.b16 %v816, %v815
  %v1052 = vpack.c.b16 %v818, %v817
  %v1053 = vpack.c.b16 %v820, %v819
  %v1054 = vpack.c.b16 %v822, %v821
  %v1055 = vpack.c.b16 %v824, %v823
  %v1056 = vpack.c.b16 %v826, %v825
  %v1057 = vpack.c.b16 %v828, %v827
  %v1058 = vpack.c.b16 %v830, %v829
  %v1059 = vpack.c.b16 %v832, %v831
  %v1060 = vpack.c.b16 %v834, %v833
  %v1061 = vpack.c.b16 %v836, %v835
  %v1062 = vpack.c.b16 %v838, %v837
  %v1063 = vpack.c.b16 %v840, %v839
  %v1064 = vpack.c.b16 %v842, %v841
  %v1065 = vpack.c.b16 %v844, %v843
  %v1066 = vpack.c.b16 %v846, %v845
  %v1067 = vpack.c.b16 %v848, %v847
  %v1068 = vpack.c.b16 %v850, %v849
  %v1069 = vpack.c.b16 %v852, %v851
  %v1070 = vpack.c.b16 %v854, %v853
  %v1071 = vpack.c.b16 %v856, %v855
  %v1072 = vpack.c.b16 %v858, %v857
  %v1073 = vpack.c.b16 %v860, %v859
  %v1074 = vpack.c.b16 %v862, %v861
  %v1075 = vpack.c.b16 %v864, %v863
  %v1076 = vpack.c.b16 %v866, %v865
  %v1077 = vpack.c.b16 %v868, %v867
  %v1078 = vpack.c.b16 %v870, %v869
  %v1079 = vpack.c.b16 %v872, %v871
  %v1080 = vpack.c.b16 %v874, %v873
  %v1081 = vpack.c.b16 %v876, %v875
  %v1082 = vpack.c.b16 %v878, %v877
  %v1083 = vpack.c.b16 %v880, %v879
  %v1084 = vpack.c.b16 %v882, %v881
  %v1085 = vpack.c.b16 %v884, %v883
  %v1086 = vpack.c.b16 %v886, %v885
  %v1087 = vpack.c.b16 %v888, %v887
  %v1088 = vpack.c.b16 %v890, %v889
  %v1089 = vpack.c.b16 %v892, %v891
  %v1090 = vpack.c.b16 %v894, %v893
  %v1091 = vpack.c.b16 %v896, %v895
  %v1092 = vpack.c.b16 %v898, %v897
  %v1093 = vpack.c.b16 %v900, %v899
  %v1094 = vpack.c.b16 %v902, %v901
  %v1095 = vpack.c.b16 %v904, %v903
  %v1096 = vpack.c.b16 %v906, %v905
  %v1097 = vpack.c.b16 %v908, %v907
  %v1098 = vpack.c.b16 %v910, %v909
  %v1099 = vpack.c.b16 %v912, %v911
  %v1100 = vpack.c.b16 %v914, %v913
  %v1101 = vpack.c.b16 %v916, %v915
  %v1102 = vpack.c.b16 %v918, %v917
  %v1103 = vpack.c.b16 %v920, %v919
  %v1104 = vpack.c.b16 %v922, %v921
  %v1105 = vpack.c.b16 %v924, %v923
  %v1106 = vpack.c.b16 %v926, %v925
  %v1107 = vpack.c.b16 %v928, %v927
  %v1108 = vpack.c.b16 %v930, %v929
  %v1109 = vpack.c.b16 %v932, %v931
  %v1110 = vpack.c.b16 %v934, %v933
  %v1111 = vpack.c.b16 %v936, %v935
  %v1112 = vpack.c.b16 %v938, %v937
  %v1113 = vpack.c.b16 %v940, %v939
  %v1114 = vpack.c.b16 %v942, %v941
  %v1115 = vpack.c.b16 %v944, %v943
  %v1116 = vpack.c.b16 %v946, %v945
  %v1117 = vpack.c.b16 %v948, %v947
  %v1118 = vpack.c.b16 %v950, %v949
  %v1119 = vpack.c.b16 %v952, %v951
  %v1120 = vpack.c.b16 %v954, %v953
  %v1121 = vpack.c.b16 %v956, %v955
  %v1122 = vpack.c.b16 %v958, %v957
  %v1123 = vpack.c.b16 %v960, %v959
  %v1124 = vpack.c.b16 %v962, %v961
  %v1125 = vpack.c.b16 %v964, %v963
  %v1126 = vpack.c.b16 %v966, %v965
  %v1127 = vpack.c.b16 %v968, %v967
  %v1128 = vpack.c.b16 %v970, %v969
  %v1129 = vpack.c.b16 %v972, %v971
  %v1130 = vpack.c.b16 %v974, %v973
  %v1131 = vpack.c.b16 %v976, %v975
  %v1132 = vpack.c.b16 %v978, %v977
  %v1133 = vpack.c.b16 %v980, %v979
  %v1134 = vpack.c.b16 %v982, %v981
  %v1135 = vpack.c.b16 %v984, %v983
  %v1136 = vpack.c.b16 %v986, %v985
  %v1137 = vpack.c.b16 %v988, %v987
  %v1138 = vpack.c.b16 %v990, %v989
  %v1139 = vpack.c.b16 %v992, %v991
  %v1140 = vpack.c.b16 %v994, %v993
  %v1141 = vpack.c.b16 %v996, %v995
  %v1142 = vpack.c.b16 %v998, %v997
  %1287 = vmatprep.subr.bf16.mxu0 0
  %1288 = vmatpush1.bf16.msra.mxu0 %v999
  %1289 = vmatprep.subr.bf16.mxu0 0
  %1290 = vmatpush1.bf16.msra.mxu0 %v1000
  %1291 = vmatprep.subr.bf16.mxu0 0
  %1292 = vmatpush1.bf16.msra.mxu0 %v1001
  %1293 = vmatprep.subr.bf16.mxu0 0
  %1294 = vmatpush1.bf16.msra.mxu0 %v1002
  %1295 = vmatprep.subr.bf16.mxu0 0
  %1296 = vmatpush1.bf16.msra.mxu0 %v1003
  %1297 = vmatprep.subr.bf16.mxu0 0
  %1298 = vmatpush1.bf16.msra.mxu0 %v1004
  %1299 = vmatprep.subr.bf16.mxu0 0
  %1300 = vmatpush1.bf16.msra.mxu0 %v1005
  %1301 = vmatprep.subr.bf16.mxu0 0
  %1302 = vmatpush1.bf16.msra.mxu0 %v1006
  %1303 = vmatprep.subr.bf16.mxu0 0
  %1304 = vmatpush1.bf16.msra.mxu0 %v1007
  %1305 = vmatprep.subr.bf16.mxu0 0
  %1306 = vmatpush1.bf16.msra.mxu0 %v1008
  %1307 = vmatprep.subr.bf16.mxu0 0
  %1308 = vmatpush1.bf16.msra.mxu0 %v1009
  %1309 = vmatprep.subr.bf16.mxu0 0
  %1310 = vmatpush1.bf16.msra.mxu0 %v1010
  %1311 = vmatprep.subr.bf16.mxu0 0
  %1312 = vmatpush1.bf16.msra.mxu0 %v1011
  %1313 = vmatprep.subr.bf16.mxu0 0
  %1314 = vmatpush1.bf16.msra.mxu0 %v1012
  %1315 = vmatprep.subr.bf16.mxu0 0
  %1316 = vmatpush1.bf16.msra.mxu0 %v1013
  %1317 = vmatprep.subr.bf16.mxu0 0
  %1318 = vmatpush1.bf16.msra.mxu0 %v1014
  %1319 = vmatprep.mubr.bf16.mxu0 %v388
  %1320 = vmatmul.mubr.bf16.gmra.mrb[0].mxu0 %v387
  %v1321 = vpop.f32.mrb[0].mxu0
  %v1322 = vadd.f32 %v326, %v1321
  %v1323 = vpop.f32.mrb[0].mxu0
  %v1324 = vpop.f32.mrb[0].mxu0
  %v1325 = vadd.f32 %v331, %v1324
  %v1326 = vpop.f32.mrb[0].mxu0
  %1327 = vdwg.mxu0
  %1328 = vmatprep.subr.bf16.mxu0 0
  %1329 = vmatpush1.bf16.msra.mxu0 %v1015
  %1330 = vmatprep.subr.bf16.mxu0 0
  %1331 = vmatpush1.bf16.msra.mxu0 %v1016
  %1332 = vmatprep.subr.bf16.mxu0 0
  %1333 = vmatpush1.bf16.msra.mxu0 %v1017
  %1334 = vmatprep.subr.bf16.mxu0 0
  %1335 = vmatpush1.bf16.msra.mxu0 %v1018
  %1336 = vmatprep.subr.bf16.mxu0 0
  %1337 = vmatpush1.bf16.msra.mxu0 %v1019
  %1338 = vmatprep.subr.bf16.mxu0 0
  %1339 = vmatpush1.bf16.msra.mxu0 %v1020
  %1340 = vmatprep.subr.bf16.mxu0 0
  %1341 = vmatpush1.bf16.msra.mxu0 %v1021
  %1342 = vmatprep.subr.bf16.mxu0 0
  %1343 = vmatpush1.bf16.msra.mxu0 %v1022
  %1344 = vmatprep.subr.bf16.mxu0 0
  %1345 = vmatpush1.bf16.msra.mxu0 %v1023
  %1346 = vmatprep.subr.bf16.mxu0 0
  %1347 = vmatpush1.bf16.msra.mxu0 %v1024
  %1348 = vmatprep.subr.bf16.mxu0 0
  %1349 = vmatpush1.bf16.msra.mxu0 %v1025
  %1350 = vmatprep.subr.bf16.mxu0 0
  %1351 = vmatpush1.bf16.msra.mxu0 %v1026
  %1352 = vmatprep.subr.bf16.mxu0 0
  %1353 = vmatpush1.bf16.msra.mxu0 %v1027
  %1354 = vmatprep.subr.bf16.mxu0 0
  %1355 = vmatpush1.bf16.msra.mxu0 %v1028
  %1356 = vmatprep.subr.bf16.mxu0 0
  %1357 = vmatpush1.bf16.msra.mxu0 %v1029
  %1358 = vmatprep.subr.bf16.mxu0 0
  %1359 = vmatpush1.bf16.msra.mxu0 %v1030
  %1360 = vmatprep.mubr.bf16.mxu0 %v390
  %1361 = vmatmul.mubr.bf16.gmra.mrb[0].mxu0 %v389
  %v1362 = vpop.f32.mrb[0].mxu0
  %v1363 = vadd.f32 %v1322, %v1362
  %v1364 = vpop.f32.mrb[0].mxu0
  %v1365 = vpop.f32.mrb[0].mxu0
  %v1366 = vadd.f32 %v1325, %v1365
  %v1367 = vpop.f32.mrb[0].mxu0
  %1368 = vdwg.mxu0
  %1369 = vmatprep.subr.bf16.mxu0 0
  %1370 = vmatpush1.bf16.msra.mxu0 %v1031
  %1371 = vmatprep.subr.bf16.mxu0 0
  %1372 = vmatpush1.bf16.msra.mxu0 %v1032
  %1373 = vmatprep.subr.bf16.mxu0 0
  %1374 = vmatpush1.bf16.msra.mxu0 %v1033
  %1375 = vmatprep.subr.bf16.mxu0 0
  %1376 = vmatpush1.bf16.msra.mxu0 %v1034
  %1377 = vmatprep.subr.bf16.mxu0 0
  %1378 = vmatpush1.bf16.msra.mxu0 %v1035
  %1379 = vmatprep.subr.bf16.mxu0 0
  %1380 = vmatpush1.bf16.msra.mxu0 %v1036
  %1381 = vmatprep.subr.bf16.mxu0 0
  %1382 = vmatpush1.bf16.msra.mxu0 %v1037
  %1383 = vmatprep.subr.bf16.mxu0 0
  %1384 = vmatpush1.bf16.msra.mxu0 %v1038
  %1385 = vmatprep.subr.bf16.mxu0 0
  %1386 = vmatpush1.bf16.msra.mxu0 %v1039
  %1387 = vmatprep.subr.bf16.mxu0 0
  %1388 = vmatpush1.bf16.msra.mxu0 %v1040
  %1389 = vmatprep.subr.bf16.mxu0 0
  %1390 = vmatpush1.bf16.msra.mxu0 %v1041
  %1391 = vmatprep.subr.bf16.mxu0 0
  %1392 = vmatpush1.bf16.msra.mxu0 %v1042
  %1393 = vmatprep.subr.bf16.mxu0 0
  %1394 = vmatpush1.bf16.msra.mxu0 %v1043
  %1395 = vmatprep.subr.bf16.mxu0 0
  %1396 = vmatpush1.bf16.msra.mxu0 %v1044
  %1397 = vmatprep.subr.bf16.mxu0 0
  %1398 = vmatpush1.bf16.msra.mxu0 %v1045
  %1399 = vmatprep.subr.bf16.mxu0 0
  %1400 = vmatpush1.bf16.msra.mxu0 %v1046
  %1401 = vmatprep.mubr.bf16.mxu0 %v392
  %1402 = vmatmul.mubr.bf16.gmra.mrb[0].mxu0 %v391
  %v1403 = vpop.f32.mrb[0].mxu0
  %v1404 = vadd.f32 %v1363, %v1403
  %v1405 = vpop.f32.mrb[0].mxu0
  %v1406 = vpop.f32.mrb[0].mxu0
  %v1407 = vadd.f32 %v1366, %v1406
  %v1408 = vpop.f32.mrb[0].mxu0
  %1409 = vdwg.mxu0
  %1410 = vmatprep.subr.bf16.mxu0 0
  %1411 = vmatpush1.bf16.msra.mxu0 %v1047
  %1412 = vmatprep.subr.bf16.mxu0 0
  %1413 = vmatpush1.bf16.msra.mxu0 %v1048
  %1414 = vmatprep.subr.bf16.mxu0 0
  %1415 = vmatpush1.bf16.msra.mxu0 %v1049
  %1416 = vmatprep.subr.bf16.mxu0 0
  %1417 = vmatpush1.bf16.msra.mxu0 %v1050
  %1418 = vmatprep.subr.bf16.mxu0 0
  %1419 = vmatpush1.bf16.msra.mxu0 %v1051
  %1420 = vmatprep.subr.bf16.mxu0 0
  %1421 = vmatpush1.bf16.msra.mxu0 %v1052
  %1422 = vmatprep.subr.bf16.mxu0 0
  %1423 = vmatpush1.bf16.msra.mxu0 %v1053
  %1424 = vmatprep.subr.bf16.mxu0 0
  %1425 = vmatpush1.bf16.msra.mxu0 %v1054
  %1426 = vmatprep.subr.bf16.mxu0 0
  %1427 = vmatpush1.bf16.msra.mxu0 %v1055
  %1428 = vmatprep.subr.bf16.mxu0 0
  %1429 = vmatpush1.bf16.msra.mxu0 %v1056
  %1430 = vmatprep.subr.bf16.mxu0 0
  %1431 = vmatpush1.bf16.msra.mxu0 %v1057
  %1432 = vmatprep.subr.bf16.mxu0 0
  %1433 = vmatpush1.bf16.msra.mxu0 %v1058
  %1434 = vmatprep.subr.bf16.mxu0 0
  %1435 = vmatpush1.bf16.msra.mxu0 %v1059
  %1436 = vmatprep.subr.bf16.mxu0 0
  %1437 = vmatpush1.bf16.msra.mxu0 %v1060
  %1438 = vmatprep.subr.bf16.mxu0 0
  %1439 = vmatpush1.bf16.msra.mxu0 %v1061
  %1440 = vmatprep.subr.bf16.mxu0 0
  %1441 = vmatpush1.bf16.msra.mxu0 %v1062
  %1442 = vmatprep.mubr.bf16.mxu0 %v394
  %1443 = vmatmul.mubr.bf16.gmra.mrb[0].mxu0 %v393
  %v1444 = vpop.f32.mrb[0].mxu0
  %v1445 = vadd.f32 %v1404, %v1444
  %v1446 = vpop.f32.mrb[0].mxu0
  %v1447 = vpop.f32.mrb[0].mxu0
  %v1448 = vadd.f32 %v1407, %v1447
  %v1449 = vpop.f32.mrb[0].mxu0
  %1450 = vdwg.mxu0
  %1451 = vmatprep.subr.bf16.mxu0 0
  %1452 = vmatpush1.bf16.msra.mxu0 %v1063
  %1453 = vmatprep.subr.bf16.mxu0 0
  %1454 = vmatpush1.bf16.msra.mxu0 %v1064
  %1455 = vmatprep.subr.bf16.mxu0 0
  %1456 = vmatpush1.bf16.msra.mxu0 %v1065
  %1457 = vmatprep.subr.bf16.mxu0 0
  %1458 = vmatpush1.bf16.msra.mxu0 %v1066
  %1459 = vmatprep.subr.bf16.mxu0 0
  %1460 = vmatpush1.bf16.msra.mxu0 %v1067
  %1461 = vmatprep.subr.bf16.mxu0 0
  %1462 = vmatpush1.bf16.msra.mxu0 %v1068
  %1463 = vmatprep.subr.bf16.mxu0 0
  %1464 = vmatpush1.bf16.msra.mxu0 %v1069
  %1465 = vmatprep.subr.bf16.mxu0 0
  %1466 = vmatpush1.bf16.msra.mxu0 %v1070
  %1467 = vmatprep.subr.bf16.mxu0 0
  %1468 = vmatpush1.bf16.msra.mxu0 %v1071
  %1469 = vmatprep.subr.bf16.mxu0 0
  %1470 = vmatpush1.bf16.msra.mxu0 %v1072
  %1471 = vmatprep.subr.bf16.mxu0 0
  %1472 = vmatpush1.bf16.msra.mxu0 %v1073
  %1473 = vmatprep.subr.bf16.mxu0 0
  %1474 = vmatpush1.bf16.msra.mxu0 %v1074
  %1475 = vmatprep.subr.bf16.mxu0 0
  %1476 = vmatpush1.bf16.msra.mxu0 %v1075
  %1477 = vmatprep.subr.bf16.mxu0 0
  %1478 = vmatpush1.bf16.msra.mxu0 %v1076
  %1479 = vmatprep.subr.bf16.mxu0 0
  %1480 = vmatpush1.bf16.msra.mxu0 %v1077
  %1481 = vmatprep.subr.bf16.mxu0 0
  %1482 = vmatpush1.bf16.msra.mxu0 %v1078
  %1483 = vmatprep.mubr.bf16.mxu0 %v396
  %1484 = vmatmul.mubr.bf16.gmra.mrb[0].mxu0 %v395
  %v1485 = vpop.f32.mrb[0].mxu0
  %v1486 = vadd.f32 %v1445, %v1485
  %v1487 = vpop.f32.mrb[0].mxu0
  %v1488 = vpop.f32.mrb[0].mxu0
  %v1489 = vadd.f32 %v1448, %v1488
  %v1490 = vpop.f32.mrb[0].mxu0
  %1491 = vdwg.mxu0
  %1492 = vmatprep.subr.bf16.mxu0 0
  %1493 = vmatpush1.bf16.msra.mxu0 %v1079
  %1494 = vmatprep.subr.bf16.mxu0 0
  %1495 = vmatpush1.bf16.msra.mxu0 %v1080
  %1496 = vmatprep.subr.bf16.mxu0 0
  %1497 = vmatpush1.bf16.msra.mxu0 %v1081
  %1498 = vmatprep.subr.bf16.mxu0 0
  %1499 = vmatpush1.bf16.msra.mxu0 %v1082
  %1500 = vmatprep.subr.bf16.mxu0 0
  %1501 = vmatpush1.bf16.msra.mxu0 %v1083
  %1502 = vmatprep.subr.bf16.mxu0 0
  %1503 = vmatpush1.bf16.msra.mxu0 %v1084
  %1504 = vmatprep.subr.bf16.mxu0 0
  %1505 = vmatpush1.bf16.msra.mxu0 %v1085
  %1506 = vmatprep.subr.bf16.mxu0 0
  %1507 = vmatpush1.bf16.msra.mxu0 %v1086
  %1508 = vmatprep.subr.bf16.mxu0 0
  %1509 = vmatpush1.bf16.msra.mxu0 %v1087
  %1510 = vmatprep.subr.bf16.mxu0 0
  %1511 = vmatpush1.bf16.msra.mxu0 %v1088
  %1512 = vmatprep.subr.bf16.mxu0 0
  %1513 = vmatpush1.bf16.msra.mxu0 %v1089
  %1514 = vmatprep.subr.bf16.mxu0 0
  %1515 = vmatpush1.bf16.msra.mxu0 %v1090
  %1516 = vmatprep.subr.bf16.mxu0 0
  %1517 = vmatpush1.bf16.msra.mxu0 %v1091
  %1518 = vmatprep.subr.bf16.mxu0 0
  %1519 = vmatpush1.bf16.msra.mxu0 %v1092
  %1520 = vmatprep.subr.bf16.mxu0 0
  %1521 = vmatpush1.bf16.msra.mxu0 %v1093
  %1522 = vmatprep.subr.bf16.mxu0 0
  %1523 = vmatpush1.bf16.msra.mxu0 %v1094
  %1524 = vmatprep.mubr.bf16.mxu0 %v398
  %1525 = vmatmul.mubr.bf16.gmra.mrb[0].mxu0 %v397
  %v1526 = vpop.f32.mrb[0].mxu0
  %v1527 = vadd.f32 %v1486, %v1526
  %v1528 = vpop.f32.mrb[0].mxu0
  %v1529 = vpop.f32.mrb[0].mxu0
  %v1530 = vadd.f32 %v1489, %v1529
  %v1531 = vpop.f32.mrb[0].mxu0
  %1532 = vdwg.mxu0
  %1533 = vmatprep.subr.bf16.mxu0 0
  %1534 = vmatpush1.bf16.msra.mxu0 %v1095
  %1535 = vmatprep.subr.bf16.mxu0 0
  %1536 = vmatpush1.bf16.msra.mxu0 %v1096
  %1537 = vmatprep.subr.bf16.mxu0 0
  %1538 = vmatpush1.bf16.msra.mxu0 %v1097
  %1539 = vmatprep.subr.bf16.mxu0 0
  %1540 = vmatpush1.bf16.msra.mxu0 %v1098
  %1541 = vmatprep.subr.bf16.mxu0 0
  %1542 = vmatpush1.bf16.msra.mxu0 %v1099
  %1543 = vmatprep.subr.bf16.mxu0 0
  %1544 = vmatpush1.bf16.msra.mxu0 %v1100
  %1545 = vmatprep.subr.bf16.mxu0 0
  %1546 = vmatpush1.bf16.msra.mxu0 %v1101
  %1547 = vmatprep.subr.bf16.mxu0 0
  %1548 = vmatpush1.bf16.msra.mxu0 %v1102
  %1549 = vmatprep.subr.bf16.mxu0 0
  %1550 = vmatpush1.bf16.msra.mxu0 %v1103
  %1551 = vmatprep.subr.bf16.mxu0 0
  %1552 = vmatpush1.bf16.msra.mxu0 %v1104
  %1553 = vmatprep.subr.bf16.mxu0 0
  %1554 = vmatpush1.bf16.msra.mxu0 %v1105
  %1555 = vmatprep.subr.bf16.mxu0 0
  %1556 = vmatpush1.bf16.msra.mxu0 %v1106
  %1557 = vmatprep.subr.bf16.mxu0 0
  %1558 = vmatpush1.bf16.msra.mxu0 %v1107
  %1559 = vmatprep.subr.bf16.mxu0 0
  %1560 = vmatpush1.bf16.msra.mxu0 %v1108
  %1561 = vmatprep.subr.bf16.mxu0 0
  %1562 = vmatpush1.bf16.msra.mxu0 %v1109
  %1563 = vmatprep.subr.bf16.mxu0 0
  %1564 = vmatpush1.bf16.msra.mxu0 %v1110
  %1565 = vmatprep.mubr.bf16.mxu0 %v400
  %1566 = vmatmul.mubr.bf16.gmra.mrb[0].mxu0 %v399
  %v1567 = vpop.f32.mrb[0].mxu0
  %v1568 = vadd.f32 %v1527, %v1567
  %v1569 = vpop.f32.mrb[0].mxu0
  %v1570 = vpop.f32.mrb[0].mxu0
  %v1571 = vadd.f32 %v1530, %v1570
  %v1572 = vpop.f32.mrb[0].mxu0
  %1573 = vdwg.mxu0
  %1574 = vmatprep.subr.bf16.mxu0 0
  %1575 = vmatpush1.bf16.msra.mxu0 %v1111
  %1576 = vmatprep.subr.bf16.mxu0 0
  %1577 = vmatpush1.bf16.msra.mxu0 %v1112
  %1578 = vmatprep.subr.bf16.mxu0 0
  %1579 = vmatpush1.bf16.msra.mxu0 %v1113
  %1580 = vmatprep.subr.bf16.mxu0 0
  %1581 = vmatpush1.bf16.msra.mxu0 %v1114
  %1582 = vmatprep.subr.bf16.mxu0 0
  %1583 = vmatpush1.bf16.msra.mxu0 %v1115
  %1584 = vmatprep.subr.bf16.mxu0 0
  %1585 = vmatpush1.bf16.msra.mxu0 %v1116
  %1586 = vmatprep.subr.bf16.mxu0 0
  %1587 = vmatpush1.bf16.msra.mxu0 %v1117
  %1588 = vmatprep.subr.bf16.mxu0 0
  %1589 = vmatpush1.bf16.msra.mxu0 %v1118
  %1590 = vmatprep.subr.bf16.mxu0 0
  %1591 = vmatpush1.bf16.msra.mxu0 %v1119
  %1592 = vmatprep.subr.bf16.mxu0 0
  %1593 = vmatpush1.bf16.msra.mxu0 %v1120
  %1594 = vmatprep.subr.bf16.mxu0 0
  %1595 = vmatpush1.bf16.msra.mxu0 %v1121
  %1596 = vmatprep.subr.bf16.mxu0 0
  %1597 = vmatpush1.bf16.msra.mxu0 %v1122
  %1598 = vmatprep.subr.bf16.mxu0 0
  %1599 = vmatpush1.bf16.msra.mxu0 %v1123
  %1600 = vmatprep.subr.bf16.mxu0 0
  %1601 = vmatpush1.bf16.msra.mxu0 %v1124
  %1602 = vmatprep.subr.bf16.mxu0 0
  %1603 = vmatpush1.bf16.msra.mxu0 %v1125
  %1604 = vmatprep.subr.bf16.mxu0 0
  %1605 = vmatpush1.bf16.msra.mxu0 %v1126
  %1606 = vmatprep.mubr.bf16.mxu0 %v402
  %1607 = vmatmul.mubr.bf16.gmra.mrb[0].mxu0 %v401
  %v1608 = vpop.f32.mrb[0].mxu0
  %v1609 = vadd.f32 %v1568, %v1608
  %v1610 = vpop.f32.mrb[0].mxu0
  %v1611 = vpop.f32.mrb[0].mxu0
  %v1612 = vadd.f32 %v1571, %v1611
  %v1613 = vpop.f32.mrb[0].mxu0
  %1614 = vdwg.mxu0
  %1615 = vmatprep.subr.bf16.mxu0 0
  %1616 = vmatpush1.bf16.msra.mxu0 %v1127
  %1617 = vmatprep.subr.bf16.mxu0 0
  %1618 = vmatpush1.bf16.msra.mxu0 %v1128
  %1619 = vmatprep.subr.bf16.mxu0 0
  %1620 = vmatpush1.bf16.msra.mxu0 %v1129
  %1621 = vmatprep.subr.bf16.mxu0 0
  %1622 = vmatpush1.bf16.msra.mxu0 %v1130
  %1623 = vmatprep.subr.bf16.mxu0 0
  %1624 = vmatpush1.bf16.msra.mxu0 %v1131
  %1625 = vmatprep.subr.bf16.mxu0 0
  %1626 = vmatpush1.bf16.msra.mxu0 %v1132
  %1627 = vmatprep.subr.bf16.mxu0 0
  %1628 = vmatpush1.bf16.msra.mxu0 %v1133
  %1629 = vmatprep.subr.bf16.mxu0 0
  %1630 = vmatpush1.bf16.msra.mxu0 %v1134
  %1631 = vmatprep.subr.bf16.mxu0 0
  %1632 = vmatpush1.bf16.msra.mxu0 %v1135
  %1633 = vmatprep.subr.bf16.mxu0 0
  %1634 = vmatpush1.bf16.msra.mxu0 %v1136
  %1635 = vmatprep.subr.bf16.mxu0 0
  %1636 = vmatpush1.bf16.msra.mxu0 %v1137
  %1637 = vmatprep.subr.bf16.mxu0 0
  %1638 = vmatpush1.bf16.msra.mxu0 %v1138
  %1639 = vmatprep.subr.bf16.mxu0 0
  %1640 = vmatpush1.bf16.msra.mxu0 %v1139
  %1641 = vmatprep.subr.bf16.mxu0 0
  %1642 = vmatpush1.bf16.msra.mxu0 %v1140
  %1643 = vmatprep.subr.bf16.mxu0 0
  %1644 = vmatpush1.bf16.msra.mxu0 %v1141
  %1645 = vmatprep.subr.bf16.mxu0 0
  %1646 = vmatpush1.bf16.msra.mxu0 %v1142
  %1647 = vmatprep.mubr.bf16.mxu0 %v404
  %1648 = vmatmul.mubr.bf16.gmra.mrb[0].mxu0 %v403
  %v1649 = vpop.f32.mrb[0].mxu0
  %v1650 = vadd.f32 %v1609, %v1649
  %v1651 = vpop.f32.mrb[0].mxu0
  %v1652 = vpop.f32.mrb[0].mxu0
  %v1653 = vadd.f32 %v1612, %v1652
  %v1654 = vpop.f32.mrb[0].mxu0
  %1655 = vdwg.mxu0
  %1656 = vst [vmem:[%s3] sm:$0xff] %v1650
  %1657 = vst [vmem:[%s3 + $0x8] sm:$0xff] %v1653
  // Predicated region
  $region14: #{unet3d_forward.16} parent=0 // pred_check
    _
  $region15: #{unet3d_forward.16} parent=0 // pred_check_branch
    %1659 = sbr.rel (0) target = $region17
  $region16: #{unet3d_forward.16} parent=0 // pred_region
    _
  $region17: #{unet3d_forward.16} parent=0 // pred_fallthru
    _
  // Predicated region
  $region18: #{unet3d_forward.16} parent=0 // pred_check
    _
  $region19: #{unet3d_forward.16} parent=0 // pred_check_branch
    %1661 = sbr.rel (0) target = $region21
  $region20: #{unet3d_forward.16} parent=0 // pred_region
    _
  $region21: #{unet3d_forward.16} parent=0 // pred_fallthru
    _

// kernel: unet3d_forward.17
$region0: #{unet3d_forward.17}
  #allocation0 [shape = 'u32[]', space=smem, size = 0x4, offset = 0x4, fixed_abs, tag = 'smem constant byte address 0x4 - core index']
  #allocation1 [shape = 'u32[144,128]{1,0:T(1,128)}', space=vmem, size = 0x12000, scoped, tag = 'internal scratch']
  %s0 = inlined_call_operand.vmem [shape: bf16[16,1152], index: 0, kind: input, shape index: {}]
  %s1 = inlined_call_operand.vmem [shape: bf16[1152,128], index: 1, kind: input, shape index: {}]
  %s2 = inlined_call_operand.vmem [shape: f32[16,1], index: 2, kind: input, shape index: {}]
  %s3 = inlined_call_operand.vmem [shape: f32[16,128], index: 3, kind: output, shape index: {}]
  %s4 = sld [smem:[#allocation0]]
  $region22: #{unet3d_forward.17} parent=0
    _
  %s6 = ssub.s32 1, %s4
  %s7 = scalar_select 0, %s6, %s4
  // Predicated region
  $region2: #{unet3d_forward.17} parent=0 // pred_check
    _
  $region3: #{unet3d_forward.17} parent=0 // pred_check_branch
    %9 = sbr.rel (0) target = $region5
  $region4: #{unet3d_forward.17} parent=0 // pred_region
    _
  $region5: #{unet3d_forward.17} parent=0 // pred_fallthru
    _
  // Predicated region
  $region6: #{unet3d_forward.17} parent=0 // pred_check
    _
  $region7: #{unet3d_forward.17} parent=0 // pred_check_branch
    %11 = sbr.rel (0) target = $region9
  $region8: #{unet3d_forward.17} parent=0 // pred_region
    _
  $region9: #{unet3d_forward.17} parent=0 // pred_fallthru
    _
  // Predicated region
  $region10: #{unet3d_forward.17} parent=0 // pred_check
    _
  $region11: #{unet3d_forward.17} parent=0 // pred_check_branch
    %13 = sbr.rel (0) target = $region13
  $region12: #{unet3d_forward.17} parent=0 // pred_region
    _
  $region13: #{unet3d_forward.17} parent=0 // pred_fallthru
    _
  %v15 = vld [vmem:[%s1] sm:$0xf]
  %v16 = vld [vmem:[%s1 + $0x4] sm:$0xf]
  %v17 = vld [vmem:[%s1 + $0x8] sm:$0xf]
  %v18 = vld [vmem:[%s1 + $0xc] sm:$0xf]
  %v19 = vld [vmem:[%s1 + $0x10] sm:$0xf]
  %v20 = vld [vmem:[%s1 + $0x14] sm:$0xf]
  %v21 = vld [vmem:[%s1 + $0x18] sm:$0xf]
  %v22 = vld [vmem:[%s1 + $0x1c] sm:$0xf]
  %v23 = vld [vmem:[%s1 + $0x20] sm:$0xf]
  %v24 = vld [vmem:[%s1 + $0x24] sm:$0xf]
  %v25 = vld [vmem:[%s1 + $0x28] sm:$0xf]
  %v26 = vld [vmem:[%s1 + $0x2c] sm:$0xf]
  %v27 = vld [vmem:[%s1 + $0x30] sm:$0xf]
  %v28 = vld [vmem:[%s1 + $0x34] sm:$0xf]
  %v29 = vld [vmem:[%s1 + $0x38] sm:$0xf]
  %v30 = vld [vmem:[%s1 + $0x3c] sm:$0xf]
  %v31 = vld [vmem:[%s1 + $0x40] sm:$0xf]
  %v32 = vld [vmem:[%s1 + $0x44] sm:$0xf]
  %v33 = vld [vmem:[%s1 + $0x48] sm:$0xf]
  %v34 = vld [vmem:[%s1 + $0x4c] sm:$0xf]
  %v35 = vld [vmem:[%s1 + $0x50] sm:$0xf]
  %v36 = vld [vmem:[%s1 + $0x54] sm:$0xf]
  %v37 = vld [vmem:[%s1 + $0x58] sm:$0xf]
  %v38 = vld [vmem:[%s1 + $0x5c] sm:$0xf]
  %v39 = vld [vmem:[%s1 + $0x60] sm:$0xf]
  %v40 = vld [vmem:[%s1 + $0x64] sm:$0xf]
  %v41 = vld [vmem:[%s1 + $0x68] sm:$0xf]
  %v42 = vld [vmem:[%s1 + $0x6c] sm:$0xf]
  %v43 = vld [vmem:[%s1 + $0x70] sm:$0xf]
  %v44 = vld [vmem:[%s1 + $0x74] sm:$0xf]
  %v45 = vld [vmem:[%s1 + $0x78] sm:$0xf]
  %v46 = vld [vmem:[%s1 + $0x7c] sm:$0xf]
  %v47 = vld [vmem:[%s1 + $0x80] sm:$0xf]
  %v48 = vld [vmem:[%s1 + $0x84] sm:$0xf]
  %v49 = vld [vmem:[%s1 + $0x88] sm:$0xf]
  %v50 = vld [vmem:[%s1 + $0x8c] sm:$0xf]
  %v51 = vld [vmem:[%s1 + $0x90] sm:$0xf]
  %v52 = vld [vmem:[%s1 + $0x94] sm:$0xf]
  %v53 = vld [vmem:[%s1 + $0x98] sm:$0xf]
  %v54 = vld [vmem:[%s1 + $0x9c] sm:$0xf]
  %v55 = vld [vmem:[%s1 + $0xa0] sm:$0xf]
  %v56 = vld [vmem:[%s1 + $0xa4] sm:$0xf]
  %v57 = vld [vmem:[%s1 + $0xa8] sm:$0xf]
  %v58 = vld [vmem:[%s1 + $0xac] sm:$0xf]
  %v59 = vld [vmem:[%s1 + $0xb0] sm:$0xf]
  %v60 = vld [vmem:[%s1 + $0xb4] sm:$0xf]
  %v61 = vld [vmem:[%s1 + $0xb8] sm:$0xf]
  %v62 = vld [vmem:[%s1 + $0xbc] sm:$0xf]
  %v63 = vld [vmem:[%s1 + $0xc0] sm:$0xf]
  %v64 = vld [vmem:[%s1 + $0xc4] sm:$0xf]
  %v65 = vld [vmem:[%s1 + $0xc8] sm:$0xf]
  %v66 = vld [vmem:[%s1 + $0xcc] sm:$0xf]
  %v67 = vld [vmem:[%s1 + $0xd0] sm:$0xf]
  %v68 = vld [vmem:[%s1 + $0xd4] sm:$0xf]
  %v69 = vld [vmem:[%s1 + $0xd8] sm:$0xf]
  %v70 = vld [vmem:[%s1 + $0xdc] sm:$0xf]
  %v71 = vld [vmem:[%s1 + $0xe0] sm:$0xf]
  %v72 = vld [vmem:[%s1 + $0xe4] sm:$0xf]
  %v73 = vld [vmem:[%s1 + $0xe8] sm:$0xf]
  %v74 = vld [vmem:[%s1 + $0xec] sm:$0xf]
  %v75 = vld [vmem:[%s1 + $0xf0] sm:$0xf]
  %v76 = vld [vmem:[%s1 + $0xf4] sm:$0xf]
  %v77 = vld [vmem:[%s1 + $0xf8] sm:$0xf]
  %v78 = vld [vmem:[%s1 + $0xfc] sm:$0xf]
  %v79 = vld [vmem:[%s1 + $0x100] sm:$0xf]
  %v80 = vld [vmem:[%s1 + $0x104] sm:$0xf]
  %v81 = vld [vmem:[%s1 + $0x108] sm:$0xf]
  %v82 = vld [vmem:[%s1 + $0x10c] sm:$0xf]
  %v83 = vld [vmem:[%s1 + $0x110] sm:$0xf]
  %v84 = vld [vmem:[%s1 + $0x114] sm:$0xf]
  %v85 = vld [vmem:[%s1 + $0x118] sm:$0xf]
  %v86 = vld [vmem:[%s1 + $0x11c] sm:$0xf]
  %v87 = vld [vmem:[%s1 + $0x120] sm:$0xf]
  %v88 = vld [vmem:[%s1 + $0x124] sm:$0xf]
  %v89 = vld [vmem:[%s1 + $0x128] sm:$0xf]
  %v90 = vld [vmem:[%s1 + $0x12c] sm:$0xf]
  %v91 = vld [vmem:[%s1 + $0x130] sm:$0xf]
  %v92 = vld [vmem:[%s1 + $0x134] sm:$0xf]
  %v93 = vld [vmem:[%s1 + $0x138] sm:$0xf]
  %v94 = vld [vmem:[%s1 + $0x13c] sm:$0xf]
  %v95 = vld [vmem:[%s1 + $0x140] sm:$0xf]
  %v96 = vld [vmem:[%s1 + $0x144] sm:$0xf]
  %v97 = vld [vmem:[%s1 + $0x148] sm:$0xf]
  %v98 = vld [vmem:[%s1 + $0x14c] sm:$0xf]
  %v99 = vld [vmem:[%s1 + $0x150] sm:$0xf]
  %v100 = vld [vmem:[%s1 + $0x154] sm:$0xf]
  %v101 = vld [vmem:[%s1 + $0x158] sm:$0xf]
  %v102 = vld [vmem:[%s1 + $0x15c] sm:$0xf]
  %v103 = vld [vmem:[%s1 + $0x160] sm:$0xf]
  %v104 = vld [vmem:[%s1 + $0x164] sm:$0xf]
  %v105 = vld [vmem:[%s1 + $0x168] sm:$0xf]
  %v106 = vld [vmem:[%s1 + $0x16c] sm:$0xf]
  %v107 = vld [vmem:[%s1 + $0x170] sm:$0xf]
  %v108 = vld [vmem:[%s1 + $0x174] sm:$0xf]
  %v109 = vld [vmem:[%s1 + $0x178] sm:$0xf]
  %v110 = vld [vmem:[%s1 + $0x17c] sm:$0xf]
  %v111 = vld [vmem:[%s1 + $0x180] sm:$0xf]
  %v112 = vld [vmem:[%s1 + $0x184] sm:$0xf]
  %v113 = vld [vmem:[%s1 + $0x188] sm:$0xf]
  %v114 = vld [vmem:[%s1 + $0x18c] sm:$0xf]
  %v115 = vld [vmem:[%s1 + $0x190] sm:$0xf]
  %v116 = vld [vmem:[%s1 + $0x194] sm:$0xf]
  %v117 = vld [vmem:[%s1 + $0x198] sm:$0xf]
  %v118 = vld [vmem:[%s1 + $0x19c] sm:$0xf]
  %v119 = vld [vmem:[%s1 + $0x1a0] sm:$0xf]
  %v120 = vld [vmem:[%s1 + $0x1a4] sm:$0xf]
  %v121 = vld [vmem:[%s1 + $0x1a8] sm:$0xf]
  %v122 = vld [vmem:[%s1 + $0x1ac] sm:$0xf]
  %v123 = vld [vmem:[%s1 + $0x1b0] sm:$0xf]
  %v124 = vld [vmem:[%s1 + $0x1b4] sm:$0xf]
  %v125 = vld [vmem:[%s1 + $0x1b8] sm:$0xf]
  %v126 = vld [vmem:[%s1 + $0x1bc] sm:$0xf]
  %v127 = vld [vmem:[%s1 + $0x1c0] sm:$0xf]
  %v128 = vld [vmem:[%s1 + $0x1c4] sm:$0xf]
  %v129 = vld [vmem:[%s1 + $0x1c8] sm:$0xf]
  %v130 = vld [vmem:[%s1 + $0x1cc] sm:$0xf]
  %v131 = vld [vmem:[%s1 + $0x1d0] sm:$0xf]
  %v132 = vld [vmem:[%s1 + $0x1d4] sm:$0xf]
  %v133 = vld [vmem:[%s1 + $0x1d8] sm:$0xf]
  %v134 = vld [vmem:[%s1 + $0x1dc] sm:$0xf]
  %v135 = vld [vmem:[%s1 + $0x1e0] sm:$0xf]
  %v136 = vld [vmem:[%s1 + $0x1e4] sm:$0xf]
  %v137 = vld [vmem:[%s1 + $0x1e8] sm:$0xf]
  %v138 = vld [vmem:[%s1 + $0x1ec] sm:$0xf]
  %v139 = vld [vmem:[%s1 + $0x1f0] sm:$0xf]
  %v140 = vld [vmem:[%s1 + $0x1f4] sm:$0xf]
  %v141 = vld [vmem:[%s1 + $0x1f8] sm:$0xf]
  %v142 = vld [vmem:[%s1 + $0x1fc] sm:$0xf]
  %v143 = vld [vmem:[%s1 + $0x200] sm:$0xf]
  %v144 = vld [vmem:[%s1 + $0x204] sm:$0xf]
  %v145 = vld [vmem:[%s1 + $0x208] sm:$0xf]
  %v146 = vld [vmem:[%s1 + $0x20c] sm:$0xf]
  %v147 = vld [vmem:[%s1 + $0x210] sm:$0xf]
  %v148 = vld [vmem:[%s1 + $0x214] sm:$0xf]
  %v149 = vld [vmem:[%s1 + $0x218] sm:$0xf]
  %v150 = vld [vmem:[%s1 + $0x21c] sm:$0xf]
  %v151 = vld [vmem:[%s1 + $0x220] sm:$0xf]
  %v152 = vld [vmem:[%s1 + $0x224] sm:$0xf]
  %v153 = vld [vmem:[%s1 + $0x228] sm:$0xf]
  %v154 = vld [vmem:[%s1 + $0x22c] sm:$0xf]
  %v155 = vld [vmem:[%s1 + $0x230] sm:$0xf]
  %v156 = vld [vmem:[%s1 + $0x234] sm:$0xf]
  %v157 = vld [vmem:[%s1 + $0x238] sm:$0xf]
  %v158 = vld [vmem:[%s1 + $0x23c] sm:$0xf]
  %v159 = vld [vmem:[%s0] sm:$0xff]
  %v160 = vld [vmem:[%s0 + $0x8] sm:$0xff]
  %v161 = vld [vmem:[%s0 + $0x10] sm:$0xff]
  %v162 = vld [vmem:[%s0 + $0x18] sm:$0xff]
  %v163 = vld [vmem:[%s0 + $0x20] sm:$0xf]
  %v164 = vld [vmem:[%s0 + $0x24] sm:$0xff]
  %v165 = vld [vmem:[%s0 + $0x2c] sm:$0xff]
  %v166 = vld [vmem:[%s0 + $0x34] sm:$0xff]
  %v167 = vld [vmem:[%s0 + $0x3c] sm:$0xff]
  %v168 = vld [vmem:[%s0 + $0x44] sm:$0xf]
  %v169 = vld [vmem:[%s2] sm:$0xff]
  %v170 = vld [vmem:[%s2 + $0x8] sm:$0xff]
  %172 = vset.pattern.permute.xlu0 0
  %173 = vperm.xlu0 %172, %v169
  %v174 = vpop.permute.xlu0 %173
  %177 = vset.pattern.permute.xlu0 0
  %178 = vperm.xlu0 %177, %v170
  %v179 = vpop.permute.xlu0 %178
  %v191 = vunpack.c.l.b16 %v159
  %v192 = vunpack.c.h.b16 %v159
  %v193 = vunpack.c.l.b16 %v160
  %v194 = vunpack.c.h.b16 %v160
  %v195 = vunpack.c.l.b16 %v161
  %v196 = vunpack.c.h.b16 %v161
  %v197 = vunpack.c.l.b16 %v162
  %v198 = vunpack.c.h.b16 %v162
  %v199 = vunpack.c.l.b16 %v163
  %v200 = vunpack.c.l.b16 %v164
  %v201 = vunpack.c.h.b16 %v164
  %v202 = vunpack.c.l.b16 %v165
  %v203 = vunpack.c.h.b16 %v165
  %v204 = vunpack.c.l.b16 %v166
  %v205 = vunpack.c.h.b16 %v166
  %v206 = vunpack.c.l.b16 %v167
  %v207 = vunpack.c.h.b16 %v167
  %v208 = vunpack.c.l.b16 %v168
  %v209 = vpack.c.b16 %v200, %v191
  %v210 = vpack.c.b16 %v201, %v192
  %v211 = vpack.c.b16 %v202, %v193
  %v212 = vpack.c.b16 %v203, %v194
  %v213 = vpack.c.b16 %v204, %v195
  %v214 = vpack.c.b16 %v205, %v196
  %v215 = vpack.c.b16 %v206, %v197
  %v216 = vpack.c.b16 %v207, %v198
  %v217 = vpack.c.b16 %v208, %v199
  %v371 = vunpack.c.l.b16 %v15
  %v372 = vunpack.c.l.b16 %v16
  %v373 = vunpack.c.l.b16 %v17
  %v374 = vunpack.c.l.b16 %v18
  %v375 = vunpack.c.l.b16 %v19
  %v376 = vunpack.c.l.b16 %v20
  %v377 = vunpack.c.l.b16 %v21
  %v378 = vunpack.c.l.b16 %v22
  %v379 = vunpack.c.l.b16 %v23
  %v380 = vunpack.c.l.b16 %v24
  %v381 = vunpack.c.l.b16 %v25
  %v382 = vunpack.c.l.b16 %v26
  %v383 = vunpack.c.l.b16 %v27
  %v384 = vunpack.c.l.b16 %v28
  %v385 = vunpack.c.l.b16 %v29
  %v386 = vunpack.c.l.b16 %v30
  %v387 = vunpack.c.l.b16 %v31
  %v388 = vunpack.c.l.b16 %v32
  %v389 = vunpack.c.l.b16 %v33
  %v390 = vunpack.c.l.b16 %v34
  %v391 = vunpack.c.l.b16 %v35
  %v392 = vunpack.c.l.b16 %v36
  %v393 = vunpack.c.l.b16 %v37
  %v394 = vunpack.c.l.b16 %v38
  %v395 = vunpack.c.l.b16 %v39
  %v396 = vunpack.c.l.b16 %v40
  %v397 = vunpack.c.l.b16 %v41
  %v398 = vunpack.c.l.b16 %v42
  %v399 = vunpack.c.l.b16 %v43
  %v400 = vunpack.c.l.b16 %v44
  %v401 = vunpack.c.l.b16 %v45
  %v402 = vunpack.c.l.b16 %v46
  %v403 = vunpack.c.l.b16 %v47
  %v404 = vunpack.c.l.b16 %v48
  %v405 = vunpack.c.l.b16 %v49
  %v406 = vunpack.c.l.b16 %v50
  %v407 = vunpack.c.l.b16 %v51
  %v408 = vunpack.c.l.b16 %v52
  %v409 = vunpack.c.l.b16 %v53
  %v410 = vunpack.c.l.b16 %v54
  %v411 = vunpack.c.l.b16 %v55
  %v412 = vunpack.c.l.b16 %v56
  %v413 = vunpack.c.l.b16 %v57
  %v414 = vunpack.c.l.b16 %v58
  %v415 = vunpack.c.l.b16 %v59
  %v416 = vunpack.c.l.b16 %v60
  %v417 = vunpack.c.l.b16 %v61
  %v418 = vunpack.c.l.b16 %v62
  %v419 = vunpack.c.l.b16 %v63
  %v420 = vunpack.c.l.b16 %v64
  %v421 = vunpack.c.l.b16 %v65
  %v422 = vunpack.c.l.b16 %v66
  %v423 = vunpack.c.l.b16 %v67
  %v424 = vunpack.c.l.b16 %v68
  %v425 = vunpack.c.l.b16 %v69
  %v426 = vunpack.c.l.b16 %v70
  %v427 = vunpack.c.l.b16 %v71
  %v428 = vunpack.c.l.b16 %v72
  %v429 = vunpack.c.l.b16 %v73
  %v430 = vunpack.c.l.b16 %v74
  %v431 = vunpack.c.l.b16 %v75
  %v432 = vunpack.c.l.b16 %v76
  %v433 = vunpack.c.l.b16 %v77
  %v434 = vunpack.c.l.b16 %v78
  %v435 = vunpack.c.l.b16 %v79
  %v436 = vunpack.c.l.b16 %v80
  %v437 = vunpack.c.l.b16 %v81
  %v438 = vunpack.c.l.b16 %v82
  %v439 = vunpack.c.l.b16 %v83
  %v440 = vunpack.c.l.b16 %v84
  %v441 = vunpack.c.l.b16 %v85
  %v442 = vunpack.c.l.b16 %v86
  %v443 = vunpack.c.l.b16 %v87
  %v444 = vunpack.c.l.b16 %v88
  %v445 = vunpack.c.l.b16 %v89
  %v446 = vunpack.c.l.b16 %v90
  %v447 = vunpack.c.l.b16 %v91
  %v448 = vunpack.c.l.b16 %v92
  %v449 = vunpack.c.l.b16 %v93
  %v450 = vunpack.c.l.b16 %v94
  %v451 = vunpack.c.l.b16 %v95
  %v452 = vunpack.c.l.b16 %v96
  %v453 = vunpack.c.l.b16 %v97
  %v454 = vunpack.c.l.b16 %v98
  %v455 = vunpack.c.l.b16 %v99
  %v456 = vunpack.c.l.b16 %v100
  %v457 = vunpack.c.l.b16 %v101
  %v458 = vunpack.c.l.b16 %v102
  %v459 = vunpack.c.l.b16 %v103
  %v460 = vunpack.c.l.b16 %v104
  %v461 = vunpack.c.l.b16 %v105
  %v462 = vunpack.c.l.b16 %v106
  %v463 = vunpack.c.l.b16 %v107
  %v464 = vunpack.c.l.b16 %v108
  %v465 = vunpack.c.l.b16 %v109
  %v466 = vunpack.c.l.b16 %v110
  %v467 = vunpack.c.l.b16 %v111
  %v468 = vunpack.c.l.b16 %v112
  %v469 = vunpack.c.l.b16 %v113
  %v470 = vunpack.c.l.b16 %v114
  %v471 = vunpack.c.l.b16 %v115
  %v472 = vunpack.c.l.b16 %v116
  %v473 = vunpack.c.l.b16 %v117
  %v474 = vunpack.c.l.b16 %v118
  %v475 = vunpack.c.l.b16 %v119
  %v476 = vunpack.c.l.b16 %v120
  %v477 = vunpack.c.l.b16 %v121
  %v478 = vunpack.c.l.b16 %v122
  %v479 = vunpack.c.l.b16 %v123
  %v480 = vunpack.c.l.b16 %v124
  %v481 = vunpack.c.l.b16 %v125
  %v482 = vunpack.c.l.b16 %v126
  %v483 = vunpack.c.l.b16 %v127
  %v484 = vunpack.c.l.b16 %v128
  %v485 = vunpack.c.l.b16 %v129
  %v486 = vunpack.c.l.b16 %v130
  %v487 = vunpack.c.l.b16 %v131
  %v488 = vunpack.c.l.b16 %v132
  %v489 = vunpack.c.l.b16 %v133
  %v490 = vunpack.c.l.b16 %v134
  %v491 = vunpack.c.l.b16 %v135
  %v492 = vunpack.c.l.b16 %v136
  %v493 = vunpack.c.l.b16 %v137
  %v494 = vunpack.c.l.b16 %v138
  %v495 = vunpack.c.l.b16 %v139
  %v496 = vunpack.c.l.b16 %v140
  %v497 = vunpack.c.l.b16 %v141
  %v498 = vunpack.c.l.b16 %v142
  %v499 = vunpack.c.l.b16 %v143
  %v500 = vunpack.c.l.b16 %v144
  %v501 = vunpack.c.l.b16 %v145
  %v502 = vunpack.c.l.b16 %v146
  %v503 = vunpack.c.l.b16 %v147
  %v504 = vunpack.c.l.b16 %v148
  %v505 = vunpack.c.l.b16 %v149
  %v506 = vunpack.c.l.b16 %v150
  %v507 = vunpack.c.l.b16 %v151
  %v508 = vunpack.c.l.b16 %v152
  %v509 = vunpack.c.l.b16 %v153
  %v510 = vunpack.c.l.b16 %v154
  %v511 = vunpack.c.l.b16 %v155
  %v512 = vunpack.c.l.b16 %v156
  %v513 = vunpack.c.l.b16 %v157
  %v514 = vunpack.c.l.b16 %v158
  %v515 = vpack.c.b16 %v372, %v371
  %v516 = vpack.c.b16 %v374, %v373
  %v517 = vpack.c.b16 %v376, %v375
  %v518 = vpack.c.b16 %v378, %v377
  %v519 = vpack.c.b16 %v380, %v379
  %v520 = vpack.c.b16 %v382, %v381
  %v521 = vpack.c.b16 %v384, %v383
  %v522 = vpack.c.b16 %v386, %v385
  %v523 = vpack.c.b16 %v388, %v387
  %v524 = vpack.c.b16 %v390, %v389
  %v525 = vpack.c.b16 %v392, %v391
  %v526 = vpack.c.b16 %v394, %v393
  %v527 = vpack.c.b16 %v396, %v395
  %v528 = vpack.c.b16 %v398, %v397
  %v529 = vpack.c.b16 %v400, %v399
  %v530 = vpack.c.b16 %v402, %v401
  %v531 = vpack.c.b16 %v404, %v403
  %v532 = vpack.c.b16 %v406, %v405
  %v533 = vpack.c.b16 %v408, %v407
  %v534 = vpack.c.b16 %v410, %v409
  %v535 = vpack.c.b16 %v412, %v411
  %v536 = vpack.c.b16 %v414, %v413
  %v537 = vpack.c.b16 %v416, %v415
  %v538 = vpack.c.b16 %v418, %v417
  %v539 = vpack.c.b16 %v420, %v419
  %v540 = vpack.c.b16 %v422, %v421
  %v541 = vpack.c.b16 %v424, %v423
  %v542 = vpack.c.b16 %v426, %v425
  %v543 = vpack.c.b16 %v428, %v427
  %v544 = vpack.c.b16 %v430, %v429
  %v545 = vpack.c.b16 %v432, %v431
  %v546 = vpack.c.b16 %v434, %v433
  %v547 = vpack.c.b16 %v436, %v435
  %v548 = vpack.c.b16 %v438, %v437
  %v549 = vpack.c.b16 %v440, %v439
  %v550 = vpack.c.b16 %v442, %v441
  %v551 = vpack.c.b16 %v444, %v443
  %v552 = vpack.c.b16 %v446, %v445
  %v553 = vpack.c.b16 %v448, %v447
  %v554 = vpack.c.b16 %v450, %v449
  %v555 = vpack.c.b16 %v452, %v451
  %v556 = vpack.c.b16 %v454, %v453
  %v557 = vpack.c.b16 %v456, %v455
  %v558 = vpack.c.b16 %v458, %v457
  %v559 = vpack.c.b16 %v460, %v459
  %v560 = vpack.c.b16 %v462, %v461
  %v561 = vpack.c.b16 %v464, %v463
  %v562 = vpack.c.b16 %v466, %v465
  %v563 = vpack.c.b16 %v468, %v467
  %v564 = vpack.c.b16 %v470, %v469
  %v565 = vpack.c.b16 %v472, %v471
  %v566 = vpack.c.b16 %v474, %v473
  %v567 = vpack.c.b16 %v476, %v475
  %v568 = vpack.c.b16 %v478, %v477
  %v569 = vpack.c.b16 %v480, %v479
  %v570 = vpack.c.b16 %v482, %v481
  %v571 = vpack.c.b16 %v484, %v483
  %v572 = vpack.c.b16 %v486, %v485
  %v573 = vpack.c.b16 %v488, %v487
  %v574 = vpack.c.b16 %v490, %v489
  %v575 = vpack.c.b16 %v492, %v491
  %v576 = vpack.c.b16 %v494, %v493
  %v577 = vpack.c.b16 %v496, %v495
  %v578 = vpack.c.b16 %v498, %v497
  %v579 = vpack.c.b16 %v500, %v499
  %v580 = vpack.c.b16 %v502, %v501
  %v581 = vpack.c.b16 %v504, %v503
  %v582 = vpack.c.b16 %v506, %v505
  %v583 = vpack.c.b16 %v508, %v507
  %v584 = vpack.c.b16 %v510, %v509
  %v585 = vpack.c.b16 %v512, %v511
  %v586 = vpack.c.b16 %v514, %v513
  %659 = vmatprep.subr.bf16.mxu0 0
  %660 = vmatpush1.bf16.msra.mxu0 %v515
  %661 = vmatprep.subr.bf16.mxu0 0
  %662 = vmatpush1.bf16.msra.mxu0 %v516
  %663 = vmatprep.subr.bf16.mxu0 0
  %664 = vmatpush1.bf16.msra.mxu0 %v517
  %665 = vmatprep.subr.bf16.mxu0 0
  %666 = vmatpush1.bf16.msra.mxu0 %v518
  %667 = vmatprep.subr.bf16.mxu0 0
  %668 = vmatpush1.bf16.msra.mxu0 %v519
  %669 = vmatprep.subr.bf16.mxu0 0
  %670 = vmatpush1.bf16.msra.mxu0 %v520
  %671 = vmatprep.subr.bf16.mxu0 0
  %672 = vmatpush1.bf16.msra.mxu0 %v521
  %673 = vmatprep.subr.bf16.mxu0 0
  %674 = vmatpush1.bf16.msra.mxu0 %v522
  %675 = vmatprep.subr.bf16.mxu0 0
  %676 = vmatpush1.bf16.msra.mxu0 %v523
  %677 = vmatprep.subr.bf16.mxu0 0
  %678 = vmatpush1.bf16.msra.mxu0 %v524
  %679 = vmatprep.subr.bf16.mxu0 0
  %680 = vmatpush1.bf16.msra.mxu0 %v525
  %681 = vmatprep.subr.bf16.mxu0 0
  %682 = vmatpush1.bf16.msra.mxu0 %v526
  %683 = vmatprep.subr.bf16.mxu0 0
  %684 = vmatpush1.bf16.msra.mxu0 %v527
  %685 = vmatprep.subr.bf16.mxu0 0
  %686 = vmatpush1.bf16.msra.mxu0 %v528
  %687 = vmatprep.subr.bf16.mxu0 0
  %688 = vmatpush1.bf16.msra.mxu0 %v529
  %689 = vmatprep.subr.bf16.mxu0 0
  %690 = vmatpush1.bf16.msra.mxu0 %v530
  %691 = vmatprep.mubr.bf16.mxu0 %v210
  %692 = vmatmul.mubr.bf16.gmra.mrb[0].mxu0 %v209
  %v693 = vpop.f32.mrb[0].mxu0
  %v694 = vadd.f32 %v174, %v693
  %v695 = vpop.f32.mrb[0].mxu0
  %v696 = vpop.f32.mrb[0].mxu0
  %v697 = vadd.f32 %v179, %v696
  %v698 = vpop.f32.mrb[0].mxu0
  %699 = vdwg.mxu0
  %700 = vmatprep.subr.bf16.mxu0 0
  %701 = vmatpush1.bf16.msra.mxu0 %v531
  %702 = vmatprep.subr.bf16.mxu0 0
  %703 = vmatpush1.bf16.msra.mxu0 %v532
  %704 = vmatprep.subr.bf16.mxu0 0
  %705 = vmatpush1.bf16.msra.mxu0 %v533
  %706 = vmatprep.subr.bf16.mxu0 0
  %707 = vmatpush1.bf16.msra.mxu0 %v534
  %708 = vmatprep.subr.bf16.mxu0 0
  %709 = vmatpush1.bf16.msra.mxu0 %v535
  %710 = vmatprep.subr.bf16.mxu0 0
  %711 = vmatpush1.bf16.msra.mxu0 %v536
  %712 = vmatprep.subr.bf16.mxu0 0
  %713 = vmatpush1.bf16.msra.mxu0 %v537
  %714 = vmatprep.subr.bf16.mxu0 0
  %715 = vmatpush1.bf16.msra.mxu0 %v538
  %716 = vmatprep.subr.bf16.mxu0 0
  %717 = vmatpush1.bf16.msra.mxu0 %v539
  %718 = vmatprep.subr.bf16.mxu0 0
  %719 = vmatpush1.bf16.msra.mxu0 %v540
  %720 = vmatprep.subr.bf16.mxu0 0
  %721 = vmatpush1.bf16.msra.mxu0 %v541
  %722 = vmatprep.subr.bf16.mxu0 0
  %723 = vmatpush1.bf16.msra.mxu0 %v542
  %724 = vmatprep.subr.bf16.mxu0 0
  %725 = vmatpush1.bf16.msra.mxu0 %v543
  %726 = vmatprep.subr.bf16.mxu0 0
  %727 = vmatpush1.bf16.msra.mxu0 %v544
  %728 = vmatprep.subr.bf16.mxu0 0
  %729 = vmatpush1.bf16.msra.mxu0 %v545
  %730 = vmatprep.subr.bf16.mxu0 0
  %731 = vmatpush1.bf16.msra.mxu0 %v546
  %732 = vmatprep.mubr.bf16.mxu0 %v212
  %733 = vmatmul.mubr.bf16.gmra.mrb[0].mxu0 %v211
  %v734 = vpop.f32.mrb[0].mxu0
  %v735 = vadd.f32 %v694, %v734
  %v736 = vpop.f32.mrb[0].mxu0
  %v737 = vpop.f32.mrb[0].mxu0
  %v738 = vadd.f32 %v697, %v737
  %v739 = vpop.f32.mrb[0].mxu0
  %740 = vdwg.mxu0
  %741 = vmatprep.subr.bf16.mxu0 0
  %742 = vmatpush1.bf16.msra.mxu0 %v547
  %743 = vmatprep.subr.bf16.mxu0 0
  %744 = vmatpush1.bf16.msra.mxu0 %v548
  %745 = vmatprep.subr.bf16.mxu0 0
  %746 = vmatpush1.bf16.msra.mxu0 %v549
  %747 = vmatprep.subr.bf16.mxu0 0
  %748 = vmatpush1.bf16.msra.mxu0 %v550
  %749 = vmatprep.subr.bf16.mxu0 0
  %750 = vmatpush1.bf16.msra.mxu0 %v551
  %751 = vmatprep.subr.bf16.mxu0 0
  %752 = vmatpush1.bf16.msra.mxu0 %v552
  %753 = vmatprep.subr.bf16.mxu0 0
  %754 = vmatpush1.bf16.msra.mxu0 %v553
  %755 = vmatprep.subr.bf16.mxu0 0
  %756 = vmatpush1.bf16.msra.mxu0 %v554
  %757 = vmatprep.subr.bf16.mxu0 0
  %758 = vmatpush1.bf16.msra.mxu0 %v555
  %759 = vmatprep.subr.bf16.mxu0 0
  %760 = vmatpush1.bf16.msra.mxu0 %v556
  %761 = vmatprep.subr.bf16.mxu0 0
  %762 = vmatpush1.bf16.msra.mxu0 %v557
  %763 = vmatprep.subr.bf16.mxu0 0
  %764 = vmatpush1.bf16.msra.mxu0 %v558
  %765 = vmatprep.subr.bf16.mxu0 0
  %766 = vmatpush1.bf16.msra.mxu0 %v559
  %767 = vmatprep.subr.bf16.mxu0 0
  %768 = vmatpush1.bf16.msra.mxu0 %v560
  %769 = vmatprep.subr.bf16.mxu0 0
  %770 = vmatpush1.bf16.msra.mxu0 %v561
  %771 = vmatprep.subr.bf16.mxu0 0
  %772 = vmatpush1.bf16.msra.mxu0 %v562
  %773 = vmatprep.mubr.bf16.mxu0 %v214
  %774 = vmatmul.mubr.bf16.gmra.mrb[0].mxu0 %v213
  %v775 = vpop.f32.mrb[0].mxu0
  %v776 = vadd.f32 %v735, %v775
  %v777 = vpop.f32.mrb[0].mxu0
  %v778 = vpop.f32.mrb[0].mxu0
  %v779 = vadd.f32 %v738, %v778
  %v780 = vpop.f32.mrb[0].mxu0
  %781 = vdwg.mxu0
  %782 = vmatprep.subr.bf16.mxu0 0
  %783 = vmatpush1.bf16.msra.mxu0 %v563
  %784 = vmatprep.subr.bf16.mxu0 0
  %785 = vmatpush1.bf16.msra.mxu0 %v564
  %786 = vmatprep.subr.bf16.mxu0 0
  %787 = vmatpush1.bf16.msra.mxu0 %v565
  %788 = vmatprep.subr.bf16.mxu0 0
  %789 = vmatpush1.bf16.msra.mxu0 %v566
  %790 = vmatprep.subr.bf16.mxu0 0
  %791 = vmatpush1.bf16.msra.mxu0 %v567
  %792 = vmatprep.subr.bf16.mxu0 0
  %793 = vmatpush1.bf16.msra.mxu0 %v568
  %794 = vmatprep.subr.bf16.mxu0 0
  %795 = vmatpush1.bf16.msra.mxu0 %v569
  %796 = vmatprep.subr.bf16.mxu0 0
  %797 = vmatpush1.bf16.msra.mxu0 %v570
  %798 = vmatprep.subr.bf16.mxu0 0
  %799 = vmatpush1.bf16.msra.mxu0 %v571
  %800 = vmatprep.subr.bf16.mxu0 0
  %801 = vmatpush1.bf16.msra.mxu0 %v572
  %802 = vmatprep.subr.bf16.mxu0 0
  %803 = vmatpush1.bf16.msra.mxu0 %v573
  %804 = vmatprep.subr.bf16.mxu0 0
  %805 = vmatpush1.bf16.msra.mxu0 %v574
  %806 = vmatprep.subr.bf16.mxu0 0
  %807 = vmatpush1.bf16.msra.mxu0 %v575
  %808 = vmatprep.subr.bf16.mxu0 0
  %809 = vmatpush1.bf16.msra.mxu0 %v576
  %810 = vmatprep.subr.bf16.mxu0 0
  %811 = vmatpush1.bf16.msra.mxu0 %v577
  %812 = vmatprep.subr.bf16.mxu0 0
  %813 = vmatpush1.bf16.msra.mxu0 %v578
  %814 = vmatprep.mubr.bf16.mxu0 %v216
  %815 = vmatmul.mubr.bf16.gmra.mrb[0].mxu0 %v215
  %v816 = vpop.f32.mrb[0].mxu0
  %v817 = vadd.f32 %v776, %v816
  %v818 = vpop.f32.mrb[0].mxu0
  %v819 = vpop.f32.mrb[0].mxu0
  %v820 = vadd.f32 %v779, %v819
  %v821 = vpop.f32.mrb[0].mxu0
  %822 = vdwg.mxu0
  %823 = vmatprep.subr.bf16.mxu0 0
  %824 = vmatpush1.bf16.msra.mxu0 %v579
  %825 = vmatprep.subr.bf16.mxu0 0
  %826 = vmatpush1.bf16.msra.mxu0 %v580
  %827 = vmatprep.subr.bf16.mxu0 0
  %828 = vmatpush1.bf16.msra.mxu0 %v581
  %829 = vmatprep.subr.bf16.mxu0 0
  %830 = vmatpush1.bf16.msra.mxu0 %v582
  %831 = vmatprep.subr.bf16.mxu0 0
  %832 = vmatpush1.bf16.msra.mxu0 %v583
  %833 = vmatprep.subr.bf16.mxu0 0
  %834 = vmatpush1.bf16.msra.mxu0 %v584
  %835 = vmatprep.subr.bf16.mxu0 0
  %836 = vmatpush1.bf16.msra.mxu0 %v585
  %837 = vmatprep.subr.bf16.mxu0 0
  %838 = vmatpush1.bf16.msra.mxu0 %v586
  %839 = vmatprep.subr.bf16.mxu0 0
  %840 = vmatpush1.bf16.msra.mxu0 0
  %841 = vmatprep.subr.bf16.mxu0 0
  %842 = vmatpush1.bf16.msra.mxu0 0
  %843 = vmatprep.subr.bf16.mxu0 0
  %844 = vmatpush1.bf16.msra.mxu0 0
  %845 = vmatprep.subr.bf16.mxu0 0
  %846 = vmatpush1.bf16.msra.mxu0 0
  %847 = vmatprep.subr.bf16.mxu0 0
  %848 = vmatpush1.bf16.msra.mxu0 0
  %849 = vmatprep.subr.bf16.mxu0 0
  %850 = vmatpush1.bf16.msra.mxu0 0
  %851 = vmatprep.subr.bf16.mxu0 0
  %852 = vmatpush1.bf16.msra.mxu0 0
  %853 = vmatprep.subr.bf16.mxu0 0
  %854 = vmatpush1.bf16.msra.mxu0 0
  %855 = vmatprep.mubr.bf16.mxu0 0
  %856 = vmatmul.mubr.bf16.gmra.mrb[0].mxu0 %v217
  %v857 = vpop.f32.mrb[0].mxu0
  %v858 = vadd.f32 %v817, %v857
  %v859 = vpop.f32.mrb[0].mxu0
  %v860 = vpop.f32.mrb[0].mxu0
  %v861 = vadd.f32 %v820, %v860
  %v862 = vpop.f32.mrb[0].mxu0
  %863 = vdwg.mxu0
  %864 = vst [vmem:[%s3] sm:$0xff] %v858
  %865 = vst [vmem:[%s3 + $0x8] sm:$0xff] %v861
  // Predicated region
  $region14: #{unet3d_forward.17} parent=0 // pred_check
    _
  $region15: #{unet3d_forward.17} parent=0 // pred_check_branch
    %867 = sbr.rel (0) target = $region17
  $region16: #{unet3d_forward.17} parent=0 // pred_region
    _
  $region17: #{unet3d_forward.17} parent=0 // pred_fallthru
    _
  // Predicated region
  $region18: #{unet3d_forward.17} parent=0 // pred_check
    _
  $region19: #{unet3d_forward.17} parent=0 // pred_check_branch
    %869 = sbr.rel (0) target = $region21
  $region20: #{unet3d_forward.17} parent=0 // pred_region
    _
  $region21: #{unet3d_forward.17} parent=0 // pred_fallthru
    _

// kernel: unet3d_forward.18
$region0: #{unet3d_forward.18}
  #allocation0 [shape = 'u32[]', space=smem, size = 0x4, offset = 0x4, fixed_abs, tag = 'smem constant byte address 0x4 - core index']
  #allocation1 [shape = 'u32[144,128]{1,0:T(1,128)}', space=vmem, size = 0x12000, scoped, tag = 'internal scratch']
  %s0 = inlined_call_operand.vmem [shape: bf16[16,1152], index: 0, kind: input, shape index: {}]
  %s1 = inlined_call_operand.vmem [shape: bf16[1152,512], index: 1, kind: input, shape index: {}]
  %s2 = inlined_call_operand.vmem [shape: f32[16,1], index: 2, kind: input, shape index: {}]
  %s3 = inlined_call_operand.vmem [shape: f32[16,512], index: 3, kind: output, shape index: {}]
  %s4 = sld [smem:[#allocation0]]
  $region22: #{unet3d_forward.18} parent=0
    _
  %s6 = ssub.s32 1, %s4
  %s7 = scalar_select 0, %s6, %s4
  // Predicated region
  $region2: #{unet3d_forward.18} parent=0 // pred_check
    _
  $region3: #{unet3d_forward.18} parent=0 // pred_check_branch
    %9 = sbr.rel (0) target = $region5
  $region4: #{unet3d_forward.18} parent=0 // pred_region
    _
  $region5: #{unet3d_forward.18} parent=0 // pred_fallthru
    _
  // Predicated region
  $region6: #{unet3d_forward.18} parent=0 // pred_check
    _
  $region7: #{unet3d_forward.18} parent=0 // pred_check_branch
    %11 = sbr.rel (0) target = $region9
  $region8: #{unet3d_forward.18} parent=0 // pred_region
    _
  $region9: #{unet3d_forward.18} parent=0 // pred_fallthru
    _
  // Predicated region
  $region10: #{unet3d_forward.18} parent=0 // pred_check
    _
  $region11: #{unet3d_forward.18} parent=0 // pred_check_branch
    %13 = sbr.rel (0) target = $region13
  $region12: #{unet3d_forward.18} parent=0 // pred_region
    _
  $region13: #{unet3d_forward.18} parent=0 // pred_fallthru
    _
  %v15 = vld [vmem:[%s1] sm:$0xff]
  %v16 = vld [vmem:[%s1 + $0x8] sm:$0xff]
  %v17 = vld [vmem:[%s1 + $0x10] sm:$0xff]
  %v18 = vld [vmem:[%s1 + $0x18] sm:$0xff]
  %v19 = vld [vmem:[%s1 + $0x20] sm:$0xff]
  %v20 = vld [vmem:[%s1 + $0x28] sm:$0xff]
  %v21 = vld [vmem:[%s1 + $0x30] sm:$0xff]
  %v22 = vld [vmem:[%s1 + $0x38] sm:$0xff]
  %v23 = vld [vmem:[%s1 + $0x40] sm:$0xff]
  %v24 = vld [vmem:[%s1 + $0x48] sm:$0xff]
  %v25 = vld [vmem:[%s1 + $0x50] sm:$0xff]
  %v26 = vld [vmem:[%s1 + $0x58] sm:$0xff]
  %v27 = vld [vmem:[%s1 + $0x60] sm:$0xff]
  %v28 = vld [vmem:[%s1 + $0x68] sm:$0xff]
  %v29 = vld [vmem:[%s1 + $0x70] sm:$0xff]
  %v30 = vld [vmem:[%s1 + $0x78] sm:$0xff]
  %v31 = vld [vmem:[%s1 + $0x80] sm:$0xff]
  %v32 = vld [vmem:[%s1 + $0x88] sm:$0xff]
  %v33 = vld [vmem:[%s1 + $0x90] sm:$0xff]
  %v34 = vld [vmem:[%s1 + $0x98] sm:$0xff]
  %v35 = vld [vmem:[%s1 + $0xa0] sm:$0xff]
  %v36 = vld [vmem:[%s1 + $0xa8] sm:$0xff]
  %v37 = vld [vmem:[%s1 + $0xb0] sm:$0xff]
  %v38 = vld [vmem:[%s1 + $0xb8] sm:$0xff]
  %v39 = vld [vmem:[%s1 + $0xc0] sm:$0xff]
  %v40 = vld [vmem:[%s1 + $0xc8] sm:$0xff]
  %v41 = vld [vmem:[%s1 + $0xd0] sm:$0xff]
  %v42 = vld [vmem:[%s1 + $0xd8] sm:$0xff]
  %v43 = vld [vmem:[%s1 + $0xe0] sm:$0xff]
  %v44 = vld [vmem:[%s1 + $0xe8] sm:$0xff]
  %v45 = vld [vmem:[%s1 + $0xf0] sm:$0xff]
  %v46 = vld [vmem:[%s1 + $0xf8] sm:$0xff]
  %v47 = vld [vmem:[%s1 + $0x100] sm:$0xff]
  %v48 = vld [vmem:[%s1 + $0x108] sm:$0xff]
  %v49 = vld [vmem:[%s1 + $0x110] sm:$0xff]
  %v50 = vld [vmem:[%s1 + $0x118] sm:$0xff]
  %v51 = vld [vmem:[%s1 + $0x120] sm:$0xff]
  %v52 = vld [vmem:[%s1 + $0x128] sm:$0xff]
  %v53 = vld [vmem:[%s1 + $0x130] sm:$0xff]
  %v54 = vld [vmem:[%s1 + $0x138] sm:$0xff]
  %v55 = vld [vmem:[%s1 + $0x140] sm:$0xff]
  %v56 = vld [vmem:[%s1 + $0x148] sm:$0xff]
  %v57 = vld [vmem:[%s1 + $0x150] sm:$0xff]
  %v58 = vld [vmem:[%s1 + $0x158] sm:$0xff]
  %v59 = vld [vmem:[%s1 + $0x160] sm:$0xff]
  %v60 = vld [vmem:[%s1 + $0x168] sm:$0xff]
  %v61 = vld [vmem:[%s1 + $0x170] sm:$0xff]
  %v62 = vld [vmem:[%s1 + $0x178] sm:$0xff]
  %v63 = vld [vmem:[%s1 + $0x180] sm:$0xff]
  %v64 = vld [vmem:[%s1 + $0x188] sm:$0xff]
  %v65 = vld [vmem:[%s1 + $0x190] sm:$0xff]
  %v66 = vld [vmem:[%s1 + $0x198] sm:$0xff]
  %v67 = vld [vmem:[%s1 + $0x1a0] sm:$0xff]
  %v68 = vld [vmem:[%s1 + $0x1a8] sm:$0xff]
  %v69 = vld [vmem:[%s1 + $0x1b0] sm:$0xff]
  %v70 = vld [vmem:[%s1 + $0x1b8] sm:$0xff]
  %v71 = vld [vmem:[%s1 + $0x1c0] sm:$0xff]
  %v72 = vld [vmem:[%s1 + $0x1c8] sm:$0xff]
  %v73 = vld [vmem:[%s1 + $0x1d0] sm:$0xff]
  %v74 = vld [vmem:[%s1 + $0x1d8] sm:$0xff]
  %v75 = vld [vmem:[%s1 + $0x1e0] sm:$0xff]
  %v76 = vld [vmem:[%s1 + $0x1e8] sm:$0xff]
  %v77 = vld [vmem:[%s1 + $0x1f0] sm:$0xff]
  %v78 = vld [vmem:[%s1 + $0x1f8] sm:$0xff]
  %v79 = vld [vmem:[%s1 + $0x200] sm:$0xff]
  %v80 = vld [vmem:[%s1 + $0x208] sm:$0xff]
  %v81 = vld [vmem:[%s1 + $0x210] sm:$0xff]
  %v82 = vld [vmem:[%s1 + $0x218] sm:$0xff]
  %v83 = vld [vmem:[%s1 + $0x220] sm:$0xff]
  %v84 = vld [vmem:[%s1 + $0x228] sm:$0xff]
  %v85 = vld [vmem:[%s1 + $0x230] sm:$0xff]
  %v86 = vld [vmem:[%s1 + $0x238] sm:$0xff]
  %v87 = vld [vmem:[%s1 + $0x240] sm:$0xff]
  %v88 = vld [vmem:[%s1 + $0x248] sm:$0xff]
  %v89 = vld [vmem:[%s1 + $0x250] sm:$0xff]
  %v90 = vld [vmem:[%s1 + $0x258] sm:$0xff]
  %v91 = vld [vmem:[%s1 + $0x260] sm:$0xff]
  %v92 = vld [vmem:[%s1 + $0x268] sm:$0xff]
  %v93 = vld [vmem:[%s1 + $0x270] sm:$0xff]
  %v94 = vld [vmem:[%s1 + $0x278] sm:$0xff]
  %v95 = vld [vmem:[%s1 + $0x280] sm:$0xff]
  %v96 = vld [vmem:[%s1 + $0x288] sm:$0xff]
  %v97 = vld [vmem:[%s1 + $0x290] sm:$0xff]
  %v98 = vld [vmem:[%s1 + $0x298] sm:$0xff]
  %v99 = vld [vmem:[%s1 + $0x2a0] sm:$0xff]
  %v100 = vld [vmem:[%s1 + $0x2a8] sm:$0xff]
  %v101 = vld [vmem:[%s1 + $0x2b0] sm:$0xff]
  %v102 = vld [vmem:[%s1 + $0x2b8] sm:$0xff]
  %v103 = vld [vmem:[%s1 + $0x2c0] sm:$0xff]
  %v104 = vld [vmem:[%s1 + $0x2c8] sm:$0xff]
  %v105 = vld [vmem:[%s1 + $0x2d0] sm:$0xff]
  %v106 = vld [vmem:[%s1 + $0x2d8] sm:$0xff]
  %v107 = vld [vmem:[%s1 + $0x2e0] sm:$0xff]
  %v108 = vld [vmem:[%s1 + $0x2e8] sm:$0xff]
  %v109 = vld [vmem:[%s1 + $0x2f0] sm:$0xff]
  %v110 = vld [vmem:[%s1 + $0x2f8] sm:$0xff]
  %v111 = vld [vmem:[%s1 + $0x300] sm:$0xff]
  %v112 = vld [vmem:[%s1 + $0x308] sm:$0xff]
  %v113 = vld [vmem:[%s1 + $0x310] sm:$0xff]
  %v114 = vld [vmem:[%s1 + $0x318] sm:$0xff]
  %v115 = vld [vmem:[%s1 + $0x320] sm:$0xff]
  %v116 = vld [vmem:[%s1 + $0x328] sm:$0xff]
  %v117 = vld [vmem:[%s1 + $0x330] sm:$0xff]
  %v118 = vld [vmem:[%s1 + $0x338] sm:$0xff]
  %v119 = vld [vmem:[%s1 + $0x340] sm:$0xff]
  %v120 = vld [vmem:[%s1 + $0x348] sm:$0xff]
  %v121 = vld [vmem:[%s1 + $0x350] sm:$0xff]
  %v122 = vld [vmem:[%s1 + $0x358] sm:$0xff]
  %v123 = vld [vmem:[%s1 + $0x360] sm:$0xff]
  %v124 = vld [vmem:[%s1 + $0x368] sm:$0xff]
  %v125 = vld [vmem:[%s1 + $0x370] sm:$0xff]
  %v126 = vld [vmem:[%s1 + $0x378] sm:$0xff]
  %v127 = vld [vmem:[%s1 + $0x380] sm:$0xff]
  %v128 = vld [vmem:[%s1 + $0x388] sm:$0xff]
  %v129 = vld [vmem:[%s1 + $0x390] sm:$0xff]
  %v130 = vld [vmem:[%s1 + $0x398] sm:$0xff]
  %v131 = vld [vmem:[%s1 + $0x3a0] sm:$0xff]
  %v132 = vld [vmem:[%s1 + $0x3a8] sm:$0xff]
  %v133 = vld [vmem:[%s1 + $0x3b0] sm:$0xff]
  %v134 = vld [vmem:[%s1 + $0x3b8] sm:$0xff]
  %v135 = vld [vmem:[%s1 + $0x3c0] sm:$0xff]
  %v136 = vld [vmem:[%s1 + $0x3c8] sm:$0xff]
  %v137 = vld [vmem:[%s1 + $0x3d0] sm:$0xff]
  %v138 = vld [vmem:[%s1 + $0x3d8] sm:$0xff]
  %v139 = vld [vmem:[%s1 + $0x3e0] sm:$0xff]
  %v140 = vld [vmem:[%s1 + $0x3e8] sm:$0xff]
  %v141 = vld [vmem:[%s1 + $0x3f0] sm:$0xff]
  %v142 = vld [vmem:[%s1 + $0x3f8] sm:$0xff]
  %v143 = vld [vmem:[%s1 + $0x400] sm:$0xff]
  %v144 = vld [vmem:[%s1 + $0x408] sm:$0xff]
  %v145 = vld [vmem:[%s1 + $0x410] sm:$0xff]
  %v146 = vld [vmem:[%s1 + $0x418] sm:$0xff]
  %v147 = vld [vmem:[%s1 + $0x420] sm:$0xff]
  %v148 = vld [vmem:[%s1 + $0x428] sm:$0xff]
  %v149 = vld [vmem:[%s1 + $0x430] sm:$0xff]
  %v150 = vld [vmem:[%s1 + $0x438] sm:$0xff]
  %v151 = vld [vmem:[%s1 + $0x440] sm:$0xff]
  %v152 = vld [vmem:[%s1 + $0x448] sm:$0xff]
  %v153 = vld [vmem:[%s1 + $0x450] sm:$0xff]
  %v154 = vld [vmem:[%s1 + $0x458] sm:$0xff]
  %v155 = vld [vmem:[%s1 + $0x460] sm:$0xff]
  %v156 = vld [vmem:[%s1 + $0x468] sm:$0xff]
  %v157 = vld [vmem:[%s1 + $0x470] sm:$0xff]
  %v158 = vld [vmem:[%s1 + $0x478] sm:$0xff]
  %v159 = vld [vmem:[%s1 + $0x480] sm:$0xff]
  %v160 = vld [vmem:[%s1 + $0x488] sm:$0xff]
  %v161 = vld [vmem:[%s1 + $0x490] sm:$0xff]
  %v162 = vld [vmem:[%s1 + $0x498] sm:$0xff]
  %v163 = vld [vmem:[%s1 + $0x4a0] sm:$0xff]
  %v164 = vld [vmem:[%s1 + $0x4a8] sm:$0xff]
  %v165 = vld [vmem:[%s1 + $0x4b0] sm:$0xff]
  %v166 = vld [vmem:[%s1 + $0x4b8] sm:$0xff]
  %v167 = vld [vmem:[%s1 + $0x4c0] sm:$0xff]
  %v168 = vld [vmem:[%s1 + $0x4c8] sm:$0xff]
  %v169 = vld [vmem:[%s1 + $0x4d0] sm:$0xff]
  %v170 = vld [vmem:[%s1 + $0x4d8] sm:$0xff]
  %v171 = vld [vmem:[%s1 + $0x4e0] sm:$0xff]
  %v172 = vld [vmem:[%s1 + $0x4e8] sm:$0xff]
  %v173 = vld [vmem:[%s1 + $0x4f0] sm:$0xff]
  %v174 = vld [vmem:[%s1 + $0x4f8] sm:$0xff]
  %v175 = vld [vmem:[%s1 + $0x500] sm:$0xff]
  %v176 = vld [vmem:[%s1 + $0x508] sm:$0xff]
  %v177 = vld [vmem:[%s1 + $0x510] sm:$0xff]
  %v178 = vld [vmem:[%s1 + $0x518] sm:$0xff]
  %v179 = vld [vmem:[%s1 + $0x520] sm:$0xff]
  %v180 = vld [vmem:[%s1 + $0x528] sm:$0xff]
  %v181 = vld [vmem:[%s1 + $0x530] sm:$0xff]
  %v182 = vld [vmem:[%s1 + $0x538] sm:$0xff]
  %v183 = vld [vmem:[%s1 + $0x540] sm:$0xff]
  %v184 = vld [vmem:[%s1 + $0x548] sm:$0xff]
  %v185 = vld [vmem:[%s1 + $0x550] sm:$0xff]
  %v186 = vld [vmem:[%s1 + $0x558] sm:$0xff]
  %v187 = vld [vmem:[%s1 + $0x560] sm:$0xff]
  %v188 = vld [vmem:[%s1 + $0x568] sm:$0xff]
  %v189 = vld [vmem:[%s1 + $0x570] sm:$0xff]
  %v190 = vld [vmem:[%s1 + $0x578] sm:$0xff]
  %v191 = vld [vmem:[%s1 + $0x580] sm:$0xff]
  %v192 = vld [vmem:[%s1 + $0x588] sm:$0xff]
  %v193 = vld [vmem:[%s1 + $0x590] sm:$0xff]
  %v194 = vld [vmem:[%s1 + $0x598] sm:$0xff]
  %v195 = vld [vmem:[%s1 + $0x5a0] sm:$0xff]
  %v196 = vld [vmem:[%s1 + $0x5a8] sm:$0xff]
  %v197 = vld [vmem:[%s1 + $0x5b0] sm:$0xff]
  %v198 = vld [vmem:[%s1 + $0x5b8] sm:$0xff]
  %v199 = vld [vmem:[%s1 + $0x5c0] sm:$0xff]
  %v200 = vld [vmem:[%s1 + $0x5c8] sm:$0xff]
  %v201 = vld [vmem:[%s1 + $0x5d0] sm:$0xff]
  %v202 = vld [vmem:[%s1 + $0x5d8] sm:$0xff]
  %v203 = vld [vmem:[%s1 + $0x5e0] sm:$0xff]
  %v204 = vld [vmem:[%s1 + $0x5e8] sm:$0xff]
  %v205 = vld [vmem:[%s1 + $0x5f0] sm:$0xff]
  %v206 = vld [vmem:[%s1 + $0x5f8] sm:$0xff]
  %v207 = vld [vmem:[%s1 + $0x600] sm:$0xff]
  %v208 = vld [vmem:[%s1 + $0x608] sm:$0xff]
  %v209 = vld [vmem:[%s1 + $0x610] sm:$0xff]
  %v210 = vld [vmem:[%s1 + $0x618] sm:$0xff]
  %v211 = vld [vmem:[%s1 + $0x620] sm:$0xff]
  %v212 = vld [vmem:[%s1 + $0x628] sm:$0xff]
  %v213 = vld [vmem:[%s1 + $0x630] sm:$0xff]
  %v214 = vld [vmem:[%s1 + $0x638] sm:$0xff]
  %v215 = vld [vmem:[%s1 + $0x640] sm:$0xff]
  %v216 = vld [vmem:[%s1 + $0x648] sm:$0xff]
  %v217 = vld [vmem:[%s1 + $0x650] sm:$0xff]
  %v218 = vld [vmem:[%s1 + $0x658] sm:$0xff]
  %v219 = vld [vmem:[%s1 + $0x660] sm:$0xff]
  %v220 = vld [vmem:[%s1 + $0x668] sm:$0xff]
  %v221 = vld [vmem:[%s1 + $0x670] sm:$0xff]
  %v222 = vld [vmem:[%s1 + $0x678] sm:$0xff]
  %v223 = vld [vmem:[%s1 + $0x680] sm:$0xff]
  %v224 = vld [vmem:[%s1 + $0x688] sm:$0xff]
  %v225 = vld [vmem:[%s1 + $0x690] sm:$0xff]
  %v226 = vld [vmem:[%s1 + $0x698] sm:$0xff]
  %v227 = vld [vmem:[%s1 + $0x6a0] sm:$0xff]
  %v228 = vld [vmem:[%s1 + $0x6a8] sm:$0xff]
  %v229 = vld [vmem:[%s1 + $0x6b0] sm:$0xff]
  %v230 = vld [vmem:[%s1 + $0x6b8] sm:$0xff]
  %v231 = vld [vmem:[%s1 + $0x6c0] sm:$0xff]
  %v232 = vld [vmem:[%s1 + $0x6c8] sm:$0xff]
  %v233 = vld [vmem:[%s1 + $0x6d0] sm:$0xff]
  %v234 = vld [vmem:[%s1 + $0x6d8] sm:$0xff]
  %v235 = vld [vmem:[%s1 + $0x6e0] sm:$0xff]
  %v236 = vld [vmem:[%s1 + $0x6e8] sm:$0xff]
  %v237 = vld [vmem:[%s1 + $0x6f0] sm:$0xff]
  %v238 = vld [vmem:[%s1 + $0x6f8] sm:$0xff]
  %v239 = vld [vmem:[%s1 + $0x700] sm:$0xff]
  %v240 = vld [vmem:[%s1 + $0x708] sm:$0xff]
  %v241 = vld [vmem:[%s1 + $0x710] sm:$0xff]
  %v242 = vld [vmem:[%s1 + $0x718] sm:$0xff]
  %v243 = vld [vmem:[%s1 + $0x720] sm:$0xff]
  %v244 = vld [vmem:[%s1 + $0x728] sm:$0xff]
  %v245 = vld [vmem:[%s1 + $0x730] sm:$0xff]
  %v246 = vld [vmem:[%s1 + $0x738] sm:$0xff]
  %v247 = vld [vmem:[%s1 + $0x740] sm:$0xff]
  %v248 = vld [vmem:[%s1 + $0x748] sm:$0xff]
  %v249 = vld [vmem:[%s1 + $0x750] sm:$0xff]
  %v250 = vld [vmem:[%s1 + $0x758] sm:$0xff]
  %v251 = vld [vmem:[%s1 + $0x760] sm:$0xff]
  %v252 = vld [vmem:[%s1 + $0x768] sm:$0xff]
  %v253 = vld [vmem:[%s1 + $0x770] sm:$0xff]
  %v254 = vld [vmem:[%s1 + $0x778] sm:$0xff]
  %v255 = vld [vmem:[%s1 + $0x780] sm:$0xff]
  %v256 = vld [vmem:[%s1 + $0x788] sm:$0xff]
  %v257 = vld [vmem:[%s1 + $0x790] sm:$0xff]
  %v258 = vld [vmem:[%s1 + $0x798] sm:$0xff]
  %v259 = vld [vmem:[%s1 + $0x7a0] sm:$0xff]
  %v260 = vld [vmem:[%s1 + $0x7a8] sm:$0xff]
  %v261 = vld [vmem:[%s1 + $0x7b0] sm:$0xff]
  %v262 = vld [vmem:[%s1 + $0x7b8] sm:$0xff]
  %v263 = vld [vmem:[%s1 + $0x7c0] sm:$0xff]
  %v264 = vld [vmem:[%s1 + $0x7c8] sm:$0xff]
  %v265 = vld [vmem:[%s1 + $0x7d0] sm:$0xff]
  %v266 = vld [vmem:[%s1 + $0x7d8] sm:$0xff]
  %v267 = vld [vmem:[%s1 + $0x7e0] sm:$0xff]
  %v268 = vld [vmem:[%s1 + $0x7e8] sm:$0xff]
  %v269 = vld [vmem:[%s1 + $0x7f0] sm:$0xff]
  %v270 = vld [vmem:[%s1 + $0x7f8] sm:$0xff]
  %v271 = vld [vmem:[%s1 + $0x800] sm:$0xff]
  %v272 = vld [vmem:[%s1 + $0x808] sm:$0xff]
  %v273 = vld [vmem:[%s1 + $0x810] sm:$0xff]
  %v274 = vld [vmem:[%s1 + $0x818] sm:$0xff]
  %v275 = vld [vmem:[%s1 + $0x820] sm:$0xff]
  %v276 = vld [vmem:[%s1 + $0x828] sm:$0xff]
  %v277 = vld [vmem:[%s1 + $0x830] sm:$0xff]
  %v278 = vld [vmem:[%s1 + $0x838] sm:$0xff]
  %v279 = vld [vmem:[%s1 + $0x840] sm:$0xff]
  %v280 = vld [vmem:[%s1 + $0x848] sm:$0xff]
  %v281 = vld [vmem:[%s1 + $0x850] sm:$0xff]
  %v282 = vld [vmem:[%s1 + $0x858] sm:$0xff]
  %v283 = vld [vmem:[%s1 + $0x860] sm:$0xff]
  %v284 = vld [vmem:[%s1 + $0x868] sm:$0xff]
  %v285 = vld [vmem:[%s1 + $0x870] sm:$0xff]
  %v286 = vld [vmem:[%s1 + $0x878] sm:$0xff]
  %v287 = vld [vmem:[%s1 + $0x880] sm:$0xff]
  %v288 = vld [vmem:[%s1 + $0x888] sm:$0xff]
  %v289 = vld [vmem:[%s1 + $0x890] sm:$0xff]
  %v290 = vld [vmem:[%s1 + $0x898] sm:$0xff]
  %v291 = vld [vmem:[%s1 + $0x8a0] sm:$0xff]
  %v292 = vld [vmem:[%s1 + $0x8a8] sm:$0xff]
  %v293 = vld [vmem:[%s1 + $0x8b0] sm:$0xff]
  %v294 = vld [vmem:[%s1 + $0x8b8] sm:$0xff]
  %v295 = vld [vmem:[%s1 + $0x8c0] sm:$0xff]
  %v296 = vld [vmem:[%s1 + $0x8c8] sm:$0xff]
  %v297 = vld [vmem:[%s1 + $0x8d0] sm:$0xff]
  %v298 = vld [vmem:[%s1 + $0x8d8] sm:$0xff]
  %v299 = vld [vmem:[%s1 + $0x8e0] sm:$0xff]
  %v300 = vld [vmem:[%s1 + $0x8e8] sm:$0xff]
  %v301 = vld [vmem:[%s1 + $0x8f0] sm:$0xff]
  %v302 = vld [vmem:[%s1 + $0x8f8] sm:$0xff]
  %v303 = vld [vmem:[%s0] sm:$0xff]
  %v304 = vld [vmem:[%s0 + $0x8] sm:$0xff]
  %v305 = vld [vmem:[%s0 + $0x10] sm:$0xff]
  %v306 = vld [vmem:[%s0 + $0x18] sm:$0xff]
  %v307 = vld [vmem:[%s0 + $0x20] sm:$0xf]
  %v308 = vld [vmem:[%s0 + $0x24] sm:$0xff]
  %v309 = vld [vmem:[%s0 + $0x2c] sm:$0xff]
  %v310 = vld [vmem:[%s0 + $0x34] sm:$0xff]
  %v311 = vld [vmem:[%s0 + $0x3c] sm:$0xff]
  %v312 = vld [vmem:[%s0 + $0x44] sm:$0xf]
  %v313 = vld [vmem:[%s2] sm:$0xff]
  %v314 = vld [vmem:[%s2 + $0x8] sm:$0xff]
  %316 = vset.pattern.permute.xlu0 0
  %317 = vperm.xlu0 %316, %v313
  %v318 = vpop.permute.xlu0 %317
  %321 = vset.pattern.permute.xlu0 0
  %322 = vperm.xlu0 %321, %v314
  %v323 = vpop.permute.xlu0 %322
  %v335 = vunpack.c.l.b16 %v303
  %v336 = vunpack.c.h.b16 %v303
  %v337 = vunpack.c.l.b16 %v304
  %v338 = vunpack.c.h.b16 %v304
  %v339 = vunpack.c.l.b16 %v305
  %v340 = vunpack.c.h.b16 %v305
  %v341 = vunpack.c.l.b16 %v306
  %v342 = vunpack.c.h.b16 %v306
  %v343 = vunpack.c.l.b16 %v307
  %v344 = vunpack.c.l.b16 %v308
  %v345 = vunpack.c.h.b16 %v308
  %v346 = vunpack.c.l.b16 %v309
  %v347 = vunpack.c.h.b16 %v309
  %v348 = vunpack.c.l.b16 %v310
  %v349 = vunpack.c.h.b16 %v310
  %v350 = vunpack.c.l.b16 %v311
  %v351 = vunpack.c.h.b16 %v311
  %v352 = vunpack.c.l.b16 %v312
  %v353 = vpack.c.b16 %v344, %v335
  %v354 = vpack.c.b16 %v345, %v336
  %v355 = vpack.c.b16 %v346, %v337
  %v356 = vpack.c.b16 %v347, %v338
  %v357 = vpack.c.b16 %v348, %v339
  %v358 = vpack.c.b16 %v349, %v340
  %v359 = vpack.c.b16 %v350, %v341
  %v360 = vpack.c.b16 %v351, %v342
  %v361 = vpack.c.b16 %v352, %v343
  %v659 = vunpack.c.l.b16 %v15
  %v660 = vunpack.c.h.b16 %v15
  %v661 = vunpack.c.l.b16 %v16
  %v662 = vunpack.c.h.b16 %v16
  %v663 = vunpack.c.l.b16 %v17
  %v664 = vunpack.c.h.b16 %v17
  %v665 = vunpack.c.l.b16 %v18
  %v666 = vunpack.c.h.b16 %v18
  %v667 = vunpack.c.l.b16 %v19
  %v668 = vunpack.c.h.b16 %v19
  %v669 = vunpack.c.l.b16 %v20
  %v670 = vunpack.c.h.b16 %v20
  %v671 = vunpack.c.l.b16 %v21
  %v672 = vunpack.c.h.b16 %v21
  %v673 = vunpack.c.l.b16 %v22
  %v674 = vunpack.c.h.b16 %v22
  %v675 = vunpack.c.l.b16 %v23
  %v676 = vunpack.c.h.b16 %v23
  %v677 = vunpack.c.l.b16 %v24
  %v678 = vunpack.c.h.b16 %v24
  %v679 = vunpack.c.l.b16 %v25
  %v680 = vunpack.c.h.b16 %v25
  %v681 = vunpack.c.l.b16 %v26
  %v682 = vunpack.c.h.b16 %v26
  %v683 = vunpack.c.l.b16 %v27
  %v684 = vunpack.c.h.b16 %v27
  %v685 = vunpack.c.l.b16 %v28
  %v686 = vunpack.c.h.b16 %v28
  %v687 = vunpack.c.l.b16 %v29
  %v688 = vunpack.c.h.b16 %v29
  %v689 = vunpack.c.l.b16 %v30
  %v690 = vunpack.c.h.b16 %v30
  %v691 = vunpack.c.l.b16 %v31
  %v692 = vunpack.c.h.b16 %v31
  %v693 = vunpack.c.l.b16 %v32
  %v694 = vunpack.c.h.b16 %v32
  %v695 = vunpack.c.l.b16 %v33
  %v696 = vunpack.c.h.b16 %v33
  %v697 = vunpack.c.l.b16 %v34
  %v698 = vunpack.c.h.b16 %v34
  %v699 = vunpack.c.l.b16 %v35
  %v700 = vunpack.c.h.b16 %v35
  %v701 = vunpack.c.l.b16 %v36
  %v702 = vunpack.c.h.b16 %v36
  %v703 = vunpack.c.l.b16 %v37
  %v704 = vunpack.c.h.b16 %v37
  %v705 = vunpack.c.l.b16 %v38
  %v706 = vunpack.c.h.b16 %v38
  %v707 = vunpack.c.l.b16 %v39
  %v708 = vunpack.c.h.b16 %v39
  %v709 = vunpack.c.l.b16 %v40
  %v710 = vunpack.c.h.b16 %v40
  %v711 = vunpack.c.l.b16 %v41
  %v712 = vunpack.c.h.b16 %v41
  %v713 = vunpack.c.l.b16 %v42
  %v714 = vunpack.c.h.b16 %v42
  %v715 = vunpack.c.l.b16 %v43
  %v716 = vunpack.c.h.b16 %v43
  %v717 = vunpack.c.l.b16 %v44
  %v718 = vunpack.c.h.b16 %v44
  %v719 = vunpack.c.l.b16 %v45
  %v720 = vunpack.c.h.b16 %v45
  %v721 = vunpack.c.l.b16 %v46
  %v722 = vunpack.c.h.b16 %v46
  %v723 = vunpack.c.l.b16 %v47
  %v724 = vunpack.c.h.b16 %v47
  %v725 = vunpack.c.l.b16 %v48
  %v726 = vunpack.c.h.b16 %v48
  %v727 = vunpack.c.l.b16 %v49
  %v728 = vunpack.c.h.b16 %v49
  %v729 = vunpack.c.l.b16 %v50
  %v730 = vunpack.c.h.b16 %v50
  %v731 = vunpack.c.l.b16 %v51
  %v732 = vunpack.c.h.b16 %v51
  %v733 = vunpack.c.l.b16 %v52
  %v734 = vunpack.c.h.b16 %v52
  %v735 = vunpack.c.l.b16 %v53
  %v736 = vunpack.c.h.b16 %v53
  %v737 = vunpack.c.l.b16 %v54
  %v738 = vunpack.c.h.b16 %v54
  %v739 = vunpack.c.l.b16 %v55
  %v740 = vunpack.c.h.b16 %v55
  %v741 = vunpack.c.l.b16 %v56
  %v742 = vunpack.c.h.b16 %v56
  %v743 = vunpack.c.l.b16 %v57
  %v744 = vunpack.c.h.b16 %v57
  %v745 = vunpack.c.l.b16 %v58
  %v746 = vunpack.c.h.b16 %v58
  %v747 = vunpack.c.l.b16 %v59
  %v748 = vunpack.c.h.b16 %v59
  %v749 = vunpack.c.l.b16 %v60
  %v750 = vunpack.c.h.b16 %v60
  %v751 = vunpack.c.l.b16 %v61
  %v752 = vunpack.c.h.b16 %v61
  %v753 = vunpack.c.l.b16 %v62
  %v754 = vunpack.c.h.b16 %v62
  %v755 = vunpack.c.l.b16 %v63
  %v756 = vunpack.c.h.b16 %v63
  %v757 = vunpack.c.l.b16 %v64
  %v758 = vunpack.c.h.b16 %v64
  %v759 = vunpack.c.l.b16 %v65
  %v760 = vunpack.c.h.b16 %v65
  %v761 = vunpack.c.l.b16 %v66
  %v762 = vunpack.c.h.b16 %v66
  %v763 = vunpack.c.l.b16 %v67
  %v764 = vunpack.c.h.b16 %v67
  %v765 = vunpack.c.l.b16 %v68
  %v766 = vunpack.c.h.b16 %v68
  %v767 = vunpack.c.l.b16 %v69
  %v768 = vunpack.c.h.b16 %v69
  %v769 = vunpack.c.l.b16 %v70
  %v770 = vunpack.c.h.b16 %v70
  %v771 = vunpack.c.l.b16 %v71
  %v772 = vunpack.c.h.b16 %v71
  %v773 = vunpack.c.l.b16 %v72
  %v774 = vunpack.c.h.b16 %v72
  %v775 = vunpack.c.l.b16 %v73
  %v776 = vunpack.c.h.b16 %v73
  %v777 = vunpack.c.l.b16 %v74
  %v778 = vunpack.c.h.b16 %v74
  %v779 = vunpack.c.l.b16 %v75
  %v780 = vunpack.c.h.b16 %v75
  %v781 = vunpack.c.l.b16 %v76
  %v782 = vunpack.c.h.b16 %v76
  %v783 = vunpack.c.l.b16 %v77
  %v784 = vunpack.c.h.b16 %v77
  %v785 = vunpack.c.l.b16 %v78
  %v786 = vunpack.c.h.b16 %v78
  %v787 = vunpack.c.l.b16 %v79
  %v788 = vunpack.c.h.b16 %v79
  %v789 = vunpack.c.l.b16 %v80
  %v790 = vunpack.c.h.b16 %v80
  %v791 = vunpack.c.l.b16 %v81
  %v792 = vunpack.c.h.b16 %v81
  %v793 = vunpack.c.l.b16 %v82
  %v794 = vunpack.c.h.b16 %v82
  %v795 = vunpack.c.l.b16 %v83
  %v796 = vunpack.c.h.b16 %v83
  %v797 = vunpack.c.l.b16 %v84
  %v798 = vunpack.c.h.b16 %v84
  %v799 = vunpack.c.l.b16 %v85
  %v800 = vunpack.c.h.b16 %v85
  %v801 = vunpack.c.l.b16 %v86
  %v802 = vunpack.c.h.b16 %v86
  %v803 = vunpack.c.l.b16 %v87
  %v804 = vunpack.c.h.b16 %v87
  %v805 = vunpack.c.l.b16 %v88
  %v806 = vunpack.c.h.b16 %v88
  %v807 = vunpack.c.l.b16 %v89
  %v808 = vunpack.c.h.b16 %v89
  %v809 = vunpack.c.l.b16 %v90
  %v810 = vunpack.c.h.b16 %v90
  %v811 = vunpack.c.l.b16 %v91
  %v812 = vunpack.c.h.b16 %v91
  %v813 = vunpack.c.l.b16 %v92
  %v814 = vunpack.c.h.b16 %v92
  %v815 = vunpack.c.l.b16 %v93
  %v816 = vunpack.c.h.b16 %v93
  %v817 = vunpack.c.l.b16 %v94
  %v818 = vunpack.c.h.b16 %v94
  %v819 = vunpack.c.l.b16 %v95
  %v820 = vunpack.c.h.b16 %v95
  %v821 = vunpack.c.l.b16 %v96
  %v822 = vunpack.c.h.b16 %v96
  %v823 = vunpack.c.l.b16 %v97
  %v824 = vunpack.c.h.b16 %v97
  %v825 = vunpack.c.l.b16 %v98
  %v826 = vunpack.c.h.b16 %v98
  %v827 = vunpack.c.l.b16 %v99
  %v828 = vunpack.c.h.b16 %v99
  %v829 = vunpack.c.l.b16 %v100
  %v830 = vunpack.c.h.b16 %v100
  %v831 = vunpack.c.l.b16 %v101
  %v832 = vunpack.c.h.b16 %v101
  %v833 = vunpack.c.l.b16 %v102
  %v834 = vunpack.c.h.b16 %v102
  %v835 = vunpack.c.l.b16 %v103
  %v836 = vunpack.c.h.b16 %v103
  %v837 = vunpack.c.l.b16 %v104
  %v838 = vunpack.c.h.b16 %v104
  %v839 = vunpack.c.l.b16 %v105
  %v840 = vunpack.c.h.b16 %v105
  %v841 = vunpack.c.l.b16 %v106
  %v842 = vunpack.c.h.b16 %v106
  %v843 = vunpack.c.l.b16 %v107
  %v844 = vunpack.c.h.b16 %v107
  %v845 = vunpack.c.l.b16 %v108
  %v846 = vunpack.c.h.b16 %v108
  %v847 = vunpack.c.l.b16 %v109
  %v848 = vunpack.c.h.b16 %v109
  %v849 = vunpack.c.l.b16 %v110
  %v850 = vunpack.c.h.b16 %v110
  %v851 = vunpack.c.l.b16 %v111
  %v852 = vunpack.c.h.b16 %v111
  %v853 = vunpack.c.l.b16 %v112
  %v854 = vunpack.c.h.b16 %v112
  %v855 = vunpack.c.l.b16 %v113
  %v856 = vunpack.c.h.b16 %v113
  %v857 = vunpack.c.l.b16 %v114
  %v858 = vunpack.c.h.b16 %v114
  %v859 = vunpack.c.l.b16 %v115
  %v860 = vunpack.c.h.b16 %v115
  %v861 = vunpack.c.l.b16 %v116
  %v862 = vunpack.c.h.b16 %v116
  %v863 = vunpack.c.l.b16 %v117
  %v864 = vunpack.c.h.b16 %v117
  %v865 = vunpack.c.l.b16 %v118
  %v866 = vunpack.c.h.b16 %v118
  %v867 = vunpack.c.l.b16 %v119
  %v868 = vunpack.c.h.b16 %v119
  %v869 = vunpack.c.l.b16 %v120
  %v870 = vunpack.c.h.b16 %v120
  %v871 = vunpack.c.l.b16 %v121
  %v872 = vunpack.c.h.b16 %v121
  %v873 = vunpack.c.l.b16 %v122
  %v874 = vunpack.c.h.b16 %v122
  %v875 = vunpack.c.l.b16 %v123
  %v876 = vunpack.c.h.b16 %v123
  %v877 = vunpack.c.l.b16 %v124
  %v878 = vunpack.c.h.b16 %v124
  %v879 = vunpack.c.l.b16 %v125
  %v880 = vunpack.c.h.b16 %v125
  %v881 = vunpack.c.l.b16 %v126
  %v882 = vunpack.c.h.b16 %v126
  %v883 = vunpack.c.l.b16 %v127
  %v884 = vunpack.c.h.b16 %v127
  %v885 = vunpack.c.l.b16 %v128
  %v886 = vunpack.c.h.b16 %v128
  %v887 = vunpack.c.l.b16 %v129
  %v888 = vunpack.c.h.b16 %v129
  %v889 = vunpack.c.l.b16 %v130
  %v890 = vunpack.c.h.b16 %v130
  %v891 = vunpack.c.l.b16 %v131
  %v892 = vunpack.c.h.b16 %v131
  %v893 = vunpack.c.l.b16 %v132
  %v894 = vunpack.c.h.b16 %v132
  %v895 = vunpack.c.l.b16 %v133
  %v896 = vunpack.c.h.b16 %v133
  %v897 = vunpack.c.l.b16 %v134
  %v898 = vunpack.c.h.b16 %v134
  %v899 = vunpack.c.l.b16 %v135
  %v900 = vunpack.c.h.b16 %v135
  %v901 = vunpack.c.l.b16 %v136
  %v902 = vunpack.c.h.b16 %v136
  %v903 = vunpack.c.l.b16 %v137
  %v904 = vunpack.c.h.b16 %v137
  %v905 = vunpack.c.l.b16 %v138
  %v906 = vunpack.c.h.b16 %v138
  %v907 = vunpack.c.l.b16 %v139
  %v908 = vunpack.c.h.b16 %v139
  %v909 = vunpack.c.l.b16 %v140
  %v910 = vunpack.c.h.b16 %v140
  %v911 = vunpack.c.l.b16 %v141
  %v912 = vunpack.c.h.b16 %v141
  %v913 = vunpack.c.l.b16 %v142
  %v914 = vunpack.c.h.b16 %v142
  %v915 = vunpack.c.l.b16 %v143
  %v916 = vunpack.c.h.b16 %v143
  %v917 = vunpack.c.l.b16 %v144
  %v918 = vunpack.c.h.b16 %v144
  %v919 = vunpack.c.l.b16 %v145
  %v920 = vunpack.c.h.b16 %v145
  %v921 = vunpack.c.l.b16 %v146
  %v922 = vunpack.c.h.b16 %v146
  %v923 = vunpack.c.l.b16 %v147
  %v924 = vunpack.c.h.b16 %v147
  %v925 = vunpack.c.l.b16 %v148
  %v926 = vunpack.c.h.b16 %v148
  %v927 = vunpack.c.l.b16 %v149
  %v928 = vunpack.c.h.b16 %v149
  %v929 = vunpack.c.l.b16 %v150
  %v930 = vunpack.c.h.b16 %v150
  %v931 = vunpack.c.l.b16 %v151
  %v932 = vunpack.c.h.b16 %v151
  %v933 = vunpack.c.l.b16 %v152
  %v934 = vunpack.c.h.b16 %v152
  %v935 = vunpack.c.l.b16 %v153
  %v936 = vunpack.c.h.b16 %v153
  %v937 = vunpack.c.l.b16 %v154
  %v938 = vunpack.c.h.b16 %v154
  %v939 = vunpack.c.l.b16 %v155
  %v940 = vunpack.c.h.b16 %v155
  %v941 = vunpack.c.l.b16 %v156
  %v942 = vunpack.c.h.b16 %v156
  %v943 = vunpack.c.l.b16 %v157
  %v944 = vunpack.c.h.b16 %v157
  %v945 = vunpack.c.l.b16 %v158
  %v946 = vunpack.c.h.b16 %v158
  %v947 = vunpack.c.l.b16 %v159
  %v948 = vunpack.c.h.b16 %v159
  %v949 = vunpack.c.l.b16 %v160
  %v950 = vunpack.c.h.b16 %v160
  %v951 = vunpack.c.l.b16 %v161
  %v952 = vunpack.c.h.b16 %v161
  %v953 = vunpack.c.l.b16 %v162
  %v954 = vunpack.c.h.b16 %v162
  %v955 = vunpack.c.l.b16 %v163
  %v956 = vunpack.c.h.b16 %v163
  %v957 = vunpack.c.l.b16 %v164
  %v958 = vunpack.c.h.b16 %v164
  %v959 = vunpack.c.l.b16 %v165
  %v960 = vunpack.c.h.b16 %v165
  %v961 = vunpack.c.l.b16 %v166
  %v962 = vunpack.c.h.b16 %v166
  %v963 = vunpack.c.l.b16 %v167
  %v964 = vunpack.c.h.b16 %v167
  %v965 = vunpack.c.l.b16 %v168
  %v966 = vunpack.c.h.b16 %v168
  %v967 = vunpack.c.l.b16 %v169
  %v968 = vunpack.c.h.b16 %v169
  %v969 = vunpack.c.l.b16 %v170
  %v970 = vunpack.c.h.b16 %v170
  %v971 = vunpack.c.l.b16 %v171
  %v972 = vunpack.c.h.b16 %v171
  %v973 = vunpack.c.l.b16 %v172
  %v974 = vunpack.c.h.b16 %v172
  %v975 = vunpack.c.l.b16 %v173
  %v976 = vunpack.c.h.b16 %v173
  %v977 = vunpack.c.l.b16 %v174
  %v978 = vunpack.c.h.b16 %v174
  %v979 = vunpack.c.l.b16 %v175
  %v980 = vunpack.c.h.b16 %v175
  %v981 = vunpack.c.l.b16 %v176
  %v982 = vunpack.c.h.b16 %v176
  %v983 = vunpack.c.l.b16 %v177
  %v984 = vunpack.c.h.b16 %v177
  %v985 = vunpack.c.l.b16 %v178
  %v986 = vunpack.c.h.b16 %v178
  %v987 = vunpack.c.l.b16 %v179
  %v988 = vunpack.c.h.b16 %v179
  %v989 = vunpack.c.l.b16 %v180
  %v990 = vunpack.c.h.b16 %v180
  %v991 = vunpack.c.l.b16 %v181
  %v992 = vunpack.c.h.b16 %v181
  %v993 = vunpack.c.l.b16 %v182
  %v994 = vunpack.c.h.b16 %v182
  %v995 = vunpack.c.l.b16 %v183
  %v996 = vunpack.c.h.b16 %v183
  %v997 = vunpack.c.l.b16 %v184
  %v998 = vunpack.c.h.b16 %v184
  %v999 = vunpack.c.l.b16 %v185
  %v1000 = vunpack.c.h.b16 %v185
  %v1001 = vunpack.c.l.b16 %v186
  %v1002 = vunpack.c.h.b16 %v186
  %v1003 = vunpack.c.l.b16 %v187
  %v1004 = vunpack.c.h.b16 %v187
  %v1005 = vunpack.c.l.b16 %v188
  %v1006 = vunpack.c.h.b16 %v188
  %v1007 = vunpack.c.l.b16 %v189
  %v1008 = vunpack.c.h.b16 %v189
  %v1009 = vunpack.c.l.b16 %v190
  %v1010 = vunpack.c.h.b16 %v190
  %v1011 = vunpack.c.l.b16 %v191
  %v1012 = vunpack.c.h.b16 %v191
  %v1013 = vunpack.c.l.b16 %v192
  %v1014 = vunpack.c.h.b16 %v192
  %v1015 = vunpack.c.l.b16 %v193
  %v1016 = vunpack.c.h.b16 %v193
  %v1017 = vunpack.c.l.b16 %v194
  %v1018 = vunpack.c.h.b16 %v194
  %v1019 = vunpack.c.l.b16 %v195
  %v1020 = vunpack.c.h.b16 %v195
  %v1021 = vunpack.c.l.b16 %v196
  %v1022 = vunpack.c.h.b16 %v196
  %v1023 = vunpack.c.l.b16 %v197
  %v1024 = vunpack.c.h.b16 %v197
  %v1025 = vunpack.c.l.b16 %v198
  %v1026 = vunpack.c.h.b16 %v198
  %v1027 = vunpack.c.l.b16 %v199
  %v1028 = vunpack.c.h.b16 %v199
  %v1029 = vunpack.c.l.b16 %v200
  %v1030 = vunpack.c.h.b16 %v200
  %v1031 = vunpack.c.l.b16 %v201
  %v1032 = vunpack.c.h.b16 %v201
  %v1033 = vunpack.c.l.b16 %v202
  %v1034 = vunpack.c.h.b16 %v202
  %v1035 = vunpack.c.l.b16 %v203
  %v1036 = vunpack.c.h.b16 %v203
  %v1037 = vunpack.c.l.b16 %v204
  %v1038 = vunpack.c.h.b16 %v204
  %v1039 = vunpack.c.l.b16 %v205
  %v1040 = vunpack.c.h.b16 %v205
  %v1041 = vunpack.c.l.b16 %v206
  %v1042 = vunpack.c.h.b16 %v206
  %v1043 = vunpack.c.l.b16 %v207
  %v1044 = vunpack.c.h.b16 %v207
  %v1045 = vunpack.c.l.b16 %v208
  %v1046 = vunpack.c.h.b16 %v208
  %v1047 = vunpack.c.l.b16 %v209
  %v1048 = vunpack.c.h.b16 %v209
  %v1049 = vunpack.c.l.b16 %v210
  %v1050 = vunpack.c.h.b16 %v210
  %v1051 = vunpack.c.l.b16 %v211
  %v1052 = vunpack.c.h.b16 %v211
  %v1053 = vunpack.c.l.b16 %v212
  %v1054 = vunpack.c.h.b16 %v212
  %v1055 = vunpack.c.l.b16 %v213
  %v1056 = vunpack.c.h.b16 %v213
  %v1057 = vunpack.c.l.b16 %v214
  %v1058 = vunpack.c.h.b16 %v214
  %v1059 = vunpack.c.l.b16 %v215
  %v1060 = vunpack.c.h.b16 %v215
  %v1061 = vunpack.c.l.b16 %v216
  %v1062 = vunpack.c.h.b16 %v216
  %v1063 = vunpack.c.l.b16 %v217
  %v1064 = vunpack.c.h.b16 %v217
  %v1065 = vunpack.c.l.b16 %v218
  %v1066 = vunpack.c.h.b16 %v218
  %v1067 = vunpack.c.l.b16 %v219
  %v1068 = vunpack.c.h.b16 %v219
  %v1069 = vunpack.c.l.b16 %v220
  %v1070 = vunpack.c.h.b16 %v220
  %v1071 = vunpack.c.l.b16 %v221
  %v1072 = vunpack.c.h.b16 %v221
  %v1073 = vunpack.c.l.b16 %v222
  %v1074 = vunpack.c.h.b16 %v222
  %v1075 = vunpack.c.l.b16 %v223
  %v1076 = vunpack.c.h.b16 %v223
  %v1077 = vunpack.c.l.b16 %v224
  %v1078 = vunpack.c.h.b16 %v224
  %v1079 = vunpack.c.l.b16 %v225
  %v1080 = vunpack.c.h.b16 %v225
  %v1081 = vunpack.c.l.b16 %v226
  %v1082 = vunpack.c.h.b16 %v226
  %v1083 = vunpack.c.l.b16 %v227
  %v1084 = vunpack.c.h.b16 %v227
  %v1085 = vunpack.c.l.b16 %v228
  %v1086 = vunpack.c.h.b16 %v228
  %v1087 = vunpack.c.l.b16 %v229
  %v1088 = vunpack.c.h.b16 %v229
  %v1089 = vunpack.c.l.b16 %v230
  %v1090 = vunpack.c.h.b16 %v230
  %v1091 = vunpack.c.l.b16 %v231
  %v1092 = vunpack.c.h.b16 %v231
  %v1093 = vunpack.c.l.b16 %v232
  %v1094 = vunpack.c.h.b16 %v232
  %v1095 = vunpack.c.l.b16 %v233
  %v1096 = vunpack.c.h.b16 %v233
  %v1097 = vunpack.c.l.b16 %v234
  %v1098 = vunpack.c.h.b16 %v234
  %v1099 = vunpack.c.l.b16 %v235
  %v1100 = vunpack.c.h.b16 %v235
  %v1101 = vunpack.c.l.b16 %v236
  %v1102 = vunpack.c.h.b16 %v236
  %v1103 = vunpack.c.l.b16 %v237
  %v1104 = vunpack.c.h.b16 %v237
  %v1105 = vunpack.c.l.b16 %v238
  %v1106 = vunpack.c.h.b16 %v238
  %v1107 = vunpack.c.l.b16 %v239
  %v1108 = vunpack.c.h.b16 %v239
  %v1109 = vunpack.c.l.b16 %v240
  %v1110 = vunpack.c.h.b16 %v240
  %v1111 = vunpack.c.l.b16 %v241
  %v1112 = vunpack.c.h.b16 %v241
  %v1113 = vunpack.c.l.b16 %v242
  %v1114 = vunpack.c.h.b16 %v242
  %v1115 = vunpack.c.l.b16 %v243
  %v1116 = vunpack.c.h.b16 %v243
  %v1117 = vunpack.c.l.b16 %v244
  %v1118 = vunpack.c.h.b16 %v244
  %v1119 = vunpack.c.l.b16 %v245
  %v1120 = vunpack.c.h.b16 %v245
  %v1121 = vunpack.c.l.b16 %v246
  %v1122 = vunpack.c.h.b16 %v246
  %v1123 = vunpack.c.l.b16 %v247
  %v1124 = vunpack.c.h.b16 %v247
  %v1125 = vunpack.c.l.b16 %v248
  %v1126 = vunpack.c.h.b16 %v248
  %v1127 = vunpack.c.l.b16 %v249
  %v1128 = vunpack.c.h.b16 %v249
  %v1129 = vunpack.c.l.b16 %v250
  %v1130 = vunpack.c.h.b16 %v250
  %v1131 = vunpack.c.l.b16 %v251
  %v1132 = vunpack.c.h.b16 %v251
  %v1133 = vunpack.c.l.b16 %v252
  %v1134 = vunpack.c.h.b16 %v252
  %v1135 = vunpack.c.l.b16 %v253
  %v1136 = vunpack.c.h.b16 %v253
  %v1137 = vunpack.c.l.b16 %v254
  %v1138 = vunpack.c.h.b16 %v254
  %v1139 = vunpack.c.l.b16 %v255
  %v1140 = vunpack.c.h.b16 %v255
  %v1141 = vunpack.c.l.b16 %v256
  %v1142 = vunpack.c.h.b16 %v256
  %v1143 = vunpack.c.l.b16 %v257
  %v1144 = vunpack.c.h.b16 %v257
  %v1145 = vunpack.c.l.b16 %v258
  %v1146 = vunpack.c.h.b16 %v258
  %v1147 = vunpack.c.l.b16 %v259
  %v1148 = vunpack.c.h.b16 %v259
  %v1149 = vunpack.c.l.b16 %v260
  %v1150 = vunpack.c.h.b16 %v260
  %v1151 = vunpack.c.l.b16 %v261
  %v1152 = vunpack.c.h.b16 %v261
  %v1153 = vunpack.c.l.b16 %v262
  %v1154 = vunpack.c.h.b16 %v262
  %v1155 = vunpack.c.l.b16 %v263
  %v1156 = vunpack.c.h.b16 %v263
  %v1157 = vunpack.c.l.b16 %v264
  %v1158 = vunpack.c.h.b16 %v264
  %v1159 = vunpack.c.l.b16 %v265
  %v1160 = vunpack.c.h.b16 %v265
  %v1161 = vunpack.c.l.b16 %v266
  %v1162 = vunpack.c.h.b16 %v266
  %v1163 = vunpack.c.l.b16 %v267
  %v1164 = vunpack.c.h.b16 %v267
  %v1165 = vunpack.c.l.b16 %v268
  %v1166 = vunpack.c.h.b16 %v268
  %v1167 = vunpack.c.l.b16 %v269
  %v1168 = vunpack.c.h.b16 %v269
  %v1169 = vunpack.c.l.b16 %v270
  %v1170 = vunpack.c.h.b16 %v270
  %v1171 = vunpack.c.l.b16 %v271
  %v1172 = vunpack.c.h.b16 %v271
  %v1173 = vunpack.c.l.b16 %v272
  %v1174 = vunpack.c.h.b16 %v272
  %v1175 = vunpack.c.l.b16 %v273
  %v1176 = vunpack.c.h.b16 %v273
  %v1177 = vunpack.c.l.b16 %v274
  %v1178 = vunpack.c.h.b16 %v274
  %v1179 = vunpack.c.l.b16 %v275
  %v1180 = vunpack.c.h.b16 %v275
  %v1181 = vunpack.c.l.b16 %v276
  %v1182 = vunpack.c.h.b16 %v276
  %v1183 = vunpack.c.l.b16 %v277
  %v1184 = vunpack.c.h.b16 %v277
  %v1185 = vunpack.c.l.b16 %v278
  %v1186 = vunpack.c.h.b16 %v278
  %v1187 = vunpack.c.l.b16 %v279
  %v1188 = vunpack.c.h.b16 %v279
  %v1189 = vunpack.c.l.b16 %v280
  %v1190 = vunpack.c.h.b16 %v280
  %v1191 = vunpack.c.l.b16 %v281
  %v1192 = vunpack.c.h.b16 %v281
  %v1193 = vunpack.c.l.b16 %v282
  %v1194 = vunpack.c.h.b16 %v282
  %v1195 = vunpack.c.l.b16 %v283
  %v1196 = vunpack.c.h.b16 %v283
  %v1197 = vunpack.c.l.b16 %v284
  %v1198 = vunpack.c.h.b16 %v284
  %v1199 = vunpack.c.l.b16 %v285
  %v1200 = vunpack.c.h.b16 %v285
  %v1201 = vunpack.c.l.b16 %v286
  %v1202 = vunpack.c.h.b16 %v286
  %v1203 = vunpack.c.l.b16 %v287
  %v1204 = vunpack.c.h.b16 %v287
  %v1205 = vunpack.c.l.b16 %v288
  %v1206 = vunpack.c.h.b16 %v288
  %v1207 = vunpack.c.l.b16 %v289
  %v1208 = vunpack.c.h.b16 %v289
  %v1209 = vunpack.c.l.b16 %v290
  %v1210 = vunpack.c.h.b16 %v290
  %v1211 = vunpack.c.l.b16 %v291
  %v1212 = vunpack.c.h.b16 %v291
  %v1213 = vunpack.c.l.b16 %v292
  %v1214 = vunpack.c.h.b16 %v292
  %v1215 = vunpack.c.l.b16 %v293
  %v1216 = vunpack.c.h.b16 %v293
  %v1217 = vunpack.c.l.b16 %v294
  %v1218 = vunpack.c.h.b16 %v294
  %v1219 = vunpack.c.l.b16 %v295
  %v1220 = vunpack.c.h.b16 %v295
  %v1221 = vunpack.c.l.b16 %v296
  %v1222 = vunpack.c.h.b16 %v296
  %v1223 = vunpack.c.l.b16 %v297
  %v1224 = vunpack.c.h.b16 %v297
  %v1225 = vunpack.c.l.b16 %v298
  %v1226 = vunpack.c.h.b16 %v298
  %v1227 = vunpack.c.l.b16 %v299
  %v1228 = vunpack.c.h.b16 %v299
  %v1229 = vunpack.c.l.b16 %v300
  %v1230 = vunpack.c.h.b16 %v300
  %v1231 = vunpack.c.l.b16 %v301
  %v1232 = vunpack.c.h.b16 %v301
  %v1233 = vunpack.c.l.b16 %v302
  %v1234 = vunpack.c.h.b16 %v302
  %v1235 = vpack.c.b16 %v663, %v659
  %v1236 = vpack.c.b16 %v664, %v660
  %v1237 = vpack.c.b16 %v665, %v661
  %v1238 = vpack.c.b16 %v666, %v662
  %v1239 = vpack.c.b16 %v671, %v667
  %v1240 = vpack.c.b16 %v672, %v668
  %v1241 = vpack.c.b16 %v673, %v669
  %v1242 = vpack.c.b16 %v674, %v670
  %v1243 = vpack.c.b16 %v679, %v675
  %v1244 = vpack.c.b16 %v680, %v676
  %v1245 = vpack.c.b16 %v681, %v677
  %v1246 = vpack.c.b16 %v682, %v678
  %v1247 = vpack.c.b16 %v687, %v683
  %v1248 = vpack.c.b16 %v688, %v684
  %v1249 = vpack.c.b16 %v689, %v685
  %v1250 = vpack.c.b16 %v690, %v686
  %v1251 = vpack.c.b16 %v695, %v691
  %v1252 = vpack.c.b16 %v696, %v692
  %v1253 = vpack.c.b16 %v697, %v693
  %v1254 = vpack.c.b16 %v698, %v694
  %v1255 = vpack.c.b16 %v703, %v699
  %v1256 = vpack.c.b16 %v704, %v700
  %v1257 = vpack.c.b16 %v705, %v701
  %v1258 = vpack.c.b16 %v706, %v702
  %v1259 = vpack.c.b16 %v711, %v707
  %v1260 = vpack.c.b16 %v712, %v708
  %v1261 = vpack.c.b16 %v713, %v709
  %v1262 = vpack.c.b16 %v714, %v710
  %v1263 = vpack.c.b16 %v719, %v715
  %v1264 = vpack.c.b16 %v720, %v716
  %v1265 = vpack.c.b16 %v721, %v717
  %v1266 = vpack.c.b16 %v722, %v718
  %v1267 = vpack.c.b16 %v727, %v723
  %v1268 = vpack.c.b16 %v728, %v724
  %v1269 = vpack.c.b16 %v729, %v725
  %v1270 = vpack.c.b16 %v730, %v726
  %v1271 = vpack.c.b16 %v735, %v731
  %v1272 = vpack.c.b16 %v736, %v732
  %v1273 = vpack.c.b16 %v737, %v733
  %v1274 = vpack.c.b16 %v738, %v734
  %v1275 = vpack.c.b16 %v743, %v739
  %v1276 = vpack.c.b16 %v744, %v740
  %v1277 = vpack.c.b16 %v745, %v741
  %v1278 = vpack.c.b16 %v746, %v742
  %v1279 = vpack.c.b16 %v751, %v747
  %v1280 = vpack.c.b16 %v752, %v748
  %v1281 = vpack.c.b16 %v753, %v749
  %v1282 = vpack.c.b16 %v754, %v750
  %v1283 = vpack.c.b16 %v759, %v755
  %v1284 = vpack.c.b16 %v760, %v756
  %v1285 = vpack.c.b16 %v761, %v757
  %v1286 = vpack.c.b16 %v762, %v758
  %v1287 = vpack.c.b16 %v767, %v763
  %v1288 = vpack.c.b16 %v768, %v764
  %v1289 = vpack.c.b16 %v769, %v765
  %v1290 = vpack.c.b16 %v770, %v766
  %v1291 = vpack.c.b16 %v775, %v771
  %v1292 = vpack.c.b16 %v776, %v772
  %v1293 = vpack.c.b16 %v777, %v773
  %v1294 = vpack.c.b16 %v778, %v774
  %v1295 = vpack.c.b16 %v783, %v779
  %v1296 = vpack.c.b16 %v784, %v780
  %v1297 = vpack.c.b16 %v785, %v781
  %v1298 = vpack.c.b16 %v786, %v782
  %v1299 = vpack.c.b16 %v791, %v787
  %v1300 = vpack.c.b16 %v792, %v788
  %v1301 = vpack.c.b16 %v793, %v789
  %v1302 = vpack.c.b16 %v794, %v790
  %v1303 = vpack.c.b16 %v799, %v795
  %v1304 = vpack.c.b16 %v800, %v796
  %v1305 = vpack.c.b16 %v801, %v797
  %v1306 = vpack.c.b16 %v802, %v798
  %v1307 = vpack.c.b16 %v807, %v803
  %v1308 = vpack.c.b16 %v808, %v804
  %v1309 = vpack.c.b16 %v809, %v805
  %v1310 = vpack.c.b16 %v810, %v806
  %v1311 = vpack.c.b16 %v815, %v811
  %v1312 = vpack.c.b16 %v816, %v812
  %v1313 = vpack.c.b16 %v817, %v813
  %v1314 = vpack.c.b16 %v818, %v814
  %v1315 = vpack.c.b16 %v823, %v819
  %v1316 = vpack.c.b16 %v824, %v820
  %v1317 = vpack.c.b16 %v825, %v821
  %v1318 = vpack.c.b16 %v826, %v822
  %v1319 = vpack.c.b16 %v831, %v827
  %v1320 = vpack.c.b16 %v832, %v828
  %v1321 = vpack.c.b16 %v833, %v829
  %v1322 = vpack.c.b16 %v834, %v830
  %v1323 = vpack.c.b16 %v839, %v835
  %v1324 = vpack.c.b16 %v840, %v836
  %v1325 = vpack.c.b16 %v841, %v837
  %v1326 = vpack.c.b16 %v842, %v838
  %v1327 = vpack.c.b16 %v847, %v843
  %v1328 = vpack.c.b16 %v848, %v844
  %v1329 = vpack.c.b16 %v849, %v845
  %v1330 = vpack.c.b16 %v850, %v846
  %v1331 = vpack.c.b16 %v855, %v851
  %v1332 = vpack.c.b16 %v856, %v852
  %v1333 = vpack.c.b16 %v857, %v853
  %v1334 = vpack.c.b16 %v858, %v854
  %v1335 = vpack.c.b16 %v863, %v859
  %v1336 = vpack.c.b16 %v864, %v860
  %v1337 = vpack.c.b16 %v865, %v861
  %v1338 = vpack.c.b16 %v866, %v862
  %v1339 = vpack.c.b16 %v871, %v867
  %v1340 = vpack.c.b16 %v872, %v868
  %v1341 = vpack.c.b16 %v873, %v869
  %v1342 = vpack.c.b16 %v874, %v870
  %v1343 = vpack.c.b16 %v879, %v875
  %v1344 = vpack.c.b16 %v880, %v876
  %v1345 = vpack.c.b16 %v881, %v877
  %v1346 = vpack.c.b16 %v882, %v878
  %v1347 = vpack.c.b16 %v887, %v883
  %v1348 = vpack.c.b16 %v888, %v884
  %v1349 = vpack.c.b16 %v889, %v885
  %v1350 = vpack.c.b16 %v890, %v886
  %v1351 = vpack.c.b16 %v895, %v891
  %v1352 = vpack.c.b16 %v896, %v892
  %v1353 = vpack.c.b16 %v897, %v893
  %v1354 = vpack.c.b16 %v898, %v894
  %v1355 = vpack.c.b16 %v903, %v899
  %v1356 = vpack.c.b16 %v904, %v900
  %v1357 = vpack.c.b16 %v905, %v901
  %v1358 = vpack.c.b16 %v906, %v902
  %v1359 = vpack.c.b16 %v911, %v907
  %v1360 = vpack.c.b16 %v912, %v908
  %v1361 = vpack.c.b16 %v913, %v909
  %v1362 = vpack.c.b16 %v914, %v910
  %v1363 = vpack.c.b16 %v919, %v915
  %v1364 = vpack.c.b16 %v920, %v916
  %v1365 = vpack.c.b16 %v921, %v917
  %v1366 = vpack.c.b16 %v922, %v918
  %v1367 = vpack.c.b16 %v927, %v923
  %v1368 = vpack.c.b16 %v928, %v924
  %v1369 = vpack.c.b16 %v929, %v925
  %v1370 = vpack.c.b16 %v930, %v926
  %v1371 = vpack.c.b16 %v935, %v931
  %v1372 = vpack.c.b16 %v936, %v932
  %v1373 = vpack.c.b16 %v937, %v933
  %v1374 = vpack.c.b16 %v938, %v934
  %v1375 = vpack.c.b16 %v943, %v939
  %v1376 = vpack.c.b16 %v944, %v940
  %v1377 = vpack.c.b16 %v945, %v941
  %v1378 = vpack.c.b16 %v946, %v942
  %v1379 = vpack.c.b16 %v951, %v947
  %v1380 = vpack.c.b16 %v952, %v948
  %v1381 = vpack.c.b16 %v953, %v949
  %v1382 = vpack.c.b16 %v954, %v950
  %v1383 = vpack.c.b16 %v959, %v955
  %v1384 = vpack.c.b16 %v960, %v956
  %v1385 = vpack.c.b16 %v961, %v957
  %v1386 = vpack.c.b16 %v962, %v958
  %v1387 = vpack.c.b16 %v967, %v963
  %v1388 = vpack.c.b16 %v968, %v964
  %v1389 = vpack.c.b16 %v969, %v965
  %v1390 = vpack.c.b16 %v970, %v966
  %v1391 = vpack.c.b16 %v975, %v971
  %v1392 = vpack.c.b16 %v976, %v972
  %v1393 = vpack.c.b16 %v977, %v973
  %v1394 = vpack.c.b16 %v978, %v974
  %v1395 = vpack.c.b16 %v983, %v979
  %v1396 = vpack.c.b16 %v984, %v980
  %v1397 = vpack.c.b16 %v985, %v981
  %v1398 = vpack.c.b16 %v986, %v982
  %v1399 = vpack.c.b16 %v991, %v987
  %v1400 = vpack.c.b16 %v992, %v988
  %v1401 = vpack.c.b16 %v993, %v989
  %v1402 = vpack.c.b16 %v994, %v990
  %v1403 = vpack.c.b16 %v999, %v995
  %v1404 = vpack.c.b16 %v1000, %v996
  %v1405 = vpack.c.b16 %v1001, %v997
  %v1406 = vpack.c.b16 %v1002, %v998
  %v1407 = vpack.c.b16 %v1007, %v1003
  %v1408 = vpack.c.b16 %v1008, %v1004
  %v1409 = vpack.c.b16 %v1009, %v1005
  %v1410 = vpack.c.b16 %v1010, %v1006
  %v1411 = vpack.c.b16 %v1015, %v1011
  %v1412 = vpack.c.b16 %v1016, %v1012
  %v1413 = vpack.c.b16 %v1017, %v1013
  %v1414 = vpack.c.b16 %v1018, %v1014
  %v1415 = vpack.c.b16 %v1023, %v1019
  %v1416 = vpack.c.b16 %v1024, %v1020
  %v1417 = vpack.c.b16 %v1025, %v1021
  %v1418 = vpack.c.b16 %v1026, %v1022
  %v1419 = vpack.c.b16 %v1031, %v1027
  %v1420 = vpack.c.b16 %v1032, %v1028
  %v1421 = vpack.c.b16 %v1033, %v1029
  %v1422 = vpack.c.b16 %v1034, %v1030
  %v1423 = vpack.c.b16 %v1039, %v1035
  %v1424 = vpack.c.b16 %v1040, %v1036
  %v1425 = vpack.c.b16 %v1041, %v1037
  %v1426 = vpack.c.b16 %v1042, %v1038
  %v1427 = vpack.c.b16 %v1047, %v1043
  %v1428 = vpack.c.b16 %v1048, %v1044
  %v1429 = vpack.c.b16 %v1049, %v1045
  %v1430 = vpack.c.b16 %v1050, %v1046
  %v1431 = vpack.c.b16 %v1055, %v1051
  %v1432 = vpack.c.b16 %v1056, %v1052
  %v1433 = vpack.c.b16 %v1057, %v1053
  %v1434 = vpack.c.b16 %v1058, %v1054
  %v1435 = vpack.c.b16 %v1063, %v1059
  %v1436 = vpack.c.b16 %v1064, %v1060
  %v1437 = vpack.c.b16 %v1065, %v1061
  %v1438 = vpack.c.b16 %v1066, %v1062
  %v1439 = vpack.c.b16 %v1071, %v1067
  %v1440 = vpack.c.b16 %v1072, %v1068
  %v1441 = vpack.c.b16 %v1073, %v1069
  %v1442 = vpack.c.b16 %v1074, %v1070
  %v1443 = vpack.c.b16 %v1079, %v1075
  %v1444 = vpack.c.b16 %v1080, %v1076
  %v1445 = vpack.c.b16 %v1081, %v1077
  %v1446 = vpack.c.b16 %v1082, %v1078
  %v1447 = vpack.c.b16 %v1087, %v1083
  %v1448 = vpack.c.b16 %v1088, %v1084
  %v1449 = vpack.c.b16 %v1089, %v1085
  %v1450 = vpack.c.b16 %v1090, %v1086
  %v1451 = vpack.c.b16 %v1095, %v1091
  %v1452 = vpack.c.b16 %v1096, %v1092
  %v1453 = vpack.c.b16 %v1097, %v1093
  %v1454 = vpack.c.b16 %v1098, %v1094
  %v1455 = vpack.c.b16 %v1103, %v1099
  %v1456 = vpack.c.b16 %v1104, %v1100
  %v1457 = vpack.c.b16 %v1105, %v1101
  %v1458 = vpack.c.b16 %v1106, %v1102
  %v1459 = vpack.c.b16 %v1111, %v1107
  %v1460 = vpack.c.b16 %v1112, %v1108
  %v1461 = vpack.c.b16 %v1113, %v1109
  %v1462 = vpack.c.b16 %v1114, %v1110
  %v1463 = vpack.c.b16 %v1119, %v1115
  %v1464 = vpack.c.b16 %v1120, %v1116
  %v1465 = vpack.c.b16 %v1121, %v1117
  %v1466 = vpack.c.b16 %v1122, %v1118
  %v1467 = vpack.c.b16 %v1127, %v1123
  %v1468 = vpack.c.b16 %v1128, %v1124
  %v1469 = vpack.c.b16 %v1129, %v1125
  %v1470 = vpack.c.b16 %v1130, %v1126
  %v1471 = vpack.c.b16 %v1135, %v1131
  %v1472 = vpack.c.b16 %v1136, %v1132
  %v1473 = vpack.c.b16 %v1137, %v1133
  %v1474 = vpack.c.b16 %v1138, %v1134
  %v1475 = vpack.c.b16 %v1143, %v1139
  %v1476 = vpack.c.b16 %v1144, %v1140
  %v1477 = vpack.c.b16 %v1145, %v1141
  %v1478 = vpack.c.b16 %v1146, %v1142
  %v1479 = vpack.c.b16 %v1151, %v1147
  %v1480 = vpack.c.b16 %v1152, %v1148
  %v1481 = vpack.c.b16 %v1153, %v1149
  %v1482 = vpack.c.b16 %v1154, %v1150
  %v1483 = vpack.c.b16 %v1159, %v1155
  %v1484 = vpack.c.b16 %v1160, %v1156
  %v1485 = vpack.c.b16 %v1161, %v1157
  %v1486 = vpack.c.b16 %v1162, %v1158
  %v1487 = vpack.c.b16 %v1167, %v1163
  %v1488 = vpack.c.b16 %v1168, %v1164
  %v1489 = vpack.c.b16 %v1169, %v1165
  %v1490 = vpack.c.b16 %v1170, %v1166
  %v1491 = vpack.c.b16 %v1175, %v1171
  %v1492 = vpack.c.b16 %v1176, %v1172
  %v1493 = vpack.c.b16 %v1177, %v1173
  %v1494 = vpack.c.b16 %v1178, %v1174
  %v1495 = vpack.c.b16 %v1183, %v1179
  %v1496 = vpack.c.b16 %v1184, %v1180
  %v1497 = vpack.c.b16 %v1185, %v1181
  %v1498 = vpack.c.b16 %v1186, %v1182
  %v1499 = vpack.c.b16 %v1191, %v1187
  %v1500 = vpack.c.b16 %v1192, %v1188
  %v1501 = vpack.c.b16 %v1193, %v1189
  %v1502 = vpack.c.b16 %v1194, %v1190
  %v1503 = vpack.c.b16 %v1199, %v1195
  %v1504 = vpack.c.b16 %v1200, %v1196
  %v1505 = vpack.c.b16 %v1201, %v1197
  %v1506 = vpack.c.b16 %v1202, %v1198
  %v1507 = vpack.c.b16 %v1207, %v1203
  %v1508 = vpack.c.b16 %v1208, %v1204
  %v1509 = vpack.c.b16 %v1209, %v1205
  %v1510 = vpack.c.b16 %v1210, %v1206
  %v1511 = vpack.c.b16 %v1215, %v1211
  %v1512 = vpack.c.b16 %v1216, %v1212
  %v1513 = vpack.c.b16 %v1217, %v1213
  %v1514 = vpack.c.b16 %v1218, %v1214
  %v1515 = vpack.c.b16 %v1223, %v1219
  %v1516 = vpack.c.b16 %v1224, %v1220
  %v1517 = vpack.c.b16 %v1225, %v1221
  %v1518 = vpack.c.b16 %v1226, %v1222
  %v1519 = vpack.c.b16 %v1231, %v1227
  %v1520 = vpack.c.b16 %v1232, %v1228
  %v1521 = vpack.c.b16 %v1233, %v1229
  %v1522 = vpack.c.b16 %v1234, %v1230
  %1811 = vmatprep.subr.bf16.mxu0 %v1236
  %1812 = vmatpush1.bf16.msra.mxu0 %v1235
  %1813 = vmatprep.subr.bf16.mxu0 %v1240
  %1814 = vmatpush1.bf16.msra.mxu0 %v1239
  %1815 = vmatprep.subr.bf16.mxu0 %v1244
  %1816 = vmatpush1.bf16.msra.mxu0 %v1243
  %1817 = vmatprep.subr.bf16.mxu0 %v1248
  %1818 = vmatpush1.bf16.msra.mxu0 %v1247
  %1819 = vmatprep.subr.bf16.mxu0 %v1252
  %1820 = vmatpush1.bf16.msra.mxu0 %v1251
  %1821 = vmatprep.subr.bf16.mxu0 %v1256
  %1822 = vmatpush1.bf16.msra.mxu0 %v1255
  %1823 = vmatprep.subr.bf16.mxu0 %v1260
  %1824 = vmatpush1.bf16.msra.mxu0 %v1259
  %1825 = vmatprep.subr.bf16.mxu0 %v1264
  %1826 = vmatpush1.bf16.msra.mxu0 %v1263
  %1827 = vmatprep.subr.bf16.mxu0 %v1268
  %1828 = vmatpush1.bf16.msra.mxu0 %v1267
  %1829 = vmatprep.subr.bf16.mxu0 %v1272
  %1830 = vmatpush1.bf16.msra.mxu0 %v1271
  %1831 = vmatprep.subr.bf16.mxu0 %v1276
  %1832 = vmatpush1.bf16.msra.mxu0 %v1275
  %1833 = vmatprep.subr.bf16.mxu0 %v1280
  %1834 = vmatpush1.bf16.msra.mxu0 %v1279
  %1835 = vmatprep.subr.bf16.mxu0 %v1284
  %1836 = vmatpush1.bf16.msra.mxu0 %v1283
  %1837 = vmatprep.subr.bf16.mxu0 %v1288
  %1838 = vmatpush1.bf16.msra.mxu0 %v1287
  %1839 = vmatprep.subr.bf16.mxu0 %v1292
  %1840 = vmatpush1.bf16.msra.mxu0 %v1291
  %1841 = vmatprep.subr.bf16.mxu0 %v1296
  %1842 = vmatpush1.bf16.msra.mxu0 %v1295
  %1843 = vmatprep.mubr.bf16.mxu0 %v354
  %1844 = vmatmul.mubr.bf16.gmra.mrb[0].mxu0 %v353
  %v1845 = vpop.f32.mrb[0].mxu0
  %v1846 = vadd.f32 %v318, %v1845
  %v1847 = vpop.f32.mrb[0].mxu0
  %v1848 = vadd.f32 %v318, %v1847
  %v1849 = vpop.f32.mrb[0].mxu0
  %v1850 = vadd.f32 %v323, %v1849
  %v1851 = vpop.f32.mrb[0].mxu0
  %v1852 = vadd.f32 %v323, %v1851
  %1853 = vdwg.mxu0
  %1854 = vmatprep.subr.bf16.mxu0 %v1300
  %1855 = vmatpush1.bf16.msra.mxu0 %v1299
  %1856 = vmatprep.subr.bf16.mxu0 %v1304
  %1857 = vmatpush1.bf16.msra.mxu0 %v1303
  %1858 = vmatprep.subr.bf16.mxu0 %v1308
  %1859 = vmatpush1.bf16.msra.mxu0 %v1307
  %1860 = vmatprep.subr.bf16.mxu0 %v1312
  %1861 = vmatpush1.bf16.msra.mxu0 %v1311
  %1862 = vmatprep.subr.bf16.mxu0 %v1316
  %1863 = vmatpush1.bf16.msra.mxu0 %v1315
  %1864 = vmatprep.subr.bf16.mxu0 %v1320
  %1865 = vmatpush1.bf16.msra.mxu0 %v1319
  %1866 = vmatprep.subr.bf16.mxu0 %v1324
  %1867 = vmatpush1.bf16.msra.mxu0 %v1323
  %1868 = vmatprep.subr.bf16.mxu0 %v1328
  %1869 = vmatpush1.bf16.msra.mxu0 %v1327
  %1870 = vmatprep.subr.bf16.mxu0 %v1332
  %1871 = vmatpush1.bf16.msra.mxu0 %v1331
  %1872 = vmatprep.subr.bf16.mxu0 %v1336
  %1873 = vmatpush1.bf16.msra.mxu0 %v1335
  %1874 = vmatprep.subr.bf16.mxu0 %v1340
  %1875 = vmatpush1.bf16.msra.mxu0 %v1339
  %1876 = vmatprep.subr.bf16.mxu0 %v1344
  %1877 = vmatpush1.bf16.msra.mxu0 %v1343
  %1878 = vmatprep.subr.bf16.mxu0 %v1348
  %1879 = vmatpush1.bf16.msra.mxu0 %v1347
  %1880 = vmatprep.subr.bf16.mxu0 %v1352
  %1881 = vmatpush1.bf16.msra.mxu0 %v1351
  %1882 = vmatprep.subr.bf16.mxu0 %v1356
  %1883 = vmatpush1.bf16.msra.mxu0 %v1355
  %1884 = vmatprep.subr.bf16.mxu0 %v1360
  %1885 = vmatpush1.bf16.msra.mxu0 %v1359
  %1886 = vmatprep.mubr.bf16.mxu0 %v356
  %1887 = vmatmul.mubr.bf16.gmra.mrb[0].mxu0 %v355
  %v1888 = vpop.f32.mrb[0].mxu0
  %v1889 = vadd.f32 %v1846, %v1888
  %v1890 = vpop.f32.mrb[0].mxu0
  %v1891 = vadd.f32 %v1848, %v1890
  %v1892 = vpop.f32.mrb[0].mxu0
  %v1893 = vadd.f32 %v1850, %v1892
  %v1894 = vpop.f32.mrb[0].mxu0
  %v1895 = vadd.f32 %v1852, %v1894
  %1896 = vdwg.mxu0
  %1897 = vmatprep.subr.bf16.mxu0 %v1364
  %1898 = vmatpush1.bf16.msra.mxu0 %v1363
  %1899 = vmatprep.subr.bf16.mxu0 %v1368
  %1900 = vmatpush1.bf16.msra.mxu0 %v1367
  %1901 = vmatprep.subr.bf16.mxu0 %v1372
  %1902 = vmatpush1.bf16.msra.mxu0 %v1371
  %1903 = vmatprep.subr.bf16.mxu0 %v1376
  %1904 = vmatpush1.bf16.msra.mxu0 %v1375
  %1905 = vmatprep.subr.bf16.mxu0 %v1380
  %1906 = vmatpush1.bf16.msra.mxu0 %v1379
  %1907 = vmatprep.subr.bf16.mxu0 %v1384
  %1908 = vmatpush1.bf16.msra.mxu0 %v1383
  %1909 = vmatprep.subr.bf16.mxu0 %v1388
  %1910 = vmatpush1.bf16.msra.mxu0 %v1387
  %1911 = vmatprep.subr.bf16.mxu0 %v1392
  %1912 = vmatpush1.bf16.msra.mxu0 %v1391
  %1913 = vmatprep.subr.bf16.mxu0 %v1396
  %1914 = vmatpush1.bf16.msra.mxu0 %v1395
  %1915 = vmatprep.subr.bf16.mxu0 %v1400
  %1916 = vmatpush1.bf16.msra.mxu0 %v1399
  %1917 = vmatprep.subr.bf16.mxu0 %v1404
  %1918 = vmatpush1.bf16.msra.mxu0 %v1403
  %1919 = vmatprep.subr.bf16.mxu0 %v1408
  %1920 = vmatpush1.bf16.msra.mxu0 %v1407
  %1921 = vmatprep.subr.bf16.mxu0 %v1412
  %1922 = vmatpush1.bf16.msra.mxu0 %v1411
  %1923 = vmatprep.subr.bf16.mxu0 %v1416
  %1924 = vmatpush1.bf16.msra.mxu0 %v1415
  %1925 = vmatprep.subr.bf16.mxu0 %v1420
  %1926 = vmatpush1.bf16.msra.mxu0 %v1419
  %1927 = vmatprep.subr.bf16.mxu0 %v1424
  %1928 = vmatpush1.bf16.msra.mxu0 %v1423
  %1929 = vmatprep.mubr.bf16.mxu0 %v358
  %1930 = vmatmul.mubr.bf16.gmra.mrb[0].mxu0 %v357
  %v1931 = vpop.f32.mrb[0].mxu0
  %v1932 = vadd.f32 %v1889, %v1931
  %v1933 = vpop.f32.mrb[0].mxu0
  %v1934 = vadd.f32 %v1891, %v1933
  %v1935 = vpop.f32.mrb[0].mxu0
  %v1936 = vadd.f32 %v1893, %v1935
  %v1937 = vpop.f32.mrb[0].mxu0
  %v1938 = vadd.f32 %v1895, %v1937
  %1939 = vdwg.mxu0
  %1940 = vmatprep.subr.bf16.mxu0 %v1428
  %1941 = vmatpush1.bf16.msra.mxu0 %v1427
  %1942 = vmatprep.subr.bf16.mxu0 %v1432
  %1943 = vmatpush1.bf16.msra.mxu0 %v1431
  %1944 = vmatprep.subr.bf16.mxu0 %v1436
  %1945 = vmatpush1.bf16.msra.mxu0 %v1435
  %1946 = vmatprep.subr.bf16.mxu0 %v1440
  %1947 = vmatpush1.bf16.msra.mxu0 %v1439
  %1948 = vmatprep.subr.bf16.mxu0 %v1444
  %1949 = vmatpush1.bf16.msra.mxu0 %v1443
  %1950 = vmatprep.subr.bf16.mxu0 %v1448
  %1951 = vmatpush1.bf16.msra.mxu0 %v1447
  %1952 = vmatprep.subr.bf16.mxu0 %v1452
  %1953 = vmatpush1.bf16.msra.mxu0 %v1451
  %1954 = vmatprep.subr.bf16.mxu0 %v1456
  %1955 = vmatpush1.bf16.msra.mxu0 %v1455
  %1956 = vmatprep.subr.bf16.mxu0 %v1460
  %1957 = vmatpush1.bf16.msra.mxu0 %v1459
  %1958 = vmatprep.subr.bf16.mxu0 %v1464
  %1959 = vmatpush1.bf16.msra.mxu0 %v1463
  %1960 = vmatprep.subr.bf16.mxu0 %v1468
  %1961 = vmatpush1.bf16.msra.mxu0 %v1467
  %1962 = vmatprep.subr.bf16.mxu0 %v1472
  %1963 = vmatpush1.bf16.msra.mxu0 %v1471
  %1964 = vmatprep.subr.bf16.mxu0 %v1476
  %1965 = vmatpush1.bf16.msra.mxu0 %v1475
  %1966 = vmatprep.subr.bf16.mxu0 %v1480
  %1967 = vmatpush1.bf16.msra.mxu0 %v1479
  %1968 = vmatprep.subr.bf16.mxu0 %v1484
  %1969 = vmatpush1.bf16.msra.mxu0 %v1483
  %1970 = vmatprep.subr.bf16.mxu0 %v1488
  %1971 = vmatpush1.bf16.msra.mxu0 %v1487
  %1972 = vmatprep.mubr.bf16.mxu0 %v360
  %1973 = vmatmul.mubr.bf16.gmra.mrb[0].mxu0 %v359
  %v1974 = vpop.f32.mrb[0].mxu0
  %v1975 = vadd.f32 %v1932, %v1974
  %v1976 = vpop.f32.mrb[0].mxu0
  %v1977 = vadd.f32 %v1934, %v1976
  %v1978 = vpop.f32.mrb[0].mxu0
  %v1979 = vadd.f32 %v1936, %v1978
  %v1980 = vpop.f32.mrb[0].mxu0
  %v1981 = vadd.f32 %v1938, %v1980
  %1982 = vdwg.mxu0
  %1983 = vmatprep.subr.bf16.mxu0 %v1492
  %1984 = vmatpush1.bf16.msra.mxu0 %v1491
  %1985 = vmatprep.subr.bf16.mxu0 %v1496
  %1986 = vmatpush1.bf16.msra.mxu0 %v1495
  %1987 = vmatprep.subr.bf16.mxu0 %v1500
  %1988 = vmatpush1.bf16.msra.mxu0 %v1499
  %1989 = vmatprep.subr.bf16.mxu0 %v1504
  %1990 = vmatpush1.bf16.msra.mxu0 %v1503
  %1991 = vmatprep.subr.bf16.mxu0 %v1508
  %1992 = vmatpush1.bf16.msra.mxu0 %v1507
  %1993 = vmatprep.subr.bf16.mxu0 %v1512
  %1994 = vmatpush1.bf16.msra.mxu0 %v1511
  %1995 = vmatprep.subr.bf16.mxu0 %v1516
  %1996 = vmatpush1.bf16.msra.mxu0 %v1515
  %1997 = vmatprep.subr.bf16.mxu0 %v1520
  %1998 = vmatpush1.bf16.msra.mxu0 %v1519
  %1999 = vmatprep.subr.bf16.mxu0 0
  %2000 = vmatpush1.bf16.msra.mxu0 0
  %2001 = vmatprep.subr.bf16.mxu0 0
  %2002 = vmatpush1.bf16.msra.mxu0 0
  %2003 = vmatprep.subr.bf16.mxu0 0
  %2004 = vmatpush1.bf16.msra.mxu0 0
  %2005 = vmatprep.subr.bf16.mxu0 0
  %2006 = vmatpush1.bf16.msra.mxu0 0
  %2007 = vmatprep.subr.bf16.mxu0 0
  %2008 = vmatpush1.bf16.msra.mxu0 0
  %2009 = vmatprep.subr.bf16.mxu0 0
  %2010 = vmatpush1.bf16.msra.mxu0 0
  %2011 = vmatprep.subr.bf16.mxu0 0
  %2012 = vmatpush1.bf16.msra.mxu0 0
  %2013 = vmatprep.subr.bf16.mxu0 0
  %2014 = vmatpush1.bf16.msra.mxu0 0
  %2015 = vmatprep.mubr.bf16.mxu0 0
  %2016 = vmatmul.mubr.bf16.gmra.mrb[0].mxu0 %v361
  %v2017 = vpop.f32.mrb[0].mxu0
  %v2018 = vadd.f32 %v1975, %v2017
  %v2019 = vpop.f32.mrb[0].mxu0
  %v2020 = vadd.f32 %v1977, %v2019
  %v2021 = vpop.f32.mrb[0].mxu0
  %v2022 = vadd.f32 %v1979, %v2021
  %v2023 = vpop.f32.mrb[0].mxu0
  %v2024 = vadd.f32 %v1981, %v2023
  %2025 = vdwg.mxu0
  %2026 = vmatprep.subr.bf16.mxu0 %v1238
  %2027 = vmatpush1.bf16.msra.mxu0 %v1237
  %2028 = vmatprep.subr.bf16.mxu0 %v1242
  %2029 = vmatpush1.bf16.msra.mxu0 %v1241
  %2030 = vmatprep.subr.bf16.mxu0 %v1246
  %2031 = vmatpush1.bf16.msra.mxu0 %v1245
  %2032 = vmatprep.subr.bf16.mxu0 %v1250
  %2033 = vmatpush1.bf16.msra.mxu0 %v1249
  %2034 = vmatprep.subr.bf16.mxu0 %v1254
  %2035 = vmatpush1.bf16.msra.mxu0 %v1253
  %2036 = vmatprep.subr.bf16.mxu0 %v1258
  %2037 = vmatpush1.bf16.msra.mxu0 %v1257
  %2038 = vmatprep.subr.bf16.mxu0 %v1262
  %2039 = vmatpush1.bf16.msra.mxu0 %v1261
  %2040 = vmatprep.subr.bf16.mxu0 %v1266
  %2041 = vmatpush1.bf16.msra.mxu0 %v1265
  %2042 = vmatprep.subr.bf16.mxu0 %v1270
  %2043 = vmatpush1.bf16.msra.mxu0 %v1269
  %2044 = vmatprep.subr.bf16.mxu0 %v1274
  %2045 = vmatpush1.bf16.msra.mxu0 %v1273
  %2046 = vmatprep.subr.bf16.mxu0 %v1278
  %2047 = vmatpush1.bf16.msra.mxu0 %v1277
  %2048 = vmatprep.subr.bf16.mxu0 %v1282
  %2049 = vmatpush1.bf16.msra.mxu0 %v1281
  %2050 = vmatprep.subr.bf16.mxu0 %v1286
  %2051 = vmatpush1.bf16.msra.mxu0 %v1285
  %2052 = vmatprep.subr.bf16.mxu0 %v1290
  %2053 = vmatpush1.bf16.msra.mxu0 %v1289
  %2054 = vmatprep.subr.bf16.mxu0 %v1294
  %2055 = vmatpush1.bf16.msra.mxu0 %v1293
  %2056 = vmatprep.subr.bf16.mxu0 %v1298
  %2057 = vmatpush1.bf16.msra.mxu0 %v1297
  %2058 = vmatprep.mubr.bf16.mxu0 %v354
  %2059 = vmatmul.mubr.bf16.gmra.mrb[0].mxu0 %v353
  %v2060 = vpop.f32.mrb[0].mxu0
  %v2061 = vadd.f32 %v318, %v2060
  %v2062 = vpop.f32.mrb[0].mxu0
  %v2063 = vadd.f32 %v318, %v2062
  %v2064 = vpop.f32.mrb[0].mxu0
  %v2065 = vadd.f32 %v323, %v2064
  %v2066 = vpop.f32.mrb[0].mxu0
  %v2067 = vadd.f32 %v323, %v2066
  %2068 = vdwg.mxu0
  %2069 = vmatprep.subr.bf16.mxu0 %v1302
  %2070 = vmatpush1.bf16.msra.mxu0 %v1301
  %2071 = vmatprep.subr.bf16.mxu0 %v1306
  %2072 = vmatpush1.bf16.msra.mxu0 %v1305
  %2073 = vmatprep.subr.bf16.mxu0 %v1310
  %2074 = vmatpush1.bf16.msra.mxu0 %v1309
  %2075 = vmatprep.subr.bf16.mxu0 %v1314
  %2076 = vmatpush1.bf16.msra.mxu0 %v1313
  %2077 = vmatprep.subr.bf16.mxu0 %v1318
  %2078 = vmatpush1.bf16.msra.mxu0 %v1317
  %2079 = vmatprep.subr.bf16.mxu0 %v1322
  %2080 = vmatpush1.bf16.msra.mxu0 %v1321
  %2081 = vmatprep.subr.bf16.mxu0 %v1326
  %2082 = vmatpush1.bf16.msra.mxu0 %v1325
  %2083 = vmatprep.subr.bf16.mxu0 %v1330
  %2084 = vmatpush1.bf16.msra.mxu0 %v1329
  %2085 = vmatprep.subr.bf16.mxu0 %v1334
  %2086 = vmatpush1.bf16.msra.mxu0 %v1333
  %2087 = vmatprep.subr.bf16.mxu0 %v1338
  %2088 = vmatpush1.bf16.msra.mxu0 %v1337
  %2089 = vmatprep.subr.bf16.mxu0 %v1342
  %2090 = vmatpush1.bf16.msra.mxu0 %v1341
  %2091 = vmatprep.subr.bf16.mxu0 %v1346
  %2092 = vmatpush1.bf16.msra.mxu0 %v1345
  %2093 = vmatprep.subr.bf16.mxu0 %v1350
  %2094 = vmatpush1.bf16.msra.mxu0 %v1349
  %2095 = vmatprep.subr.bf16.mxu0 %v1354
  %2096 = vmatpush1.bf16.msra.mxu0 %v1353
  %2097 = vmatprep.subr.bf16.mxu0 %v1358
  %2098 = vmatpush1.bf16.msra.mxu0 %v1357
  %2099 = vmatprep.subr.bf16.mxu0 %v1362
  %2100 = vmatpush1.bf16.msra.mxu0 %v1361
  %2101 = vmatprep.mubr.bf16.mxu0 %v356
  %2102 = vmatmul.mubr.bf16.gmra.mrb[0].mxu0 %v355
  %v2103 = vpop.f32.mrb[0].mxu0
  %v2104 = vadd.f32 %v2061, %v2103
  %v2105 = vpop.f32.mrb[0].mxu0
  %v2106 = vadd.f32 %v2063, %v2105
  %v2107 = vpop.f32.mrb[0].mxu0
  %v2108 = vadd.f32 %v2065, %v2107
  %v2109 = vpop.f32.mrb[0].mxu0
  %v2110 = vadd.f32 %v2067, %v2109
  %2111 = vdwg.mxu0
  %2112 = vmatprep.subr.bf16.mxu0 %v1366
  %2113 = vmatpush1.bf16.msra.mxu0 %v1365
  %2114 = vmatprep.subr.bf16.mxu0 %v1370
  %2115 = vmatpush1.bf16.msra.mxu0 %v1369
  %2116 = vmatprep.subr.bf16.mxu0 %v1374
  %2117 = vmatpush1.bf16.msra.mxu0 %v1373
  %2118 = vmatprep.subr.bf16.mxu0 %v1378
  %2119 = vmatpush1.bf16.msra.mxu0 %v1377
  %2120 = vmatprep.subr.bf16.mxu0 %v1382
  %2121 = vmatpush1.bf16.msra.mxu0 %v1381
  %2122 = vmatprep.subr.bf16.mxu0 %v1386
  %2123 = vmatpush1.bf16.msra.mxu0 %v1385
  %2124 = vmatprep.subr.bf16.mxu0 %v1390
  %2125 = vmatpush1.bf16.msra.mxu0 %v1389
  %2126 = vmatprep.subr.bf16.mxu0 %v1394
  %2127 = vmatpush1.bf16.msra.mxu0 %v1393
  %2128 = vmatprep.subr.bf16.mxu0 %v1398
  %2129 = vmatpush1.bf16.msra.mxu0 %v1397
  %2130 = vmatprep.subr.bf16.mxu0 %v1402
  %2131 = vmatpush1.bf16.msra.mxu0 %v1401
  %2132 = vmatprep.subr.bf16.mxu0 %v1406
  %2133 = vmatpush1.bf16.msra.mxu0 %v1405
  %2134 = vmatprep.subr.bf16.mxu0 %v1410
  %2135 = vmatpush1.bf16.msra.mxu0 %v1409
  %2136 = vmatprep.subr.bf16.mxu0 %v1414
  %2137 = vmatpush1.bf16.msra.mxu0 %v1413
  %2138 = vmatprep.subr.bf16.mxu0 %v1418
  %2139 = vmatpush1.bf16.msra.mxu0 %v1417
  %2140 = vmatprep.subr.bf16.mxu0 %v1422
  %2141 = vmatpush1.bf16.msra.mxu0 %v1421
  %2142 = vmatprep.subr.bf16.mxu0 %v1426
  %2143 = vmatpush1.bf16.msra.mxu0 %v1425
  %2144 = vmatprep.mubr.bf16.mxu0 %v358
  %2145 = vmatmul.mubr.bf16.gmra.mrb[0].mxu0 %v357
  %v2146 = vpop.f32.mrb[0].mxu0
  %v2147 = vadd.f32 %v2104, %v2146
  %v2148 = vpop.f32.mrb[0].mxu0
  %v2149 = vadd.f32 %v2106, %v2148
  %v2150 = vpop.f32.mrb[0].mxu0
  %v2151 = vadd.f32 %v2108, %v2150
  %v2152 = vpop.f32.mrb[0].mxu0
  %v2153 = vadd.f32 %v2110, %v2152
  %2154 = vdwg.mxu0
  %2155 = vmatprep.subr.bf16.mxu0 %v1430
  %2156 = vmatpush1.bf16.msra.mxu0 %v1429
  %2157 = vmatprep.subr.bf16.mxu0 %v1434
  %2158 = vmatpush1.bf16.msra.mxu0 %v1433
  %2159 = vmatprep.subr.bf16.mxu0 %v1438
  %2160 = vmatpush1.bf16.msra.mxu0 %v1437
  %2161 = vmatprep.subr.bf16.mxu0 %v1442
  %2162 = vmatpush1.bf16.msra.mxu0 %v1441
  %2163 = vmatprep.subr.bf16.mxu0 %v1446
  %2164 = vmatpush1.bf16.msra.mxu0 %v1445
  %2165 = vmatprep.subr.bf16.mxu0 %v1450
  %2166 = vmatpush1.bf16.msra.mxu0 %v1449
  %2167 = vmatprep.subr.bf16.mxu0 %v1454
  %2168 = vmatpush1.bf16.msra.mxu0 %v1453
  %2169 = vmatprep.subr.bf16.mxu0 %v1458
  %2170 = vmatpush1.bf16.msra.mxu0 %v1457
  %2171 = vmatprep.subr.bf16.mxu0 %v1462
  %2172 = vmatpush1.bf16.msra.mxu0 %v1461
  %2173 = vmatprep.subr.bf16.mxu0 %v1466
  %2174 = vmatpush1.bf16.msra.mxu0 %v1465
  %2175 = vmatprep.subr.bf16.mxu0 %v1470
  %2176 = vmatpush1.bf16.msra.mxu0 %v1469
  %2177 = vmatprep.subr.bf16.mxu0 %v1474
  %2178 = vmatpush1.bf16.msra.mxu0 %v1473
  %2179 = vmatprep.subr.bf16.mxu0 %v1478
  %2180 = vmatpush1.bf16.msra.mxu0 %v1477
  %2181 = vmatprep.subr.bf16.mxu0 %v1482
  %2182 = vmatpush1.bf16.msra.mxu0 %v1481
  %2183 = vmatprep.subr.bf16.mxu0 %v1486
  %2184 = vmatpush1.bf16.msra.mxu0 %v1485
  %2185 = vmatprep.subr.bf16.mxu0 %v1490
  %2186 = vmatpush1.bf16.msra.mxu0 %v1489
  %2187 = vmatprep.mubr.bf16.mxu0 %v360
  %2188 = vmatmul.mubr.bf16.gmra.mrb[0].mxu0 %v359
  %v2189 = vpop.f32.mrb[0].mxu0
  %v2190 = vadd.f32 %v2147, %v2189
  %v2191 = vpop.f32.mrb[0].mxu0
  %v2192 = vadd.f32 %v2149, %v2191
  %v2193 = vpop.f32.mrb[0].mxu0
  %v2194 = vadd.f32 %v2151, %v2193
  %v2195 = vpop.f32.mrb[0].mxu0
  %v2196 = vadd.f32 %v2153, %v2195
  %2197 = vdwg.mxu0
  %2198 = vmatprep.subr.bf16.mxu0 %v1494
  %2199 = vmatpush1.bf16.msra.mxu0 %v1493
  %2200 = vmatprep.subr.bf16.mxu0 %v1498
  %2201 = vmatpush1.bf16.msra.mxu0 %v1497
  %2202 = vmatprep.subr.bf16.mxu0 %v1502
  %2203 = vmatpush1.bf16.msra.mxu0 %v1501
  %2204 = vmatprep.subr.bf16.mxu0 %v1506
  %2205 = vmatpush1.bf16.msra.mxu0 %v1505
  %2206 = vmatprep.subr.bf16.mxu0 %v1510
  %2207 = vmatpush1.bf16.msra.mxu0 %v1509
  %2208 = vmatprep.subr.bf16.mxu0 %v1514
  %2209 = vmatpush1.bf16.msra.mxu0 %v1513
  %2210 = vmatprep.subr.bf16.mxu0 %v1518
  %2211 = vmatpush1.bf16.msra.mxu0 %v1517
  %2212 = vmatprep.subr.bf16.mxu0 %v1522
  %2213 = vmatpush1.bf16.msra.mxu0 %v1521
  %2214 = vmatprep.subr.bf16.mxu0 0
  %2215 = vmatpush1.bf16.msra.mxu0 0
  %2216 = vmatprep.subr.bf16.mxu0 0
  %2217 = vmatpush1.bf16.msra.mxu0 0
  %2218 = vmatprep.subr.bf16.mxu0 0
  %2219 = vmatpush1.bf16.msra.mxu0 0
  %2220 = vmatprep.subr.bf16.mxu0 0
  %2221 = vmatpush1.bf16.msra.mxu0 0
  %2222 = vmatprep.subr.bf16.mxu0 0
  %2223 = vmatpush1.bf16.msra.mxu0 0
  %2224 = vmatprep.subr.bf16.mxu0 0
  %2225 = vmatpush1.bf16.msra.mxu0 0
  %2226 = vmatprep.subr.bf16.mxu0 0
  %2227 = vmatpush1.bf16.msra.mxu0 0
  %2228 = vmatprep.subr.bf16.mxu0 0
  %2229 = vmatpush1.bf16.msra.mxu0 0
  %2230 = vmatprep.mubr.bf16.mxu0 0
  %2231 = vmatmul.mubr.bf16.gmra.mrb[0].mxu0 %v361
  %v2232 = vpop.f32.mrb[0].mxu0
  %v2233 = vadd.f32 %v2190, %v2232
  %v2234 = vpop.f32.mrb[0].mxu0
  %v2235 = vadd.f32 %v2192, %v2234
  %v2236 = vpop.f32.mrb[0].mxu0
  %v2237 = vadd.f32 %v2194, %v2236
  %v2238 = vpop.f32.mrb[0].mxu0
  %v2239 = vadd.f32 %v2196, %v2238
  %2240 = vdwg.mxu0
  %2241 = vst [vmem:[%s3] sm:$0xff] %v2018
  %2242 = vst [vmem:[%s3 + $0x8] sm:$0xff] %v2020
  %2243 = vst [vmem:[%s3 + $0x10] sm:$0xff] %v2233
  %2244 = vst [vmem:[%s3 + $0x18] sm:$0xff] %v2235
  %2245 = vst [vmem:[%s3 + $0x20] sm:$0xff] %v2022
  %2246 = vst [vmem:[%s3 + $0x28] sm:$0xff] %v2024
  %2247 = vst [vmem:[%s3 + $0x30] sm:$0xff] %v2237
  %2248 = vst [vmem:[%s3 + $0x38] sm:$0xff] %v2239
  // Predicated region
  $region14: #{unet3d_forward.18} parent=0 // pred_check
    _
  $region15: #{unet3d_forward.18} parent=0 // pred_check_branch
    %2250 = sbr.rel (0) target = $region17
  $region16: #{unet3d_forward.18} parent=0 // pred_region
    _
  $region17: #{unet3d_forward.18} parent=0 // pred_fallthru
    _
  // Predicated region
  $region18: #{unet3d_forward.18} parent=0 // pred_check
    _
  $region19: #{unet3d_forward.18} parent=0 // pred_check_branch
    %2252 = sbr.rel (0) target = $region21
  $region20: #{unet3d_forward.18} parent=0 // pred_region
    _
  $region21: #{unet3d_forward.18} parent=0 // pred_fallthru
    _

// kernel: unet3d_forward.19
$region0: #{unet3d_forward.19}
  #allocation0 [shape = 'u32[]', space=smem, size = 0x4, offset = 0x4, fixed_abs, tag = 'smem constant byte address 0x4 - core index']
  #allocation1 [shape = 'u32[144,128]{1,0:T(1,128)}', space=vmem, size = 0x12000, scoped, tag = 'internal scratch']
  %s0 = inlined_call_operand.vmem [shape: bf16[16,768], index: 0, kind: input, shape index: {}]
  %s1 = inlined_call_operand.vmem [shape: bf16[768,2048], index: 1, kind: input, shape index: {}]
  %s2 = inlined_call_operand.vmem [shape: f32[16,1], index: 2, kind: input, shape index: {}]
  %s3 = inlined_call_operand.vmem [shape: f32[16,2048], index: 3, kind: output, shape index: {}]
  %s4 = sld [smem:[#allocation0]]
  $region87: #{unet3d_forward.19} parent=0
    _
  %s6 = ssub.s32 1, %s4
  %s7 = scalar_select 0, %s6, %s4
  $region1: #{unet3d_forward.19} parent=0
    #allocation2 [shape = 'u8[1572864]{0}', space=vmem, size = 0x180000, scoped, tag = 'input window, operand 1']
    #allocation3 [shape = 'u8[65536]{0}', space=vmem, size = 0x10000, scoped, tag = 'output window, operand 0']
    loop: start=0, step=1, limit=6
    $region2: #{unet3d_forward.19} parent=1 // loop_pre_header
      _
    $region3: #{unet3d_forward.19} parent=1 // loop_header
      %s9 = sphi 0, %s13
      %p10 = scmp.ge.s32.totalorder %s9, 6
      %s17 = sphi 0, %s17
      %s19 = sphi 0, %s17
      %s20 = sphi 0, %s19
      %s34 = sphi 0, %s20
      %s40 = sphi 0, %s42
      %s43 = sphi 0, %s40
      %s44 = sphi 0, %s43
      %s60 = sphi 0, %s44
      %s64 = sphi 0, %s64
      %s66 = sphi 0, %s64
      %s67 = sphi 0, %s66
      %s81 = sphi 0, %s67
      %s87 = sphi 0, %s89
      %s90 = sphi 0, %s87
      %s91 = sphi 0, %s90
      %s107 = sphi 0, %s91
    $region4: #{unet3d_forward.19} parent=1 // loop_header_branch
      %12 = sbr.rel (%p10) target = $region8
    $region5: #{unet3d_forward.19} parent=1 // loop_body
      %s14 = ssub.s32 %s9, 1
      %s15 = ssub.s32 %s9, 2
      %s16 = sadd.s32 %s9, 1
      %s18 = sadd.s32 %s17, 1
      %p21 = scmp.eq.s32.totalorder %s9, 3
      %p22 = scmp.ne.s32.totalorder %s17, %s19
      %p23 = scmp.eq.s32.totalorder %s9, 0
      %p24 = por %p22, %p23
      %p25 = scmp.ne.s32.totalorder %s17, %s19
      %p26 = scmp.eq.s32.totalorder %s14, 3
      %p27 = por %p25, %p26
      %p28 = scmp.ne.s32.totalorder %s19, %s20
      %p29 = scmp.eq.s32.totalorder %s14, 0
      %p30 = por %p28, %p29
      %p31 = scmp.ne.s32.totalorder %s19, %s20
      %p32 = scmp.eq.s32.totalorder %s15, 3
      %p33 = por %p31, %p32
      %p35 = scmp.ne.s32.totalorder %s20, %s34
      %p36 = scmp.eq.s32.totalorder %s15, 0
      %p37 = por %p35, %p36
      %s38 = ssub.s32 %s9, %s16
      %p39 = scmp.eq.s32.totalorder %s38, 0
      %s41 = sadd.s32 %s40, 1
      %s42 = scalar_select %p39, %s40, %s41
      %p45 = pneg %p39
      %p46 = scmp.eq.s32.totalorder %s9, 3
      %p47 = por %p45, %p46
      %p48 = scmp.ne.s32.totalorder %s40, %s43
      %p49 = scmp.eq.s32.totalorder %s9, 0
      %p50 = por %p48, %p49
      %p51 = scmp.ne.s32.totalorder %s40, %s43
      %p52 = scmp.eq.s32.totalorder %s14, 3
      %p53 = por %p51, %p52
      %p54 = scmp.ne.s32.totalorder %s43, %s44
      %p55 = scmp.eq.s32.totalorder %s14, 0
      %p56 = por %p54, %p55
      %p57 = scmp.ne.s32.totalorder %s43, %s44
      %p58 = scmp.eq.s32.totalorder %s15, 3
      %p59 = por %p57, %p58
      %p61 = scmp.ne.s32.totalorder %s44, %s60
      %p62 = scmp.eq.s32.totalorder %s15, 0
      %p63 = por %p61, %p62
      %s65 = sadd.s32 %s64, 1
      %p68 = scmp.eq.s32.totalorder %s9, 3
      %p69 = scmp.ne.s32.totalorder %s64, %s66
      %p70 = scmp.eq.s32.totalorder %s9, 0
      %p71 = por %p69, %p70
      %p72 = scmp.ne.s32.totalorder %s64, %s66
      %p73 = scmp.eq.s32.totalorder %s14, 3
      %p74 = por %p72, %p73
      %p75 = scmp.ne.s32.totalorder %s66, %s67
      %p76 = scmp.eq.s32.totalorder %s14, 0
      %p77 = por %p75, %p76
      %p78 = scmp.ne.s32.totalorder %s66, %s67
      %p79 = scmp.eq.s32.totalorder %s15, 3
      %p80 = por %p78, %p79
      %p82 = scmp.ne.s32.totalorder %s67, %s81
      %p83 = scmp.eq.s32.totalorder %s15, 0
      %p84 = por %p82, %p83
      %s85 = ssub.s32 %s9, %s16
      %p86 = scmp.eq.s32.totalorder %s85, 0
      %s88 = sadd.s32 %s87, 1
      %s89 = scalar_select %p86, %s87, %s88
      %p92 = pneg %p86
      %p93 = scmp.eq.s32.totalorder %s9, 3
      %p94 = por %p92, %p93
      %p95 = scmp.ne.s32.totalorder %s87, %s90
      %p96 = scmp.eq.s32.totalorder %s9, 0
      %p97 = por %p95, %p96
      %p98 = scmp.ne.s32.totalorder %s87, %s90
      %p99 = scmp.eq.s32.totalorder %s14, 3
      %p100 = por %p98, %p99
      %p101 = scmp.ne.s32.totalorder %s90, %s91
      %p102 = scmp.eq.s32.totalorder %s14, 0
      %p103 = por %p101, %p102
      %p104 = scmp.ne.s32.totalorder %s90, %s91
      %p105 = scmp.eq.s32.totalorder %s15, 3
      %p106 = por %p104, %p105
      %p108 = scmp.ne.s32.totalorder %s91, %s107
      %p109 = scmp.eq.s32.totalorder %s15, 0
      %p110 = por %p108, %p109
      %p111 = scmp.le.s32.totalorder 1, %s9
      %p112 = scmp.lt.s32.totalorder %s9, 5
      %p113 = pnand %p111, %p112
      %p114 = pneg %p113
      // Predicated region
      $region9: #{unet3d_forward.19} parent=5 // pred_check
        _
      $region10: #{unet3d_forward.19} parent=5 // pred_check_branch
        %116 = sbr.rel (%p113) target = $region12
      $region11: #{unet3d_forward.19} parent=5 // pred_region
        %s117 = ssub.s32 %s9, 1
        // Predicated region
        $region13: #{unet3d_forward.19} parent=11 // pred_check
          %p118 = pneg %p30
        $region14: #{unet3d_forward.19} parent=11 // pred_check_branch
          %120 = sbr.rel (%p118) target = $region16
        $region15: #{unet3d_forward.19} parent=11 // pred_region
          _
        $region16: #{unet3d_forward.19} parent=11 // pred_fallthru
          _
        // Predicated region
        $region17: #{unet3d_forward.19} parent=11 // pred_check
          %p121 = pneg %p77
        $region18: #{unet3d_forward.19} parent=11 // pred_check_branch
          %123 = sbr.rel (%p121) target = $region20
        $region19: #{unet3d_forward.19} parent=11 // pred_region
          _
        $region20: #{unet3d_forward.19} parent=11 // pred_fallthru
          _
      $region12: #{unet3d_forward.19} parent=5 // pred_fallthru
        _
      %p124 = scmp.lt.s32.totalorder %s9, 4
      // Predicated region
      $region21: #{unet3d_forward.19} parent=5 // pred_check
        %p125 = pneg %p124
      $region22: #{unet3d_forward.19} parent=5 // pred_check_branch
        %127 = sbr.rel (%p125) target = $region24
      $region23: #{unet3d_forward.19} parent=5 // pred_region
        // Predicated region
        $region25: #{unet3d_forward.19} parent=23 // pred_check
          %p128 = pneg %p50
        $region26: #{unet3d_forward.19} parent=23 // pred_check_branch
          %130 = sbr.rel (%p128) target = $region28
        $region27: #{unet3d_forward.19} parent=23 // pred_region
          %s131 = sand.u32 %s40, 1
          %s132 = sand.u32 %s40, 1
          %s133 = smul.addr %s132, 1536
          %s134 = scalar_lea.vmem [#allocation2], %s133
          %s135 = smul.u32 4, %s9
          %s136 = smul.addr %s135, 4
          %s137 = scalar_lea.vmem %s1, %s136
          // Predicated region
          $region29: #{unet3d_forward.19} parent=27 // pred_check
            _
          $region30: #{unet3d_forward.19} parent=27 // pred_check_branch
            %139 = sbr.rel (0) target = $region32
          $region31: #{unet3d_forward.19} parent=27 // pred_region
            // Predicated region
            $region33: #{unet3d_forward.19} parent=31 // pred_check
              _
            $region34: #{unet3d_forward.19} parent=31 // pred_check_branch
              %141 = sbr.rel (0) target = $region36
            $region35: #{unet3d_forward.19} parent=31 // pred_region
              loop: start=0, step=1, limit=1
              $region37: #{unet3d_forward.19} parent=35 // loop_pre_header
                _
              $region38: #{unet3d_forward.19} parent=35 // loop_header
                %s143 = sphi 0, %s147
                %p144 = scmp.ge.s32.totalorder %s143, 1
                %s148 = sphi %s137, %s137
                %s149 = sphi %s134, %s134
              $region39: #{unet3d_forward.19} parent=35 // loop_header_branch
                %146 = sbr.rel (%p144) target = $region43
              $region40: #{unet3d_forward.19} parent=35 // loop_body
                %v150 = vld [vmem:[%s148] sm:$0xff]
                %151 = vst [vmem:[%s149] sm:$0xff] %v150
                %v152 = vld [vmem:[%s148 + $0x8] sm:$0xff]
                %153 = vst [vmem:[%s149 + $0x8] sm:$0xff] %v152
                %v154 = vld [vmem:[%s148 + $0x40] sm:$0xff]
                %155 = vst [vmem:[%s149 + $0x10] sm:$0xff] %v154
                %v156 = vld [vmem:[%s148 + $0x48] sm:$0xff]
                %157 = vst [vmem:[%s149 + $0x18] sm:$0xff] %v156
                %v158 = vld [vmem:[%s148 + $0x80] sm:$0xff]
                %159 = vst [vmem:[%s149 + $0x20] sm:$0xff] %v158
                %v160 = vld [vmem:[%s148 + $0x88] sm:$0xff]
                %161 = vst [vmem:[%s149 + $0x28] sm:$0xff] %v160
                %v162 = vld [vmem:[%s148 + $0xc0] sm:$0xff]
                %163 = vst [vmem:[%s149 + $0x30] sm:$0xff] %v162
                %v164 = vld [vmem:[%s148 + $0xc8] sm:$0xff]
                %165 = vst [vmem:[%s149 + $0x38] sm:$0xff] %v164
                %v166 = vld [vmem:[%s148 + $0x100] sm:$0xff]
                %167 = vst [vmem:[%s149 + $0x40] sm:$0xff] %v166
                %v168 = vld [vmem:[%s148 + $0x108] sm:$0xff]
                %169 = vst [vmem:[%s149 + $0x48] sm:$0xff] %v168
                %v170 = vld [vmem:[%s148 + $0x140] sm:$0xff]
                %171 = vst [vmem:[%s149 + $0x50] sm:$0xff] %v170
                %v172 = vld [vmem:[%s148 + $0x148] sm:$0xff]
                %173 = vst [vmem:[%s149 + $0x58] sm:$0xff] %v172
                %v174 = vld [vmem:[%s148 + $0x180] sm:$0xff]
                %175 = vst [vmem:[%s149 + $0x60] sm:$0xff] %v174
                %v176 = vld [vmem:[%s148 + $0x188] sm:$0xff]
                %177 = vst [vmem:[%s149 + $0x68] sm:$0xff] %v176
                %v178 = vld [vmem:[%s148 + $0x1c0] sm:$0xff]
                %179 = vst [vmem:[%s149 + $0x70] sm:$0xff] %v178
                %v180 = vld [vmem:[%s148 + $0x1c8] sm:$0xff]
                %181 = vst [vmem:[%s149 + $0x78] sm:$0xff] %v180
                %v182 = vld [vmem:[%s148 + $0x200] sm:$0xff]
                %183 = vst [vmem:[%s149 + $0x80] sm:$0xff] %v182
                %v184 = vld [vmem:[%s148 + $0x208] sm:$0xff]
                %185 = vst [vmem:[%s149 + $0x88] sm:$0xff] %v184
                %v186 = vld [vmem:[%s148 + $0x240] sm:$0xff]
                %187 = vst [vmem:[%s149 + $0x90] sm:$0xff] %v186
                %v188 = vld [vmem:[%s148 + $0x248] sm:$0xff]
                %189 = vst [vmem:[%s149 + $0x98] sm:$0xff] %v188
                %v190 = vld [vmem:[%s148 + $0x280] sm:$0xff]
                %191 = vst [vmem:[%s149 + $0xa0] sm:$0xff] %v190
                %v192 = vld [vmem:[%s148 + $0x288] sm:$0xff]
                %193 = vst [vmem:[%s149 + $0xa8] sm:$0xff] %v192
                %v194 = vld [vmem:[%s148 + $0x2c0] sm:$0xff]
                %195 = vst [vmem:[%s149 + $0xb0] sm:$0xff] %v194
                %v196 = vld [vmem:[%s148 + $0x2c8] sm:$0xff]
                %197 = vst [vmem:[%s149 + $0xb8] sm:$0xff] %v196
                %v198 = vld [vmem:[%s148 + $0x300] sm:$0xff]
                %199 = vst [vmem:[%s149 + $0xc0] sm:$0xff] %v198
                %v200 = vld [vmem:[%s148 + $0x308] sm:$0xff]
                %201 = vst [vmem:[%s149 + $0xc8] sm:$0xff] %v200
                %v202 = vld [vmem:[%s148 + $0x340] sm:$0xff]
                %203 = vst [vmem:[%s149 + $0xd0] sm:$0xff] %v202
                %v204 = vld [vmem:[%s148 + $0x348] sm:$0xff]
                %205 = vst [vmem:[%s149 + $0xd8] sm:$0xff] %v204
                %v206 = vld [vmem:[%s148 + $0x380] sm:$0xff]
                %207 = vst [vmem:[%s149 + $0xe0] sm:$0xff] %v206
                %v208 = vld [vmem:[%s148 + $0x388] sm:$0xff]
                %209 = vst [vmem:[%s149 + $0xe8] sm:$0xff] %v208
                %v210 = vld [vmem:[%s148 + $0x3c0] sm:$0xff]
                %211 = vst [vmem:[%s149 + $0xf0] sm:$0xff] %v210
                %v212 = vld [vmem:[%s148 + $0x3c8] sm:$0xff]
                %213 = vst [vmem:[%s149 + $0xf8] sm:$0xff] %v212
                %v214 = vld [vmem:[%s148 + $0x400] sm:$0xff]
                %215 = vst [vmem:[%s149 + $0x100] sm:$0xff] %v214
                %v216 = vld [vmem:[%s148 + $0x408] sm:$0xff]
                %217 = vst [vmem:[%s149 + $0x108] sm:$0xff] %v216
                %v218 = vld [vmem:[%s148 + $0x440] sm:$0xff]
                %219 = vst [vmem:[%s149 + $0x110] sm:$0xff] %v218
                %v220 = vld [vmem:[%s148 + $0x448] sm:$0xff]
                %221 = vst [vmem:[%s149 + $0x118] sm:$0xff] %v220
                %v222 = vld [vmem:[%s148 + $0x480] sm:$0xff]
                %223 = vst [vmem:[%s149 + $0x120] sm:$0xff] %v222
                %v224 = vld [vmem:[%s148 + $0x488] sm:$0xff]
                %225 = vst [vmem:[%s149 + $0x128] sm:$0xff] %v224
                %v226 = vld [vmem:[%s148 + $0x4c0] sm:$0xff]
                %227 = vst [vmem:[%s149 + $0x130] sm:$0xff] %v226
                %v228 = vld [vmem:[%s148 + $0x4c8] sm:$0xff]
                %229 = vst [vmem:[%s149 + $0x138] sm:$0xff] %v228
                %v230 = vld [vmem:[%s148 + $0x500] sm:$0xff]
                %231 = vst [vmem:[%s149 + $0x140] sm:$0xff] %v230
                %v232 = vld [vmem:[%s148 + $0x508] sm:$0xff]
                %233 = vst [vmem:[%s149 + $0x148] sm:$0xff] %v232
                %v234 = vld [vmem:[%s148 + $0x540] sm:$0xff]
                %235 = vst [vmem:[%s149 + $0x150] sm:$0xff] %v234
                %v236 = vld [vmem:[%s148 + $0x548] sm:$0xff]
                %237 = vst [vmem:[%s149 + $0x158] sm:$0xff] %v236
                %v238 = vld [vmem:[%s148 + $0x580] sm:$0xff]
                %239 = vst [vmem:[%s149 + $0x160] sm:$0xff] %v238
                %v240 = vld [vmem:[%s148 + $0x588] sm:$0xff]
                %241 = vst [vmem:[%s149 + $0x168] sm:$0xff] %v240
                %v242 = vld [vmem:[%s148 + $0x5c0] sm:$0xff]
                %243 = vst [vmem:[%s149 + $0x170] sm:$0xff] %v242
                %v244 = vld [vmem:[%s148 + $0x5c8] sm:$0xff]
                %245 = vst [vmem:[%s149 + $0x178] sm:$0xff] %v244
                %v246 = vld [vmem:[%s148 + $0x600] sm:$0xff]
                %247 = vst [vmem:[%s149 + $0x180] sm:$0xff] %v246
                %v248 = vld [vmem:[%s148 + $0x608] sm:$0xff]
                %249 = vst [vmem:[%s149 + $0x188] sm:$0xff] %v248
                %v250 = vld [vmem:[%s148 + $0x640] sm:$0xff]
                %251 = vst [vmem:[%s149 + $0x190] sm:$0xff] %v250
                %v252 = vld [vmem:[%s148 + $0x648] sm:$0xff]
                %253 = vst [vmem:[%s149 + $0x198] sm:$0xff] %v252
                %v254 = vld [vmem:[%s148 + $0x680] sm:$0xff]
                %255 = vst [vmem:[%s149 + $0x1a0] sm:$0xff] %v254
                %v256 = vld [vmem:[%s148 + $0x688] sm:$0xff]
                %257 = vst [vmem:[%s149 + $0x1a8] sm:$0xff] %v256
                %v258 = vld [vmem:[%s148 + $0x6c0] sm:$0xff]
                %259 = vst [vmem:[%s149 + $0x1b0] sm:$0xff] %v258
                %v260 = vld [vmem:[%s148 + $0x6c8] sm:$0xff]
                %261 = vst [vmem:[%s149 + $0x1b8] sm:$0xff] %v260
                %v262 = vld [vmem:[%s148 + $0x700] sm:$0xff]
                %263 = vst [vmem:[%s149 + $0x1c0] sm:$0xff] %v262
                %v264 = vld [vmem:[%s148 + $0x708] sm:$0xff]
                %265 = vst [vmem:[%s149 + $0x1c8] sm:$0xff] %v264
                %v266 = vld [vmem:[%s148 + $0x740] sm:$0xff]
                %267 = vst [vmem:[%s149 + $0x1d0] sm:$0xff] %v266
                %v268 = vld [vmem:[%s148 + $0x748] sm:$0xff]
                %269 = vst [vmem:[%s149 + $0x1d8] sm:$0xff] %v268
                %v270 = vld [vmem:[%s148 + $0x780] sm:$0xff]
                %271 = vst [vmem:[%s149 + $0x1e0] sm:$0xff] %v270
                %v272 = vld [vmem:[%s148 + $0x788] sm:$0xff]
                %273 = vst [vmem:[%s149 + $0x1e8] sm:$0xff] %v272
                %v274 = vld [vmem:[%s148 + $0x7c0] sm:$0xff]
                %275 = vst [vmem:[%s149 + $0x1f0] sm:$0xff] %v274
                %v276 = vld [vmem:[%s148 + $0x7c8] sm:$0xff]
                %277 = vst [vmem:[%s149 + $0x1f8] sm:$0xff] %v276
                %v278 = vld [vmem:[%s148 + $0x800] sm:$0xff]
                %279 = vst [vmem:[%s149 + $0x200] sm:$0xff] %v278
                %v280 = vld [vmem:[%s148 + $0x808] sm:$0xff]
                %281 = vst [vmem:[%s149 + $0x208] sm:$0xff] %v280
                %v282 = vld [vmem:[%s148 + $0x840] sm:$0xff]
                %283 = vst [vmem:[%s149 + $0x210] sm:$0xff] %v282
                %v284 = vld [vmem:[%s148 + $0x848] sm:$0xff]
                %285 = vst [vmem:[%s149 + $0x218] sm:$0xff] %v284
                %v286 = vld [vmem:[%s148 + $0x880] sm:$0xff]
                %287 = vst [vmem:[%s149 + $0x220] sm:$0xff] %v286
                %v288 = vld [vmem:[%s148 + $0x888] sm:$0xff]
                %289 = vst [vmem:[%s149 + $0x228] sm:$0xff] %v288
                %v290 = vld [vmem:[%s148 + $0x8c0] sm:$0xff]
                %291 = vst [vmem:[%s149 + $0x230] sm:$0xff] %v290
                %v292 = vld [vmem:[%s148 + $0x8c8] sm:$0xff]
                %293 = vst [vmem:[%s149 + $0x238] sm:$0xff] %v292
                %v294 = vld [vmem:[%s148 + $0x900] sm:$0xff]
                %295 = vst [vmem:[%s149 + $0x240] sm:$0xff] %v294
                %v296 = vld [vmem:[%s148 + $0x908] sm:$0xff]
                %297 = vst [vmem:[%s149 + $0x248] sm:$0xff] %v296
                %v298 = vld [vmem:[%s148 + $0x940] sm:$0xff]
                %299 = vst [vmem:[%s149 + $0x250] sm:$0xff] %v298
                %v300 = vld [vmem:[%s148 + $0x948] sm:$0xff]
                %301 = vst [vmem:[%s149 + $0x258] sm:$0xff] %v300
                %v302 = vld [vmem:[%s148 + $0x980] sm:$0xff]
                %303 = vst [vmem:[%s149 + $0x260] sm:$0xff] %v302
                %v304 = vld [vmem:[%s148 + $0x988] sm:$0xff]
                %305 = vst [vmem:[%s149 + $0x268] sm:$0xff] %v304
                %v306 = vld [vmem:[%s148 + $0x9c0] sm:$0xff]
                %307 = vst [vmem:[%s149 + $0x270] sm:$0xff] %v306
                %v308 = vld [vmem:[%s148 + $0x9c8] sm:$0xff]
                %309 = vst [vmem:[%s149 + $0x278] sm:$0xff] %v308
                %v310 = vld [vmem:[%s148 + $0xa00] sm:$0xff]
                %311 = vst [vmem:[%s149 + $0x280] sm:$0xff] %v310
                %v312 = vld [vmem:[%s148 + $0xa08] sm:$0xff]
                %313 = vst [vmem:[%s149 + $0x288] sm:$0xff] %v312
                %v314 = vld [vmem:[%s148 + $0xa40] sm:$0xff]
                %315 = vst [vmem:[%s149 + $0x290] sm:$0xff] %v314
                %v316 = vld [vmem:[%s148 + $0xa48] sm:$0xff]
                %317 = vst [vmem:[%s149 + $0x298] sm:$0xff] %v316
                %v318 = vld [vmem:[%s148 + $0xa80] sm:$0xff]
                %319 = vst [vmem:[%s149 + $0x2a0] sm:$0xff] %v318
                %v320 = vld [vmem:[%s148 + $0xa88] sm:$0xff]
                %321 = vst [vmem:[%s149 + $0x2a8] sm:$0xff] %v320
                %v322 = vld [vmem:[%s148 + $0xac0] sm:$0xff]
                %323 = vst [vmem:[%s149 + $0x2b0] sm:$0xff] %v322
                %v324 = vld [vmem:[%s148 + $0xac8] sm:$0xff]
                %325 = vst [vmem:[%s149 + $0x2b8] sm:$0xff] %v324
                %v326 = vld [vmem:[%s148 + $0xb00] sm:$0xff]
                %327 = vst [vmem:[%s149 + $0x2c0] sm:$0xff] %v326
                %v328 = vld [vmem:[%s148 + $0xb08] sm:$0xff]
                %329 = vst [vmem:[%s149 + $0x2c8] sm:$0xff] %v328
                %v330 = vld [vmem:[%s148 + $0xb40] sm:$0xff]
                %331 = vst [vmem:[%s149 + $0x2d0] sm:$0xff] %v330
                %v332 = vld [vmem:[%s148 + $0xb48] sm:$0xff]
                %333 = vst [vmem:[%s149 + $0x2d8] sm:$0xff] %v332
                %v334 = vld [vmem:[%s148 + $0xb80] sm:$0xff]
                %335 = vst [vmem:[%s149 + $0x2e0] sm:$0xff] %v334
                %v336 = vld [vmem:[%s148 + $0xb88] sm:$0xff]
                %337 = vst [vmem:[%s149 + $0x2e8] sm:$0xff] %v336
                %v338 = vld [vmem:[%s148 + $0xbc0] sm:$0xff]
                %339 = vst [vmem:[%s149 + $0x2f0] sm:$0xff] %v338
                %v340 = vld [vmem:[%s148 + $0xbc8] sm:$0xff]
                %341 = vst [vmem:[%s149 + $0x2f8] sm:$0xff] %v340
                %v342 = vld [vmem:[%s148 + $0xc00] sm:$0xff]
                %343 = vst [vmem:[%s149 + $0x300] sm:$0xff] %v342
                %v344 = vld [vmem:[%s148 + $0xc08] sm:$0xff]
                %345 = vst [vmem:[%s149 + $0x308] sm:$0xff] %v344
                %v346 = vld [vmem:[%s148 + $0xc40] sm:$0xff]
                %347 = vst [vmem:[%s149 + $0x310] sm:$0xff] %v346
                %v348 = vld [vmem:[%s148 + $0xc48] sm:$0xff]
                %349 = vst [vmem:[%s149 + $0x318] sm:$0xff] %v348
                %v350 = vld [vmem:[%s148 + $0xc80] sm:$0xff]
                %351 = vst [vmem:[%s149 + $0x320] sm:$0xff] %v350
                %v352 = vld [vmem:[%s148 + $0xc88] sm:$0xff]
                %353 = vst [vmem:[%s149 + $0x328] sm:$0xff] %v352
                %v354 = vld [vmem:[%s148 + $0xcc0] sm:$0xff]
                %355 = vst [vmem:[%s149 + $0x330] sm:$0xff] %v354
                %v356 = vld [vmem:[%s148 + $0xcc8] sm:$0xff]
                %357 = vst [vmem:[%s149 + $0x338] sm:$0xff] %v356
                %v358 = vld [vmem:[%s148 + $0xd00] sm:$0xff]
                %359 = vst [vmem:[%s149 + $0x340] sm:$0xff] %v358
                %v360 = vld [vmem:[%s148 + $0xd08] sm:$0xff]
                %361 = vst [vmem:[%s149 + $0x348] sm:$0xff] %v360
                %v362 = vld [vmem:[%s148 + $0xd40] sm:$0xff]
                %363 = vst [vmem:[%s149 + $0x350] sm:$0xff] %v362
                %v364 = vld [vmem:[%s148 + $0xd48] sm:$0xff]
                %365 = vst [vmem:[%s149 + $0x358] sm:$0xff] %v364
                %v366 = vld [vmem:[%s148 + $0xd80] sm:$0xff]
                %367 = vst [vmem:[%s149 + $0x360] sm:$0xff] %v366
                %v368 = vld [vmem:[%s148 + $0xd88] sm:$0xff]
                %369 = vst [vmem:[%s149 + $0x368] sm:$0xff] %v368
                %v370 = vld [vmem:[%s148 + $0xdc0] sm:$0xff]
                %371 = vst [vmem:[%s149 + $0x370] sm:$0xff] %v370
                %v372 = vld [vmem:[%s148 + $0xdc8] sm:$0xff]
                %373 = vst [vmem:[%s149 + $0x378] sm:$0xff] %v372
                %v374 = vld [vmem:[%s148 + $0xe00] sm:$0xff]
                %375 = vst [vmem:[%s149 + $0x380] sm:$0xff] %v374
                %v376 = vld [vmem:[%s148 + $0xe08] sm:$0xff]
                %377 = vst [vmem:[%s149 + $0x388] sm:$0xff] %v376
                %v378 = vld [vmem:[%s148 + $0xe40] sm:$0xff]
                %379 = vst [vmem:[%s149 + $0x390] sm:$0xff] %v378
                %v380 = vld [vmem:[%s148 + $0xe48] sm:$0xff]
                %381 = vst [vmem:[%s149 + $0x398] sm:$0xff] %v380
                %v382 = vld [vmem:[%s148 + $0xe80] sm:$0xff]
                %383 = vst [vmem:[%s149 + $0x3a0] sm:$0xff] %v382
                %v384 = vld [vmem:[%s148 + $0xe88] sm:$0xff]
                %385 = vst [vmem:[%s149 + $0x3a8] sm:$0xff] %v384
                %v386 = vld [vmem:[%s148 + $0xec0] sm:$0xff]
                %387 = vst [vmem:[%s149 + $0x3b0] sm:$0xff] %v386
                %v388 = vld [vmem:[%s148 + $0xec8] sm:$0xff]
                %389 = vst [vmem:[%s149 + $0x3b8] sm:$0xff] %v388
                %v390 = vld [vmem:[%s148 + $0xf00] sm:$0xff]
                %391 = vst [vmem:[%s149 + $0x3c0] sm:$0xff] %v390
                %v392 = vld [vmem:[%s148 + $0xf08] sm:$0xff]
                %393 = vst [vmem:[%s149 + $0x3c8] sm:$0xff] %v392
                %v394 = vld [vmem:[%s148 + $0xf40] sm:$0xff]
                %395 = vst [vmem:[%s149 + $0x3d0] sm:$0xff] %v394
                %v396 = vld [vmem:[%s148 + $0xf48] sm:$0xff]
                %397 = vst [vmem:[%s149 + $0x3d8] sm:$0xff] %v396
                %v398 = vld [vmem:[%s148 + $0xf80] sm:$0xff]
                %399 = vst [vmem:[%s149 + $0x3e0] sm:$0xff] %v398
                %v400 = vld [vmem:[%s148 + $0xf88] sm:$0xff]
                %401 = vst [vmem:[%s149 + $0x3e8] sm:$0xff] %v400
                %v402 = vld [vmem:[%s148 + $0xfc0] sm:$0xff]
                %403 = vst [vmem:[%s149 + $0x3f0] sm:$0xff] %v402
                %v404 = vld [vmem:[%s148 + $0xfc8] sm:$0xff]
                %405 = vst [vmem:[%s149 + $0x3f8] sm:$0xff] %v404
                %v406 = vld [vmem:[%s148 + $0x1000] sm:$0xff]
                %407 = vst [vmem:[%s149 + $0x400] sm:$0xff] %v406
                %v408 = vld [vmem:[%s148 + $0x1008] sm:$0xff]
                %409 = vst [vmem:[%s149 + $0x408] sm:$0xff] %v408
                %v410 = vld [vmem:[%s148 + $0x1040] sm:$0xff]
                %411 = vst [vmem:[%s149 + $0x410] sm:$0xff] %v410
                %v412 = vld [vmem:[%s148 + $0x1048] sm:$0xff]
                %413 = vst [vmem:[%s149 + $0x418] sm:$0xff] %v412
                %v414 = vld [vmem:[%s148 + $0x1080] sm:$0xff]
                %415 = vst [vmem:[%s149 + $0x420] sm:$0xff] %v414
                %v416 = vld [vmem:[%s148 + $0x1088] sm:$0xff]
                %417 = vst [vmem:[%s149 + $0x428] sm:$0xff] %v416
                %v418 = vld [vmem:[%s148 + $0x10c0] sm:$0xff]
                %419 = vst [vmem:[%s149 + $0x430] sm:$0xff] %v418
                %v420 = vld [vmem:[%s148 + $0x10c8] sm:$0xff]
                %421 = vst [vmem:[%s149 + $0x438] sm:$0xff] %v420
                %v422 = vld [vmem:[%s148 + $0x1100] sm:$0xff]
                %423 = vst [vmem:[%s149 + $0x440] sm:$0xff] %v422
                %v424 = vld [vmem:[%s148 + $0x1108] sm:$0xff]
                %425 = vst [vmem:[%s149 + $0x448] sm:$0xff] %v424
                %v426 = vld [vmem:[%s148 + $0x1140] sm:$0xff]
                %427 = vst [vmem:[%s149 + $0x450] sm:$0xff] %v426
                %v428 = vld [vmem:[%s148 + $0x1148] sm:$0xff]
                %429 = vst [vmem:[%s149 + $0x458] sm:$0xff] %v428
                %v430 = vld [vmem:[%s148 + $0x1180] sm:$0xff]
                %431 = vst [vmem:[%s149 + $0x460] sm:$0xff] %v430
                %v432 = vld [vmem:[%s148 + $0x1188] sm:$0xff]
                %433 = vst [vmem:[%s149 + $0x468] sm:$0xff] %v432
                %v434 = vld [vmem:[%s148 + $0x11c0] sm:$0xff]
                %435 = vst [vmem:[%s149 + $0x470] sm:$0xff] %v434
                %v436 = vld [vmem:[%s148 + $0x11c8] sm:$0xff]
                %437 = vst [vmem:[%s149 + $0x478] sm:$0xff] %v436
                %v438 = vld [vmem:[%s148 + $0x1200] sm:$0xff]
                %439 = vst [vmem:[%s149 + $0x480] sm:$0xff] %v438
                %v440 = vld [vmem:[%s148 + $0x1208] sm:$0xff]
                %441 = vst [vmem:[%s149 + $0x488] sm:$0xff] %v440
                %v442 = vld [vmem:[%s148 + $0x1240] sm:$0xff]
                %443 = vst [vmem:[%s149 + $0x490] sm:$0xff] %v442
                %v444 = vld [vmem:[%s148 + $0x1248] sm:$0xff]
                %445 = vst [vmem:[%s149 + $0x498] sm:$0xff] %v444
                %v446 = vld [vmem:[%s148 + $0x1280] sm:$0xff]
                %447 = vst [vmem:[%s149 + $0x4a0] sm:$0xff] %v446
                %v448 = vld [vmem:[%s148 + $0x1288] sm:$0xff]
                %449 = vst [vmem:[%s149 + $0x4a8] sm:$0xff] %v448
                %v450 = vld [vmem:[%s148 + $0x12c0] sm:$0xff]
                %451 = vst [vmem:[%s149 + $0x4b0] sm:$0xff] %v450
                %v452 = vld [vmem:[%s148 + $0x12c8] sm:$0xff]
                %453 = vst [vmem:[%s149 + $0x4b8] sm:$0xff] %v452
                %v454 = vld [vmem:[%s148 + $0x1300] sm:$0xff]
                %455 = vst [vmem:[%s149 + $0x4c0] sm:$0xff] %v454
                %v456 = vld [vmem:[%s148 + $0x1308] sm:$0xff]
                %457 = vst [vmem:[%s149 + $0x4c8] sm:$0xff] %v456
                %v458 = vld [vmem:[%s148 + $0x1340] sm:$0xff]
                %459 = vst [vmem:[%s149 + $0x4d0] sm:$0xff] %v458
                %v460 = vld [vmem:[%s148 + $0x1348] sm:$0xff]
                %461 = vst [vmem:[%s149 + $0x4d8] sm:$0xff] %v460
                %v462 = vld [vmem:[%s148 + $0x1380] sm:$0xff]
                %463 = vst [vmem:[%s149 + $0x4e0] sm:$0xff] %v462
                %v464 = vld [vmem:[%s148 + $0x1388] sm:$0xff]
                %465 = vst [vmem:[%s149 + $0x4e8] sm:$0xff] %v464
                %v466 = vld [vmem:[%s148 + $0x13c0] sm:$0xff]
                %467 = vst [vmem:[%s149 + $0x4f0] sm:$0xff] %v466
                %v468 = vld [vmem:[%s148 + $0x13c8] sm:$0xff]
                %469 = vst [vmem:[%s149 + $0x4f8] sm:$0xff] %v468
                %v470 = vld [vmem:[%s148 + $0x1400] sm:$0xff]
                %471 = vst [vmem:[%s149 + $0x500] sm:$0xff] %v470
                %v472 = vld [vmem:[%s148 + $0x1408] sm:$0xff]
                %473 = vst [vmem:[%s149 + $0x508] sm:$0xff] %v472
                %v474 = vld [vmem:[%s148 + $0x1440] sm:$0xff]
                %475 = vst [vmem:[%s149 + $0x510] sm:$0xff] %v474
                %v476 = vld [vmem:[%s148 + $0x1448] sm:$0xff]
                %477 = vst [vmem:[%s149 + $0x518] sm:$0xff] %v476
                %v478 = vld [vmem:[%s148 + $0x1480] sm:$0xff]
                %479 = vst [vmem:[%s149 + $0x520] sm:$0xff] %v478
                %v480 = vld [vmem:[%s148 + $0x1488] sm:$0xff]
                %481 = vst [vmem:[%s149 + $0x528] sm:$0xff] %v480
                %v482 = vld [vmem:[%s148 + $0x14c0] sm:$0xff]
                %483 = vst [vmem:[%s149 + $0x530] sm:$0xff] %v482
                %v484 = vld [vmem:[%s148 + $0x14c8] sm:$0xff]
                %485 = vst [vmem:[%s149 + $0x538] sm:$0xff] %v484
                %v486 = vld [vmem:[%s148 + $0x1500] sm:$0xff]
                %487 = vst [vmem:[%s149 + $0x540] sm:$0xff] %v486
                %v488 = vld [vmem:[%s148 + $0x1508] sm:$0xff]
                %489 = vst [vmem:[%s149 + $0x548] sm:$0xff] %v488
                %v490 = vld [vmem:[%s148 + $0x1540] sm:$0xff]
                %491 = vst [vmem:[%s149 + $0x550] sm:$0xff] %v490
                %v492 = vld [vmem:[%s148 + $0x1548] sm:$0xff]
                %493 = vst [vmem:[%s149 + $0x558] sm:$0xff] %v492
                %v494 = vld [vmem:[%s148 + $0x1580] sm:$0xff]
                %495 = vst [vmem:[%s149 + $0x560] sm:$0xff] %v494
                %v496 = vld [vmem:[%s148 + $0x1588] sm:$0xff]
                %497 = vst [vmem:[%s149 + $0x568] sm:$0xff] %v496
                %v498 = vld [vmem:[%s148 + $0x15c0] sm:$0xff]
                %499 = vst [vmem:[%s149 + $0x570] sm:$0xff] %v498
                %v500 = vld [vmem:[%s148 + $0x15c8] sm:$0xff]
                %501 = vst [vmem:[%s149 + $0x578] sm:$0xff] %v500
                %v502 = vld [vmem:[%s148 + $0x1600] sm:$0xff]
                %503 = vst [vmem:[%s149 + $0x580] sm:$0xff] %v502
                %v504 = vld [vmem:[%s148 + $0x1608] sm:$0xff]
                %505 = vst [vmem:[%s149 + $0x588] sm:$0xff] %v504
                %v506 = vld [vmem:[%s148 + $0x1640] sm:$0xff]
                %507 = vst [vmem:[%s149 + $0x590] sm:$0xff] %v506
                %v508 = vld [vmem:[%s148 + $0x1648] sm:$0xff]
                %509 = vst [vmem:[%s149 + $0x598] sm:$0xff] %v508
                %v510 = vld [vmem:[%s148 + $0x1680] sm:$0xff]
                %511 = vst [vmem:[%s149 + $0x5a0] sm:$0xff] %v510
                %v512 = vld [vmem:[%s148 + $0x1688] sm:$0xff]
                %513 = vst [vmem:[%s149 + $0x5a8] sm:$0xff] %v512
                %v514 = vld [vmem:[%s148 + $0x16c0] sm:$0xff]
                %515 = vst [vmem:[%s149 + $0x5b0] sm:$0xff] %v514
                %v516 = vld [vmem:[%s148 + $0x16c8] sm:$0xff]
                %517 = vst [vmem:[%s149 + $0x5b8] sm:$0xff] %v516
                %v518 = vld [vmem:[%s148 + $0x1700] sm:$0xff]
                %519 = vst [vmem:[%s149 + $0x5c0] sm:$0xff] %v518
                %v520 = vld [vmem:[%s148 + $0x1708] sm:$0xff]
                %521 = vst [vmem:[%s149 + $0x5c8] sm:$0xff] %v520
                %v522 = vld [vmem:[%s148 + $0x1740] sm:$0xff]
                %523 = vst [vmem:[%s149 + $0x5d0] sm:$0xff] %v522
                %v524 = vld [vmem:[%s148 + $0x1748] sm:$0xff]
                %525 = vst [vmem:[%s149 + $0x5d8] sm:$0xff] %v524
                %v526 = vld [vmem:[%s148 + $0x1780] sm:$0xff]
                %527 = vst [vmem:[%s149 + $0x5e0] sm:$0xff] %v526
                %v528 = vld [vmem:[%s148 + $0x1788] sm:$0xff]
                %529 = vst [vmem:[%s149 + $0x5e8] sm:$0xff] %v528
                %v530 = vld [vmem:[%s148 + $0x17c0] sm:$0xff]
                %531 = vst [vmem:[%s149 + $0x5f0] sm:$0xff] %v530
                %v532 = vld [vmem:[%s148 + $0x17c8] sm:$0xff]
                %533 = vst [vmem:[%s149 + $0x5f8] sm:$0xff] %v532
              $region41: #{unet3d_forward.19} parent=35 // loop_footer
                %s147 = sadd.s32 1, %s143
              $region42: #{unet3d_forward.19} parent=35 // loop_footer_branch
                %142 = sbr.rel target = $region38
              $region43: #{unet3d_forward.19} parent=35 // loop_exit
                _
            $region36: #{unet3d_forward.19} parent=31 // pred_fallthru
              _
            // Predicated region
            $region44: #{unet3d_forward.19} parent=31 // pred_check
              _
            $region45: #{unet3d_forward.19} parent=31 // pred_check_branch
              %535 = sbr.rel target = $region47
            $region46: #{unet3d_forward.19} parent=31 // pred_region
              _
            $region47: #{unet3d_forward.19} parent=31 // pred_fallthru
              _
          $region32: #{unet3d_forward.19} parent=27 // pred_fallthru
            _
          %536 = vnop
        $region28: #{unet3d_forward.19} parent=23 // pred_fallthru
          _
      $region24: #{unet3d_forward.19} parent=5 // pred_fallthru
        _
      %p537 = scmp.le.s32.totalorder 1, %s9
      %p538 = scmp.lt.s32.totalorder %s9, 5
      %p539 = pnand %p537, %p538
      %p540 = pneg %p539
      // Predicated region
      $region48: #{unet3d_forward.19} parent=5 // pred_check
        _
      $region49: #{unet3d_forward.19} parent=5 // pred_check_branch
        %542 = sbr.rel (%p539) target = $region51
      $region50: #{unet3d_forward.19} parent=5 // pred_region
        %s543 = ssub.s32 %s9, 1
        %s544 = sand.u32 %s43, 1
        %s545 = sand.u32 %s43, 1
        %s546 = smul.addr %s545, 1536
        %s547 = scalar_lea.vmem [#allocation2], %s546
        // Predicated region
        $region52: #{unet3d_forward.19} parent=50 // pred_check
          %p548 = pneg %p56
        $region53: #{unet3d_forward.19} parent=50 // pred_check_branch
          %550 = sbr.rel (%p548) target = $region55
        $region54: #{unet3d_forward.19} parent=50 // pred_region
          _
        $region55: #{unet3d_forward.19} parent=50 // pred_fallthru
          _
        %p551 = pneg %p30
        %p552 = pneg %p27
        %s553 = sand.u32 %s43, 1
        %s554 = sand.u32 %s43, 1
        %s555 = smul.addr %s554, 1536
        %s556 = scalar_lea.vmem [#allocation2], %s555
        %p557 = pneg %p56
        %p558 = pneg %p53
        %p559 = pneg %p77
        %p560 = pneg %p74
        %p561 = pneg %p103
        %p562 = pneg %p100
        %s563 = sand.u32 %s90, 1
        %s564 = sand.u32 %s90, 1
        %s565 = smul.addr %s564, 64
        %s566 = scalar_lea.vmem [#allocation3], %s565
        %s567 = smul.u32 4, %s14
        %s568 = smul.u32 4, %s14
        %v570 = vld [vmem:[%s547] sm:$0xff]
        %v571 = vld [vmem:[%s547 + $0x8] sm:$0xff]
        %v572 = vld [vmem:[%s547 + $0x10] sm:$0xff]
        %v573 = vld [vmem:[%s547 + $0x18] sm:$0xff]
        %v574 = vld [vmem:[%s547 + $0x20] sm:$0xff]
        %v575 = vld [vmem:[%s547 + $0x28] sm:$0xff]
        %v576 = vld [vmem:[%s547 + $0x30] sm:$0xff]
        %v577 = vld [vmem:[%s547 + $0x38] sm:$0xff]
        %v578 = vld [vmem:[%s547 + $0x40] sm:$0xff]
        %v579 = vld [vmem:[%s547 + $0x48] sm:$0xff]
        %v580 = vld [vmem:[%s547 + $0x50] sm:$0xff]
        %v581 = vld [vmem:[%s547 + $0x58] sm:$0xff]
        %v582 = vld [vmem:[%s547 + $0x60] sm:$0xff]
        %v583 = vld [vmem:[%s547 + $0x68] sm:$0xff]
        %v584 = vld [vmem:[%s547 + $0x70] sm:$0xff]
        %v585 = vld [vmem:[%s547 + $0x78] sm:$0xff]
        %v586 = vld [vmem:[%s547 + $0x80] sm:$0xff]
        %v587 = vld [vmem:[%s547 + $0x88] sm:$0xff]
        %v588 = vld [vmem:[%s547 + $0x90] sm:$0xff]
        %v589 = vld [vmem:[%s547 + $0x98] sm:$0xff]
        %v590 = vld [vmem:[%s547 + $0xa0] sm:$0xff]
        %v591 = vld [vmem:[%s547 + $0xa8] sm:$0xff]
        %v592 = vld [vmem:[%s547 + $0xb0] sm:$0xff]
        %v593 = vld [vmem:[%s547 + $0xb8] sm:$0xff]
        %v594 = vld [vmem:[%s547 + $0xc0] sm:$0xff]
        %v595 = vld [vmem:[%s547 + $0xc8] sm:$0xff]
        %v596 = vld [vmem:[%s547 + $0xd0] sm:$0xff]
        %v597 = vld [vmem:[%s547 + $0xd8] sm:$0xff]
        %v598 = vld [vmem:[%s547 + $0xe0] sm:$0xff]
        %v599 = vld [vmem:[%s547 + $0xe8] sm:$0xff]
        %v600 = vld [vmem:[%s547 + $0xf0] sm:$0xff]
        %v601 = vld [vmem:[%s547 + $0xf8] sm:$0xff]
        %v602 = vld [vmem:[%s547 + $0x100] sm:$0xff]
        %v603 = vld [vmem:[%s547 + $0x108] sm:$0xff]
        %v604 = vld [vmem:[%s547 + $0x110] sm:$0xff]
        %v605 = vld [vmem:[%s547 + $0x118] sm:$0xff]
        %v606 = vld [vmem:[%s547 + $0x120] sm:$0xff]
        %v607 = vld [vmem:[%s547 + $0x128] sm:$0xff]
        %v608 = vld [vmem:[%s547 + $0x130] sm:$0xff]
        %v609 = vld [vmem:[%s547 + $0x138] sm:$0xff]
        %v610 = vld [vmem:[%s547 + $0x140] sm:$0xff]
        %v611 = vld [vmem:[%s547 + $0x148] sm:$0xff]
        %v612 = vld [vmem:[%s547 + $0x150] sm:$0xff]
        %v613 = vld [vmem:[%s547 + $0x158] sm:$0xff]
        %v614 = vld [vmem:[%s547 + $0x160] sm:$0xff]
        %v615 = vld [vmem:[%s547 + $0x168] sm:$0xff]
        %v616 = vld [vmem:[%s547 + $0x170] sm:$0xff]
        %v617 = vld [vmem:[%s547 + $0x178] sm:$0xff]
        %v618 = vld [vmem:[%s547 + $0x180] sm:$0xff]
        %v619 = vld [vmem:[%s547 + $0x188] sm:$0xff]
        %v620 = vld [vmem:[%s547 + $0x190] sm:$0xff]
        %v621 = vld [vmem:[%s547 + $0x198] sm:$0xff]
        %v622 = vld [vmem:[%s547 + $0x1a0] sm:$0xff]
        %v623 = vld [vmem:[%s547 + $0x1a8] sm:$0xff]
        %v624 = vld [vmem:[%s547 + $0x1b0] sm:$0xff]
        %v625 = vld [vmem:[%s547 + $0x1b8] sm:$0xff]
        %v626 = vld [vmem:[%s547 + $0x1c0] sm:$0xff]
        %v627 = vld [vmem:[%s547 + $0x1c8] sm:$0xff]
        %v628 = vld [vmem:[%s547 + $0x1d0] sm:$0xff]
        %v629 = vld [vmem:[%s547 + $0x1d8] sm:$0xff]
        %v630 = vld [vmem:[%s547 + $0x1e0] sm:$0xff]
        %v631 = vld [vmem:[%s547 + $0x1e8] sm:$0xff]
        %v632 = vld [vmem:[%s547 + $0x1f0] sm:$0xff]
        %v633 = vld [vmem:[%s547 + $0x1f8] sm:$0xff]
        %v634 = vld [vmem:[%s547 + $0x200] sm:$0xff]
        %v635 = vld [vmem:[%s547 + $0x208] sm:$0xff]
        %v636 = vld [vmem:[%s547 + $0x210] sm:$0xff]
        %v637 = vld [vmem:[%s547 + $0x218] sm:$0xff]
        %v638 = vld [vmem:[%s547 + $0x220] sm:$0xff]
        %v639 = vld [vmem:[%s547 + $0x228] sm:$0xff]
        %v640 = vld [vmem:[%s547 + $0x230] sm:$0xff]
        %v641 = vld [vmem:[%s547 + $0x238] sm:$0xff]
        %v642 = vld [vmem:[%s547 + $0x240] sm:$0xff]
        %v643 = vld [vmem:[%s547 + $0x248] sm:$0xff]
        %v644 = vld [vmem:[%s547 + $0x250] sm:$0xff]
        %v645 = vld [vmem:[%s547 + $0x258] sm:$0xff]
        %v646 = vld [vmem:[%s547 + $0x260] sm:$0xff]
        %v647 = vld [vmem:[%s547 + $0x268] sm:$0xff]
        %v648 = vld [vmem:[%s547 + $0x270] sm:$0xff]
        %v649 = vld [vmem:[%s547 + $0x278] sm:$0xff]
        %v650 = vld [vmem:[%s547 + $0x280] sm:$0xff]
        %v651 = vld [vmem:[%s547 + $0x288] sm:$0xff]
        %v652 = vld [vmem:[%s547 + $0x290] sm:$0xff]
        %v653 = vld [vmem:[%s547 + $0x298] sm:$0xff]
        %v654 = vld [vmem:[%s547 + $0x2a0] sm:$0xff]
        %v655 = vld [vmem:[%s547 + $0x2a8] sm:$0xff]
        %v656 = vld [vmem:[%s547 + $0x2b0] sm:$0xff]
        %v657 = vld [vmem:[%s547 + $0x2b8] sm:$0xff]
        %v658 = vld [vmem:[%s547 + $0x2c0] sm:$0xff]
        %v659 = vld [vmem:[%s547 + $0x2c8] sm:$0xff]
        %v660 = vld [vmem:[%s547 + $0x2d0] sm:$0xff]
        %v661 = vld [vmem:[%s547 + $0x2d8] sm:$0xff]
        %v662 = vld [vmem:[%s547 + $0x2e0] sm:$0xff]
        %v663 = vld [vmem:[%s547 + $0x2e8] sm:$0xff]
        %v664 = vld [vmem:[%s547 + $0x2f0] sm:$0xff]
        %v665 = vld [vmem:[%s547 + $0x2f8] sm:$0xff]
        %v666 = vld [vmem:[%s547 + $0x300] sm:$0xff]
        %v667 = vld [vmem:[%s547 + $0x308] sm:$0xff]
        %v668 = vld [vmem:[%s547 + $0x310] sm:$0xff]
        %v669 = vld [vmem:[%s547 + $0x318] sm:$0xff]
        %v670 = vld [vmem:[%s547 + $0x320] sm:$0xff]
        %v671 = vld [vmem:[%s547 + $0x328] sm:$0xff]
        %v672 = vld [vmem:[%s547 + $0x330] sm:$0xff]
        %v673 = vld [vmem:[%s547 + $0x338] sm:$0xff]
        %v674 = vld [vmem:[%s547 + $0x340] sm:$0xff]
        %v675 = vld [vmem:[%s547 + $0x348] sm:$0xff]
        %v676 = vld [vmem:[%s547 + $0x350] sm:$0xff]
        %v677 = vld [vmem:[%s547 + $0x358] sm:$0xff]
        %v678 = vld [vmem:[%s547 + $0x360] sm:$0xff]
        %v679 = vld [vmem:[%s547 + $0x368] sm:$0xff]
        %v680 = vld [vmem:[%s547 + $0x370] sm:$0xff]
        %v681 = vld [vmem:[%s547 + $0x378] sm:$0xff]
        %v682 = vld [vmem:[%s547 + $0x380] sm:$0xff]
        %v683 = vld [vmem:[%s547 + $0x388] sm:$0xff]
        %v684 = vld [vmem:[%s547 + $0x390] sm:$0xff]
        %v685 = vld [vmem:[%s547 + $0x398] sm:$0xff]
        %v686 = vld [vmem:[%s547 + $0x3a0] sm:$0xff]
        %v687 = vld [vmem:[%s547 + $0x3a8] sm:$0xff]
        %v688 = vld [vmem:[%s547 + $0x3b0] sm:$0xff]
        %v689 = vld [vmem:[%s547 + $0x3b8] sm:$0xff]
        %v690 = vld [vmem:[%s547 + $0x3c0] sm:$0xff]
        %v691 = vld [vmem:[%s547 + $0x3c8] sm:$0xff]
        %v692 = vld [vmem:[%s547 + $0x3d0] sm:$0xff]
        %v693 = vld [vmem:[%s547 + $0x3d8] sm:$0xff]
        %v694 = vld [vmem:[%s547 + $0x3e0] sm:$0xff]
        %v695 = vld [vmem:[%s547 + $0x3e8] sm:$0xff]
        %v696 = vld [vmem:[%s547 + $0x3f0] sm:$0xff]
        %v697 = vld [vmem:[%s547 + $0x3f8] sm:$0xff]
        %v698 = vld [vmem:[%s547 + $0x400] sm:$0xff]
        %v699 = vld [vmem:[%s547 + $0x408] sm:$0xff]
        %v700 = vld [vmem:[%s547 + $0x410] sm:$0xff]
        %v701 = vld [vmem:[%s547 + $0x418] sm:$0xff]
        %v702 = vld [vmem:[%s547 + $0x420] sm:$0xff]
        %v703 = vld [vmem:[%s547 + $0x428] sm:$0xff]
        %v704 = vld [vmem:[%s547 + $0x430] sm:$0xff]
        %v705 = vld [vmem:[%s547 + $0x438] sm:$0xff]
        %v706 = vld [vmem:[%s547 + $0x440] sm:$0xff]
        %v707 = vld [vmem:[%s547 + $0x448] sm:$0xff]
        %v708 = vld [vmem:[%s547 + $0x450] sm:$0xff]
        %v709 = vld [vmem:[%s547 + $0x458] sm:$0xff]
        %v710 = vld [vmem:[%s547 + $0x460] sm:$0xff]
        %v711 = vld [vmem:[%s547 + $0x468] sm:$0xff]
        %v712 = vld [vmem:[%s547 + $0x470] sm:$0xff]
        %v713 = vld [vmem:[%s547 + $0x478] sm:$0xff]
        %v714 = vld [vmem:[%s547 + $0x480] sm:$0xff]
        %v715 = vld [vmem:[%s547 + $0x488] sm:$0xff]
        %v716 = vld [vmem:[%s547 + $0x490] sm:$0xff]
        %v717 = vld [vmem:[%s547 + $0x498] sm:$0xff]
        %v718 = vld [vmem:[%s547 + $0x4a0] sm:$0xff]
        %v719 = vld [vmem:[%s547 + $0x4a8] sm:$0xff]
        %v720 = vld [vmem:[%s547 + $0x4b0] sm:$0xff]
        %v721 = vld [vmem:[%s547 + $0x4b8] sm:$0xff]
        %v722 = vld [vmem:[%s547 + $0x4c0] sm:$0xff]
        %v723 = vld [vmem:[%s547 + $0x4c8] sm:$0xff]
        %v724 = vld [vmem:[%s547 + $0x4d0] sm:$0xff]
        %v725 = vld [vmem:[%s547 + $0x4d8] sm:$0xff]
        %v726 = vld [vmem:[%s547 + $0x4e0] sm:$0xff]
        %v727 = vld [vmem:[%s547 + $0x4e8] sm:$0xff]
        %v728 = vld [vmem:[%s547 + $0x4f0] sm:$0xff]
        %v729 = vld [vmem:[%s547 + $0x4f8] sm:$0xff]
        %v730 = vld [vmem:[%s547 + $0x500] sm:$0xff]
        %v731 = vld [vmem:[%s547 + $0x508] sm:$0xff]
        %v732 = vld [vmem:[%s547 + $0x510] sm:$0xff]
        %v733 = vld [vmem:[%s547 + $0x518] sm:$0xff]
        %v734 = vld [vmem:[%s547 + $0x520] sm:$0xff]
        %v735 = vld [vmem:[%s547 + $0x528] sm:$0xff]
        %v736 = vld [vmem:[%s547 + $0x530] sm:$0xff]
        %v737 = vld [vmem:[%s547 + $0x538] sm:$0xff]
        %v738 = vld [vmem:[%s547 + $0x540] sm:$0xff]
        %v739 = vld [vmem:[%s547 + $0x548] sm:$0xff]
        %v740 = vld [vmem:[%s547 + $0x550] sm:$0xff]
        %v741 = vld [vmem:[%s547 + $0x558] sm:$0xff]
        %v742 = vld [vmem:[%s547 + $0x560] sm:$0xff]
        %v743 = vld [vmem:[%s547 + $0x568] sm:$0xff]
        %v744 = vld [vmem:[%s547 + $0x570] sm:$0xff]
        %v745 = vld [vmem:[%s547 + $0x578] sm:$0xff]
        %v746 = vld [vmem:[%s547 + $0x580] sm:$0xff]
        %v747 = vld [vmem:[%s547 + $0x588] sm:$0xff]
        %v748 = vld [vmem:[%s547 + $0x590] sm:$0xff]
        %v749 = vld [vmem:[%s547 + $0x598] sm:$0xff]
        %v750 = vld [vmem:[%s547 + $0x5a0] sm:$0xff]
        %v751 = vld [vmem:[%s547 + $0x5a8] sm:$0xff]
        %v752 = vld [vmem:[%s547 + $0x5b0] sm:$0xff]
        %v753 = vld [vmem:[%s547 + $0x5b8] sm:$0xff]
        %v754 = vld [vmem:[%s547 + $0x5c0] sm:$0xff]
        %v755 = vld [vmem:[%s547 + $0x5c8] sm:$0xff]
        %v756 = vld [vmem:[%s547 + $0x5d0] sm:$0xff]
        %v757 = vld [vmem:[%s547 + $0x5d8] sm:$0xff]
        %v758 = vld [vmem:[%s547 + $0x5e0] sm:$0xff]
        %v759 = vld [vmem:[%s547 + $0x5e8] sm:$0xff]
        %v760 = vld [vmem:[%s547 + $0x5f0] sm:$0xff]
        %v761 = vld [vmem:[%s547 + $0x5f8] sm:$0xff]
        %v762 = vmax.bf16 %v570, 0
        %v763 = vmax.bf16 %v571, 0
        %v764 = vmax.bf16 %v572, 0
        %v765 = vmax.bf16 %v573, 0
        %v766 = vmax.bf16 %v574, 0
        %v767 = vmax.bf16 %v575, 0
        %v768 = vmax.bf16 %v576, 0
        %v769 = vmax.bf16 %v577, 0
        %v770 = vmax.bf16 %v578, 0
        %v771 = vmax.bf16 %v579, 0
        %v772 = vmax.bf16 %v580, 0
        %v773 = vmax.bf16 %v581, 0
        %v774 = vmax.bf16 %v582, 0
        %v775 = vmax.bf16 %v583, 0
        %v776 = vmax.bf16 %v584, 0
        %v777 = vmax.bf16 %v585, 0
        %v778 = vmax.bf16 %v586, 0
        %v779 = vmax.bf16 %v587, 0
        %v780 = vmax.bf16 %v588, 0
        %v781 = vmax.bf16 %v589, 0
        %v782 = vmax.bf16 %v590, 0
        %v783 = vmax.bf16 %v591, 0
        %v784 = vmax.bf16 %v592, 0
        %v785 = vmax.bf16 %v593, 0
        %v786 = vmax.bf16 %v594, 0
        %v787 = vmax.bf16 %v595, 0
        %v788 = vmax.bf16 %v596, 0
        %v789 = vmax.bf16 %v597, 0
        %v790 = vmax.bf16 %v598, 0
        %v791 = vmax.bf16 %v599, 0
        %v792 = vmax.bf16 %v600, 0
        %v793 = vmax.bf16 %v601, 0
        %v794 = vmax.bf16 %v602, 0
        %v795 = vmax.bf16 %v603, 0
        %v796 = vmax.bf16 %v604, 0
        %v797 = vmax.bf16 %v605, 0
        %v798 = vmax.bf16 %v606, 0
        %v799 = vmax.bf16 %v607, 0
        %v800 = vmax.bf16 %v608, 0
        %v801 = vmax.bf16 %v609, 0
        %v802 = vmax.bf16 %v610, 0
        %v803 = vmax.bf16 %v611, 0
        %v804 = vmax.bf16 %v612, 0
        %v805 = vmax.bf16 %v613, 0
        %v806 = vmax.bf16 %v614, 0
        %v807 = vmax.bf16 %v615, 0
        %v808 = vmax.bf16 %v616, 0
        %v809 = vmax.bf16 %v617, 0
        %v810 = vmax.bf16 %v618, 0
        %v811 = vmax.bf16 %v619, 0
        %v812 = vmax.bf16 %v620, 0
        %v813 = vmax.bf16 %v621, 0
        %v814 = vmax.bf16 %v622, 0
        %v815 = vmax.bf16 %v623, 0
        %v816 = vmax.bf16 %v624, 0
        %v817 = vmax.bf16 %v625, 0
        %v818 = vmax.bf16 %v626, 0
        %v819 = vmax.bf16 %v627, 0
        %v820 = vmax.bf16 %v628, 0
        %v821 = vmax.bf16 %v629, 0
        %v822 = vmax.bf16 %v630, 0
        %v823 = vmax.bf16 %v631, 0
        %v824 = vmax.bf16 %v632, 0
        %v825 = vmax.bf16 %v633, 0
        %v826 = vmax.bf16 %v634, 0
        %v827 = vmax.bf16 %v635, 0
        %v828 = vmax.bf16 %v636, 0
        %v829 = vmax.bf16 %v637, 0
        %v830 = vmax.bf16 %v638, 0
        %v831 = vmax.bf16 %v639, 0
        %v832 = vmax.bf16 %v640, 0
        %v833 = vmax.bf16 %v641, 0
        %v834 = vmax.bf16 %v642, 0
        %v835 = vmax.bf16 %v643, 0
        %v836 = vmax.bf16 %v644, 0
        %v837 = vmax.bf16 %v645, 0
        %v838 = vmax.bf16 %v646, 0
        %v839 = vmax.bf16 %v647, 0
        %v840 = vmax.bf16 %v648, 0
        %v841 = vmax.bf16 %v649, 0
        %v842 = vmax.bf16 %v650, 0
        %v843 = vmax.bf16 %v651, 0
        %v844 = vmax.bf16 %v652, 0
        %v845 = vmax.bf16 %v653, 0
        %v846 = vmax.bf16 %v654, 0
        %v847 = vmax.bf16 %v655, 0
        %v848 = vmax.bf16 %v656, 0
        %v849 = vmax.bf16 %v657, 0
        %v850 = vmax.bf16 %v658, 0
        %v851 = vmax.bf16 %v659, 0
        %v852 = vmax.bf16 %v660, 0
        %v853 = vmax.bf16 %v661, 0
        %v854 = vmax.bf16 %v662, 0
        %v855 = vmax.bf16 %v663, 0
        %v856 = vmax.bf16 %v664, 0
        %v857 = vmax.bf16 %v665, 0
        %v858 = vmax.bf16 %v666, 0
        %v859 = vmax.bf16 %v667, 0
        %v860 = vmax.bf16 %v668, 0
        %v861 = vmax.bf16 %v669, 0
        %v862 = vmax.bf16 %v670, 0
        %v863 = vmax.bf16 %v671, 0
        %v864 = vmax.bf16 %v672, 0
        %v865 = vmax.bf16 %v673, 0
        %v866 = vmax.bf16 %v674, 0
        %v867 = vmax.bf16 %v675, 0
        %v868 = vmax.bf16 %v676, 0
        %v869 = vmax.bf16 %v677, 0
        %v870 = vmax.bf16 %v678, 0
        %v871 = vmax.bf16 %v679, 0
        %v872 = vmax.bf16 %v680, 0
        %v873 = vmax.bf16 %v681, 0
        %v874 = vmax.bf16 %v682, 0
        %v875 = vmax.bf16 %v683, 0
        %v876 = vmax.bf16 %v684, 0
        %v877 = vmax.bf16 %v685, 0
        %v878 = vmax.bf16 %v686, 0
        %v879 = vmax.bf16 %v687, 0
        %v880 = vmax.bf16 %v688, 0
        %v881 = vmax.bf16 %v689, 0
        %v882 = vmax.bf16 %v690, 0
        %v883 = vmax.bf16 %v691, 0
        %v884 = vmax.bf16 %v692, 0
        %v885 = vmax.bf16 %v693, 0
        %v886 = vmax.bf16 %v694, 0
        %v887 = vmax.bf16 %v695, 0
        %v888 = vmax.bf16 %v696, 0
        %v889 = vmax.bf16 %v697, 0
        %v890 = vmax.bf16 %v698, 0
        %v891 = vmax.bf16 %v699, 0
        %v892 = vmax.bf16 %v700, 0
        %v893 = vmax.bf16 %v701, 0
        %v894 = vmax.bf16 %v702, 0
        %v895 = vmax.bf16 %v703, 0
        %v896 = vmax.bf16 %v704, 0
        %v897 = vmax.bf16 %v705, 0
        %v898 = vmax.bf16 %v706, 0
        %v899 = vmax.bf16 %v707, 0
        %v900 = vmax.bf16 %v708, 0
        %v901 = vmax.bf16 %v709, 0
        %v902 = vmax.bf16 %v710, 0
        %v903 = vmax.bf16 %v711, 0
        %v904 = vmax.bf16 %v712, 0
        %v905 = vmax.bf16 %v713, 0
        %v906 = vmax.bf16 %v714, 0
        %v907 = vmax.bf16 %v715, 0
        %v908 = vmax.bf16 %v716, 0
        %v909 = vmax.bf16 %v717, 0
        %v910 = vmax.bf16 %v718, 0
        %v911 = vmax.bf16 %v719, 0
        %v912 = vmax.bf16 %v720, 0
        %v913 = vmax.bf16 %v721, 0
        %v914 = vmax.bf16 %v722, 0
        %v915 = vmax.bf16 %v723, 0
        %v916 = vmax.bf16 %v724, 0
        %v917 = vmax.bf16 %v725, 0
        %v918 = vmax.bf16 %v726, 0
        %v919 = vmax.bf16 %v727, 0
        %v920 = vmax.bf16 %v728, 0
        %v921 = vmax.bf16 %v729, 0
        %v922 = vmax.bf16 %v730, 0
        %v923 = vmax.bf16 %v731, 0
        %v924 = vmax.bf16 %v732, 0
        %v925 = vmax.bf16 %v733, 0
        %v926 = vmax.bf16 %v734, 0
        %v927 = vmax.bf16 %v735, 0
        %v928 = vmax.bf16 %v736, 0
        %v929 = vmax.bf16 %v737, 0
        %v930 = vmax.bf16 %v738, 0
        %v931 = vmax.bf16 %v739, 0
        %v932 = vmax.bf16 %v740, 0
        %v933 = vmax.bf16 %v741, 0
        %v934 = vmax.bf16 %v742, 0
        %v935 = vmax.bf16 %v743, 0
        %v936 = vmax.bf16 %v744, 0
        %v937 = vmax.bf16 %v745, 0
        %v938 = vmax.bf16 %v746, 0
        %v939 = vmax.bf16 %v747, 0
        %v940 = vmax.bf16 %v748, 0
        %v941 = vmax.bf16 %v749, 0
        %v942 = vmax.bf16 %v750, 0
        %v943 = vmax.bf16 %v751, 0
        %v944 = vmax.bf16 %v752, 0
        %v945 = vmax.bf16 %v753, 0
        %v946 = vmax.bf16 %v754, 0
        %v947 = vmax.bf16 %v755, 0
        %v948 = vmax.bf16 %v756, 0
        %v949 = vmax.bf16 %v757, 0
        %v950 = vmax.bf16 %v758, 0
        %v951 = vmax.bf16 %v759, 0
        %v952 = vmax.bf16 %v760, 0
        %v953 = vmax.bf16 %v761, 0
        %v954 = vld [vmem:[%s0] sm:$0xff]
        %v955 = vld [vmem:[%s0 + $0x8] sm:$0xff]
        %v956 = vld [vmem:[%s0 + $0x10] sm:$0xff]
        %v957 = vld [vmem:[%s0 + $0x18] sm:$0xff]
        %v958 = vld [vmem:[%s0 + $0x20] sm:$0xff]
        %v959 = vld [vmem:[%s0 + $0x28] sm:$0xff]
        %v960 = vld [vmem:[%s2] sm:$0xff]
        %v961 = vld [vmem:[%s2 + $0x8] sm:$0xff]
        %963 = vset.pattern.permute.xlu0 0
        %964 = vperm.xlu0 %963, %v960
        %v965 = vpop.permute.xlu0 %964
        %968 = vset.pattern.permute.xlu0 0
        %969 = vperm.xlu0 %968, %v961
        %v970 = vpop.permute.xlu0 %969
        %v978 = vunpack.c.l.b16 %v954
        %v979 = vunpack.c.h.b16 %v954
        %v980 = vunpack.c.l.b16 %v955
        %v981 = vunpack.c.h.b16 %v955
        %v982 = vunpack.c.l.b16 %v956
        %v983 = vunpack.c.h.b16 %v956
        %v984 = vunpack.c.l.b16 %v957
        %v985 = vunpack.c.h.b16 %v957
        %v986 = vunpack.c.l.b16 %v958
        %v987 = vunpack.c.h.b16 %v958
        %v988 = vunpack.c.l.b16 %v959
        %v989 = vunpack.c.h.b16 %v959
        %v990 = vpack.c.b16 %v984, %v978
        %v991 = vpack.c.b16 %v985, %v979
        %v992 = vpack.c.b16 %v986, %v980
        %v993 = vpack.c.b16 %v987, %v981
        %v994 = vpack.c.b16 %v988, %v982
        %v995 = vpack.c.b16 %v989, %v983
        %v1194 = vunpack.c.l.b16 %v762
        %v1195 = vunpack.c.h.b16 %v762
        %v1196 = vunpack.c.l.b16 %v763
        %v1197 = vunpack.c.h.b16 %v763
        %v1198 = vunpack.c.l.b16 %v764
        %v1199 = vunpack.c.h.b16 %v764
        %v1200 = vunpack.c.l.b16 %v765
        %v1201 = vunpack.c.h.b16 %v765
        %v1202 = vunpack.c.l.b16 %v766
        %v1203 = vunpack.c.h.b16 %v766
        %v1204 = vunpack.c.l.b16 %v767
        %v1205 = vunpack.c.h.b16 %v767
        %v1206 = vunpack.c.l.b16 %v768
        %v1207 = vunpack.c.h.b16 %v768
        %v1208 = vunpack.c.l.b16 %v769
        %v1209 = vunpack.c.h.b16 %v769
        %v1210 = vunpack.c.l.b16 %v770
        %v1211 = vunpack.c.h.b16 %v770
        %v1212 = vunpack.c.l.b16 %v771
        %v1213 = vunpack.c.h.b16 %v771
        %v1214 = vunpack.c.l.b16 %v772
        %v1215 = vunpack.c.h.b16 %v772
        %v1216 = vunpack.c.l.b16 %v773
        %v1217 = vunpack.c.h.b16 %v773
        %v1218 = vunpack.c.l.b16 %v774
        %v1219 = vunpack.c.h.b16 %v774
        %v1220 = vunpack.c.l.b16 %v775
        %v1221 = vunpack.c.h.b16 %v775
        %v1222 = vunpack.c.l.b16 %v776
        %v1223 = vunpack.c.h.b16 %v776
        %v1224 = vunpack.c.l.b16 %v777
        %v1225 = vunpack.c.h.b16 %v777
        %v1226 = vunpack.c.l.b16 %v778
        %v1227 = vunpack.c.h.b16 %v778
        %v1228 = vunpack.c.l.b16 %v779
        %v1229 = vunpack.c.h.b16 %v779
        %v1230 = vunpack.c.l.b16 %v780
        %v1231 = vunpack.c.h.b16 %v780
        %v1232 = vunpack.c.l.b16 %v781
        %v1233 = vunpack.c.h.b16 %v781
        %v1234 = vunpack.c.l.b16 %v782
        %v1235 = vunpack.c.h.b16 %v782
        %v1236 = vunpack.c.l.b16 %v783
        %v1237 = vunpack.c.h.b16 %v783
        %v1238 = vunpack.c.l.b16 %v784
        %v1239 = vunpack.c.h.b16 %v784
        %v1240 = vunpack.c.l.b16 %v785
        %v1241 = vunpack.c.h.b16 %v785
        %v1242 = vunpack.c.l.b16 %v786
        %v1243 = vunpack.c.h.b16 %v786
        %v1244 = vunpack.c.l.b16 %v787
        %v1245 = vunpack.c.h.b16 %v787
        %v1246 = vunpack.c.l.b16 %v788
        %v1247 = vunpack.c.h.b16 %v788
        %v1248 = vunpack.c.l.b16 %v789
        %v1249 = vunpack.c.h.b16 %v789
        %v1250 = vunpack.c.l.b16 %v790
        %v1251 = vunpack.c.h.b16 %v790
        %v1252 = vunpack.c.l.b16 %v791
        %v1253 = vunpack.c.h.b16 %v791
        %v1254 = vunpack.c.l.b16 %v792
        %v1255 = vunpack.c.h.b16 %v792
        %v1256 = vunpack.c.l.b16 %v793
        %v1257 = vunpack.c.h.b16 %v793
        %v1258 = vunpack.c.l.b16 %v794
        %v1259 = vunpack.c.h.b16 %v794
        %v1260 = vunpack.c.l.b16 %v795
        %v1261 = vunpack.c.h.b16 %v795
        %v1262 = vunpack.c.l.b16 %v796
        %v1263 = vunpack.c.h.b16 %v796
        %v1264 = vunpack.c.l.b16 %v797
        %v1265 = vunpack.c.h.b16 %v797
        %v1266 = vunpack.c.l.b16 %v798
        %v1267 = vunpack.c.h.b16 %v798
        %v1268 = vunpack.c.l.b16 %v799
        %v1269 = vunpack.c.h.b16 %v799
        %v1270 = vunpack.c.l.b16 %v800
        %v1271 = vunpack.c.h.b16 %v800
        %v1272 = vunpack.c.l.b16 %v801
        %v1273 = vunpack.c.h.b16 %v801
        %v1274 = vunpack.c.l.b16 %v802
        %v1275 = vunpack.c.h.b16 %v802
        %v1276 = vunpack.c.l.b16 %v803
        %v1277 = vunpack.c.h.b16 %v803
        %v1278 = vunpack.c.l.b16 %v804
        %v1279 = vunpack.c.h.b16 %v804
        %v1280 = vunpack.c.l.b16 %v805
        %v1281 = vunpack.c.h.b16 %v805
        %v1282 = vunpack.c.l.b16 %v806
        %v1283 = vunpack.c.h.b16 %v806
        %v1284 = vunpack.c.l.b16 %v807
        %v1285 = vunpack.c.h.b16 %v807
        %v1286 = vunpack.c.l.b16 %v808
        %v1287 = vunpack.c.h.b16 %v808
        %v1288 = vunpack.c.l.b16 %v809
        %v1289 = vunpack.c.h.b16 %v809
        %v1290 = vunpack.c.l.b16 %v810
        %v1291 = vunpack.c.h.b16 %v810
        %v1292 = vunpack.c.l.b16 %v811
        %v1293 = vunpack.c.h.b16 %v811
        %v1294 = vunpack.c.l.b16 %v812
        %v1295 = vunpack.c.h.b16 %v812
        %v1296 = vunpack.c.l.b16 %v813
        %v1297 = vunpack.c.h.b16 %v813
        %v1298 = vunpack.c.l.b16 %v814
        %v1299 = vunpack.c.h.b16 %v814
        %v1300 = vunpack.c.l.b16 %v815
        %v1301 = vunpack.c.h.b16 %v815
        %v1302 = vunpack.c.l.b16 %v816
        %v1303 = vunpack.c.h.b16 %v816
        %v1304 = vunpack.c.l.b16 %v817
        %v1305 = vunpack.c.h.b16 %v817
        %v1306 = vunpack.c.l.b16 %v818
        %v1307 = vunpack.c.h.b16 %v818
        %v1308 = vunpack.c.l.b16 %v819
        %v1309 = vunpack.c.h.b16 %v819
        %v1310 = vunpack.c.l.b16 %v820
        %v1311 = vunpack.c.h.b16 %v820
        %v1312 = vunpack.c.l.b16 %v821
        %v1313 = vunpack.c.h.b16 %v821
        %v1314 = vunpack.c.l.b16 %v822
        %v1315 = vunpack.c.h.b16 %v822
        %v1316 = vunpack.c.l.b16 %v823
        %v1317 = vunpack.c.h.b16 %v823
        %v1318 = vunpack.c.l.b16 %v824
        %v1319 = vunpack.c.h.b16 %v824
        %v1320 = vunpack.c.l.b16 %v825
        %v1321 = vunpack.c.h.b16 %v825
        %v1322 = vunpack.c.l.b16 %v826
        %v1323 = vunpack.c.h.b16 %v826
        %v1324 = vunpack.c.l.b16 %v827
        %v1325 = vunpack.c.h.b16 %v827
        %v1326 = vunpack.c.l.b16 %v828
        %v1327 = vunpack.c.h.b16 %v828
        %v1328 = vunpack.c.l.b16 %v829
        %v1329 = vunpack.c.h.b16 %v829
        %v1330 = vunpack.c.l.b16 %v830
        %v1331 = vunpack.c.h.b16 %v830
        %v1332 = vunpack.c.l.b16 %v831
        %v1333 = vunpack.c.h.b16 %v831
        %v1334 = vunpack.c.l.b16 %v832
        %v1335 = vunpack.c.h.b16 %v832
        %v1336 = vunpack.c.l.b16 %v833
        %v1337 = vunpack.c.h.b16 %v833
        %v1338 = vunpack.c.l.b16 %v834
        %v1339 = vunpack.c.h.b16 %v834
        %v1340 = vunpack.c.l.b16 %v835
        %v1341 = vunpack.c.h.b16 %v835
        %v1342 = vunpack.c.l.b16 %v836
        %v1343 = vunpack.c.h.b16 %v836
        %v1344 = vunpack.c.l.b16 %v837
        %v1345 = vunpack.c.h.b16 %v837
        %v1346 = vunpack.c.l.b16 %v838
        %v1347 = vunpack.c.h.b16 %v838
        %v1348 = vunpack.c.l.b16 %v839
        %v1349 = vunpack.c.h.b16 %v839
        %v1350 = vunpack.c.l.b16 %v840
        %v1351 = vunpack.c.h.b16 %v840
        %v1352 = vunpack.c.l.b16 %v841
        %v1353 = vunpack.c.h.b16 %v841
        %v1354 = vunpack.c.l.b16 %v842
        %v1355 = vunpack.c.h.b16 %v842
        %v1356 = vunpack.c.l.b16 %v843
        %v1357 = vunpack.c.h.b16 %v843
        %v1358 = vunpack.c.l.b16 %v844
        %v1359 = vunpack.c.h.b16 %v844
        %v1360 = vunpack.c.l.b16 %v845
        %v1361 = vunpack.c.h.b16 %v845
        %v1362 = vunpack.c.l.b16 %v846
        %v1363 = vunpack.c.h.b16 %v846
        %v1364 = vunpack.c.l.b16 %v847
        %v1365 = vunpack.c.h.b16 %v847
        %v1366 = vunpack.c.l.b16 %v848
        %v1367 = vunpack.c.h.b16 %v848
        %v1368 = vunpack.c.l.b16 %v849
        %v1369 = vunpack.c.h.b16 %v849
        %v1370 = vunpack.c.l.b16 %v850
        %v1371 = vunpack.c.h.b16 %v850
        %v1372 = vunpack.c.l.b16 %v851
        %v1373 = vunpack.c.h.b16 %v851
        %v1374 = vunpack.c.l.b16 %v852
        %v1375 = vunpack.c.h.b16 %v852
        %v1376 = vunpack.c.l.b16 %v853
        %v1377 = vunpack.c.h.b16 %v853
        %v1378 = vunpack.c.l.b16 %v854
        %v1379 = vunpack.c.h.b16 %v854
        %v1380 = vunpack.c.l.b16 %v855
        %v1381 = vunpack.c.h.b16 %v855
        %v1382 = vunpack.c.l.b16 %v856
        %v1383 = vunpack.c.h.b16 %v856
        %v1384 = vunpack.c.l.b16 %v857
        %v1385 = vunpack.c.h.b16 %v857
        %v1386 = vunpack.c.l.b16 %v858
        %v1387 = vunpack.c.h.b16 %v858
        %v1388 = vunpack.c.l.b16 %v859
        %v1389 = vunpack.c.h.b16 %v859
        %v1390 = vunpack.c.l.b16 %v860
        %v1391 = vunpack.c.h.b16 %v860
        %v1392 = vunpack.c.l.b16 %v861
        %v1393 = vunpack.c.h.b16 %v861
        %v1394 = vunpack.c.l.b16 %v862
        %v1395 = vunpack.c.h.b16 %v862
        %v1396 = vunpack.c.l.b16 %v863
        %v1397 = vunpack.c.h.b16 %v863
        %v1398 = vunpack.c.l.b16 %v864
        %v1399 = vunpack.c.h.b16 %v864
        %v1400 = vunpack.c.l.b16 %v865
        %v1401 = vunpack.c.h.b16 %v865
        %v1402 = vunpack.c.l.b16 %v866
        %v1403 = vunpack.c.h.b16 %v866
        %v1404 = vunpack.c.l.b16 %v867
        %v1405 = vunpack.c.h.b16 %v867
        %v1406 = vunpack.c.l.b16 %v868
        %v1407 = vunpack.c.h.b16 %v868
        %v1408 = vunpack.c.l.b16 %v869
        %v1409 = vunpack.c.h.b16 %v869
        %v1410 = vunpack.c.l.b16 %v870
        %v1411 = vunpack.c.h.b16 %v870
        %v1412 = vunpack.c.l.b16 %v871
        %v1413 = vunpack.c.h.b16 %v871
        %v1414 = vunpack.c.l.b16 %v872
        %v1415 = vunpack.c.h.b16 %v872
        %v1416 = vunpack.c.l.b16 %v873
        %v1417 = vunpack.c.h.b16 %v873
        %v1418 = vunpack.c.l.b16 %v874
        %v1419 = vunpack.c.h.b16 %v874
        %v1420 = vunpack.c.l.b16 %v875
        %v1421 = vunpack.c.h.b16 %v875
        %v1422 = vunpack.c.l.b16 %v876
        %v1423 = vunpack.c.h.b16 %v876
        %v1424 = vunpack.c.l.b16 %v877
        %v1425 = vunpack.c.h.b16 %v877
        %v1426 = vunpack.c.l.b16 %v878
        %v1427 = vunpack.c.h.b16 %v878
        %v1428 = vunpack.c.l.b16 %v879
        %v1429 = vunpack.c.h.b16 %v879
        %v1430 = vunpack.c.l.b16 %v880
        %v1431 = vunpack.c.h.b16 %v880
        %v1432 = vunpack.c.l.b16 %v881
        %v1433 = vunpack.c.h.b16 %v881
        %v1434 = vunpack.c.l.b16 %v882
        %v1435 = vunpack.c.h.b16 %v882
        %v1436 = vunpack.c.l.b16 %v883
        %v1437 = vunpack.c.h.b16 %v883
        %v1438 = vunpack.c.l.b16 %v884
        %v1439 = vunpack.c.h.b16 %v884
        %v1440 = vunpack.c.l.b16 %v885
        %v1441 = vunpack.c.h.b16 %v885
        %v1442 = vunpack.c.l.b16 %v886
        %v1443 = vunpack.c.h.b16 %v886
        %v1444 = vunpack.c.l.b16 %v887
        %v1445 = vunpack.c.h.b16 %v887
        %v1446 = vunpack.c.l.b16 %v888
        %v1447 = vunpack.c.h.b16 %v888
        %v1448 = vunpack.c.l.b16 %v889
        %v1449 = vunpack.c.h.b16 %v889
        %v1450 = vunpack.c.l.b16 %v890
        %v1451 = vunpack.c.h.b16 %v890
        %v1452 = vunpack.c.l.b16 %v891
        %v1453 = vunpack.c.h.b16 %v891
        %v1454 = vunpack.c.l.b16 %v892
        %v1455 = vunpack.c.h.b16 %v892
        %v1456 = vunpack.c.l.b16 %v893
        %v1457 = vunpack.c.h.b16 %v893
        %v1458 = vunpack.c.l.b16 %v894
        %v1459 = vunpack.c.h.b16 %v894
        %v1460 = vunpack.c.l.b16 %v895
        %v1461 = vunpack.c.h.b16 %v895
        %v1462 = vunpack.c.l.b16 %v896
        %v1463 = vunpack.c.h.b16 %v896
        %v1464 = vunpack.c.l.b16 %v897
        %v1465 = vunpack.c.h.b16 %v897
        %v1466 = vunpack.c.l.b16 %v898
        %v1467 = vunpack.c.h.b16 %v898
        %v1468 = vunpack.c.l.b16 %v899
        %v1469 = vunpack.c.h.b16 %v899
        %v1470 = vunpack.c.l.b16 %v900
        %v1471 = vunpack.c.h.b16 %v900
        %v1472 = vunpack.c.l.b16 %v901
        %v1473 = vunpack.c.h.b16 %v901
        %v1474 = vunpack.c.l.b16 %v902
        %v1475 = vunpack.c.h.b16 %v902
        %v1476 = vunpack.c.l.b16 %v903
        %v1477 = vunpack.c.h.b16 %v903
        %v1478 = vunpack.c.l.b16 %v904
        %v1479 = vunpack.c.h.b16 %v904
        %v1480 = vunpack.c.l.b16 %v905
        %v1481 = vunpack.c.h.b16 %v905
        %v1482 = vunpack.c.l.b16 %v906
        %v1483 = vunpack.c.h.b16 %v906
        %v1484 = vunpack.c.l.b16 %v907
        %v1485 = vunpack.c.h.b16 %v907
        %v1486 = vunpack.c.l.b16 %v908
        %v1487 = vunpack.c.h.b16 %v908
        %v1488 = vunpack.c.l.b16 %v909
        %v1489 = vunpack.c.h.b16 %v909
        %v1490 = vunpack.c.l.b16 %v910
        %v1491 = vunpack.c.h.b16 %v910
        %v1492 = vunpack.c.l.b16 %v911
        %v1493 = vunpack.c.h.b16 %v911
        %v1494 = vunpack.c.l.b16 %v912
        %v1495 = vunpack.c.h.b16 %v912
        %v1496 = vunpack.c.l.b16 %v913
        %v1497 = vunpack.c.h.b16 %v913
        %v1498 = vunpack.c.l.b16 %v914
        %v1499 = vunpack.c.h.b16 %v914
        %v1500 = vunpack.c.l.b16 %v915
        %v1501 = vunpack.c.h.b16 %v915
        %v1502 = vunpack.c.l.b16 %v916
        %v1503 = vunpack.c.h.b16 %v916
        %v1504 = vunpack.c.l.b16 %v917
        %v1505 = vunpack.c.h.b16 %v917
        %v1506 = vunpack.c.l.b16 %v918
        %v1507 = vunpack.c.h.b16 %v918
        %v1508 = vunpack.c.l.b16 %v919
        %v1509 = vunpack.c.h.b16 %v919
        %v1510 = vunpack.c.l.b16 %v920
        %v1511 = vunpack.c.h.b16 %v920
        %v1512 = vunpack.c.l.b16 %v921
        %v1513 = vunpack.c.h.b16 %v921
        %v1514 = vunpack.c.l.b16 %v922
        %v1515 = vunpack.c.h.b16 %v922
        %v1516 = vunpack.c.l.b16 %v923
        %v1517 = vunpack.c.h.b16 %v923
        %v1518 = vunpack.c.l.b16 %v924
        %v1519 = vunpack.c.h.b16 %v924
        %v1520 = vunpack.c.l.b16 %v925
        %v1521 = vunpack.c.h.b16 %v925
        %v1522 = vunpack.c.l.b16 %v926
        %v1523 = vunpack.c.h.b16 %v926
        %v1524 = vunpack.c.l.b16 %v927
        %v1525 = vunpack.c.h.b16 %v927
        %v1526 = vunpack.c.l.b16 %v928
        %v1527 = vunpack.c.h.b16 %v928
        %v1528 = vunpack.c.l.b16 %v929
        %v1529 = vunpack.c.h.b16 %v929
        %v1530 = vunpack.c.l.b16 %v930
        %v1531 = vunpack.c.h.b16 %v930
        %v1532 = vunpack.c.l.b16 %v931
        %v1533 = vunpack.c.h.b16 %v931
        %v1534 = vunpack.c.l.b16 %v932
        %v1535 = vunpack.c.h.b16 %v932
        %v1536 = vunpack.c.l.b16 %v933
        %v1537 = vunpack.c.h.b16 %v933
        %v1538 = vunpack.c.l.b16 %v934
        %v1539 = vunpack.c.h.b16 %v934
        %v1540 = vunpack.c.l.b16 %v935
        %v1541 = vunpack.c.h.b16 %v935
        %v1542 = vunpack.c.l.b16 %v936
        %v1543 = vunpack.c.h.b16 %v936
        %v1544 = vunpack.c.l.b16 %v937
        %v1545 = vunpack.c.h.b16 %v937
        %v1546 = vunpack.c.l.b16 %v938
        %v1547 = vunpack.c.h.b16 %v938
        %v1548 = vunpack.c.l.b16 %v939
        %v1549 = vunpack.c.h.b16 %v939
        %v1550 = vunpack.c.l.b16 %v940
        %v1551 = vunpack.c.h.b16 %v940
        %v1552 = vunpack.c.l.b16 %v941
        %v1553 = vunpack.c.h.b16 %v941
        %v1554 = vunpack.c.l.b16 %v942
        %v1555 = vunpack.c.h.b16 %v942
        %v1556 = vunpack.c.l.b16 %v943
        %v1557 = vunpack.c.h.b16 %v943
        %v1558 = vunpack.c.l.b16 %v944
        %v1559 = vunpack.c.h.b16 %v944
        %v1560 = vunpack.c.l.b16 %v945
        %v1561 = vunpack.c.h.b16 %v945
        %v1562 = vunpack.c.l.b16 %v946
        %v1563 = vunpack.c.h.b16 %v946
        %v1564 = vunpack.c.l.b16 %v947
        %v1565 = vunpack.c.h.b16 %v947
        %v1566 = vunpack.c.l.b16 %v948
        %v1567 = vunpack.c.h.b16 %v948
        %v1568 = vunpack.c.l.b16 %v949
        %v1569 = vunpack.c.h.b16 %v949
        %v1570 = vunpack.c.l.b16 %v950
        %v1571 = vunpack.c.h.b16 %v950
        %v1572 = vunpack.c.l.b16 %v951
        %v1573 = vunpack.c.h.b16 %v951
        %v1574 = vunpack.c.l.b16 %v952
        %v1575 = vunpack.c.h.b16 %v952
        %v1576 = vunpack.c.l.b16 %v953
        %v1577 = vunpack.c.h.b16 %v953
        %v1578 = vpack.c.b16 %v1198, %v1194
        %v1579 = vpack.c.b16 %v1199, %v1195
        %v1580 = vpack.c.b16 %v1200, %v1196
        %v1581 = vpack.c.b16 %v1201, %v1197
        %v1582 = vpack.c.b16 %v1206, %v1202
        %v1583 = vpack.c.b16 %v1207, %v1203
        %v1584 = vpack.c.b16 %v1208, %v1204
        %v1585 = vpack.c.b16 %v1209, %v1205
        %v1586 = vpack.c.b16 %v1214, %v1210
        %v1587 = vpack.c.b16 %v1215, %v1211
        %v1588 = vpack.c.b16 %v1216, %v1212
        %v1589 = vpack.c.b16 %v1217, %v1213
        %v1590 = vpack.c.b16 %v1222, %v1218
        %v1591 = vpack.c.b16 %v1223, %v1219
        %v1592 = vpack.c.b16 %v1224, %v1220
        %v1593 = vpack.c.b16 %v1225, %v1221
        %v1594 = vpack.c.b16 %v1230, %v1226
        %v1595 = vpack.c.b16 %v1231, %v1227
        %v1596 = vpack.c.b16 %v1232, %v1228
        %v1597 = vpack.c.b16 %v1233, %v1229
        %v1598 = vpack.c.b16 %v1238, %v1234
        %v1599 = vpack.c.b16 %v1239, %v1235
        %v1600 = vpack.c.b16 %v1240, %v1236
        %v1601 = vpack.c.b16 %v1241, %v1237
        %v1602 = vpack.c.b16 %v1246, %v1242
        %v1603 = vpack.c.b16 %v1247, %v1243
        %v1604 = vpack.c.b16 %v1248, %v1244
        %v1605 = vpack.c.b16 %v1249, %v1245
        %v1606 = vpack.c.b16 %v1254, %v1250
        %v1607 = vpack.c.b16 %v1255, %v1251
        %v1608 = vpack.c.b16 %v1256, %v1252
        %v1609 = vpack.c.b16 %v1257, %v1253
        %v1610 = vpack.c.b16 %v1262, %v1258
        %v1611 = vpack.c.b16 %v1263, %v1259
        %v1612 = vpack.c.b16 %v1264, %v1260
        %v1613 = vpack.c.b16 %v1265, %v1261
        %v1614 = vpack.c.b16 %v1270, %v1266
        %v1615 = vpack.c.b16 %v1271, %v1267
        %v1616 = vpack.c.b16 %v1272, %v1268
        %v1617 = vpack.c.b16 %v1273, %v1269
        %v1618 = vpack.c.b16 %v1278, %v1274
        %v1619 = vpack.c.b16 %v1279, %v1275
        %v1620 = vpack.c.b16 %v1280, %v1276
        %v1621 = vpack.c.b16 %v1281, %v1277
        %v1622 = vpack.c.b16 %v1286, %v1282
        %v1623 = vpack.c.b16 %v1287, %v1283
        %v1624 = vpack.c.b16 %v1288, %v1284
        %v1625 = vpack.c.b16 %v1289, %v1285
        %v1626 = vpack.c.b16 %v1294, %v1290
        %v1627 = vpack.c.b16 %v1295, %v1291
        %v1628 = vpack.c.b16 %v1296, %v1292
        %v1629 = vpack.c.b16 %v1297, %v1293
        %v1630 = vpack.c.b16 %v1302, %v1298
        %v1631 = vpack.c.b16 %v1303, %v1299
        %v1632 = vpack.c.b16 %v1304, %v1300
        %v1633 = vpack.c.b16 %v1305, %v1301
        %v1634 = vpack.c.b16 %v1310, %v1306
        %v1635 = vpack.c.b16 %v1311, %v1307
        %v1636 = vpack.c.b16 %v1312, %v1308
        %v1637 = vpack.c.b16 %v1313, %v1309
        %v1638 = vpack.c.b16 %v1318, %v1314
        %v1639 = vpack.c.b16 %v1319, %v1315
        %v1640 = vpack.c.b16 %v1320, %v1316
        %v1641 = vpack.c.b16 %v1321, %v1317
        %v1642 = vpack.c.b16 %v1326, %v1322
        %v1643 = vpack.c.b16 %v1327, %v1323
        %v1644 = vpack.c.b16 %v1328, %v1324
        %v1645 = vpack.c.b16 %v1329, %v1325
        %v1646 = vpack.c.b16 %v1334, %v1330
        %v1647 = vpack.c.b16 %v1335, %v1331
        %v1648 = vpack.c.b16 %v1336, %v1332
        %v1649 = vpack.c.b16 %v1337, %v1333
        %v1650 = vpack.c.b16 %v1342, %v1338
        %v1651 = vpack.c.b16 %v1343, %v1339
        %v1652 = vpack.c.b16 %v1344, %v1340
        %v1653 = vpack.c.b16 %v1345, %v1341
        %v1654 = vpack.c.b16 %v1350, %v1346
        %v1655 = vpack.c.b16 %v1351, %v1347
        %v1656 = vpack.c.b16 %v1352, %v1348
        %v1657 = vpack.c.b16 %v1353, %v1349
        %v1658 = vpack.c.b16 %v1358, %v1354
        %v1659 = vpack.c.b16 %v1359, %v1355
        %v1660 = vpack.c.b16 %v1360, %v1356
        %v1661 = vpack.c.b16 %v1361, %v1357
        %v1662 = vpack.c.b16 %v1366, %v1362
        %v1663 = vpack.c.b16 %v1367, %v1363
        %v1664 = vpack.c.b16 %v1368, %v1364
        %v1665 = vpack.c.b16 %v1369, %v1365
        %v1666 = vpack.c.b16 %v1374, %v1370
        %v1667 = vpack.c.b16 %v1375, %v1371
        %v1668 = vpack.c.b16 %v1376, %v1372
        %v1669 = vpack.c.b16 %v1377, %v1373
        %v1670 = vpack.c.b16 %v1382, %v1378
        %v1671 = vpack.c.b16 %v1383, %v1379
        %v1672 = vpack.c.b16 %v1384, %v1380
        %v1673 = vpack.c.b16 %v1385, %v1381
        %v1674 = vpack.c.b16 %v1390, %v1386
        %v1675 = vpack.c.b16 %v1391, %v1387
        %v1676 = vpack.c.b16 %v1392, %v1388
        %v1677 = vpack.c.b16 %v1393, %v1389
        %v1678 = vpack.c.b16 %v1398, %v1394
        %v1679 = vpack.c.b16 %v1399, %v1395
        %v1680 = vpack.c.b16 %v1400, %v1396
        %v1681 = vpack.c.b16 %v1401, %v1397
        %v1682 = vpack.c.b16 %v1406, %v1402
        %v1683 = vpack.c.b16 %v1407, %v1403
        %v1684 = vpack.c.b16 %v1408, %v1404
        %v1685 = vpack.c.b16 %v1409, %v1405
        %v1686 = vpack.c.b16 %v1414, %v1410
        %v1687 = vpack.c.b16 %v1415, %v1411
        %v1688 = vpack.c.b16 %v1416, %v1412
        %v1689 = vpack.c.b16 %v1417, %v1413
        %v1690 = vpack.c.b16 %v1422, %v1418
        %v1691 = vpack.c.b16 %v1423, %v1419
        %v1692 = vpack.c.b16 %v1424, %v1420
        %v1693 = vpack.c.b16 %v1425, %v1421
        %v1694 = vpack.c.b16 %v1430, %v1426
        %v1695 = vpack.c.b16 %v1431, %v1427
        %v1696 = vpack.c.b16 %v1432, %v1428
        %v1697 = vpack.c.b16 %v1433, %v1429
        %v1698 = vpack.c.b16 %v1438, %v1434
        %v1699 = vpack.c.b16 %v1439, %v1435
        %v1700 = vpack.c.b16 %v1440, %v1436
        %v1701 = vpack.c.b16 %v1441, %v1437
        %v1702 = vpack.c.b16 %v1446, %v1442
        %v1703 = vpack.c.b16 %v1447, %v1443
        %v1704 = vpack.c.b16 %v1448, %v1444
        %v1705 = vpack.c.b16 %v1449, %v1445
        %v1706 = vpack.c.b16 %v1454, %v1450
        %v1707 = vpack.c.b16 %v1455, %v1451
        %v1708 = vpack.c.b16 %v1456, %v1452
        %v1709 = vpack.c.b16 %v1457, %v1453
        %v1710 = vpack.c.b16 %v1462, %v1458
        %v1711 = vpack.c.b16 %v1463, %v1459
        %v1712 = vpack.c.b16 %v1464, %v1460
        %v1713 = vpack.c.b16 %v1465, %v1461
        %v1714 = vpack.c.b16 %v1470, %v1466
        %v1715 = vpack.c.b16 %v1471, %v1467
        %v1716 = vpack.c.b16 %v1472, %v1468
        %v1717 = vpack.c.b16 %v1473, %v1469
        %v1718 = vpack.c.b16 %v1478, %v1474
        %v1719 = vpack.c.b16 %v1479, %v1475
        %v1720 = vpack.c.b16 %v1480, %v1476
        %v1721 = vpack.c.b16 %v1481, %v1477
        %v1722 = vpack.c.b16 %v1486, %v1482
        %v1723 = vpack.c.b16 %v1487, %v1483
        %v1724 = vpack.c.b16 %v1488, %v1484
        %v1725 = vpack.c.b16 %v1489, %v1485
        %v1726 = vpack.c.b16 %v1494, %v1490
        %v1727 = vpack.c.b16 %v1495, %v1491
        %v1728 = vpack.c.b16 %v1496, %v1492
        %v1729 = vpack.c.b16 %v1497, %v1493
        %v1730 = vpack.c.b16 %v1502, %v1498
        %v1731 = vpack.c.b16 %v1503, %v1499
        %v1732 = vpack.c.b16 %v1504, %v1500
        %v1733 = vpack.c.b16 %v1505, %v1501
        %v1734 = vpack.c.b16 %v1510, %v1506
        %v1735 = vpack.c.b16 %v1511, %v1507
        %v1736 = vpack.c.b16 %v1512, %v1508
        %v1737 = vpack.c.b16 %v1513, %v1509
        %v1738 = vpack.c.b16 %v1518, %v1514
        %v1739 = vpack.c.b16 %v1519, %v1515
        %v1740 = vpack.c.b16 %v1520, %v1516
        %v1741 = vpack.c.b16 %v1521, %v1517
        %v1742 = vpack.c.b16 %v1526, %v1522
        %v1743 = vpack.c.b16 %v1527, %v1523
        %v1744 = vpack.c.b16 %v1528, %v1524
        %v1745 = vpack.c.b16 %v1529, %v1525
        %v1746 = vpack.c.b16 %v1534, %v1530
        %v1747 = vpack.c.b16 %v1535, %v1531
        %v1748 = vpack.c.b16 %v1536, %v1532
        %v1749 = vpack.c.b16 %v1537, %v1533
        %v1750 = vpack.c.b16 %v1542, %v1538
        %v1751 = vpack.c.b16 %v1543, %v1539
        %v1752 = vpack.c.b16 %v1544, %v1540
        %v1753 = vpack.c.b16 %v1545, %v1541
        %v1754 = vpack.c.b16 %v1550, %v1546
        %v1755 = vpack.c.b16 %v1551, %v1547
        %v1756 = vpack.c.b16 %v1552, %v1548
        %v1757 = vpack.c.b16 %v1553, %v1549
        %v1758 = vpack.c.b16 %v1558, %v1554
        %v1759 = vpack.c.b16 %v1559, %v1555
        %v1760 = vpack.c.b16 %v1560, %v1556
        %v1761 = vpack.c.b16 %v1561, %v1557
        %v1762 = vpack.c.b16 %v1566, %v1562
        %v1763 = vpack.c.b16 %v1567, %v1563
        %v1764 = vpack.c.b16 %v1568, %v1564
        %v1765 = vpack.c.b16 %v1569, %v1565
        %v1766 = vpack.c.b16 %v1574, %v1570
        %v1767 = vpack.c.b16 %v1575, %v1571
        %v1768 = vpack.c.b16 %v1576, %v1572
        %v1769 = vpack.c.b16 %v1577, %v1573
        %1962 = vmatprep.subr.bf16.mxu0 %v1579
        %1963 = vmatpush1.bf16.msra.mxu0 %v1578
        %1964 = vmatprep.subr.bf16.mxu0 %v1583
        %1965 = vmatpush1.bf16.msra.mxu0 %v1582
        %1966 = vmatprep.subr.bf16.mxu0 %v1587
        %1967 = vmatpush1.bf16.msra.mxu0 %v1586
        %1968 = vmatprep.subr.bf16.mxu0 %v1591
        %1969 = vmatpush1.bf16.msra.mxu0 %v1590
        %1970 = vmatprep.subr.bf16.mxu0 %v1595
        %1971 = vmatpush1.bf16.msra.mxu0 %v1594
        %1972 = vmatprep.subr.bf16.mxu0 %v1599
        %1973 = vmatpush1.bf16.msra.mxu0 %v1598
        %1974 = vmatprep.subr.bf16.mxu0 %v1603
        %1975 = vmatpush1.bf16.msra.mxu0 %v1602
        %1976 = vmatprep.subr.bf16.mxu0 %v1607
        %1977 = vmatpush1.bf16.msra.mxu0 %v1606
        %1978 = vmatprep.subr.bf16.mxu0 %v1611
        %1979 = vmatpush1.bf16.msra.mxu0 %v1610
        %1980 = vmatprep.subr.bf16.mxu0 %v1615
        %1981 = vmatpush1.bf16.msra.mxu0 %v1614
        %1982 = vmatprep.subr.bf16.mxu0 %v1619
        %1983 = vmatpush1.bf16.msra.mxu0 %v1618
        %1984 = vmatprep.subr.bf16.mxu0 %v1623
        %1985 = vmatpush1.bf16.msra.mxu0 %v1622
        %1986 = vmatprep.subr.bf16.mxu0 %v1627
        %1987 = vmatpush1.bf16.msra.mxu0 %v1626
        %1988 = vmatprep.subr.bf16.mxu0 %v1631
        %1989 = vmatpush1.bf16.msra.mxu0 %v1630
        %1990 = vmatprep.subr.bf16.mxu0 %v1635
        %1991 = vmatpush1.bf16.msra.mxu0 %v1634
        %1992 = vmatprep.subr.bf16.mxu0 %v1639
        %1993 = vmatpush1.bf16.msra.mxu0 %v1638
        %1994 = vmatprep.mubr.bf16.mxu0 %v991
        %1995 = vmatmul.mubr.bf16.gmra.mrb[0].mxu0 %v990
        %v1996 = vpop.f32.mrb[0].mxu0
        %v1997 = vadd.f32 %v965, %v1996
        %v1998 = vpop.f32.mrb[0].mxu0
        %v1999 = vadd.f32 %v965, %v1998
        %v2000 = vpop.f32.mrb[0].mxu0
        %v2001 = vadd.f32 %v970, %v2000
        %v2002 = vpop.f32.mrb[0].mxu0
        %v2003 = vadd.f32 %v970, %v2002
        %2004 = vdwg.mxu0
        %2005 = vmatprep.subr.bf16.mxu0 %v1643
        %2006 = vmatpush1.bf16.msra.mxu0 %v1642
        %2007 = vmatprep.subr.bf16.mxu0 %v1647
        %2008 = vmatpush1.bf16.msra.mxu0 %v1646
        %2009 = vmatprep.subr.bf16.mxu0 %v1651
        %2010 = vmatpush1.bf16.msra.mxu0 %v1650
        %2011 = vmatprep.subr.bf16.mxu0 %v1655
        %2012 = vmatpush1.bf16.msra.mxu0 %v1654
        %2013 = vmatprep.subr.bf16.mxu0 %v1659
        %2014 = vmatpush1.bf16.msra.mxu0 %v1658
        %2015 = vmatprep.subr.bf16.mxu0 %v1663
        %2016 = vmatpush1.bf16.msra.mxu0 %v1662
        %2017 = vmatprep.subr.bf16.mxu0 %v1667
        %2018 = vmatpush1.bf16.msra.mxu0 %v1666
        %2019 = vmatprep.subr.bf16.mxu0 %v1671
        %2020 = vmatpush1.bf16.msra.mxu0 %v1670
        %2021 = vmatprep.subr.bf16.mxu0 %v1675
        %2022 = vmatpush1.bf16.msra.mxu0 %v1674
        %2023 = vmatprep.subr.bf16.mxu0 %v1679
        %2024 = vmatpush1.bf16.msra.mxu0 %v1678
        %2025 = vmatprep.subr.bf16.mxu0 %v1683
        %2026 = vmatpush1.bf16.msra.mxu0 %v1682
        %2027 = vmatprep.subr.bf16.mxu0 %v1687
        %2028 = vmatpush1.bf16.msra.mxu0 %v1686
        %2029 = vmatprep.subr.bf16.mxu0 %v1691
        %2030 = vmatpush1.bf16.msra.mxu0 %v1690
        %2031 = vmatprep.subr.bf16.mxu0 %v1695
        %2032 = vmatpush1.bf16.msra.mxu0 %v1694
        %2033 = vmatprep.subr.bf16.mxu0 %v1699
        %2034 = vmatpush1.bf16.msra.mxu0 %v1698
        %2035 = vmatprep.subr.bf16.mxu0 %v1703
        %2036 = vmatpush1.bf16.msra.mxu0 %v1702
        %2037 = vmatprep.mubr.bf16.mxu0 %v993
        %2038 = vmatmul.mubr.bf16.gmra.mrb[0].mxu0 %v992
        %v2039 = vpop.f32.mrb[0].mxu0
        %v2040 = vadd.f32 %v1997, %v2039
        %v2041 = vpop.f32.mrb[0].mxu0
        %v2042 = vadd.f32 %v1999, %v2041
        %v2043 = vpop.f32.mrb[0].mxu0
        %v2044 = vadd.f32 %v2001, %v2043
        %v2045 = vpop.f32.mrb[0].mxu0
        %v2046 = vadd.f32 %v2003, %v2045
        %2047 = vdwg.mxu0
        %2048 = vmatprep.subr.bf16.mxu0 %v1707
        %2049 = vmatpush1.bf16.msra.mxu0 %v1706
        %2050 = vmatprep.subr.bf16.mxu0 %v1711
        %2051 = vmatpush1.bf16.msra.mxu0 %v1710
        %2052 = vmatprep.subr.bf16.mxu0 %v1715
        %2053 = vmatpush1.bf16.msra.mxu0 %v1714
        %2054 = vmatprep.subr.bf16.mxu0 %v1719
        %2055 = vmatpush1.bf16.msra.mxu0 %v1718
        %2056 = vmatprep.subr.bf16.mxu0 %v1723
        %2057 = vmatpush1.bf16.msra.mxu0 %v1722
        %2058 = vmatprep.subr.bf16.mxu0 %v1727
        %2059 = vmatpush1.bf16.msra.mxu0 %v1726
        %2060 = vmatprep.subr.bf16.mxu0 %v1731
        %2061 = vmatpush1.bf16.msra.mxu0 %v1730
        %2062 = vmatprep.subr.bf16.mxu0 %v1735
        %2063 = vmatpush1.bf16.msra.mxu0 %v1734
        %2064 = vmatprep.subr.bf16.mxu0 %v1739
        %2065 = vmatpush1.bf16.msra.mxu0 %v1738
        %2066 = vmatprep.subr.bf16.mxu0 %v1743
        %2067 = vmatpush1.bf16.msra.mxu0 %v1742
        %2068 = vmatprep.subr.bf16.mxu0 %v1747
        %2069 = vmatpush1.bf16.msra.mxu0 %v1746
        %2070 = vmatprep.subr.bf16.mxu0 %v1751
        %2071 = vmatpush1.bf16.msra.mxu0 %v1750
        %2072 = vmatprep.subr.bf16.mxu0 %v1755
        %2073 = vmatpush1.bf16.msra.mxu0 %v1754
        %2074 = vmatprep.subr.bf16.mxu0 %v1759
        %2075 = vmatpush1.bf16.msra.mxu0 %v1758
        %2076 = vmatprep.subr.bf16.mxu0 %v1763
        %2077 = vmatpush1.bf16.msra.mxu0 %v1762
        %2078 = vmatprep.subr.bf16.mxu0 %v1767
        %2079 = vmatpush1.bf16.msra.mxu0 %v1766
        %2080 = vmatprep.mubr.bf16.mxu0 %v995
        %2081 = vmatmul.mubr.bf16.gmra.mrb[0].mxu0 %v994
        %v2082 = vpop.f32.mrb[0].mxu0
        %v2083 = vadd.f32 %v2040, %v2082
        %v2084 = vpop.f32.mrb[0].mxu0
        %v2085 = vadd.f32 %v2042, %v2084
        %v2086 = vpop.f32.mrb[0].mxu0
        %v2087 = vadd.f32 %v2044, %v2086
        %v2088 = vpop.f32.mrb[0].mxu0
        %v2089 = vadd.f32 %v2046, %v2088
        %2090 = vdwg.mxu0
        %2091 = vmatprep.subr.bf16.mxu0 %v1581
        %2092 = vmatpush1.bf16.msra.mxu0 %v1580
        %2093 = vmatprep.subr.bf16.mxu0 %v1585
        %2094 = vmatpush1.bf16.msra.mxu0 %v1584
        %2095 = vmatprep.subr.bf16.mxu0 %v1589
        %2096 = vmatpush1.bf16.msra.mxu0 %v1588
        %2097 = vmatprep.subr.bf16.mxu0 %v1593
        %2098 = vmatpush1.bf16.msra.mxu0 %v1592
        %2099 = vmatprep.subr.bf16.mxu0 %v1597
        %2100 = vmatpush1.bf16.msra.mxu0 %v1596
        %2101 = vmatprep.subr.bf16.mxu0 %v1601
        %2102 = vmatpush1.bf16.msra.mxu0 %v1600
        %2103 = vmatprep.subr.bf16.mxu0 %v1605
        %2104 = vmatpush1.bf16.msra.mxu0 %v1604
        %2105 = vmatprep.subr.bf16.mxu0 %v1609
        %2106 = vmatpush1.bf16.msra.mxu0 %v1608
        %2107 = vmatprep.subr.bf16.mxu0 %v1613
        %2108 = vmatpush1.bf16.msra.mxu0 %v1612
        %2109 = vmatprep.subr.bf16.mxu0 %v1617
        %2110 = vmatpush1.bf16.msra.mxu0 %v1616
        %2111 = vmatprep.subr.bf16.mxu0 %v1621
        %2112 = vmatpush1.bf16.msra.mxu0 %v1620
        %2113 = vmatprep.subr.bf16.mxu0 %v1625
        %2114 = vmatpush1.bf16.msra.mxu0 %v1624
        %2115 = vmatprep.subr.bf16.mxu0 %v1629
        %2116 = vmatpush1.bf16.msra.mxu0 %v1628
        %2117 = vmatprep.subr.bf16.mxu0 %v1633
        %2118 = vmatpush1.bf16.msra.mxu0 %v1632
        %2119 = vmatprep.subr.bf16.mxu0 %v1637
        %2120 = vmatpush1.bf16.msra.mxu0 %v1636
        %2121 = vmatprep.subr.bf16.mxu0 %v1641
        %2122 = vmatpush1.bf16.msra.mxu0 %v1640
        %2123 = vmatprep.mubr.bf16.mxu0 %v991
        %2124 = vmatmul.mubr.bf16.gmra.mrb[0].mxu0 %v990
        %v2125 = vpop.f32.mrb[0].mxu0
        %v2126 = vadd.f32 %v965, %v2125
        %v2127 = vpop.f32.mrb[0].mxu0
        %v2128 = vadd.f32 %v965, %v2127
        %v2129 = vpop.f32.mrb[0].mxu0
        %v2130 = vadd.f32 %v970, %v2129
        %v2131 = vpop.f32.mrb[0].mxu0
        %v2132 = vadd.f32 %v970, %v2131
        %2133 = vdwg.mxu0
        %2134 = vmatprep.subr.bf16.mxu0 %v1645
        %2135 = vmatpush1.bf16.msra.mxu0 %v1644
        %2136 = vmatprep.subr.bf16.mxu0 %v1649
        %2137 = vmatpush1.bf16.msra.mxu0 %v1648
        %2138 = vmatprep.subr.bf16.mxu0 %v1653
        %2139 = vmatpush1.bf16.msra.mxu0 %v1652
        %2140 = vmatprep.subr.bf16.mxu0 %v1657
        %2141 = vmatpush1.bf16.msra.mxu0 %v1656
        %2142 = vmatprep.subr.bf16.mxu0 %v1661
        %2143 = vmatpush1.bf16.msra.mxu0 %v1660
        %2144 = vmatprep.subr.bf16.mxu0 %v1665
        %2145 = vmatpush1.bf16.msra.mxu0 %v1664
        %2146 = vmatprep.subr.bf16.mxu0 %v1669
        %2147 = vmatpush1.bf16.msra.mxu0 %v1668
        %2148 = vmatprep.subr.bf16.mxu0 %v1673
        %2149 = vmatpush1.bf16.msra.mxu0 %v1672
        %2150 = vmatprep.subr.bf16.mxu0 %v1677
        %2151 = vmatpush1.bf16.msra.mxu0 %v1676
        %2152 = vmatprep.subr.bf16.mxu0 %v1681
        %2153 = vmatpush1.bf16.msra.mxu0 %v1680
        %2154 = vmatprep.subr.bf16.mxu0 %v1685
        %2155 = vmatpush1.bf16.msra.mxu0 %v1684
        %2156 = vmatprep.subr.bf16.mxu0 %v1689
        %2157 = vmatpush1.bf16.msra.mxu0 %v1688
        %2158 = vmatprep.subr.bf16.mxu0 %v1693
        %2159 = vmatpush1.bf16.msra.mxu0 %v1692
        %2160 = vmatprep.subr.bf16.mxu0 %v1697
        %2161 = vmatpush1.bf16.msra.mxu0 %v1696
        %2162 = vmatprep.subr.bf16.mxu0 %v1701
        %2163 = vmatpush1.bf16.msra.mxu0 %v1700
        %2164 = vmatprep.subr.bf16.mxu0 %v1705
        %2165 = vmatpush1.bf16.msra.mxu0 %v1704
        %2166 = vmatprep.mubr.bf16.mxu0 %v993
        %2167 = vmatmul.mubr.bf16.gmra.mrb[0].mxu0 %v992
        %v2168 = vpop.f32.mrb[0].mxu0
        %v2169 = vadd.f32 %v2126, %v2168
        %v2170 = vpop.f32.mrb[0].mxu0
        %v2171 = vadd.f32 %v2128, %v2170
        %v2172 = vpop.f32.mrb[0].mxu0
        %v2173 = vadd.f32 %v2130, %v2172
        %v2174 = vpop.f32.mrb[0].mxu0
        %v2175 = vadd.f32 %v2132, %v2174
        %2176 = vdwg.mxu0
        %2177 = vmatprep.subr.bf16.mxu0 %v1709
        %2178 = vmatpush1.bf16.msra.mxu0 %v1708
        %2179 = vmatprep.subr.bf16.mxu0 %v1713
        %2180 = vmatpush1.bf16.msra.mxu0 %v1712
        %2181 = vmatprep.subr.bf16.mxu0 %v1717
        %2182 = vmatpush1.bf16.msra.mxu0 %v1716
        %2183 = vmatprep.subr.bf16.mxu0 %v1721
        %2184 = vmatpush1.bf16.msra.mxu0 %v1720
        %2185 = vmatprep.subr.bf16.mxu0 %v1725
        %2186 = vmatpush1.bf16.msra.mxu0 %v1724
        %2187 = vmatprep.subr.bf16.mxu0 %v1729
        %2188 = vmatpush1.bf16.msra.mxu0 %v1728
        %2189 = vmatprep.subr.bf16.mxu0 %v1733
        %2190 = vmatpush1.bf16.msra.mxu0 %v1732
        %2191 = vmatprep.subr.bf16.mxu0 %v1737
        %2192 = vmatpush1.bf16.msra.mxu0 %v1736
        %2193 = vmatprep.subr.bf16.mxu0 %v1741
        %2194 = vmatpush1.bf16.msra.mxu0 %v1740
        %2195 = vmatprep.subr.bf16.mxu0 %v1745
        %2196 = vmatpush1.bf16.msra.mxu0 %v1744
        %2197 = vmatprep.subr.bf16.mxu0 %v1749
        %2198 = vmatpush1.bf16.msra.mxu0 %v1748
        %2199 = vmatprep.subr.bf16.mxu0 %v1753
        %2200 = vmatpush1.bf16.msra.mxu0 %v1752
        %2201 = vmatprep.subr.bf16.mxu0 %v1757
        %2202 = vmatpush1.bf16.msra.mxu0 %v1756
        %2203 = vmatprep.subr.bf16.mxu0 %v1761
        %2204 = vmatpush1.bf16.msra.mxu0 %v1760
        %2205 = vmatprep.subr.bf16.mxu0 %v1765
        %2206 = vmatpush1.bf16.msra.mxu0 %v1764
        %2207 = vmatprep.subr.bf16.mxu0 %v1769
        %2208 = vmatpush1.bf16.msra.mxu0 %v1768
        %2209 = vmatprep.mubr.bf16.mxu0 %v995
        %2210 = vmatmul.mubr.bf16.gmra.mrb[0].mxu0 %v994
        %v2211 = vpop.f32.mrb[0].mxu0
        %v2212 = vadd.f32 %v2169, %v2211
        %v2213 = vpop.f32.mrb[0].mxu0
        %v2214 = vadd.f32 %v2171, %v2213
        %v2215 = vpop.f32.mrb[0].mxu0
        %v2216 = vadd.f32 %v2173, %v2215
        %v2217 = vpop.f32.mrb[0].mxu0
        %v2218 = vadd.f32 %v2175, %v2217
        %2219 = vdwg.mxu0
        %2220 = vst [vmem:[%s566] sm:$0xff] %v2083
        %2221 = vst [vmem:[%s566 + $0x8] sm:$0xff] %v2085
        %2222 = vst [vmem:[%s566 + $0x10] sm:$0xff] %v2212
        %2223 = vst [vmem:[%s566 + $0x18] sm:$0xff] %v2214
        %2224 = vst [vmem:[%s566 + $0x20] sm:$0xff] %v2087
        %2225 = vst [vmem:[%s566 + $0x28] sm:$0xff] %v2089
        %2226 = vst [vmem:[%s566 + $0x30] sm:$0xff] %v2216
        %2227 = vst [vmem:[%s566 + $0x38] sm:$0xff] %v2218
        %s2228 = sand.u32 %s90, 1
        %s2229 = sand.u32 %s90, 1
        %s2230 = smul.addr %s2229, 64
        %s2231 = scalar_lea.vmem [#allocation3], %s2230
        // Predicated region
        $region56: #{unet3d_forward.19} parent=50 // pred_check
          %p2232 = pneg %p100
        $region57: #{unet3d_forward.19} parent=50 // pred_check_branch
          %2234 = sbr.rel (%p2232) target = $region59
        $region58: #{unet3d_forward.19} parent=50 // pred_region
          %s2235 = smul.u32 4, %s14
          %s2236 = smul.addr %s2235, 8
          %s2237 = scalar_lea.vmem %s3, %s2236
          // Predicated region
          $region60: #{unet3d_forward.19} parent=58 // pred_check
            _
          $region61: #{unet3d_forward.19} parent=58 // pred_check_branch
            %2239 = sbr.rel (0) target = $region63
          $region62: #{unet3d_forward.19} parent=58 // pred_region
            // Predicated region
            $region64: #{unet3d_forward.19} parent=62 // pred_check
              _
            $region65: #{unet3d_forward.19} parent=62 // pred_check_branch
              %2241 = sbr.rel (0) target = $region67
            $region66: #{unet3d_forward.19} parent=62 // pred_region
              loop: start=0, step=1, limit=1
              $region68: #{unet3d_forward.19} parent=66 // loop_pre_header
                _
              $region69: #{unet3d_forward.19} parent=66 // loop_header
                %s2243 = sphi 0, %s2247
                %p2244 = scmp.ge.s32.totalorder %s2243, 1
                %s2248 = sphi %s2231, %s2231
                %s2249 = sphi %s2237, %s2237
              $region70: #{unet3d_forward.19} parent=66 // loop_header_branch
                %2246 = sbr.rel (%p2244) target = $region74
              $region71: #{unet3d_forward.19} parent=66 // loop_body
                %v2250 = vld [vmem:[%s2248] sm:$0xff]
                %2251 = vst [vmem:[%s2249] sm:$0xff] %v2250
                %v2252 = vld [vmem:[%s2248 + $0x8] sm:$0xff]
                %2253 = vst [vmem:[%s2249 + $0x8] sm:$0xff] %v2252
                %v2254 = vld [vmem:[%s2248 + $0x10] sm:$0xff]
                %2255 = vst [vmem:[%s2249 + $0x10] sm:$0xff] %v2254
                %v2256 = vld [vmem:[%s2248 + $0x18] sm:$0xff]
                %2257 = vst [vmem:[%s2249 + $0x18] sm:$0xff] %v2256
                %v2258 = vld [vmem:[%s2248 + $0x20] sm:$0xff]
                %2259 = vst [vmem:[%s2249 + $0x80] sm:$0xff] %v2258
                %v2260 = vld [vmem:[%s2248 + $0x28] sm:$0xff]
                %2261 = vst [vmem:[%s2249 + $0x88] sm:$0xff] %v2260
                %v2262 = vld [vmem:[%s2248 + $0x30] sm:$0xff]
                %2263 = vst [vmem:[%s2249 + $0x90] sm:$0xff] %v2262
                %v2264 = vld [vmem:[%s2248 + $0x38] sm:$0xff]
                %2265 = vst [vmem:[%s2249 + $0x98] sm:$0xff] %v2264
              $region72: #{unet3d_forward.19} parent=66 // loop_footer
                %s2247 = sadd.s32 1, %s2243
              $region73: #{unet3d_forward.19} parent=66 // loop_footer_branch
                %2242 = sbr.rel target = $region69
              $region74: #{unet3d_forward.19} parent=66 // loop_exit
                _
            $region67: #{unet3d_forward.19} parent=62 // pred_fallthru
              _
            // Predicated region
            $region75: #{unet3d_forward.19} parent=62 // pred_check
              _
            $region76: #{unet3d_forward.19} parent=62 // pred_check_branch
              %2267 = sbr.rel target = $region78
            $region77: #{unet3d_forward.19} parent=62 // pred_region
              _
            $region78: #{unet3d_forward.19} parent=62 // pred_fallthru
              _
          $region63: #{unet3d_forward.19} parent=58 // pred_fallthru
            _
          %2268 = vnop
        $region59: #{unet3d_forward.19} parent=50 // pred_fallthru
          _
      $region51: #{unet3d_forward.19} parent=5 // pred_fallthru
        _
      %p2269 = scmp.le.s32.totalorder 2, %s9
      // Predicated region
      $region79: #{unet3d_forward.19} parent=5 // pred_check
        %p2270 = pneg %p2269
      $region80: #{unet3d_forward.19} parent=5 // pred_check_branch
        %2272 = sbr.rel (%p2270) target = $region82
      $region81: #{unet3d_forward.19} parent=5 // pred_region
        %s2273 = ssub.s32 %s9, 2
        // Predicated region
        $region83: #{unet3d_forward.19} parent=81 // pred_check
          %p2274 = pneg %p106
        $region84: #{unet3d_forward.19} parent=81 // pred_check_branch
          %2276 = sbr.rel (%p2274) target = $region86
        $region85: #{unet3d_forward.19} parent=81 // pred_region
          %s2277 = sand.u32 %s91, 1
          %s2278 = sand.u32 %s91, 1
          %s2279 = smul.addr %s2278, 64
          %s2280 = scalar_lea.vmem [#allocation3], %s2279
        $region86: #{unet3d_forward.19} parent=81 // pred_fallthru
          _
      $region82: #{unet3d_forward.19} parent=5 // pred_fallthru
        _
    $region6: #{unet3d_forward.19} parent=1 // loop_footer
      %s13 = sadd.s32 1, %s9
    $region7: #{unet3d_forward.19} parent=1 // loop_footer_branch
      %8 = sbr.rel target = $region3
    $region8: #{unet3d_forward.19} parent=1 // loop_exit
      _

</llo_original>
